<compile_context>
chip_gen: v5e
topology: v5e:2x2
jax: 0.10.0
libtpu: 0.0.40
codegen_flags: <defaults>
</compile_context>

<pallas_src>
import jax
import jax.numpy as jnp
from jax.experimental import pallas as pl
from jax.experimental.pallas import tpu as pltpu


# ----------------------------------------------------------------------------
# Kernel
# ----------------------------------------------------------------------------
def _make_kernel(*, C, L):
    """C = W + 2 (padded row width), L = TH * C (flat output rows per strip)."""

    def kernel(x_ref, m_ref, w1_ref, b1_ref, w2_ref, b2_ref, w3_ref, b3_ref,
               o_ref):
        # Input strip (flat rows x channels), bf16.
        x = x_ref[...]                                             # (RC, Cs)

        # ---- conv1 (1x1) + folded bn1 + relu over the whole padded strip ----
        # One MXU matmul; spatially padded positions are then zeroed with the
        # (RC, 1) valid-mask so that they act as conv2's zero padding.
        h = jnp.dot(x, w1_ref[...], preferred_element_type=jnp.float32)
        h = jnp.maximum(h + b1_ref[...], 0.0)
        hb = (h * m_ref[...]).astype(jnp.bfloat16)                 # (RC, Pp) bf16

        # ---- conv2 (3x3, pad=1) + folded bn2 + relu : ONE im2col matmul ----
        # In flat row-major coords (row stride C) tap (ky,kx) of a slab of L
        # consecutive output positions (starting at flat offset C+1) is the
        # contiguous row range hb[ky*C+kx : ky*C+kx+L] -> 9 contiguous bf16
        # slices concatenated once, then one MXU matmul with K = 9*Pp.
        slab = jnp.concatenate(
            [hb[ky * C + kx: ky * C + kx + L]
             for ky in range(3) for kx in range(3)],
            axis=1)                                                # (L, 9*Pp) bf16
        h2 = jnp.dot(slab, w2_ref[...],
                     preferred_element_type=jnp.float32)           # (L, Pp)
        h2 = jnp.maximum(h2 + b2_ref[...], 0.0).astype(jnp.bfloat16)

        # ---- conv3 (1x1) + folded bn3, residual add, relu, store -----------
        # Residual is sliced straight from the input strip (same flat layout
        # as the conv output rows), so no separate residual stream is read.
        h3 = jnp.dot(h2, w3_ref[...],
                     preferred_element_type=jnp.float32)           # (L, Co)
        res = x[C + 1: C + 1 + L, :]                               # (L, Co) bf16
        o_ref[...] = jnp.maximum(h3 + b3_ref[...] + res.astype(jnp.float32),
                                 0.0).astype(o_ref.dtype)

    return kernel


# ----------------------------------------------------------------------------
# VMEM budgeting / tile selection
# ----------------------------------------------------------------------------
def _vmem_capacity_bytes():
    try:
        return int(pltpu.get_tpu_info().vmem_capacity_bytes)
    except Exception:
        return 64 << 20  # conservative: v7x per-TensorCore VMEM


def _pick_tile_h(H, C, Cs, Pp, Co, budget):
    """Largest divisor of H whose estimated per-strip VMEM footprint fits."""
    TH = 1
    for cand in range(H, 0, -1):
        if H % cand:
            continue
        TH = cand
        R, L = cand + 3, cand * C
        RC = R * C
        est = (RC * Cs * 2 * 2                                 # x strip (bf16, 2-buf)
               + RC * 4 * 2                                    # pad mask
               + L * Co * 4 * 2                                # output (f32, 2-buf)
               + (Cs * Pp + 9 * Pp * Pp + Pp * Co) * 2         # weights (bf16, 1-buf)
               + (2 * Pp + Co) * 4                             # biases
               + RC * Pp * 6                                   # conv1 act (f32 + bf16)
               + L * 9 * Pp * 2                                # im2col slab (bf16)
               + L * Pp * 6 + L * Co * 6)                      # conv2/3 temps + residual
        if est <= budget:
            return cand
    return TH


# ----------------------------------------------------------------------------
# Wrapper
# ----------------------------------------------------------------------------
def bottleneck_baseline(x_nhwc, kp, *, tile_h=None):
    """x_nhwc: (N, H, W, Cin) float32.  Returns (N, H, W, Cin) float32."""
    N, H, W, Cin = x_nhwc.shape
    w1, b1, w2, b2, w3, b3 = kp["w1"], kp["b1"], kp["w2"], kp["b2"], kp["w3"], kp["b3"]
    Cout = kp["cout"]
    assert kp["cin"] == Cin
    assert Cout == Cin, "downsample=None requires inplanes == planes*expansion"

    Cs, Pp = w1.shape                 # padded input channels, padded planes
    Co = w3.shape[1]                  # padded output channels
    assert Cs == Co, "residual is sliced from the input strip -> Cs must equal Co"

    cap = _vmem_capacity_bytes()
    vmem_limit = max(32 << 20, min(int(cap * 0.85), 112 << 20))

    C = W + 2                         # padded row width
    if tile_h is None:
        TH = _pick_tile_h(H, C, Cs, Pp, Co, budget=int(vmem_limit * 0.75))
    else:
        assert H % tile_h == 0, "tile_h must divide H"
        TH = tile_h
    nH = H // TH
    R = TH + 3                        # strip rows: 1 top halo + TH + bottom halo + tail
    RC = R * C
    L = TH * C                        # flat conv2/conv3 rows per strip
    assert RC >= L + 2 * C + 2        # last im2col tap stays in bounds

    # --- wrapper-side layout plumbing (pure XLA, once per call) ---------------
    # Channel-pad with zeros, spatially zero-pad, cast bf16, slice row strips.
    xs = jnp.pad(x_nhwc, ((0, 0), (1, 2), (1, 1), (0, Cs - Cin))
                 ).astype(jnp.bfloat16)                            # (N, H+3, W+2, Cs)
    strips = jnp.stack([xs[:, i * TH: i * TH + R] for i in range(nH)], axis=1)
    strips = strips.reshape(N, nH, RC, Cs)

    # Per-strip valid-mask (1.0 at real pixels, 0.0 at spatial zero padding).
    rvalid = (jnp.arange(H + 3) >= 1) & (jnp.arange(H + 3) <= H)
    cvalid = (jnp.arange(C) >= 1) & (jnp.arange(C) <= W)
    valid = (rvalid[:, None] & cvalid[None, :]).astype(jnp.float32)  # (H+3, C)
    mask = jnp.stack([valid[i * TH: i * TH + R] for i in range(nH)], axis=0)
    mask = mask.reshape(nH, RC, 1)

    kern = _make_kernel(C=C, L=L)

    def call(weight_pipeline_mode):
        def wspec(shape):
            idx = lambda n, i, _s=shape: (0,) * len(_s)
            if weight_pipeline_mode is None:
                return pl.BlockSpec(shape, idx)
            return pl.BlockSpec(shape, idx, pipeline_mode=weight_pipeline_mode)

        return pl.pallas_call(
            kern,
            out_shape=jax.ShapeDtypeStruct((N, nH, L, Co), jnp.float32),
            grid_spec=pltpu.PrefetchScalarGridSpec(
                num_scalar_prefetch=0,
                grid=(N, nH),
                in_specs=[
                    pl.BlockSpec((None, None, RC, Cs), lambda n, i: (n, i, 0, 0)),  # x strips
                    pl.BlockSpec((None, RC, 1), lambda n, i: (i, 0, 0)),            # pad mask
                    wspec((Cs, Pp)),        # w1 (folded, bf16)
                    wspec((1, Pp)),         # b1
                    wspec((9 * Pp, Pp)),    # w2 im2col (bf16)
                    wspec((1, Pp)),         # b2
                    wspec((Pp, Co)),        # w3 (folded, bf16)
                    wspec((1, Co)),         # b3
                ],
                out_specs=pl.BlockSpec((None, None, L, Co), lambda n, i: (n, i, 0, 0)),
            ),
            compiler_params=pltpu.CompilerParams(
                dimension_semantics=("parallel", "parallel"),
                vmem_limit_bytes=vmem_limit),
        )(strips, mask, w1, b1, w2, b2, w3, b3)

    try:
        # Single-buffer the constant weight/bias operands (index_map is constant).
        out_flat = call(pl.Buffered(1))
    except Exception:
        # Fallback for Pallas builds that reject Buffered(1): default buffering.
        out_flat = call(None)

    # Drop junk padded columns + channel padding, back to (N, H, W, Cout).
    out = out_flat.reshape(N, nH, TH, C, Co)[:, :, :, :W, :Cout]
    return out.reshape(N, H, W, Cout)


# ----------------------------------------------------------------------------
# Parameter preparation (host side, once)
# ----------------------------------------------------------------------------
def _fold_bn(gamma, beta, mean, var, eps=1e-5):
    scale = gamma / jnp.sqrt(var + eps)
    bias = beta - mean * scale
    return scale, bias


def _pack_params(raw, lane=128):
    """Fold BN into conv weights, pad channels to multiples of 128, cast bf16."""
    w1_oihw, w2_oihw, w3_oihw, bn1, bn2, bn3 = raw
    s1, b1 = _fold_bn(*bn1)
    s2, b2 = _fold_bn(*bn2)
    s3, b3 = _fold_bn(*bn3)

    # BN scale folded into the conv output channels.
    w1 = w1_oihw[:, :, 0, 0].T * s1[None, :]                              # (Cin, P)
    w2 = jnp.transpose(w2_oihw, (2, 3, 1, 0)) * s2[None, None, None, :]   # (3,3,P,P) HWIO
    w3 = w3_oihw[:, :, 0, 0].T * s3[None, :]                              # (P, Cout)

    Cin, P = w1.shape
    Cout = w3.shape[1]
    rnd = lambda n: max(lane, ((n + lane - 1) // lane) * lane)
    Pp, Co, Cs = rnd(P), rnd(Cout), rnd(Cin)

    w1k = jnp.zeros((Cs, Pp), jnp.float32).at[:Cin, :P].set(w1)
    w2k = jnp.zeros((3, 3, Pp, Pp), jnp.float32).at[:, :, :P, :P].set(w2).reshape(9 * Pp, Pp)
    w3k = jnp.zeros((Pp, Co), jnp.float32).at[:P, :Cout].set(w3)
    b1k = jnp.zeros((1, Pp), jnp.float32).at[0, :P].set(b1)
    b2k = jnp.zeros((1, Pp), jnp.float32).at[0, :P].set(b2)
    b3k = jnp.zeros((1, Co), jnp.float32).at[0, :Cout].set(b3)

    kparams = dict(w1=w1k.astype(jnp.bfloat16), b1=b1k,
                   w2=w2k.astype(jnp.bfloat16), b2=b2k,
                   w3=w3k.astype(jnp.bfloat16), b3=b3k,
                   cin=Cin, cout=Cout)
    refparams = (w1.astype(jnp.bfloat16), b1, w2.astype(jnp.bfloat16), b2,
                 w3.astype(jnp.bfloat16), b3)
    return kparams, refparams


def _init_raw_params(key, inplanes, planes, expansion=4):
    ks = jax.random.split(key, 6)
    w1 = jax.random.normal(ks[0], (planes, inplanes, 1, 1), jnp.float32) * 0.1
    w2 = jax.random.normal(ks[1], (planes, planes, 3, 3), jnp.float32) * 0.1
    w3 = jax.random.normal(ks[2], (planes * expansion, planes, 1, 1), jnp.float32) * 0.1

    def bn(k, c):
        kg, kb, km, kv = jax.random.split(k, 4)
        gamma = jax.random.uniform(kg, (c,), jnp.float32, 0.5, 1.5)
        beta = jax.random.normal(kb, (c,), jnp.float32) * 0.1
        mean = jax.random.normal(km, (c,), jnp.float32) * 0.1
        var = jax.random.uniform(kv, (c,), jnp.float32, 0.5, 1.5)
        return gamma, beta, mean, var

    return w1, w2, w3, bn(ks[3], planes), bn(ks[4], planes), bn(ks[5], planes * expansion)


# ----------------------------------------------------------------------------
# Pure-JAX reference (same bf16 matmul inputs / f32 accumulation as the kernel)
# ----------------------------------------------------------------------------
def _reference(x_nhwc, refp):
    w1, b1, w2, b2, w3, b3 = refp
    Cin, P = w1.shape
    Cout = w3.shape[1]

    def conv(h, w_hwio, pad):
        return jax.lax.conv_general_dilated(
            h.astype(jnp.bfloat16), w_hwio, (1, 1),
            [(pad, pad), (pad, pad)],
            dimension_numbers=("NHWC", "HWIO", "NHWC"),
            preferred_element_type=jnp.float32)

    h = jnp.maximum(conv(x_nhwc, w1.reshape(1, 1, Cin, P), 0) + b1.reshape(1, 1, 1, -1), 0.0)
    h = jnp.maximum(conv(h, w2, 1) + b2.reshape(1, 1, 1, -1), 0.0)
    h = conv(h, w3.reshape(1, 1, P, Cout), 0) + b3.reshape(1, 1, 1, -1)
    return jnp.maximum(h + x_nhwc, 0.0)


# ----------------------------------------------------------------------------
if __name__ == "__main__":
    key = jax.random.PRNGKey(0)
    kx, kp = jax.random.split(key)

    # inplanes == planes * expansion  (downsample=None path of the module)
    N, inplanes, planes, H, W = 2, 16, 4, 16, 16
    x_nchw = jax.random.normal(kx, (N, inplanes, H, W), jnp.float32)
    x_nhwc = jnp.transpose(x_nchw, (0, 2, 3, 1))

    raw = _init_raw_params(kp, inplanes, planes)
    kparams, refparams = _pack_params(raw)

    out = bottleneck_baseline(x_nhwc, kparams)      # auto (VMEM-budgeted) tile_h
    out = jax.block_until_ready(out)

    ref = _reference(x_nhwc, refparams)
    assert out.shape == (N, H, W, inplanes)
    max_diff = float(jnp.max(jnp.abs(out - ref)))
    assert jnp.allclose(out, ref, atol=2e-2, rtol=2e-2), (
        "mismatch vs JAX reference: max |diff| = %g" % max_diff)

    print("KERNEL_OK")
</pallas_src>

<mosaic_0001>
module attributes {stable_mosaic.version = 11 : i64} {
  func.func @kernel(%arg0: i32, %arg1: i32, %arg2: memref<1x1x342x128xbf16, #tpu.memory_space<vmem>>, %arg3: memref<1x342x1xf32, #tpu.memory_space<vmem>>, %arg4: memref<128x128xbf16, #tpu.memory_space<vmem>>, %arg5: memref<1x128xf32, #tpu.memory_space<vmem>>, %arg6: memref<1152x128xbf16, #tpu.memory_space<vmem>>, %arg7: memref<1x128xf32, #tpu.memory_space<vmem>>, %arg8: memref<128x128xbf16, #tpu.memory_space<vmem>>, %arg9: memref<1x128xf32, #tpu.memory_space<vmem>>, %arg10: memref<1x1x288x128xf32, #tpu.memory_space<vmem>>) attributes {dimension_semantics = [#tpu.dimension_semantics<parallel>, #tpu.dimension_semantics<parallel>], iteration_bounds = array<i64: 2, 1>, scalar_prefetch = 0 : i64, scratch_operands = 0 : i64, tpu.core_type = #tpu.core_type<tc>, window_params = [{transform_indices = @transform_0, window_bounds = array<i64: 1, 1, 342, 128>}, {transform_indices = @transform_1, window_bounds = array<i64: 1, 342, 1>}, {pipeline_mode = #tpu.pipeline_mode<synchronous>, transform_indices = @transform_2, window_bounds = array<i64: 128, 128>}, {pipeline_mode = #tpu.pipeline_mode<synchronous>, transform_indices = @transform_3, window_bounds = array<i64: 1, 128>}, {pipeline_mode = #tpu.pipeline_mode<synchronous>, transform_indices = @transform_4, window_bounds = array<i64: 1152, 128>}, {pipeline_mode = #tpu.pipeline_mode<synchronous>, transform_indices = @transform_5, window_bounds = array<i64: 1, 128>}, {pipeline_mode = #tpu.pipeline_mode<synchronous>, transform_indices = @transform_6, window_bounds = array<i64: 128, 128>}, {pipeline_mode = #tpu.pipeline_mode<synchronous>, transform_indices = @transform_7, window_bounds = array<i64: 1, 128>}, {transform_indices = @transform_8, window_bounds = array<i64: 1, 1, 288, 128>}]} {
    %c0 = arith.constant 0 : index
    %c0_0 = arith.constant 0 : index
    %c0_1 = arith.constant 0 : index
    %c0_2 = arith.constant 0 : index
    %0 = vector.load %arg2[%c0, %c0_0, %c0_1, %c0_2] : memref<1x1x342x128xbf16, #tpu.memory_space<vmem>>, vector<1x1x342x128xbf16>
    %1 = vector.shape_cast %0 : vector<1x1x342x128xbf16> to vector<342x128xbf16>
    %c0_3 = arith.constant 0 : index
    %c0_4 = arith.constant 0 : index
    %2 = vector.load %arg4[%c0_3, %c0_4] : memref<128x128xbf16, #tpu.memory_space<vmem>>, vector<128x128xbf16>
    %cst = arith.constant dense<0.000000e+00> : vector<342x128xf32>
    %3 = tpu.matmul %1, %2, %cst {dimension_numbers = #tpu.dot_dimension_numbers<[1], [0], [0], [1], [0, 0, 1, 1], [], []>} : vector<342x128xbf16>, vector<128x128xbf16>, vector<342x128xf32> -> vector<342x128xf32>
    %c0_5 = arith.constant 0 : index
    %c0_6 = arith.constant 0 : index
    %4 = vector.load %arg5[%c0_5, %c0_6] : memref<1x128xf32, #tpu.memory_space<vmem>>, vector<1x128xf32>
    %5 = vector.broadcast %4 : vector<1x128xf32> to vector<342x128xf32>
    %6 = arith.addf %3, %5 : vector<342x128xf32>
    %cst_7 = arith.constant 0.000000e+00 : f32
    %7 = vector.broadcast %cst_7 : f32 to vector<342x128xf32>
    %8 = arith.maximumf %6, %7 : vector<342x128xf32>
    %c0_8 = arith.constant 0 : index
    %c0_9 = arith.constant 0 : index
    %c0_10 = arith.constant 0 : index
    %9 = vector.load %arg3[%c0_8, %c0_9, %c0_10] : memref<1x342x1xf32, #tpu.memory_space<vmem>>, vector<1x342x1xf32>
    %10 = vector.shape_cast %9 : vector<1x342x1xf32> to vector<342x1xf32>
    %11 = vector.broadcast %10 : vector<342x1xf32> to vector<342x128xf32>
    %12 = arith.mulf %8, %11 : vector<342x128xf32>
    %13 = arith.truncf %12 : vector<342x128xf32> to vector<342x128xbf16>
    %14 = vector.extract_strided_slice %13 {offsets = [0, 0], sizes = [288, 128], strides = [1, 1]} : vector<342x128xbf16> to vector<288x128xbf16>
    %15 = vector.extract_strided_slice %13 {offsets = [1, 0], sizes = [288, 128], strides = [1, 1]} : vector<342x128xbf16> to vector<288x128xbf16>
    %16 = vector.extract_strided_slice %13 {offsets = [2, 0], sizes = [288, 128], strides = [1, 1]} : vector<342x128xbf16> to vector<288x128xbf16>
    %17 = vector.extract_strided_slice %13 {offsets = [18, 0], sizes = [288, 128], strides = [1, 1]} : vector<342x128xbf16> to vector<288x128xbf16>
    %18 = vector.extract_strided_slice %13 {offsets = [19, 0], sizes = [288, 128], strides = [1, 1]} : vector<342x128xbf16> to vector<288x128xbf16>
    %19 = vector.extract_strided_slice %13 {offsets = [20, 0], sizes = [288, 128], strides = [1, 1]} : vector<342x128xbf16> to vector<288x128xbf16>
    %20 = vector.extract_strided_slice %13 {offsets = [36, 0], sizes = [288, 128], strides = [1, 1]} : vector<342x128xbf16> to vector<288x128xbf16>
    %21 = vector.extract_strided_slice %13 {offsets = [37, 0], sizes = [288, 128], strides = [1, 1]} : vector<342x128xbf16> to vector<288x128xbf16>
    %22 = vector.extract_strided_slice %13 {offsets = [38, 0], sizes = [288, 128], strides = [1, 1]} : vector<342x128xbf16> to vector<288x128xbf16>
    %23 = tpu.concatenate %14, %15, %16, %17, %18, %19, %20, %21, %22 in 1 : vector<288x128xbf16>, vector<288x128xbf16>, vector<288x128xbf16>, vector<288x128xbf16>, vector<288x128xbf16>, vector<288x128xbf16>, vector<288x128xbf16>, vector<288x128xbf16>, vector<288x128xbf16> -> vector<288x1152xbf16>
    %c0_11 = arith.constant 0 : index
    %c0_12 = arith.constant 0 : index
    %24 = vector.load %arg6[%c0_11, %c0_12] : memref<1152x128xbf16, #tpu.memory_space<vmem>>, vector<1152x128xbf16>
    %cst_13 = arith.constant dense<0.000000e+00> : vector<288x128xf32>
    %25 = tpu.matmul %23, %24, %cst_13 {dimension_numbers = #tpu.dot_dimension_numbers<[1], [0], [0], [1], [0, 0, 1, 1], [], []>} : vector<288x1152xbf16>, vector<1152x128xbf16>, vector<288x128xf32> -> vector<288x128xf32>
    %c0_14 = arith.constant 0 : index
    %c0_15 = arith.constant 0 : index
    %26 = vector.load %arg7[%c0_14, %c0_15] : memref<1x128xf32, #tpu.memory_space<vmem>>, vector<1x128xf32>
    %27 = vector.broadcast %26 : vector<1x128xf32> to vector<288x128xf32>
    %28 = arith.addf %25, %27 : vector<288x128xf32>
    %cst_16 = arith.constant 0.000000e+00 : f32
    %29 = vector.broadcast %cst_16 : f32 to vector<288x128xf32>
    %30 = arith.maximumf %28, %29 : vector<288x128xf32>
    %31 = arith.truncf %30 : vector<288x128xf32> to vector<288x128xbf16>
    %c0_17 = arith.constant 0 : index
    %c0_18 = arith.constant 0 : index
    %32 = vector.load %arg8[%c0_17, %c0_18] : memref<128x128xbf16, #tpu.memory_space<vmem>>, vector<128x128xbf16>
    %cst_19 = arith.constant dense<0.000000e+00> : vector<288x128xf32>
    %33 = tpu.matmul %31, %32, %cst_19 {dimension_numbers = #tpu.dot_dimension_numbers<[1], [0], [0], [1], [0, 0, 1, 1], [], []>} : vector<288x128xbf16>, vector<128x128xbf16>, vector<288x128xf32> -> vector<288x128xf32>
    %34 = vector.extract_strided_slice %1 {offsets = [19, 0], sizes = [288, 128], strides = [1, 1]} : vector<342x128xbf16> to vector<288x128xbf16>
    %c0_20 = arith.constant 0 : index
    %c0_21 = arith.constant 0 : index
    %35 = vector.load %arg9[%c0_20, %c0_21] : memref<1x128xf32, #tpu.memory_space<vmem>>, vector<1x128xf32>
    %36 = vector.broadcast %35 : vector<1x128xf32> to vector<288x128xf32>
    %37 = arith.addf %33, %36 : vector<288x128xf32>
    %38 = arith.extf %34 : vector<288x128xbf16> to vector<288x128xf32>
    %39 = arith.addf %37, %38 : vector<288x128xf32>
    %cst_22 = arith.constant 0.000000e+00 : f32
    %40 = vector.broadcast %cst_22 : f32 to vector<288x128xf32>
    %41 = arith.maximumf %39, %40 : vector<288x128xf32>
    %c0_23 = arith.constant 0 : index
    %c0_24 = arith.constant 0 : index
    %c0_25 = arith.constant 0 : index
    %c0_26 = arith.constant 0 : index
    %42 = vector.load %arg10[%c0_23, %c0_24, %c0_25, %c0_26] : memref<1x1x288x128xf32, #tpu.memory_space<vmem>>, vector<1x1x288x128xf32>
    %43 = vector.shape_cast %42 : vector<1x1x288x128xf32> to vector<288x128xf32>
    %44 = vector.shape_cast %41 : vector<288x128xf32> to vector<1x1x288x128xf32>
    tpu.vector_store %arg10[%c0_23, %c0_24, %c0_25, %c0_26], %44 {strides = array<i32>} : memref<1x1x288x128xf32, #tpu.memory_space<vmem>>, vector<1x1x288x128xf32>,
    return
  }
  func.func @transform_0(%arg0: i32, %arg1: i32) -> (i32, i32, i32, i32) {
    %c0_i32 = arith.constant 0 : i32
    %c0_i32_0 = arith.constant 0 : i32
    %c0_i32_1 = arith.constant 0 : i32
    return %arg0, %arg1, %c0_i32, %c0_i32_0 : i32, i32, i32, i32
  }
  func.func @transform_1(%arg0: i32, %arg1: i32) -> (i32, i32, i32) {
    %c0_i32 = arith.constant 0 : i32
    %c0_i32_0 = arith.constant 0 : i32
    %c0_i32_1 = arith.constant 0 : i32
    return %arg1, %c0_i32, %c0_i32_0 : i32, i32, i32
  }
  func.func @transform_2(%arg0: i32, %arg1: i32) -> (i32, i32) {
    %c0_i32 = arith.constant 0 : i32
    %c0_i32_0 = arith.constant 0 : i32
    %c0_i32_1 = arith.constant 0 : i32
    return %c0_i32, %c0_i32_0 : i32, i32
  }
  func.func @transform_3(%arg0: i32, %arg1: i32) -> (i32, i32) {
    %c0_i32 = arith.constant 0 : i32
    %c0_i32_0 = arith.constant 0 : i32
    %c0_i32_1 = arith.constant 0 : i32
    return %c0_i32, %c0_i32_0 : i32, i32
  }
  func.func @transform_4(%arg0: i32, %arg1: i32) -> (i32, i32) {
    %c0_i32 = arith.constant 0 : i32
    %c0_i32_0 = arith.constant 0 : i32
    %c0_i32_1 = arith.constant 0 : i32
    return %c0_i32, %c0_i32_0 : i32, i32
  }
  func.func @transform_5(%arg0: i32, %arg1: i32) -> (i32, i32) {
    %c0_i32 = arith.constant 0 : i32
    %c0_i32_0 = arith.constant 0 : i32
    %c0_i32_1 = arith.constant 0 : i32
    return %c0_i32, %c0_i32_0 : i32, i32
  }
  func.func @transform_6(%arg0: i32, %arg1: i32) -> (i32, i32) {
    %c0_i32 = arith.constant 0 : i32
    %c0_i32_0 = arith.constant 0 : i32
    %c0_i32_1 = arith.constant 0 : i32
    return %c0_i32, %c0_i32_0 : i32, i32
  }
  func.func @transform_7(%arg0: i32, %arg1: i32) -> (i32, i32) {
    %c0_i32 = arith.constant 0 : i32
    %c0_i32_0 = arith.constant 0 : i32
    %c0_i32_1 = arith.constant 0 : i32
    return %c0_i32, %c0_i32_0 : i32, i32
  }
  func.func @transform_8(%arg0: i32, %arg1: i32) -> (i32, i32, i32, i32) {
    %c0_i32 = arith.constant 0 : i32
    %c0_i32_0 = arith.constant 0 : i32
    %c0_i32_1 = arith.constant 0 : i32
    return %arg0, %arg1, %c0_i32, %c0_i32_0 : i32, i32, i32, i32
  }
}

module attributes {stable_mosaic.version = 11 : i64} {
  func.func @kernel(%arg0: i32, %arg1: i32, %arg2: memref<1x1x342x128xbf16, #tpu.memory_space<vmem>>, %arg3: memref<1x342x1xf32, #tpu.memory_space<vmem>>, %arg4: memref<128x128xbf16, #tpu.memory_space<vmem>>, %arg5: memref<1x128xf32, #tpu.memory_space<vmem>>, %arg6: memref<1152x128xbf16, #tpu.memory_space<vmem>>, %arg7: memref<1x128xf32, #tpu.memory_space<vmem>>, %arg8: memref<128x128xbf16, #tpu.memory_space<vmem>>, %arg9: memref<1x128xf32, #tpu.memory_space<vmem>>, %arg10: memref<1x1x288x128xf32, #tpu.memory_space<vmem>>) attributes {dimension_semantics = [#tpu.dimension_semantics<parallel>, #tpu.dimension_semantics<parallel>], iteration_bounds = array<i64: 2, 1>, scalar_prefetch = 0 : i64, scratch_operands = 0 : i64, tpu.core_type = #tpu.core_type<tc>, window_params = [{transform_indices = @transform_0, window_bounds = array<i64: 1, 1, 342, 128>}, {transform_indices = @transform_1, window_bounds = array<i64: 1, 342, 1>}, {pipeline_mode = #tpu.pipeline_mode<synchronous>, transform_indices = @transform_2, window_bounds = array<i64: 128, 128>}, {pipeline_mode = #tpu.pipeline_mode<synchronous>, transform_indices = @transform_3, window_bounds = array<i64: 1, 128>}, {pipeline_mode = #tpu.pipeline_mode<synchronous>, transform_indices = @transform_4, window_bounds = array<i64: 1152, 128>}, {pipeline_mode = #tpu.pipeline_mode<synchronous>, transform_indices = @transform_5, window_bounds = array<i64: 1, 128>}, {pipeline_mode = #tpu.pipeline_mode<synchronous>, transform_indices = @transform_6, window_bounds = array<i64: 128, 128>}, {pipeline_mode = #tpu.pipeline_mode<synchronous>, transform_indices = @transform_7, window_bounds = array<i64: 1, 128>}, {transform_indices = @transform_8, window_bounds = array<i64: 1, 1, 288, 128>}]} {
    %c0 = arith.constant 0 : index
    %c0_0 = arith.constant 0 : index
    %c0_1 = arith.constant 0 : index
    %c0_2 = arith.constant 0 : index
    %0 = vector.load %arg2[%c0, %c0_0, %c0_1, %c0_2] : memref<1x1x342x128xbf16, #tpu.memory_space<vmem>>, vector<1x1x342x128xbf16>
    %1 = vector.shape_cast %0 : vector<1x1x342x128xbf16> to vector<342x128xbf16>
    %c0_3 = arith.constant 0 : index
    %c0_4 = arith.constant 0 : index
    %2 = vector.load %arg4[%c0_3, %c0_4] : memref<128x128xbf16, #tpu.memory_space<vmem>>, vector<128x128xbf16>
    %cst = arith.constant dense<0.000000e+00> : vector<342x128xf32>
    %3 = tpu.matmul %1, %2, %cst {dimension_numbers = #tpu.dot_dimension_numbers<[1], [0], [0], [1], [0, 0, 1, 1], [], []>} : vector<342x128xbf16>, vector<128x128xbf16>, vector<342x128xf32> -> vector<342x128xf32>
    %c0_5 = arith.constant 0 : index
    %c0_6 = arith.constant 0 : index
    %4 = vector.load %arg5[%c0_5, %c0_6] : memref<1x128xf32, #tpu.memory_space<vmem>>, vector<1x128xf32>
    %5 = vector.broadcast %4 : vector<1x128xf32> to vector<342x128xf32>
    %6 = arith.addf %3, %5 : vector<342x128xf32>
    %cst_7 = arith.constant 0.000000e+00 : f32
    %7 = vector.broadcast %cst_7 : f32 to vector<342x128xf32>
    %8 = arith.maximumf %6, %7 : vector<342x128xf32>
    %c0_8 = arith.constant 0 : index
    %c0_9 = arith.constant 0 : index
    %c0_10 = arith.constant 0 : index
    %9 = vector.load %arg3[%c0_8, %c0_9, %c0_10] : memref<1x342x1xf32, #tpu.memory_space<vmem>>, vector<1x342x1xf32>
    %10 = vector.shape_cast %9 : vector<1x342x1xf32> to vector<342x1xf32>
    %11 = vector.broadcast %10 : vector<342x1xf32> to vector<342x128xf32>
    %12 = arith.mulf %8, %11 : vector<342x128xf32>
    %13 = arith.truncf %12 : vector<342x128xf32> to vector<342x128xbf16>
    %14 = vector.extract_strided_slice %13 {offsets = [0, 0], sizes = [288, 128], strides = [1, 1]} : vector<342x128xbf16> to vector<288x128xbf16>
    %15 = vector.extract_strided_slice %13 {offsets = [1, 0], sizes = [288, 128], strides = [1, 1]} : vector<342x128xbf16> to vector<288x128xbf16>
    %16 = vector.extract_strided_slice %13 {offsets = [2, 0], sizes = [288, 128], strides = [1, 1]} : vector<342x128xbf16> to vector<288x128xbf16>
    %17 = vector.extract_strided_slice %13 {offsets = [18, 0], sizes = [288, 128], strides = [1, 1]} : vector<342x128xbf16> to vector<288x128xbf16>
    %18 = vector.extract_strided_slice %13 {offsets = [19, 0], sizes = [288, 128], strides = [1, 1]} : vector<342x128xbf16> to vector<288x128xbf16>
    %19 = vector.extract_strided_slice %13 {offsets = [20, 0], sizes = [288, 128], strides = [1, 1]} : vector<342x128xbf16> to vector<288x128xbf16>
    %20 = vector.extract_strided_slice %13 {offsets = [36, 0], sizes = [288, 128], strides = [1, 1]} : vector<342x128xbf16> to vector<288x128xbf16>
    %21 = vector.extract_strided_slice %13 {offsets = [37, 0], sizes = [288, 128], strides = [1, 1]} : vector<342x128xbf16> to vector<288x128xbf16>
    %22 = vector.extract_strided_slice %13 {offsets = [38, 0], sizes = [288, 128], strides = [1, 1]} : vector<342x128xbf16> to vector<288x128xbf16>
    %23 = tpu.concatenate %14, %15, %16, %17, %18, %19, %20, %21, %22 in 1 : vector<288x128xbf16>, vector<288x128xbf16>, vector<288x128xbf16>, vector<288x128xbf16>, vector<288x128xbf16>, vector<288x128xbf16>, vector<288x128xbf16>, vector<288x128xbf16>, vector<288x128xbf16> -> vector<288x1152xbf16>
    %c0_11 = arith.constant 0 : index
    %c0_12 = arith.constant 0 : index
    %24 = vector.load %arg6[%c0_11, %c0_12] : memref<1152x128xbf16, #tpu.memory_space<vmem>>, vector<1152x128xbf16>
    %cst_13 = arith.constant dense<0.000000e+00> : vector<288x128xf32>
    %25 = tpu.matmul %23, %24, %cst_13 {dimension_numbers = #tpu.dot_dimension_numbers<[1], [0], [0], [1], [0, 0, 1, 1], [], []>} : vector<288x1152xbf16>, vector<1152x128xbf16>, vector<288x128xf32> -> vector<288x128xf32>
    %c0_14 = arith.constant 0 : index
    %c0_15 = arith.constant 0 : index
    %26 = vector.load %arg7[%c0_14, %c0_15] : memref<1x128xf32, #tpu.memory_space<vmem>>, vector<1x128xf32>
    %27 = vector.broadcast %26 : vector<1x128xf32> to vector<288x128xf32>
    %28 = arith.addf %25, %27 : vector<288x128xf32>
    %cst_16 = arith.constant 0.000000e+00 : f32
    %29 = vector.broadcast %cst_16 : f32 to vector<288x128xf32>
    %30 = arith.maximumf %28, %29 : vector<288x128xf32>
    %31 = arith.truncf %30 : vector<288x128xf32> to vector<288x128xbf16>
    %c0_17 = arith.constant 0 : index
    %c0_18 = arith.constant 0 : index
    %32 = vector.load %arg8[%c0_17, %c0_18] : memref<128x128xbf16, #tpu.memory_space<vmem>>, vector<128x128xbf16>
    %cst_19 = arith.constant dense<0.000000e+00> : vector<288x128xf32>
    %33 = tpu.matmul %31, %32, %cst_19 {dimension_numbers = #tpu.dot_dimension_numbers<[1], [0], [0], [1], [0, 0, 1, 1], [], []>} : vector<288x128xbf16>, vector<128x128xbf16>, vector<288x128xf32> -> vector<288x128xf32>
    %34 = vector.extract_strided_slice %1 {offsets = [19, 0], sizes = [288, 128], strides = [1, 1]} : vector<342x128xbf16> to vector<288x128xbf16>
    %c0_20 = arith.constant 0 : index
    %c0_21 = arith.constant 0 : index
    %35 = vector.load %arg9[%c0_20, %c0_21] : memref<1x128xf32, #tpu.memory_space<vmem>>, vector<1x128xf32>
    %36 = vector.broadcast %35 : vector<1x128xf32> to vector<288x128xf32>
    %37 = arith.addf %33, %36 : vector<288x128xf32>
    %38 = arith.extf %34 : vector<288x128xbf16> to vector<288x128xf32>
    %39 = arith.addf %37, %38 : vector<288x128xf32>
    %cst_22 = arith.constant 0.000000e+00 : f32
    %40 = vector.broadcast %cst_22 : f32 to vector<288x128xf32>
    %41 = arith.maximumf %39, %40 : vector<288x128xf32>
    %c0_23 = arith.constant 0 : index
    %c0_24 = arith.constant 0 : index
    %c0_25 = arith.constant 0 : index
    %c0_26 = arith.constant 0 : index
    %42 = vector.load %arg10[%c0_23, %c0_24, %c0_25, %c0_26] : memref<1x1x288x128xf32, #tpu.memory_space<vmem>>, vector<1x1x288x128xf32>
    %43 = vector.shape_cast %42 : vector<1x1x288x128xf32> to vector<288x128xf32>
    %44 = vector.shape_cast %41 : vector<288x128xf32> to vector<1x1x288x128xf32>
    tpu.vector_store %arg10[%c0_23, %c0_24, %c0_25, %c0_26], %44 {strides = array<i32>} : memref<1x1x288x128xf32, #tpu.memory_space<vmem>>, vector<1x1x288x128xf32>,
    return
  }
  func.func @transform_0(%arg0: i32, %arg1: i32) -> (i32, i32, i32, i32) {
    %c0_i32 = arith.constant 0 : i32
    %c0_i32_0 = arith.constant 0 : i32
    %c0_i32_1 = arith.constant 0 : i32
    return %arg0, %arg1, %c0_i32, %c0_i32_0 : i32, i32, i32, i32
  }
  func.func @transform_1(%arg0: i32, %arg1: i32) -> (i32, i32, i32) {
    %c0_i32 = arith.constant 0 : i32
    %c0_i32_0 = arith.constant 0 : i32
    %c0_i32_1 = arith.constant 0 : i32
    return %arg1, %c0_i32, %c0_i32_0 : i32, i32, i32
  }
  func.func @transform_2(%arg0: i32, %arg1: i32) -> (i32, i32) {
    %c0_i32 = arith.constant 0 : i32
    %c0_i32_0 = arith.constant 0 : i32
    %c0_i32_1 = arith.constant 0 : i32
    return %c0_i32, %c0_i32_0 : i32, i32
  }
  func.func @transform_3(%arg0: i32, %arg1: i32) -> (i32, i32) {
    %c0_i32 = arith.constant 0 : i32
    %c0_i32_0 = arith.constant 0 : i32
    %c0_i32_1 = arith.constant 0 : i32
    return %c0_i32, %c0_i32_0 : i32, i32
  }
  func.func @transform_4(%arg0: i32, %arg1: i32) -> (i32, i32) {
    %c0_i32 = arith.constant 0 : i32
    %c0_i32_0 = arith.constant 0 : i32
    %c0_i32_1 = arith.constant 0 : i32
    return %c0_i32, %c0_i32_0 : i32, i32
  }
  func.func @transform_5(%arg0: i32, %arg1: i32) -> (i32, i32) {
    %c0_i32 = arith.constant 0 : i32
    %c0_i32_0 = arith.constant 0 : i32
    %c0_i32_1 = arith.constant 0 : i32
    return %c0_i32, %c0_i32_0 : i32, i32
  }
  func.func @transform_6(%arg0: i32, %arg1: i32) -> (i32, i32) {
    %c0_i32 = arith.constant 0 : i32
    %c0_i32_0 = arith.constant 0 : i32
    %c0_i32_1 = arith.constant 0 : i32
    return %c0_i32, %c0_i32_0 : i32, i32
  }
  func.func @transform_7(%arg0: i32, %arg1: i32) -> (i32, i32) {
    %c0_i32 = arith.constant 0 : i32
    %c0_i32_0 = arith.constant 0 : i32
    %c0_i32_1 = arith.constant 0 : i32
    return %c0_i32, %c0_i32_0 : i32, i32
  }
  func.func @transform_8(%arg0: i32, %arg1: i32) -> (i32, i32, i32, i32) {
    %c0_i32 = arith.constant 0 : i32
    %c0_i32_0 = arith.constant 0 : i32
    %c0_i32_1 = arith.constant 0 : i32
    return %arg0, %arg1, %c0_i32, %c0_i32_0 : i32, i32, i32, i32
  }
}

</mosaic_0001>

<llo_original>
// kernel: tpu_custom_call.1
$region0: #{tpu_custom_call.1}
  #allocation0 [shape = 'u32[]', space=smem, size = 0x4, offset = 0x4, fixed_abs, tag = 'smem constant byte address 0x4 - core index']
  #allocation1 [shape = 'u32[72,128]{1,0:T(1,128)}', space=vmem, size = 0x9000, scoped, tag = 'internal scratch']
  %s0 = inlined_call_operand.vmem [shape: bf16[2,1,342,128], index: 0, kind: input, shape index: {}]
  %s1 = inlined_call_operand.vmem [shape: f32[1,342,1], index: 1, kind: input, shape index: {}]
  %s2 = inlined_call_operand.vmem [shape: bf16[128,128], index: 2, kind: input, shape index: {}]
  %s3 = inlined_call_operand.vmem [shape: f32[1,128], index: 3, kind: input, shape index: {}]
  %s4 = inlined_call_operand.vmem [shape: bf16[1152,128], index: 4, kind: input, shape index: {}]
  %s5 = inlined_call_operand.vmem [shape: f32[1,128], index: 5, kind: input, shape index: {}]
  %s6 = inlined_call_operand.vmem [shape: bf16[128,128], index: 6, kind: input, shape index: {}]
  %s7 = inlined_call_operand.vmem [shape: f32[1,128], index: 7, kind: input, shape index: {}]
  %s8 = inlined_call_operand.hbm [shape: f32[2,1,288,128], index: 8, kind: output, shape index: {}]
  %s9 = sld [smem:[#allocation0]]
  $region65: #{tpu_custom_call.1} parent=0
    _
  %s11 = ssub.s32 1, %s9
  %s12 = scalar_select 0, %s11, %s9
  $region1: #{tpu_custom_call.1} parent=0
    #allocation2 [shape = 'u8[294912]{0}', space=vmem, size = 0x48000, scoped, tag = 'output window, operand 0']
    #allocation3 [shape = 's32[2]{0}', space=sflag, size = 0x8, scoped, tag = 'scoped memory for tpu_custom_call.1']
    %13 = vsyncpa [#allocation3], 0
    %s14 = scalar_lea.sflag [#allocation3], 1
    %15 = vsyncpa %s14, 0
    loop: start=0, step=1, limit=4
    $region2: #{tpu_custom_call.1} parent=1 // loop_pre_header
      _
    $region3: #{tpu_custom_call.1} parent=1 // loop_header
      %s17 = sphi 0, %s21
      %p18 = scmp.ge.s32.totalorder %s17, 4
      %s24 = sphi 0, %s36
      %s25 = sphi 0, %s32
      %s26 = sphi 0, %s24
      %s27 = sphi 0, %s25
      %s28 = sphi 0, %s26
      %s29 = sphi 0, %s27
      %s41 = sphi 0, %s43
      %s44 = sphi 0, %s41
      %s45 = sphi 0, %s44
      %s61 = sphi 0, %s45
      %s67 = sphi 0, %s69
      %s70 = sphi 0, %s67
      %s71 = sphi 0, %s70
      %s87 = sphi 0, %s71
      %s91 = sphi 0, %s91
      %s93 = sphi 0, %s91
      %s94 = sphi 0, %s93
      %s108 = sphi 0, %s94
      %s112 = sphi 0, %s112
      %s114 = sphi 0, %s112
      %s115 = sphi 0, %s114
      %s129 = sphi 0, %s115
      %s133 = sphi 0, %s133
      %s135 = sphi 0, %s133
      %s136 = sphi 0, %s135
      %s150 = sphi 0, %s136
      %s154 = sphi 0, %s154
      %s156 = sphi 0, %s154
      %s157 = sphi 0, %s156
      %s171 = sphi 0, %s157
      %s175 = sphi 0, %s175
      %s177 = sphi 0, %s175
      %s178 = sphi 0, %s177
      %s192 = sphi 0, %s178
      %s196 = sphi 0, %s196
      %s198 = sphi 0, %s196
      %s199 = sphi 0, %s198
      %s213 = sphi 0, %s199
      %s221 = sphi 0, %s223
      %s224 = sphi 0, %s221
      %s225 = sphi 0, %s224
      %s241 = sphi 0, %s225
    $region4: #{tpu_custom_call.1} parent=1 // loop_header_branch
      %20 = sbr.rel (%p18) target = $region8
    $region5: #{tpu_custom_call.1} parent=1 // loop_body
      %s22 = ssub.s32 %s17, 1
      %s23 = ssub.s32 %s17, 2
      %s30 = sadd.s32 1, %s25
      %p31 = scmp.ge.s32.totalorder %s30, 1
      %s32 = scalar_select %p31, 0, %s30
      %s33 = sadd.s32 1, %s24
      %s34 = scalar_select %p31, %s33, %s24
      %p35 = scmp.ge.s32.totalorder %s34, 2
      %s36 = scalar_select %p35, 0, %s34
      %s37 = ssub.s32 %s24, %s36
      %s38 = ssub.s32 %s25, %s32
      %s39 = sor.u32 %s37, %s38
      %p40 = scmp.eq.s32.totalorder %s39, 0
      %s42 = sadd.s32 %s41, 1
      %s43 = scalar_select %p40, %s41, %s42
      %p46 = pneg %p40
      %p47 = scmp.eq.s32.totalorder %s17, 1
      %p48 = por %p46, %p47
      %p49 = scmp.ne.s32.totalorder %s41, %s44
      %p50 = scmp.eq.s32.totalorder %s17, 0
      %p51 = por %p49, %p50
      %p52 = scmp.ne.s32.totalorder %s41, %s44
      %p53 = scmp.eq.s32.totalorder %s22, 1
      %p54 = por %p52, %p53
      %p55 = scmp.ne.s32.totalorder %s44, %s45
      %p56 = scmp.eq.s32.totalorder %s22, 0
      %p57 = por %p55, %p56
      %p58 = scmp.ne.s32.totalorder %s44, %s45
      %p59 = scmp.eq.s32.totalorder %s23, 1
      %p60 = por %p58, %p59
      %p62 = scmp.ne.s32.totalorder %s45, %s61
      %p63 = scmp.eq.s32.totalorder %s23, 0
      %p64 = por %p62, %p63
      %s65 = ssub.s32 %s25, %s32
      %p66 = scmp.eq.s32.totalorder %s65, 0
      %s68 = sadd.s32 %s67, 1
      %s69 = scalar_select %p66, %s67, %s68
      %p72 = pneg %p66
      %p73 = scmp.eq.s32.totalorder %s17, 1
      %p74 = por %p72, %p73
      %p75 = scmp.ne.s32.totalorder %s67, %s70
      %p76 = scmp.eq.s32.totalorder %s17, 0
      %p77 = por %p75, %p76
      %p78 = scmp.ne.s32.totalorder %s67, %s70
      %p79 = scmp.eq.s32.totalorder %s22, 1
      %p80 = por %p78, %p79
      %p81 = scmp.ne.s32.totalorder %s70, %s71
      %p82 = scmp.eq.s32.totalorder %s22, 0
      %p83 = por %p81, %p82
      %p84 = scmp.ne.s32.totalorder %s70, %s71
      %p85 = scmp.eq.s32.totalorder %s23, 1
      %p86 = por %p84, %p85
      %p88 = scmp.ne.s32.totalorder %s71, %s87
      %p89 = scmp.eq.s32.totalorder %s23, 0
      %p90 = por %p88, %p89
      %s92 = sadd.s32 %s91, 1
      %p95 = scmp.eq.s32.totalorder %s17, 1
      %p96 = scmp.ne.s32.totalorder %s91, %s93
      %p97 = scmp.eq.s32.totalorder %s17, 0
      %p98 = por %p96, %p97
      %p99 = scmp.ne.s32.totalorder %s91, %s93
      %p100 = scmp.eq.s32.totalorder %s22, 1
      %p101 = por %p99, %p100
      %p102 = scmp.ne.s32.totalorder %s93, %s94
      %p103 = scmp.eq.s32.totalorder %s22, 0
      %p104 = por %p102, %p103
      %p105 = scmp.ne.s32.totalorder %s93, %s94
      %p106 = scmp.eq.s32.totalorder %s23, 1
      %p107 = por %p105, %p106
      %p109 = scmp.ne.s32.totalorder %s94, %s108
      %p110 = scmp.eq.s32.totalorder %s23, 0
      %p111 = por %p109, %p110
      %s113 = sadd.s32 %s112, 1
      %p116 = scmp.eq.s32.totalorder %s17, 1
      %p117 = scmp.ne.s32.totalorder %s112, %s114
      %p118 = scmp.eq.s32.totalorder %s17, 0
      %p119 = por %p117, %p118
      %p120 = scmp.ne.s32.totalorder %s112, %s114
      %p121 = scmp.eq.s32.totalorder %s22, 1
      %p122 = por %p120, %p121
      %p123 = scmp.ne.s32.totalorder %s114, %s115
      %p124 = scmp.eq.s32.totalorder %s22, 0
      %p125 = por %p123, %p124
      %p126 = scmp.ne.s32.totalorder %s114, %s115
      %p127 = scmp.eq.s32.totalorder %s23, 1
      %p128 = por %p126, %p127
      %p130 = scmp.ne.s32.totalorder %s115, %s129
      %p131 = scmp.eq.s32.totalorder %s23, 0
      %p132 = por %p130, %p131
      %s134 = sadd.s32 %s133, 1
      %p137 = scmp.eq.s32.totalorder %s17, 1
      %p138 = scmp.ne.s32.totalorder %s133, %s135
      %p139 = scmp.eq.s32.totalorder %s17, 0
      %p140 = por %p138, %p139
      %p141 = scmp.ne.s32.totalorder %s133, %s135
      %p142 = scmp.eq.s32.totalorder %s22, 1
      %p143 = por %p141, %p142
      %p144 = scmp.ne.s32.totalorder %s135, %s136
      %p145 = scmp.eq.s32.totalorder %s22, 0
      %p146 = por %p144, %p145
      %p147 = scmp.ne.s32.totalorder %s135, %s136
      %p148 = scmp.eq.s32.totalorder %s23, 1
      %p149 = por %p147, %p148
      %p151 = scmp.ne.s32.totalorder %s136, %s150
      %p152 = scmp.eq.s32.totalorder %s23, 0
      %p153 = por %p151, %p152
      %s155 = sadd.s32 %s154, 1
      %p158 = scmp.eq.s32.totalorder %s17, 1
      %p159 = scmp.ne.s32.totalorder %s154, %s156
      %p160 = scmp.eq.s32.totalorder %s17, 0
      %p161 = por %p159, %p160
      %p162 = scmp.ne.s32.totalorder %s154, %s156
      %p163 = scmp.eq.s32.totalorder %s22, 1
      %p164 = por %p162, %p163
      %p165 = scmp.ne.s32.totalorder %s156, %s157
      %p166 = scmp.eq.s32.totalorder %s22, 0
      %p167 = por %p165, %p166
      %p168 = scmp.ne.s32.totalorder %s156, %s157
      %p169 = scmp.eq.s32.totalorder %s23, 1
      %p170 = por %p168, %p169
      %p172 = scmp.ne.s32.totalorder %s157, %s171
      %p173 = scmp.eq.s32.totalorder %s23, 0
      %p174 = por %p172, %p173
      %s176 = sadd.s32 %s175, 1
      %p179 = scmp.eq.s32.totalorder %s17, 1
      %p180 = scmp.ne.s32.totalorder %s175, %s177
      %p181 = scmp.eq.s32.totalorder %s17, 0
      %p182 = por %p180, %p181
      %p183 = scmp.ne.s32.totalorder %s175, %s177
      %p184 = scmp.eq.s32.totalorder %s22, 1
      %p185 = por %p183, %p184
      %p186 = scmp.ne.s32.totalorder %s177, %s178
      %p187 = scmp.eq.s32.totalorder %s22, 0
      %p188 = por %p186, %p187
      %p189 = scmp.ne.s32.totalorder %s177, %s178
      %p190 = scmp.eq.s32.totalorder %s23, 1
      %p191 = por %p189, %p190
      %p193 = scmp.ne.s32.totalorder %s178, %s192
      %p194 = scmp.eq.s32.totalorder %s23, 0
      %p195 = por %p193, %p194
      %s197 = sadd.s32 %s196, 1
      %p200 = scmp.eq.s32.totalorder %s17, 1
      %p201 = scmp.ne.s32.totalorder %s196, %s198
      %p202 = scmp.eq.s32.totalorder %s17, 0
      %p203 = por %p201, %p202
      %p204 = scmp.ne.s32.totalorder %s196, %s198
      %p205 = scmp.eq.s32.totalorder %s22, 1
      %p206 = por %p204, %p205
      %p207 = scmp.ne.s32.totalorder %s198, %s199
      %p208 = scmp.eq.s32.totalorder %s22, 0
      %p209 = por %p207, %p208
      %p210 = scmp.ne.s32.totalorder %s198, %s199
      %p211 = scmp.eq.s32.totalorder %s23, 1
      %p212 = por %p210, %p211
      %p214 = scmp.ne.s32.totalorder %s199, %s213
      %p215 = scmp.eq.s32.totalorder %s23, 0
      %p216 = por %p214, %p215
      %s217 = ssub.s32 %s24, %s36
      %s218 = ssub.s32 %s25, %s32
      %s219 = sor.u32 %s217, %s218
      %p220 = scmp.eq.s32.totalorder %s219, 0
      %s222 = sadd.s32 %s221, 1
      %s223 = scalar_select %p220, %s221, %s222
      %p226 = pneg %p220
      %p227 = scmp.eq.s32.totalorder %s17, 1
      %p228 = por %p226, %p227
      %p229 = scmp.ne.s32.totalorder %s221, %s224
      %p230 = scmp.eq.s32.totalorder %s17, 0
      %p231 = por %p229, %p230
      %p232 = scmp.ne.s32.totalorder %s221, %s224
      %p233 = scmp.eq.s32.totalorder %s22, 1
      %p234 = por %p232, %p233
      %p235 = scmp.ne.s32.totalorder %s224, %s225
      %p236 = scmp.eq.s32.totalorder %s22, 0
      %p237 = por %p235, %p236
      %p238 = scmp.ne.s32.totalorder %s224, %s225
      %p239 = scmp.eq.s32.totalorder %s23, 1
      %p240 = por %p238, %p239
      %p242 = scmp.ne.s32.totalorder %s225, %s241
      %p243 = scmp.eq.s32.totalorder %s23, 0
      %p244 = por %p242, %p243
      %p245 = scmp.le.s32.totalorder 1, %s17
      %p246 = scmp.lt.s32.totalorder %s17, 3
      %p247 = pnand %p245, %p246
      %p248 = pneg %p247
      // Predicated region
      $region9: #{tpu_custom_call.1} parent=5 // pred_check
        _
      $region10: #{tpu_custom_call.1} parent=5 // pred_check_branch
        %250 = sbr.rel (%p247) target = $region12
      $region11: #{tpu_custom_call.1} parent=5 // pred_region
        %s251 = ssub.s32 %s17, 1
        // Predicated region
        $region13: #{tpu_custom_call.1} parent=11 // pred_check
          %p252 = pneg %p83
        $region14: #{tpu_custom_call.1} parent=11 // pred_check_branch
          %254 = sbr.rel (%p252) target = $region16
        $region15: #{tpu_custom_call.1} parent=11 // pred_region
          %p255 = scmp.lt.s32.totalorder %s27, 0
          %s256 = scalar_select %p255, %s27, 0
          %s257 = smul.addr %s256, 43
          %s258 = smul.addr %s257, 8
          %s259 = scalar_lea.vmem %s1, %s258
        $region16: #{tpu_custom_call.1} parent=11 // pred_fallthru
          _
        // Predicated region
        $region17: #{tpu_custom_call.1} parent=11 // pred_check
          %p260 = pneg %p104
        $region18: #{tpu_custom_call.1} parent=11 // pred_check_branch
          %262 = sbr.rel (%p260) target = $region20
        $region19: #{tpu_custom_call.1} parent=11 // pred_region
          _
        $region20: #{tpu_custom_call.1} parent=11 // pred_fallthru
          _
        // Predicated region
        $region21: #{tpu_custom_call.1} parent=11 // pred_check
          %p263 = pneg %p125
        $region22: #{tpu_custom_call.1} parent=11 // pred_check_branch
          %265 = sbr.rel (%p263) target = $region24
        $region23: #{tpu_custom_call.1} parent=11 // pred_region
          _
        $region24: #{tpu_custom_call.1} parent=11 // pred_fallthru
          _
        // Predicated region
        $region25: #{tpu_custom_call.1} parent=11 // pred_check
          %p266 = pneg %p146
        $region26: #{tpu_custom_call.1} parent=11 // pred_check_branch
          %268 = sbr.rel (%p266) target = $region28
        $region27: #{tpu_custom_call.1} parent=11 // pred_region
          _
        $region28: #{tpu_custom_call.1} parent=11 // pred_fallthru
          _
        // Predicated region
        $region29: #{tpu_custom_call.1} parent=11 // pred_check
          %p269 = pneg %p167
        $region30: #{tpu_custom_call.1} parent=11 // pred_check_branch
          %271 = sbr.rel (%p269) target = $region32
        $region31: #{tpu_custom_call.1} parent=11 // pred_region
          _
        $region32: #{tpu_custom_call.1} parent=11 // pred_fallthru
          _
        // Predicated region
        $region33: #{tpu_custom_call.1} parent=11 // pred_check
          %p272 = pneg %p188
        $region34: #{tpu_custom_call.1} parent=11 // pred_check_branch
          %274 = sbr.rel (%p272) target = $region36
        $region35: #{tpu_custom_call.1} parent=11 // pred_region
          _
        $region36: #{tpu_custom_call.1} parent=11 // pred_fallthru
          _
        // Predicated region
        $region37: #{tpu_custom_call.1} parent=11 // pred_check
          %p275 = pneg %p209
        $region38: #{tpu_custom_call.1} parent=11 // pred_check_branch
          %277 = sbr.rel (%p275) target = $region40
        $region39: #{tpu_custom_call.1} parent=11 // pred_region
          _
        $region40: #{tpu_custom_call.1} parent=11 // pred_fallthru
          _
      $region12: #{tpu_custom_call.1} parent=5 // pred_fallthru
        _
      %p278 = scmp.lt.s32.totalorder %s17, 2
      // Predicated region
      $region41: #{tpu_custom_call.1} parent=5 // pred_check
        %p279 = pneg %p278
      $region42: #{tpu_custom_call.1} parent=5 // pred_check_branch
        %281 = sbr.rel (%p279) target = $region44
      $region43: #{tpu_custom_call.1} parent=5 // pred_region
        // Predicated region
        $region45: #{tpu_custom_call.1} parent=43 // pred_check
          %p282 = pneg %p51
        $region46: #{tpu_custom_call.1} parent=43 // pred_check_branch
          %284 = sbr.rel (%p282) target = $region48
        $region47: #{tpu_custom_call.1} parent=43 // pred_region
          %p285 = scmp.lt.s32.totalorder %s24, 1
          %s286 = scalar_select %p285, %s24, 1
          %p287 = scmp.lt.s32.totalorder %s25, 0
          %s288 = scalar_select %p287, %s25, 0
          %s289 = smul.addr %s288, 43
          %s290 = smul.addr %s286, 43
          %s291 = sadd.s32 %s289, %s290
          %s292 = smul.addr %s291, 4
          %s293 = scalar_lea.vmem %s0, %s292
        $region48: #{tpu_custom_call.1} parent=43 // pred_fallthru
          _
      $region44: #{tpu_custom_call.1} parent=5 // pred_fallthru
        _
      %p294 = scmp.le.s32.totalorder 1, %s17
      %p295 = scmp.lt.s32.totalorder %s17, 3
      %p296 = pnand %p294, %p295
      %p297 = pneg %p296
      // Predicated region
      $region49: #{tpu_custom_call.1} parent=5 // pred_check
        _
      $region50: #{tpu_custom_call.1} parent=5 // pred_check_branch
        %299 = sbr.rel (%p296) target = $region52
      $region51: #{tpu_custom_call.1} parent=5 // pred_region
        %s300 = ssub.s32 %s17, 1
        %p301 = scmp.lt.s32.totalorder %s26, 1
        %s302 = scalar_select %p301, %s26, 1
        %p303 = scmp.lt.s32.totalorder %s27, 0
        %s304 = scalar_select %p303, %s27, 0
        %s305 = smul.addr %s304, 43
        %s306 = smul.addr %s302, 43
        %s307 = sadd.s32 %s305, %s306
        %s308 = smul.addr %s307, 4
        %s309 = scalar_lea.vmem %s0, %s308
        %p310 = pneg %p57
        %p311 = pneg %p54
        %p312 = scmp.lt.s32.totalorder %s27, 0
        %s313 = scalar_select %p312, %s27, 0
        %s314 = smul.addr %s313, 43
        %s315 = smul.addr %s314, 8
        %s316 = scalar_lea.vmem %s1, %s315
        %p317 = pneg %p83
        %p318 = pneg %p80
        %p319 = pneg %p104
        %p320 = pneg %p101
        %p321 = pneg %p125
        %p322 = pneg %p122
        %p323 = pneg %p146
        %p324 = pneg %p143
        %p325 = pneg %p167
        %p326 = pneg %p164
        %p327 = pneg %p188
        %p328 = pneg %p185
        %p329 = pneg %p209
        %p330 = pneg %p206
        %p331 = pneg %p237
        %p332 = pneg %p234
        %s333 = sand.u32 %s224, 1
        %s334 = scalar_lea.sflag [#allocation3], %s333
        %s335 = sand.u32 %s224, 1
        %s336 = smul.addr %s335, 288
        %s337 = scalar_lea.vmem [#allocation2], %s336
        %p338 = scmp.lt.s32.totalorder %s26, 1
        %s339 = scalar_select %p338, %s26, 1
        %p340 = scmp.lt.s32.totalorder %s27, 0
        %s341 = scalar_select %p340, %s27, 0
        %s342 = smul.addr %s341, 43
        %s343 = smul.addr %s339, 43
        %s344 = sadd.s32 %s342, %s343
        %s345 = smul.addr %s344, 4
        %s346 = scalar_lea.vmem %s0, %s345
        %p347 = scmp.lt.s32.totalorder %s27, 0
        %s348 = scalar_select %p347, %s27, 0
        %s349 = smul.addr %s348, 43
        %s350 = smul.addr %s349, 8
        %s351 = scalar_lea.vmem %s1, %s350
        %v352 = vld [vmem:[%s346] sm:$0xf]
        %v353 = vld [vmem:[%s346 + $0x4] sm:$0xf]
        %v354 = vld [vmem:[%s346 + $0x8] sm:$0xf]
        %v355 = vld [vmem:[%s346 + $0xc] sm:$0xf]
        %v356 = vld [vmem:[%s346 + $0x10] sm:$0xf]
        %v357 = vld [vmem:[%s346 + $0x14] sm:$0xf]
        %v358 = vld [vmem:[%s346 + $0x18] sm:$0xf]
        %v359 = vld [vmem:[%s346 + $0x1c] sm:$0xf]
        %v360 = vld [vmem:[%s346 + $0x20] sm:$0xf]
        %v361 = vld [vmem:[%s346 + $0x24] sm:$0xf]
        %v362 = vld [vmem:[%s346 + $0x28] sm:$0xf]
        %v363 = vld [vmem:[%s346 + $0x2c] sm:$0xf]
        %v364 = vld [vmem:[%s346 + $0x30] sm:$0xf]
        %v365 = vld [vmem:[%s346 + $0x34] sm:$0xf]
        %v366 = vld [vmem:[%s346 + $0x38] sm:$0xf]
        %v367 = vld [vmem:[%s346 + $0x3c] sm:$0xf]
        %v368 = vld [vmem:[%s346 + $0x40] sm:$0xf]
        %v369 = vld [vmem:[%s346 + $0x44] sm:$0xf]
        %v370 = vld [vmem:[%s346 + $0x48] sm:$0xf]
        %v371 = vld [vmem:[%s346 + $0x4c] sm:$0xf]
        %v372 = vld [vmem:[%s346 + $0x50] sm:$0xf]
        %v373 = vld [vmem:[%s346 + $0x54] sm:$0xf]
        %v374 = vld [vmem:[%s346 + $0x58] sm:$0xf]
        %v375 = vld [vmem:[%s346 + $0x5c] sm:$0xf]
        %v376 = vld [vmem:[%s346 + $0x60] sm:$0xf]
        %v377 = vld [vmem:[%s346 + $0x64] sm:$0xf]
        %v378 = vld [vmem:[%s346 + $0x68] sm:$0xf]
        %v379 = vld [vmem:[%s346 + $0x6c] sm:$0xf]
        %v380 = vld [vmem:[%s346 + $0x70] sm:$0xf]
        %v381 = vld [vmem:[%s346 + $0x74] sm:$0xf]
        %v382 = vld [vmem:[%s346 + $0x78] sm:$0xf]
        %v383 = vld [vmem:[%s346 + $0x7c] sm:$0xf]
        %v384 = vld [vmem:[%s346 + $0x80] sm:$0xf]
        %v385 = vld [vmem:[%s346 + $0x84] sm:$0xf]
        %v386 = vld [vmem:[%s346 + $0x88] sm:$0xf]
        %v387 = vld [vmem:[%s346 + $0x8c] sm:$0xf]
        %v388 = vld [vmem:[%s346 + $0x90] sm:$0xf]
        %v389 = vld [vmem:[%s346 + $0x94] sm:$0xf]
        %v390 = vld [vmem:[%s346 + $0x98] sm:$0xf]
        %v391 = vld [vmem:[%s346 + $0x9c] sm:$0xf]
        %v392 = vld [vmem:[%s346 + $0xa0] sm:$0xf]
        %v393 = vld [vmem:[%s346 + $0xa4] sm:$0xf]
        %v394 = vld [vmem:[%s346 + $0xa8] sm:$0x7]
        %v395 = vld [vmem:[%s2] sm:$0xf]
        %v396 = vld [vmem:[%s2 + $0x4] sm:$0xf]
        %v397 = vld [vmem:[%s2 + $0x8] sm:$0xf]
        %v398 = vld [vmem:[%s2 + $0xc] sm:$0xf]
        %v399 = vld [vmem:[%s2 + $0x10] sm:$0xf]
        %v400 = vld [vmem:[%s2 + $0x14] sm:$0xf]
        %v401 = vld [vmem:[%s2 + $0x18] sm:$0xf]
        %v402 = vld [vmem:[%s2 + $0x1c] sm:$0xf]
        %v403 = vld [vmem:[%s2 + $0x20] sm:$0xf]
        %v404 = vld [vmem:[%s2 + $0x24] sm:$0xf]
        %v405 = vld [vmem:[%s2 + $0x28] sm:$0xf]
        %v406 = vld [vmem:[%s2 + $0x2c] sm:$0xf]
        %v407 = vld [vmem:[%s2 + $0x30] sm:$0xf]
        %v408 = vld [vmem:[%s2 + $0x34] sm:$0xf]
        %v409 = vld [vmem:[%s2 + $0x38] sm:$0xf]
        %v410 = vld [vmem:[%s2 + $0x3c] sm:$0xf]
        %v411 = vld [vmem:[%s3] sm:$0x1]
        %v413 = vperm.slane %v411, 0
        %v458 = vunpack.c.l.b16 %v352
        %v459 = vunpack.c.l.b16 %v353
        %v460 = vunpack.c.l.b16 %v354
        %v461 = vunpack.c.l.b16 %v355
        %v462 = vunpack.c.l.b16 %v356
        %v463 = vunpack.c.l.b16 %v357
        %v464 = vunpack.c.l.b16 %v358
        %v465 = vunpack.c.l.b16 %v359
        %v466 = vunpack.c.l.b16 %v360
        %v467 = vunpack.c.l.b16 %v361
        %v468 = vunpack.c.l.b16 %v362
        %v469 = vunpack.c.l.b16 %v363
        %v470 = vunpack.c.l.b16 %v364
        %v471 = vunpack.c.l.b16 %v365
        %v472 = vunpack.c.l.b16 %v366
        %v473 = vunpack.c.l.b16 %v367
        %v474 = vunpack.c.l.b16 %v368
        %v475 = vunpack.c.l.b16 %v369
        %v476 = vunpack.c.l.b16 %v370
        %v477 = vunpack.c.l.b16 %v371
        %v478 = vunpack.c.l.b16 %v372
        %v479 = vunpack.c.l.b16 %v373
        %v480 = vunpack.c.l.b16 %v374
        %v481 = vunpack.c.l.b16 %v375
        %v482 = vunpack.c.l.b16 %v376
        %v483 = vunpack.c.l.b16 %v377
        %v484 = vunpack.c.l.b16 %v378
        %v485 = vunpack.c.l.b16 %v379
        %v486 = vunpack.c.l.b16 %v380
        %v487 = vunpack.c.l.b16 %v381
        %v488 = vunpack.c.l.b16 %v382
        %v489 = vunpack.c.l.b16 %v383
        %v490 = vunpack.c.l.b16 %v384
        %v491 = vunpack.c.l.b16 %v385
        %v492 = vunpack.c.l.b16 %v386
        %v493 = vunpack.c.l.b16 %v387
        %v494 = vunpack.c.l.b16 %v388
        %v495 = vunpack.c.l.b16 %v389
        %v496 = vunpack.c.l.b16 %v390
        %v497 = vunpack.c.l.b16 %v391
        %v498 = vunpack.c.l.b16 %v392
        %v499 = vunpack.c.l.b16 %v393
        %v500 = vunpack.c.l.b16 %v394
        %v501 = vpack.c.b16 %v459, %v458
        %v502 = vpack.c.b16 %v461, %v460
        %v503 = vpack.c.b16 %v463, %v462
        %v504 = vpack.c.b16 %v465, %v464
        %v505 = vpack.c.b16 %v467, %v466
        %v506 = vpack.c.b16 %v469, %v468
        %v507 = vpack.c.b16 %v471, %v470
        %v508 = vpack.c.b16 %v473, %v472
        %v509 = vpack.c.b16 %v475, %v474
        %v510 = vpack.c.b16 %v477, %v476
        %v511 = vpack.c.b16 %v479, %v478
        %v512 = vpack.c.b16 %v481, %v480
        %v513 = vpack.c.b16 %v483, %v482
        %v514 = vpack.c.b16 %v485, %v484
        %v515 = vpack.c.b16 %v487, %v486
        %v516 = vpack.c.b16 %v489, %v488
        %v517 = vpack.c.b16 %v491, %v490
        %v518 = vpack.c.b16 %v493, %v492
        %v519 = vpack.c.b16 %v495, %v494
        %v520 = vpack.c.b16 %v497, %v496
        %v521 = vpack.c.b16 %v499, %v498
        %v522 = vpack.c.b16 %v500, %v500
        %v561 = vunpack.c.l.b16 %v395
        %v562 = vunpack.c.l.b16 %v396
        %v563 = vunpack.c.l.b16 %v397
        %v564 = vunpack.c.l.b16 %v398
        %v565 = vunpack.c.l.b16 %v399
        %v566 = vunpack.c.l.b16 %v400
        %v567 = vunpack.c.l.b16 %v401
        %v568 = vunpack.c.l.b16 %v402
        %v569 = vunpack.c.l.b16 %v403
        %v570 = vunpack.c.l.b16 %v404
        %v571 = vunpack.c.l.b16 %v405
        %v572 = vunpack.c.l.b16 %v406
        %v573 = vunpack.c.l.b16 %v407
        %v574 = vunpack.c.l.b16 %v408
        %v575 = vunpack.c.l.b16 %v409
        %v576 = vunpack.c.l.b16 %v410
        %v577 = vpack.c.b16 %v562, %v561
        %v578 = vpack.c.b16 %v564, %v563
        %v579 = vpack.c.b16 %v566, %v565
        %v580 = vpack.c.b16 %v568, %v567
        %v581 = vpack.c.b16 %v570, %v569
        %v582 = vpack.c.b16 %v572, %v571
        %v583 = vpack.c.b16 %v574, %v573
        %v584 = vpack.c.b16 %v576, %v575
        %593 = vmatpush.bf16.msra.mxu0 %v584
        %594 = vmatpush.bf16.msra.mxu0 %v583
        %595 = vmatpush.bf16.msra.mxu0 %v582
        %596 = vmatpush.bf16.msra.mxu0 %v581
        %597 = vmatpush.bf16.msra.mxu0 %v580
        %598 = vmatpush.bf16.msra.mxu0 %v579
        %599 = vmatpush.bf16.msra.mxu0 %v578
        %600 = vmatpush.bf16.msra.mxu0 %v577
        %601 = vmatmul.bf16.gmra.mxu0 %v501
        %v602 = vpop.f32.mrf.mxu0
        %v603 = vadd.f32 %v413, %v602
        %v604 = vpop.f32.mrf.mxu0
        %v605 = vadd.f32 %v413, %v604
        %606 = vmatmul.bf16.gmra.mxu0 %v502
        %v607 = vpop.f32.mrf.mxu0
        %v608 = vadd.f32 %v413, %v607
        %v609 = vpop.f32.mrf.mxu0
        %v610 = vadd.f32 %v413, %v609
        %611 = vmatmul.bf16.gmra.mxu0 %v503
        %v612 = vpop.f32.mrf.mxu0
        %v613 = vadd.f32 %v413, %v612
        %v614 = vpop.f32.mrf.mxu0
        %v615 = vadd.f32 %v413, %v614
        %616 = vmatmul.bf16.gmra.mxu0 %v504
        %v617 = vpop.f32.mrf.mxu0
        %v618 = vadd.f32 %v413, %v617
        %v619 = vpop.f32.mrf.mxu0
        %v620 = vadd.f32 %v413, %v619
        %621 = vmatmul.bf16.gmra.mxu0 %v505
        %v622 = vpop.f32.mrf.mxu0
        %v623 = vadd.f32 %v413, %v622
        %v624 = vpop.f32.mrf.mxu0
        %v625 = vadd.f32 %v413, %v624
        %626 = vmatmul.bf16.gmra.mxu0 %v506
        %v627 = vpop.f32.mrf.mxu0
        %v628 = vadd.f32 %v413, %v627
        %v629 = vpop.f32.mrf.mxu0
        %v630 = vadd.f32 %v413, %v629
        %631 = vmatmul.bf16.gmra.mxu0 %v507
        %v632 = vpop.f32.mrf.mxu0
        %v633 = vadd.f32 %v413, %v632
        %v634 = vpop.f32.mrf.mxu0
        %v635 = vadd.f32 %v413, %v634
        %636 = vmatmul.bf16.gmra.mxu0 %v508
        %v637 = vpop.f32.mrf.mxu0
        %v638 = vadd.f32 %v413, %v637
        %v639 = vpop.f32.mrf.mxu0
        %v640 = vadd.f32 %v413, %v639
        %641 = vmatmul.bf16.gmra.mxu0 %v509
        %v642 = vpop.f32.mrf.mxu0
        %v643 = vadd.f32 %v413, %v642
        %v644 = vpop.f32.mrf.mxu0
        %v645 = vadd.f32 %v413, %v644
        %646 = vmatmul.bf16.gmra.mxu0 %v510
        %v647 = vpop.f32.mrf.mxu0
        %v648 = vadd.f32 %v413, %v647
        %v649 = vpop.f32.mrf.mxu0
        %v650 = vadd.f32 %v413, %v649
        %651 = vmatmul.bf16.gmra.mxu0 %v511
        %v652 = vpop.f32.mrf.mxu0
        %v653 = vadd.f32 %v413, %v652
        %v654 = vpop.f32.mrf.mxu0
        %v655 = vadd.f32 %v413, %v654
        %656 = vmatmul.bf16.gmra.mxu0 %v512
        %v657 = vpop.f32.mrf.mxu0
        %v658 = vadd.f32 %v413, %v657
        %v659 = vpop.f32.mrf.mxu0
        %v660 = vadd.f32 %v413, %v659
        %661 = vmatmul.bf16.gmra.mxu0 %v513
        %v662 = vpop.f32.mrf.mxu0
        %v663 = vadd.f32 %v413, %v662
        %v664 = vpop.f32.mrf.mxu0
        %v665 = vadd.f32 %v413, %v664
        %666 = vmatmul.bf16.gmra.mxu0 %v514
        %v667 = vpop.f32.mrf.mxu0
        %v668 = vadd.f32 %v413, %v667
        %v669 = vpop.f32.mrf.mxu0
        %v670 = vadd.f32 %v413, %v669
        %671 = vmatmul.bf16.gmra.mxu0 %v515
        %v672 = vpop.f32.mrf.mxu0
        %v673 = vadd.f32 %v413, %v672
        %v674 = vpop.f32.mrf.mxu0
        %v675 = vadd.f32 %v413, %v674
        %676 = vmatmul.bf16.gmra.mxu0 %v516
        %v677 = vpop.f32.mrf.mxu0
        %v678 = vadd.f32 %v413, %v677
        %v679 = vpop.f32.mrf.mxu0
        %v680 = vadd.f32 %v413, %v679
        %681 = vmatmul.bf16.gmra.mxu0 %v517
        %v682 = vpop.f32.mrf.mxu0
        %v683 = vadd.f32 %v413, %v682
        %v684 = vpop.f32.mrf.mxu0
        %v685 = vadd.f32 %v413, %v684
        %686 = vmatmul.bf16.gmra.mxu0 %v518
        %v687 = vpop.f32.mrf.mxu0
        %v688 = vadd.f32 %v413, %v687
        %v689 = vpop.f32.mrf.mxu0
        %v690 = vadd.f32 %v413, %v689
        %691 = vmatmul.bf16.gmra.mxu0 %v519
        %v692 = vpop.f32.mrf.mxu0
        %v693 = vadd.f32 %v413, %v692
        %v694 = vpop.f32.mrf.mxu0
        %v695 = vadd.f32 %v413, %v694
        %696 = vmatmul.bf16.gmra.mxu0 %v520
        %v697 = vpop.f32.mrf.mxu0
        %v698 = vadd.f32 %v413, %v697
        %v699 = vpop.f32.mrf.mxu0
        %v700 = vadd.f32 %v413, %v699
        %701 = vmatmul.bf16.gmra.mxu0 %v521
        %v702 = vpop.f32.mrf.mxu0
        %v703 = vadd.f32 %v413, %v702
        %v704 = vpop.f32.mrf.mxu0
        %705 = vmatmul.bf16.gmra.mxu0 %v522
        %v706 = vpop.f32.mrf.mxu0
        %v707 = vpop.f32.mrf.mxu0
        %708 = vdwg.mxu0
        %v709 = vmax.f32 %v603, 0.0
        %v710 = vmax.f32 %v605, 0.0
        %v711 = vmax.f32 %v608, 0.0
        %v712 = vmax.f32 %v610, 0.0
        %v713 = vmax.f32 %v613, 0.0
        %v714 = vmax.f32 %v615, 0.0
        %v715 = vmax.f32 %v618, 0.0
        %v716 = vmax.f32 %v620, 0.0
        %v717 = vmax.f32 %v623, 0.0
        %v718 = vmax.f32 %v625, 0.0
        %v719 = vmax.f32 %v628, 0.0
        %v720 = vmax.f32 %v630, 0.0
        %v721 = vmax.f32 %v633, 0.0
        %v722 = vmax.f32 %v635, 0.0
        %v723 = vmax.f32 %v638, 0.0
        %v724 = vmax.f32 %v640, 0.0
        %v725 = vmax.f32 %v643, 0.0
        %v726 = vmax.f32 %v645, 0.0
        %v727 = vmax.f32 %v648, 0.0
        %v728 = vmax.f32 %v650, 0.0
        %v729 = vmax.f32 %v653, 0.0
        %v730 = vmax.f32 %v655, 0.0
        %v731 = vmax.f32 %v658, 0.0
        %v732 = vmax.f32 %v660, 0.0
        %v733 = vmax.f32 %v663, 0.0
        %v734 = vmax.f32 %v665, 0.0
        %v735 = vmax.f32 %v668, 0.0
        %v736 = vmax.f32 %v670, 0.0
        %v737 = vmax.f32 %v673, 0.0
        %v738 = vmax.f32 %v675, 0.0
        %v739 = vmax.f32 %v678, 0.0
        %v740 = vmax.f32 %v680, 0.0
        %v741 = vmax.f32 %v683, 0.0
        %v742 = vmax.f32 %v685, 0.0
        %v743 = vmax.f32 %v688, 0.0
        %v744 = vmax.f32 %v690, 0.0
        %v745 = vmax.f32 %v693, 0.0
        %v746 = vmax.f32 %v695, 0.0
        %v747 = vmax.f32 %v698, 0.0
        %v748 = vmax.f32 %v700, 0.0
        %v749 = vmax.f32 %v703, 0.0
        %v750 = vld [vmem:[%s351] sm:$0xff]
        %v751 = vld [vmem:[%s351 + $0x8] sm:$0xff]
        %v752 = vld [vmem:[%s351 + $0x10] sm:$0xff]
        %v753 = vld [vmem:[%s351 + $0x18] sm:$0xff]
        %v754 = vld [vmem:[%s351 + $0x20] sm:$0xff]
        %v755 = vld [vmem:[%s351 + $0x28] sm:$0xff]
        %v756 = vld [vmem:[%s351 + $0x30] sm:$0xff]
        %v757 = vld [vmem:[%s351 + $0x38] sm:$0xff]
        %v758 = vld [vmem:[%s351 + $0x40] sm:$0xff]
        %v759 = vld [vmem:[%s351 + $0x48] sm:$0xff]
        %v760 = vld [vmem:[%s351 + $0x50] sm:$0xff]
        %v761 = vld [vmem:[%s351 + $0x58] sm:$0xff]
        %v762 = vld [vmem:[%s351 + $0x60] sm:$0xff]
        %v763 = vld [vmem:[%s351 + $0x68] sm:$0xff]
        %v764 = vld [vmem:[%s351 + $0x70] sm:$0xff]
        %v765 = vld [vmem:[%s351 + $0x78] sm:$0xff]
        %v766 = vld [vmem:[%s351 + $0x80] sm:$0xff]
        %v767 = vld [vmem:[%s351 + $0x88] sm:$0xff]
        %v768 = vld [vmem:[%s351 + $0x90] sm:$0xff]
        %v769 = vld [vmem:[%s351 + $0x98] sm:$0xff]
        %v770 = vld [vmem:[%s351 + $0xa0] sm:$0xff]
        %v771 = vld [vmem:[%s351 + $0xa8] sm:$0xff]
        %v772 = vld [vmem:[%s351 + $0xb0] sm:$0xff]
        %v773 = vld [vmem:[%s351 + $0xb8] sm:$0xff]
        %v774 = vld [vmem:[%s351 + $0xc0] sm:$0xff]
        %v775 = vld [vmem:[%s351 + $0xc8] sm:$0xff]
        %v776 = vld [vmem:[%s351 + $0xd0] sm:$0xff]
        %v777 = vld [vmem:[%s351 + $0xd8] sm:$0xff]
        %v778 = vld [vmem:[%s351 + $0xe0] sm:$0xff]
        %v779 = vld [vmem:[%s351 + $0xe8] sm:$0xff]
        %v780 = vld [vmem:[%s351 + $0xf0] sm:$0xff]
        %v781 = vld [vmem:[%s351 + $0xf8] sm:$0xff]
        %v782 = vld [vmem:[%s351 + $0x100] sm:$0xff]
        %v783 = vld [vmem:[%s351 + $0x108] sm:$0xff]
        %v784 = vld [vmem:[%s351 + $0x110] sm:$0xff]
        %v785 = vld [vmem:[%s351 + $0x118] sm:$0xff]
        %v786 = vld [vmem:[%s351 + $0x120] sm:$0xff]
        %v787 = vld [vmem:[%s351 + $0x128] sm:$0xff]
        %v788 = vld [vmem:[%s351 + $0x130] sm:$0xff]
        %v789 = vld [vmem:[%s351 + $0x138] sm:$0xff]
        %v790 = vld [vmem:[%s351 + $0x140] sm:$0xff]
        %792 = vset.pattern.permute.xlu0 0
        %793 = vperm.xlu0 %792, %v750
        %v794 = vpop.permute.xlu0 %793
        %797 = vset.pattern.permute.xlu0 0
        %798 = vperm.xlu0 %797, %v751
        %v799 = vpop.permute.xlu0 %798
        %802 = vset.pattern.permute.xlu0 0
        %803 = vperm.xlu0 %802, %v752
        %v804 = vpop.permute.xlu0 %803
        %807 = vset.pattern.permute.xlu0 0
        %808 = vperm.xlu0 %807, %v753
        %v809 = vpop.permute.xlu0 %808
        %812 = vset.pattern.permute.xlu0 0
        %813 = vperm.xlu0 %812, %v754
        %v814 = vpop.permute.xlu0 %813
        %817 = vset.pattern.permute.xlu0 0
        %818 = vperm.xlu0 %817, %v755
        %v819 = vpop.permute.xlu0 %818
        %822 = vset.pattern.permute.xlu0 0
        %823 = vperm.xlu0 %822, %v756
        %v824 = vpop.permute.xlu0 %823
        %827 = vset.pattern.permute.xlu0 0
        %828 = vperm.xlu0 %827, %v757
        %v829 = vpop.permute.xlu0 %828
        %832 = vset.pattern.permute.xlu0 0
        %833 = vperm.xlu0 %832, %v758
        %v834 = vpop.permute.xlu0 %833
        %837 = vset.pattern.permute.xlu0 0
        %838 = vperm.xlu0 %837, %v759
        %v839 = vpop.permute.xlu0 %838
        %842 = vset.pattern.permute.xlu0 0
        %843 = vperm.xlu0 %842, %v760
        %v844 = vpop.permute.xlu0 %843
        %847 = vset.pattern.permute.xlu0 0
        %848 = vperm.xlu0 %847, %v761
        %v849 = vpop.permute.xlu0 %848
        %852 = vset.pattern.permute.xlu0 0
        %853 = vperm.xlu0 %852, %v762
        %v854 = vpop.permute.xlu0 %853
        %857 = vset.pattern.permute.xlu0 0
        %858 = vperm.xlu0 %857, %v763
        %v859 = vpop.permute.xlu0 %858
        %862 = vset.pattern.permute.xlu0 0
        %863 = vperm.xlu0 %862, %v764
        %v864 = vpop.permute.xlu0 %863
        %867 = vset.pattern.permute.xlu0 0
        %868 = vperm.xlu0 %867, %v765
        %v869 = vpop.permute.xlu0 %868
        %872 = vset.pattern.permute.xlu0 0
        %873 = vperm.xlu0 %872, %v766
        %v874 = vpop.permute.xlu0 %873
        %877 = vset.pattern.permute.xlu0 0
        %878 = vperm.xlu0 %877, %v767
        %v879 = vpop.permute.xlu0 %878
        %882 = vset.pattern.permute.xlu0 0
        %883 = vperm.xlu0 %882, %v768
        %v884 = vpop.permute.xlu0 %883
        %887 = vset.pattern.permute.xlu0 0
        %888 = vperm.xlu0 %887, %v769
        %v889 = vpop.permute.xlu0 %888
        %892 = vset.pattern.permute.xlu0 0
        %893 = vperm.xlu0 %892, %v770
        %v894 = vpop.permute.xlu0 %893
        %897 = vset.pattern.permute.xlu0 0
        %898 = vperm.xlu0 %897, %v771
        %v899 = vpop.permute.xlu0 %898
        %902 = vset.pattern.permute.xlu0 0
        %903 = vperm.xlu0 %902, %v772
        %v904 = vpop.permute.xlu0 %903
        %907 = vset.pattern.permute.xlu0 0
        %908 = vperm.xlu0 %907, %v773
        %v909 = vpop.permute.xlu0 %908
        %912 = vset.pattern.permute.xlu0 0
        %913 = vperm.xlu0 %912, %v774
        %v914 = vpop.permute.xlu0 %913
        %917 = vset.pattern.permute.xlu0 0
        %918 = vperm.xlu0 %917, %v775
        %v919 = vpop.permute.xlu0 %918
        %922 = vset.pattern.permute.xlu0 0
        %923 = vperm.xlu0 %922, %v776
        %v924 = vpop.permute.xlu0 %923
        %927 = vset.pattern.permute.xlu0 0
        %928 = vperm.xlu0 %927, %v777
        %v929 = vpop.permute.xlu0 %928
        %932 = vset.pattern.permute.xlu0 0
        %933 = vperm.xlu0 %932, %v778
        %v934 = vpop.permute.xlu0 %933
        %937 = vset.pattern.permute.xlu0 0
        %938 = vperm.xlu0 %937, %v779
        %v939 = vpop.permute.xlu0 %938
        %942 = vset.pattern.permute.xlu0 0
        %943 = vperm.xlu0 %942, %v780
        %v944 = vpop.permute.xlu0 %943
        %947 = vset.pattern.permute.xlu0 0
        %948 = vperm.xlu0 %947, %v781
        %v949 = vpop.permute.xlu0 %948
        %952 = vset.pattern.permute.xlu0 0
        %953 = vperm.xlu0 %952, %v782
        %v954 = vpop.permute.xlu0 %953
        %957 = vset.pattern.permute.xlu0 0
        %958 = vperm.xlu0 %957, %v783
        %v959 = vpop.permute.xlu0 %958
        %962 = vset.pattern.permute.xlu0 0
        %963 = vperm.xlu0 %962, %v784
        %v964 = vpop.permute.xlu0 %963
        %967 = vset.pattern.permute.xlu0 0
        %968 = vperm.xlu0 %967, %v785
        %v969 = vpop.permute.xlu0 %968
        %972 = vset.pattern.permute.xlu0 0
        %973 = vperm.xlu0 %972, %v786
        %v974 = vpop.permute.xlu0 %973
        %977 = vset.pattern.permute.xlu0 0
        %978 = vperm.xlu0 %977, %v787
        %v979 = vpop.permute.xlu0 %978
        %982 = vset.pattern.permute.xlu0 0
        %983 = vperm.xlu0 %982, %v788
        %v984 = vpop.permute.xlu0 %983
        %987 = vset.pattern.permute.xlu0 0
        %988 = vperm.xlu0 %987, %v789
        %v989 = vpop.permute.xlu0 %988
        %992 = vset.pattern.permute.xlu0 0
        %993 = vperm.xlu0 %992, %v790
        %v994 = vpop.permute.xlu0 %993
        %v996 = vmul.f32 %v709, %v794
        %v997 = vmul.f32 %v710, %v799
        %v998 = vmul.f32 %v711, %v804
        %v999 = vmul.f32 %v712, %v809
        %v1000 = vmul.f32 %v713, %v814
        %v1001 = vmul.f32 %v714, %v819
        %v1002 = vmul.f32 %v715, %v824
        %v1003 = vmul.f32 %v716, %v829
        %v1004 = vmul.f32 %v717, %v834
        %v1005 = vmul.f32 %v718, %v839
        %v1006 = vmul.f32 %v719, %v844
        %v1007 = vmul.f32 %v720, %v849
        %v1008 = vmul.f32 %v721, %v854
        %v1009 = vmul.f32 %v722, %v859
        %v1010 = vmul.f32 %v723, %v864
        %v1011 = vmul.f32 %v724, %v869
        %v1012 = vmul.f32 %v725, %v874
        %v1013 = vmul.f32 %v726, %v879
        %v1014 = vmul.f32 %v727, %v884
        %v1015 = vmul.f32 %v728, %v889
        %v1016 = vmul.f32 %v729, %v894
        %v1017 = vmul.f32 %v730, %v899
        %v1018 = vmul.f32 %v731, %v904
        %v1019 = vmul.f32 %v732, %v909
        %v1020 = vmul.f32 %v733, %v914
        %v1021 = vmul.f32 %v734, %v919
        %v1022 = vmul.f32 %v735, %v924
        %v1023 = vmul.f32 %v736, %v929
        %v1024 = vmul.f32 %v737, %v934
        %v1025 = vmul.f32 %v738, %v939
        %v1026 = vmul.f32 %v739, %v944
        %v1027 = vmul.f32 %v740, %v949
        %v1028 = vmul.f32 %v741, %v954
        %v1029 = vmul.f32 %v742, %v959
        %v1030 = vmul.f32 %v743, %v964
        %v1031 = vmul.f32 %v744, %v969
        %v1032 = vmul.f32 %v745, %v974
        %v1033 = vmul.f32 %v746, %v979
        %v1034 = vmul.f32 %v747, %v984
        %v1035 = vmul.f32 %v748, %v989
        %v1036 = vmul.f32 %v749, %v994
        %v1037 = vpack.c.bf16 %v996, %v996
        %v1038 = vpack.c.bf16 %v997, %v997
        %v1039 = vpack.c.bf16 %v998, %v998
        %v1040 = vpack.c.bf16 %v999, %v999
        %v1041 = vpack.c.bf16 %v1000, %v1000
        %v1042 = vpack.c.bf16 %v1001, %v1001
        %v1043 = vpack.c.bf16 %v1002, %v1002
        %v1044 = vpack.c.bf16 %v1003, %v1003
        %v1045 = vpack.c.bf16 %v1004, %v1004
        %v1046 = vpack.c.bf16 %v1005, %v1005
        %v1047 = vpack.c.bf16 %v1006, %v1006
        %v1048 = vpack.c.bf16 %v1007, %v1007
        %v1049 = vpack.c.bf16 %v1008, %v1008
        %v1050 = vpack.c.bf16 %v1009, %v1009
        %v1051 = vpack.c.bf16 %v1010, %v1010
        %v1052 = vpack.c.bf16 %v1011, %v1011
        %v1053 = vpack.c.bf16 %v1012, %v1012
        %v1054 = vpack.c.bf16 %v1013, %v1013
        %v1055 = vpack.c.bf16 %v1014, %v1014
        %v1056 = vpack.c.bf16 %v1015, %v1015
        %v1057 = vpack.c.bf16 %v1016, %v1016
        %v1058 = vpack.c.bf16 %v1017, %v1017
        %v1059 = vpack.c.bf16 %v1018, %v1018
        %v1060 = vpack.c.bf16 %v1019, %v1019
        %v1061 = vpack.c.bf16 %v1020, %v1020
        %v1062 = vpack.c.bf16 %v1021, %v1021
        %v1063 = vpack.c.bf16 %v1022, %v1022
        %v1064 = vpack.c.bf16 %v1023, %v1023
        %v1065 = vpack.c.bf16 %v1024, %v1024
        %v1066 = vpack.c.bf16 %v1025, %v1025
        %v1067 = vpack.c.bf16 %v1026, %v1026
        %v1068 = vpack.c.bf16 %v1027, %v1027
        %v1069 = vpack.c.bf16 %v1028, %v1028
        %v1070 = vpack.c.bf16 %v1029, %v1029
        %v1071 = vpack.c.bf16 %v1030, %v1030
        %v1072 = vpack.c.bf16 %v1031, %v1031
        %v1073 = vpack.c.bf16 %v1032, %v1032
        %v1074 = vpack.c.bf16 %v1033, %v1033
        %v1075 = vpack.c.bf16 %v1034, %v1034
        %v1076 = vpack.c.bf16 %v1035, %v1035
        %v1077 = vpack.c.bf16 %v1036, %v1036
        %v1114 = vunpack.c.l.b16 %v1037
        %v1115 = vunpack.c.l.b16 %v1038
        %v1116 = vunpack.c.l.b16 %v1039
        %v1117 = vunpack.c.l.b16 %v1040
        %v1118 = vunpack.c.l.b16 %v1041
        %v1119 = vunpack.c.l.b16 %v1042
        %v1120 = vunpack.c.l.b16 %v1043
        %v1121 = vunpack.c.l.b16 %v1044
        %v1122 = vunpack.c.l.b16 %v1045
        %v1123 = vunpack.c.l.b16 %v1046
        %v1124 = vunpack.c.l.b16 %v1047
        %v1125 = vunpack.c.l.b16 %v1048
        %v1126 = vunpack.c.l.b16 %v1049
        %v1127 = vunpack.c.l.b16 %v1050
        %v1128 = vunpack.c.l.b16 %v1051
        %v1129 = vunpack.c.l.b16 %v1052
        %v1130 = vunpack.c.l.b16 %v1053
        %v1131 = vunpack.c.l.b16 %v1054
        %v1132 = vunpack.c.l.b16 %v1055
        %v1133 = vunpack.c.l.b16 %v1056
        %v1134 = vunpack.c.l.b16 %v1057
        %v1135 = vunpack.c.l.b16 %v1058
        %v1136 = vunpack.c.l.b16 %v1059
        %v1137 = vunpack.c.l.b16 %v1060
        %v1138 = vunpack.c.l.b16 %v1061
        %v1139 = vunpack.c.l.b16 %v1062
        %v1140 = vunpack.c.l.b16 %v1063
        %v1141 = vunpack.c.l.b16 %v1064
        %v1142 = vunpack.c.l.b16 %v1065
        %v1143 = vunpack.c.l.b16 %v1066
        %v1144 = vunpack.c.l.b16 %v1067
        %v1145 = vunpack.c.l.b16 %v1068
        %v1146 = vunpack.c.l.b16 %v1069
        %v1147 = vunpack.c.l.b16 %v1070
        %v1148 = vunpack.c.l.b16 %v1071
        %v1149 = vunpack.c.l.b16 %v1072
        %v1150 = vpack.c.b16 %v1115, %v1114
        %v1151 = vpack.c.b16 %v1117, %v1116
        %v1152 = vpack.c.b16 %v1119, %v1118
        %v1153 = vpack.c.b16 %v1121, %v1120
        %v1154 = vpack.c.b16 %v1123, %v1122
        %v1155 = vpack.c.b16 %v1125, %v1124
        %v1156 = vpack.c.b16 %v1127, %v1126
        %v1157 = vpack.c.b16 %v1129, %v1128
        %v1158 = vpack.c.b16 %v1131, %v1130
        %v1159 = vpack.c.b16 %v1133, %v1132
        %v1160 = vpack.c.b16 %v1135, %v1134
        %v1161 = vpack.c.b16 %v1137, %v1136
        %v1162 = vpack.c.b16 %v1139, %v1138
        %v1163 = vpack.c.b16 %v1141, %v1140
        %v1164 = vpack.c.b16 %v1143, %v1142
        %v1165 = vpack.c.b16 %v1145, %v1144
        %v1166 = vpack.c.b16 %v1147, %v1146
        %v1167 = vpack.c.b16 %v1149, %v1148
        %v1187 = vunpack.c.l.b16 %v1073
        %v1188 = vpack.c.b16 %v1187, %v1187
        %vm1189 = vsmask.f32 7424
        %v1191 = vshrl.u32 %v1150, 16
        %v1193 = vshll.u32 %v1150, 16
        %v1195 = vrot.slane %v1193, 1
        %v1196 = vor.u32 %v1191, %v1195
        %v1198 = vshll.u32 %v1151, 16
        %v1200 = vrot.slane %v1198, 1
        %v1201 = vsel %vm1189, %v1196, %v1200
        %v1202 = vshrl.u32 %v1151, 16
        %v1204 = vor.u32 %v1202, %v1200
        %v1206 = vshll.u32 %v1152, 16
        %v1208 = vrot.slane %v1206, 1
        %v1209 = vsel %vm1189, %v1204, %v1208
        %v1210 = vshrl.u32 %v1152, 16
        %v1212 = vor.u32 %v1210, %v1208
        %v1214 = vshll.u32 %v1153, 16
        %v1216 = vrot.slane %v1214, 1
        %v1217 = vsel %vm1189, %v1212, %v1216
        %v1218 = vshrl.u32 %v1153, 16
        %v1220 = vor.u32 %v1218, %v1216
        %v1222 = vshll.u32 %v1154, 16
        %v1224 = vrot.slane %v1222, 1
        %v1225 = vsel %vm1189, %v1220, %v1224
        %v1226 = vshrl.u32 %v1154, 16
        %v1228 = vor.u32 %v1226, %v1224
        %v1230 = vshll.u32 %v1155, 16
        %v1232 = vrot.slane %v1230, 1
        %v1233 = vsel %vm1189, %v1228, %v1232
        %v1234 = vshrl.u32 %v1155, 16
        %v1236 = vor.u32 %v1234, %v1232
        %v1238 = vshll.u32 %v1156, 16
        %v1240 = vrot.slane %v1238, 1
        %v1241 = vsel %vm1189, %v1236, %v1240
        %v1242 = vshrl.u32 %v1156, 16
        %v1244 = vor.u32 %v1242, %v1240
        %v1246 = vshll.u32 %v1157, 16
        %v1248 = vrot.slane %v1246, 1
        %v1249 = vsel %vm1189, %v1244, %v1248
        %v1250 = vshrl.u32 %v1157, 16
        %v1252 = vor.u32 %v1250, %v1248
        %v1254 = vshll.u32 %v1158, 16
        %v1256 = vrot.slane %v1254, 1
        %v1257 = vsel %vm1189, %v1252, %v1256
        %v1258 = vshrl.u32 %v1158, 16
        %v1260 = vor.u32 %v1258, %v1256
        %v1262 = vshll.u32 %v1159, 16
        %v1264 = vrot.slane %v1262, 1
        %v1265 = vsel %vm1189, %v1260, %v1264
        %v1266 = vshrl.u32 %v1159, 16
        %v1268 = vor.u32 %v1266, %v1264
        %v1270 = vshll.u32 %v1160, 16
        %v1272 = vrot.slane %v1270, 1
        %v1273 = vsel %vm1189, %v1268, %v1272
        %v1274 = vshrl.u32 %v1160, 16
        %v1276 = vor.u32 %v1274, %v1272
        %v1278 = vshll.u32 %v1161, 16
        %v1280 = vrot.slane %v1278, 1
        %v1281 = vsel %vm1189, %v1276, %v1280
        %v1282 = vshrl.u32 %v1161, 16
        %v1284 = vor.u32 %v1282, %v1280
        %v1286 = vshll.u32 %v1162, 16
        %v1288 = vrot.slane %v1286, 1
        %v1289 = vsel %vm1189, %v1284, %v1288
        %v1290 = vshrl.u32 %v1162, 16
        %v1292 = vor.u32 %v1290, %v1288
        %v1294 = vshll.u32 %v1163, 16
        %v1296 = vrot.slane %v1294, 1
        %v1297 = vsel %vm1189, %v1292, %v1296
        %v1298 = vshrl.u32 %v1163, 16
        %v1300 = vor.u32 %v1298, %v1296
        %v1302 = vshll.u32 %v1164, 16
        %v1304 = vrot.slane %v1302, 1
        %v1305 = vsel %vm1189, %v1300, %v1304
        %v1306 = vshrl.u32 %v1164, 16
        %v1308 = vor.u32 %v1306, %v1304
        %v1310 = vshll.u32 %v1165, 16
        %v1312 = vrot.slane %v1310, 1
        %v1313 = vsel %vm1189, %v1308, %v1312
        %v1314 = vshrl.u32 %v1165, 16
        %v1316 = vor.u32 %v1314, %v1312
        %v1318 = vshll.u32 %v1166, 16
        %v1320 = vrot.slane %v1318, 1
        %v1321 = vsel %vm1189, %v1316, %v1320
        %v1322 = vshrl.u32 %v1166, 16
        %v1324 = vor.u32 %v1322, %v1320
        %v1326 = vshll.u32 %v1167, 16
        %v1328 = vrot.slane %v1326, 1
        %v1329 = vsel %vm1189, %v1324, %v1328
        %v1330 = vshrl.u32 %v1167, 16
        %v1332 = vor.u32 %v1330, %v1328
        %v1334 = vshll.u32 %v1188, 16
        %v1336 = vrot.slane %v1334, 1
        %v1337 = vsel %vm1189, %v1332, %v1336
        %vm1356 = vcmask 1046528
        %v1357 = vrot.slane %v1150, 1
        %v1358 = vrot.slane %v1151, 1
        %v1359 = vsel %vm1356, %v1357, %v1358
        %v1360 = vrot.slane %v1152, 1
        %v1361 = vsel %vm1356, %v1358, %v1360
        %v1362 = vrot.slane %v1153, 1
        %v1363 = vsel %vm1356, %v1360, %v1362
        %v1364 = vrot.slane %v1154, 1
        %v1365 = vsel %vm1356, %v1362, %v1364
        %v1366 = vrot.slane %v1155, 1
        %v1367 = vsel %vm1356, %v1364, %v1366
        %v1368 = vrot.slane %v1156, 1
        %v1369 = vsel %vm1356, %v1366, %v1368
        %v1370 = vrot.slane %v1157, 1
        %v1371 = vsel %vm1356, %v1368, %v1370
        %v1372 = vrot.slane %v1158, 1
        %v1373 = vsel %vm1356, %v1370, %v1372
        %v1374 = vrot.slane %v1159, 1
        %v1375 = vsel %vm1356, %v1372, %v1374
        %v1376 = vrot.slane %v1160, 1
        %v1377 = vsel %vm1356, %v1374, %v1376
        %v1378 = vrot.slane %v1161, 1
        %v1379 = vsel %vm1356, %v1376, %v1378
        %v1380 = vrot.slane %v1162, 1
        %v1381 = vsel %vm1356, %v1378, %v1380
        %v1382 = vrot.slane %v1163, 1
        %v1383 = vsel %vm1356, %v1380, %v1382
        %v1384 = vrot.slane %v1164, 1
        %v1385 = vsel %vm1356, %v1382, %v1384
        %v1386 = vrot.slane %v1165, 1
        %v1387 = vsel %vm1356, %v1384, %v1386
        %v1388 = vrot.slane %v1166, 1
        %v1389 = vsel %vm1356, %v1386, %v1388
        %v1390 = vrot.slane %v1167, 1
        %v1391 = vsel %vm1356, %v1388, %v1390
        %v1392 = vrot.slane %v1188, 1
        %v1393 = vsel %vm1356, %v1390, %v1392
        %v1414 = vunpack.c.l.b16 %v1074
        %v1415 = vunpack.c.l.b16 %v1075
        %v1416 = vpack.c.b16 %v1414, %v1187
        %v1417 = vpack.c.b16 %v1415, %v1415
        %v1418 = vrot.slane %v1416, 1
        %v1419 = vsel %vm1356, %v1390, %v1418
        %v1420 = vrot.slane %v1417, 1
        %v1421 = vsel %vm1356, %v1418, %v1420
        %vm1424 = vsmask.f32 6400
        %v1425 = vrot.slane %v1202, 1
        %v1426 = vrot.slane %v1198, 2
        %v1427 = vor.u32 %v1425, %v1426
        %v1428 = vrot.slane %v1210, 1
        %v1429 = vrot.slane %v1206, 2
        %v1430 = vor.u32 %v1428, %v1429
        %v1431 = vsel %vm1424, %v1427, %v1430
        %v1432 = vrot.slane %v1218, 1
        %v1433 = vrot.slane %v1214, 2
        %v1434 = vor.u32 %v1432, %v1433
        %v1435 = vsel %vm1424, %v1430, %v1434
        %v1436 = vrot.slane %v1226, 1
        %v1437 = vrot.slane %v1222, 2
        %v1438 = vor.u32 %v1436, %v1437
        %v1439 = vsel %vm1424, %v1434, %v1438
        %v1440 = vrot.slane %v1234, 1
        %v1441 = vrot.slane %v1230, 2
        %v1442 = vor.u32 %v1440, %v1441
        %v1443 = vsel %vm1424, %v1438, %v1442
        %v1444 = vrot.slane %v1242, 1
        %v1445 = vrot.slane %v1238, 2
        %v1446 = vor.u32 %v1444, %v1445
        %v1447 = vsel %vm1424, %v1442, %v1446
        %v1448 = vrot.slane %v1250, 1
        %v1449 = vrot.slane %v1246, 2
        %v1450 = vor.u32 %v1448, %v1449
        %v1451 = vsel %vm1424, %v1446, %v1450
        %v1452 = vrot.slane %v1258, 1
        %v1453 = vrot.slane %v1254, 2
        %v1454 = vor.u32 %v1452, %v1453
        %v1455 = vsel %vm1424, %v1450, %v1454
        %v1456 = vrot.slane %v1266, 1
        %v1457 = vrot.slane %v1262, 2
        %v1458 = vor.u32 %v1456, %v1457
        %v1459 = vsel %vm1424, %v1454, %v1458
        %v1460 = vrot.slane %v1274, 1
        %v1461 = vrot.slane %v1270, 2
        %v1462 = vor.u32 %v1460, %v1461
        %v1463 = vsel %vm1424, %v1458, %v1462
        %v1464 = vrot.slane %v1282, 1
        %v1465 = vrot.slane %v1278, 2
        %v1466 = vor.u32 %v1464, %v1465
        %v1467 = vsel %vm1424, %v1462, %v1466
        %v1468 = vrot.slane %v1290, 1
        %v1469 = vrot.slane %v1286, 2
        %v1470 = vor.u32 %v1468, %v1469
        %v1471 = vsel %vm1424, %v1466, %v1470
        %v1472 = vrot.slane %v1298, 1
        %v1473 = vrot.slane %v1294, 2
        %v1474 = vor.u32 %v1472, %v1473
        %v1475 = vsel %vm1424, %v1470, %v1474
        %v1476 = vrot.slane %v1306, 1
        %v1477 = vrot.slane %v1302, 2
        %v1478 = vor.u32 %v1476, %v1477
        %v1479 = vsel %vm1424, %v1474, %v1478
        %v1480 = vrot.slane %v1314, 1
        %v1481 = vrot.slane %v1310, 2
        %v1482 = vor.u32 %v1480, %v1481
        %v1483 = vsel %vm1424, %v1478, %v1482
        %v1484 = vrot.slane %v1322, 1
        %v1485 = vrot.slane %v1318, 2
        %v1486 = vor.u32 %v1484, %v1485
        %v1487 = vsel %vm1424, %v1482, %v1486
        %v1488 = vrot.slane %v1330, 1
        %v1489 = vrot.slane %v1326, 2
        %v1490 = vor.u32 %v1488, %v1489
        %v1491 = vsel %vm1424, %v1486, %v1490
        %v1493 = vshrl.u32 %v1416, 16
        %v1495 = vrot.slane %v1493, 1
        %v1496 = vshll.u32 %v1416, 16
        %v1498 = vrot.slane %v1496, 2
        %v1499 = vor.u32 %v1495, %v1498
        %v1500 = vsel %vm1424, %v1490, %v1499
        %v1502 = vshrl.u32 %v1417, 16
        %v1504 = vrot.slane %v1502, 1
        %v1505 = vshll.u32 %v1417, 16
        %v1507 = vrot.slane %v1505, 2
        %v1508 = vor.u32 %v1504, %v1507
        %v1509 = vsel %vm1424, %v1499, %v1508
        %vm1528 = vcmask 1045504
        %v1529 = vrot.slane %v1151, 2
        %v1530 = vrot.slane %v1152, 2
        %v1531 = vsel %vm1528, %v1529, %v1530
        %v1532 = vrot.slane %v1153, 2
        %v1533 = vsel %vm1528, %v1530, %v1532
        %v1534 = vrot.slane %v1154, 2
        %v1535 = vsel %vm1528, %v1532, %v1534
        %v1536 = vrot.slane %v1155, 2
        %v1537 = vsel %vm1528, %v1534, %v1536
        %v1538 = vrot.slane %v1156, 2
        %v1539 = vsel %vm1528, %v1536, %v1538
        %v1540 = vrot.slane %v1157, 2
        %v1541 = vsel %vm1528, %v1538, %v1540
        %v1542 = vrot.slane %v1158, 2
        %v1543 = vsel %vm1528, %v1540, %v1542
        %v1544 = vrot.slane %v1159, 2
        %v1545 = vsel %vm1528, %v1542, %v1544
        %v1546 = vrot.slane %v1160, 2
        %v1547 = vsel %vm1528, %v1544, %v1546
        %v1548 = vrot.slane %v1161, 2
        %v1549 = vsel %vm1528, %v1546, %v1548
        %v1550 = vrot.slane %v1162, 2
        %v1551 = vsel %vm1528, %v1548, %v1550
        %v1552 = vrot.slane %v1163, 2
        %v1553 = vsel %vm1528, %v1550, %v1552
        %v1554 = vrot.slane %v1164, 2
        %v1555 = vsel %vm1528, %v1552, %v1554
        %v1556 = vrot.slane %v1165, 2
        %v1557 = vsel %vm1528, %v1554, %v1556
        %v1558 = vrot.slane %v1166, 2
        %v1559 = vsel %vm1528, %v1556, %v1558
        %v1560 = vrot.slane %v1167, 2
        %v1561 = vsel %vm1528, %v1558, %v1560
        %v1562 = vrot.slane %v1416, 2
        %v1563 = vsel %vm1528, %v1560, %v1562
        %v1564 = vrot.slane %v1417, 2
        %v1565 = vsel %vm1528, %v1562, %v1564
        %v1586 = vunpack.c.l.b16 %v1076
        %v1587 = vunpack.c.l.b16 %v1077
        %v1588 = vpack.c.b16 %v1586, %v1415
        %v1589 = vpack.c.b16 %v1587, %v1587
        %v1590 = vrot.slane %v1588, 2
        %v1591 = vsel %vm1528, %v1562, %v1590
        %v1592 = vrot.slane %v1589, 2
        %v1593 = vsel %vm1528, %v1590, %v1592
        %vm1596 = vsmask.f32 5376
        %v1597 = vrot.slane %v1210, 2
        %v1598 = vrot.slane %v1206, 3
        %v1599 = vor.u32 %v1597, %v1598
        %v1600 = vrot.slane %v1218, 2
        %v1601 = vrot.slane %v1214, 3
        %v1602 = vor.u32 %v1600, %v1601
        %v1603 = vsel %vm1596, %v1599, %v1602
        %v1604 = vrot.slane %v1226, 2
        %v1605 = vrot.slane %v1222, 3
        %v1606 = vor.u32 %v1604, %v1605
        %v1607 = vsel %vm1596, %v1602, %v1606
        %v1608 = vrot.slane %v1234, 2
        %v1609 = vrot.slane %v1230, 3
        %v1610 = vor.u32 %v1608, %v1609
        %v1611 = vsel %vm1596, %v1606, %v1610
        %v1612 = vrot.slane %v1242, 2
        %v1613 = vrot.slane %v1238, 3
        %v1614 = vor.u32 %v1612, %v1613
        %v1615 = vsel %vm1596, %v1610, %v1614
        %v1616 = vrot.slane %v1250, 2
        %v1617 = vrot.slane %v1246, 3
        %v1618 = vor.u32 %v1616, %v1617
        %v1619 = vsel %vm1596, %v1614, %v1618
        %v1620 = vrot.slane %v1258, 2
        %v1621 = vrot.slane %v1254, 3
        %v1622 = vor.u32 %v1620, %v1621
        %v1623 = vsel %vm1596, %v1618, %v1622
        %v1624 = vrot.slane %v1266, 2
        %v1625 = vrot.slane %v1262, 3
        %v1626 = vor.u32 %v1624, %v1625
        %v1627 = vsel %vm1596, %v1622, %v1626
        %v1628 = vrot.slane %v1274, 2
        %v1629 = vrot.slane %v1270, 3
        %v1630 = vor.u32 %v1628, %v1629
        %v1631 = vsel %vm1596, %v1626, %v1630
        %v1632 = vrot.slane %v1282, 2
        %v1633 = vrot.slane %v1278, 3
        %v1634 = vor.u32 %v1632, %v1633
        %v1635 = vsel %vm1596, %v1630, %v1634
        %v1636 = vrot.slane %v1290, 2
        %v1637 = vrot.slane %v1286, 3
        %v1638 = vor.u32 %v1636, %v1637
        %v1639 = vsel %vm1596, %v1634, %v1638
        %v1640 = vrot.slane %v1298, 2
        %v1641 = vrot.slane %v1294, 3
        %v1642 = vor.u32 %v1640, %v1641
        %v1643 = vsel %vm1596, %v1638, %v1642
        %v1644 = vrot.slane %v1306, 2
        %v1645 = vrot.slane %v1302, 3
        %v1646 = vor.u32 %v1644, %v1645
        %v1647 = vsel %vm1596, %v1642, %v1646
        %v1648 = vrot.slane %v1314, 2
        %v1649 = vrot.slane %v1310, 3
        %v1650 = vor.u32 %v1648, %v1649
        %v1651 = vsel %vm1596, %v1646, %v1650
        %v1652 = vrot.slane %v1322, 2
        %v1653 = vrot.slane %v1318, 3
        %v1654 = vor.u32 %v1652, %v1653
        %v1655 = vsel %vm1596, %v1650, %v1654
        %v1656 = vrot.slane %v1330, 2
        %v1657 = vrot.slane %v1326, 3
        %v1658 = vor.u32 %v1656, %v1657
        %v1659 = vsel %vm1596, %v1654, %v1658
        %v1660 = vrot.slane %v1493, 2
        %v1661 = vrot.slane %v1496, 3
        %v1662 = vor.u32 %v1660, %v1661
        %v1663 = vsel %vm1596, %v1658, %v1662
        %v1665 = vshrl.u32 %v1588, 16
        %v1667 = vrot.slane %v1665, 2
        %v1668 = vshll.u32 %v1588, 16
        %v1670 = vrot.slane %v1668, 3
        %v1671 = vor.u32 %v1667, %v1670
        %v1672 = vsel %vm1596, %v1662, %v1671
        %v1674 = vshrl.u32 %v1589, 16
        %v1676 = vrot.slane %v1674, 2
        %v1677 = vshll.u32 %v1589, 16
        %v1679 = vrot.slane %v1677, 3
        %v1680 = vor.u32 %v1676, %v1679
        %v1681 = vsel %vm1596, %v1671, %v1680
        %vm1700 = vcmask 1044480
        %v1701 = vrot.slane %v1152, 3
        %v1702 = vrot.slane %v1153, 3
        %v1703 = vsel %vm1700, %v1701, %v1702
        %v1704 = vrot.slane %v1154, 3
        %v1705 = vsel %vm1700, %v1702, %v1704
        %v1706 = vrot.slane %v1155, 3
        %v1707 = vsel %vm1700, %v1704, %v1706
        %v1708 = vrot.slane %v1156, 3
        %v1709 = vsel %vm1700, %v1706, %v1708
        %v1710 = vrot.slane %v1157, 3
        %v1711 = vsel %vm1700, %v1708, %v1710
        %v1712 = vrot.slane %v1158, 3
        %v1713 = vsel %vm1700, %v1710, %v1712
        %v1714 = vrot.slane %v1159, 3
        %v1715 = vsel %vm1700, %v1712, %v1714
        %v1716 = vrot.slane %v1160, 3
        %v1717 = vsel %vm1700, %v1714, %v1716
        %v1718 = vrot.slane %v1161, 3
        %v1719 = vsel %vm1700, %v1716, %v1718
        %v1720 = vrot.slane %v1162, 3
        %v1721 = vsel %vm1700, %v1718, %v1720
        %v1722 = vrot.slane %v1163, 3
        %v1723 = vsel %vm1700, %v1720, %v1722
        %v1724 = vrot.slane %v1164, 3
        %v1725 = vsel %vm1700, %v1722, %v1724
        %v1726 = vrot.slane %v1165, 3
        %v1727 = vsel %vm1700, %v1724, %v1726
        %v1728 = vrot.slane %v1166, 3
        %v1729 = vsel %vm1700, %v1726, %v1728
        %v1730 = vrot.slane %v1167, 3
        %v1731 = vsel %vm1700, %v1728, %v1730
        %v1732 = vrot.slane %v1416, 3
        %v1733 = vsel %vm1700, %v1730, %v1732
        %v1734 = vrot.slane %v1588, 3
        %v1735 = vsel %vm1700, %v1732, %v1734
        %v1736 = vrot.slane %v1589, 3
        %v1737 = vsel %vm1700, %v1734, %v1736
        %v1756 = vld [vmem:[%s4] sm:$0xf]
        %v1757 = vld [vmem:[%s4 + $0x4] sm:$0xf]
        %v1758 = vld [vmem:[%s4 + $0x8] sm:$0xf]
        %v1759 = vld [vmem:[%s4 + $0xc] sm:$0xf]
        %v1760 = vld [vmem:[%s4 + $0x10] sm:$0xf]
        %v1761 = vld [vmem:[%s4 + $0x14] sm:$0xf]
        %v1762 = vld [vmem:[%s4 + $0x18] sm:$0xf]
        %v1763 = vld [vmem:[%s4 + $0x1c] sm:$0xf]
        %v1764 = vld [vmem:[%s4 + $0x20] sm:$0xf]
        %v1765 = vld [vmem:[%s4 + $0x24] sm:$0xf]
        %v1766 = vld [vmem:[%s4 + $0x28] sm:$0xf]
        %v1767 = vld [vmem:[%s4 + $0x2c] sm:$0xf]
        %v1768 = vld [vmem:[%s4 + $0x30] sm:$0xf]
        %v1769 = vld [vmem:[%s4 + $0x34] sm:$0xf]
        %v1770 = vld [vmem:[%s4 + $0x38] sm:$0xf]
        %v1771 = vld [vmem:[%s4 + $0x3c] sm:$0xf]
        %v1772 = vld [vmem:[%s4 + $0x40] sm:$0xf]
        %v1773 = vld [vmem:[%s4 + $0x44] sm:$0xf]
        %v1774 = vld [vmem:[%s4 + $0x48] sm:$0xf]
        %v1775 = vld [vmem:[%s4 + $0x4c] sm:$0xf]
        %v1776 = vld [vmem:[%s4 + $0x50] sm:$0xf]
        %v1777 = vld [vmem:[%s4 + $0x54] sm:$0xf]
        %v1778 = vld [vmem:[%s4 + $0x58] sm:$0xf]
        %v1779 = vld [vmem:[%s4 + $0x5c] sm:$0xf]
        %v1780 = vld [vmem:[%s4 + $0x60] sm:$0xf]
        %v1781 = vld [vmem:[%s4 + $0x64] sm:$0xf]
        %v1782 = vld [vmem:[%s4 + $0x68] sm:$0xf]
        %v1783 = vld [vmem:[%s4 + $0x6c] sm:$0xf]
        %v1784 = vld [vmem:[%s4 + $0x70] sm:$0xf]
        %v1785 = vld [vmem:[%s4 + $0x74] sm:$0xf]
        %v1786 = vld [vmem:[%s4 + $0x78] sm:$0xf]
        %v1787 = vld [vmem:[%s4 + $0x7c] sm:$0xf]
        %v1788 = vld [vmem:[%s4 + $0x80] sm:$0xf]
        %v1789 = vld [vmem:[%s4 + $0x84] sm:$0xf]
        %v1790 = vld [vmem:[%s4 + $0x88] sm:$0xf]
        %v1791 = vld [vmem:[%s4 + $0x8c] sm:$0xf]
        %v1792 = vld [vmem:[%s4 + $0x90] sm:$0xf]
        %v1793 = vld [vmem:[%s4 + $0x94] sm:$0xf]
        %v1794 = vld [vmem:[%s4 + $0x98] sm:$0xf]
        %v1795 = vld [vmem:[%s4 + $0x9c] sm:$0xf]
        %v1796 = vld [vmem:[%s4 + $0xa0] sm:$0xf]
        %v1797 = vld [vmem:[%s4 + $0xa4] sm:$0xf]
        %v1798 = vld [vmem:[%s4 + $0xa8] sm:$0xf]
        %v1799 = vld [vmem:[%s4 + $0xac] sm:$0xf]
        %v1800 = vld [vmem:[%s4 + $0xb0] sm:$0xf]
        %v1801 = vld [vmem:[%s4 + $0xb4] sm:$0xf]
        %v1802 = vld [vmem:[%s4 + $0xb8] sm:$0xf]
        %v1803 = vld [vmem:[%s4 + $0xbc] sm:$0xf]
        %v1804 = vld [vmem:[%s4 + $0xc0] sm:$0xf]
        %v1805 = vld [vmem:[%s4 + $0xc4] sm:$0xf]
        %v1806 = vld [vmem:[%s4 + $0xc8] sm:$0xf]
        %v1807 = vld [vmem:[%s4 + $0xcc] sm:$0xf]
        %v1808 = vld [vmem:[%s4 + $0xd0] sm:$0xf]
        %v1809 = vld [vmem:[%s4 + $0xd4] sm:$0xf]
        %v1810 = vld [vmem:[%s4 + $0xd8] sm:$0xf]
        %v1811 = vld [vmem:[%s4 + $0xdc] sm:$0xf]
        %v1812 = vld [vmem:[%s4 + $0xe0] sm:$0xf]
        %v1813 = vld [vmem:[%s4 + $0xe4] sm:$0xf]
        %v1814 = vld [vmem:[%s4 + $0xe8] sm:$0xf]
        %v1815 = vld [vmem:[%s4 + $0xec] sm:$0xf]
        %v1816 = vld [vmem:[%s4 + $0xf0] sm:$0xf]
        %v1817 = vld [vmem:[%s4 + $0xf4] sm:$0xf]
        %v1818 = vld [vmem:[%s4 + $0xf8] sm:$0xf]
        %v1819 = vld [vmem:[%s4 + $0xfc] sm:$0xf]
        %v1820 = vld [vmem:[%s4 + $0x100] sm:$0xf]
        %v1821 = vld [vmem:[%s4 + $0x104] sm:$0xf]
        %v1822 = vld [vmem:[%s4 + $0x108] sm:$0xf]
        %v1823 = vld [vmem:[%s4 + $0x10c] sm:$0xf]
        %v1824 = vld [vmem:[%s4 + $0x110] sm:$0xf]
        %v1825 = vld [vmem:[%s4 + $0x114] sm:$0xf]
        %v1826 = vld [vmem:[%s4 + $0x118] sm:$0xf]
        %v1827 = vld [vmem:[%s4 + $0x11c] sm:$0xf]
        %v1828 = vld [vmem:[%s4 + $0x120] sm:$0xf]
        %v1829 = vld [vmem:[%s4 + $0x124] sm:$0xf]
        %v1830 = vld [vmem:[%s4 + $0x128] sm:$0xf]
        %v1831 = vld [vmem:[%s4 + $0x12c] sm:$0xf]
        %v1832 = vld [vmem:[%s4 + $0x130] sm:$0xf]
        %v1833 = vld [vmem:[%s4 + $0x134] sm:$0xf]
        %v1834 = vld [vmem:[%s4 + $0x138] sm:$0xf]
        %v1835 = vld [vmem:[%s4 + $0x13c] sm:$0xf]
        %v1836 = vld [vmem:[%s4 + $0x140] sm:$0xf]
        %v1837 = vld [vmem:[%s4 + $0x144] sm:$0xf]
        %v1838 = vld [vmem:[%s4 + $0x148] sm:$0xf]
        %v1839 = vld [vmem:[%s4 + $0x14c] sm:$0xf]
        %v1840 = vld [vmem:[%s4 + $0x150] sm:$0xf]
        %v1841 = vld [vmem:[%s4 + $0x154] sm:$0xf]
        %v1842 = vld [vmem:[%s4 + $0x158] sm:$0xf]
        %v1843 = vld [vmem:[%s4 + $0x15c] sm:$0xf]
        %v1844 = vld [vmem:[%s4 + $0x160] sm:$0xf]
        %v1845 = vld [vmem:[%s4 + $0x164] sm:$0xf]
        %v1846 = vld [vmem:[%s4 + $0x168] sm:$0xf]
        %v1847 = vld [vmem:[%s4 + $0x16c] sm:$0xf]
        %v1848 = vld [vmem:[%s4 + $0x170] sm:$0xf]
        %v1849 = vld [vmem:[%s4 + $0x174] sm:$0xf]
        %v1850 = vld [vmem:[%s4 + $0x178] sm:$0xf]
        %v1851 = vld [vmem:[%s4 + $0x17c] sm:$0xf]
        %v1852 = vld [vmem:[%s4 + $0x180] sm:$0xf]
        %v1853 = vld [vmem:[%s4 + $0x184] sm:$0xf]
        %v1854 = vld [vmem:[%s4 + $0x188] sm:$0xf]
        %v1855 = vld [vmem:[%s4 + $0x18c] sm:$0xf]
        %v1856 = vld [vmem:[%s4 + $0x190] sm:$0xf]
        %v1857 = vld [vmem:[%s4 + $0x194] sm:$0xf]
        %v1858 = vld [vmem:[%s4 + $0x198] sm:$0xf]
        %v1859 = vld [vmem:[%s4 + $0x19c] sm:$0xf]
        %v1860 = vld [vmem:[%s4 + $0x1a0] sm:$0xf]
        %v1861 = vld [vmem:[%s4 + $0x1a4] sm:$0xf]
        %v1862 = vld [vmem:[%s4 + $0x1a8] sm:$0xf]
        %v1863 = vld [vmem:[%s4 + $0x1ac] sm:$0xf]
        %v1864 = vld [vmem:[%s4 + $0x1b0] sm:$0xf]
        %v1865 = vld [vmem:[%s4 + $0x1b4] sm:$0xf]
        %v1866 = vld [vmem:[%s4 + $0x1b8] sm:$0xf]
        %v1867 = vld [vmem:[%s4 + $0x1bc] sm:$0xf]
        %v1868 = vld [vmem:[%s4 + $0x1c0] sm:$0xf]
        %v1869 = vld [vmem:[%s4 + $0x1c4] sm:$0xf]
        %v1870 = vld [vmem:[%s4 + $0x1c8] sm:$0xf]
        %v1871 = vld [vmem:[%s4 + $0x1cc] sm:$0xf]
        %v1872 = vld [vmem:[%s4 + $0x1d0] sm:$0xf]
        %v1873 = vld [vmem:[%s4 + $0x1d4] sm:$0xf]
        %v1874 = vld [vmem:[%s4 + $0x1d8] sm:$0xf]
        %v1875 = vld [vmem:[%s4 + $0x1dc] sm:$0xf]
        %v1876 = vld [vmem:[%s4 + $0x1e0] sm:$0xf]
        %v1877 = vld [vmem:[%s4 + $0x1e4] sm:$0xf]
        %v1878 = vld [vmem:[%s4 + $0x1e8] sm:$0xf]
        %v1879 = vld [vmem:[%s4 + $0x1ec] sm:$0xf]
        %v1880 = vld [vmem:[%s4 + $0x1f0] sm:$0xf]
        %v1881 = vld [vmem:[%s4 + $0x1f4] sm:$0xf]
        %v1882 = vld [vmem:[%s4 + $0x1f8] sm:$0xf]
        %v1883 = vld [vmem:[%s4 + $0x1fc] sm:$0xf]
        %v1884 = vld [vmem:[%s4 + $0x200] sm:$0xf]
        %v1885 = vld [vmem:[%s4 + $0x204] sm:$0xf]
        %v1886 = vld [vmem:[%s4 + $0x208] sm:$0xf]
        %v1887 = vld [vmem:[%s4 + $0x20c] sm:$0xf]
        %v1888 = vld [vmem:[%s4 + $0x210] sm:$0xf]
        %v1889 = vld [vmem:[%s4 + $0x214] sm:$0xf]
        %v1890 = vld [vmem:[%s4 + $0x218] sm:$0xf]
        %v1891 = vld [vmem:[%s4 + $0x21c] sm:$0xf]
        %v1892 = vld [vmem:[%s4 + $0x220] sm:$0xf]
        %v1893 = vld [vmem:[%s4 + $0x224] sm:$0xf]
        %v1894 = vld [vmem:[%s4 + $0x228] sm:$0xf]
        %v1895 = vld [vmem:[%s4 + $0x22c] sm:$0xf]
        %v1896 = vld [vmem:[%s4 + $0x230] sm:$0xf]
        %v1897 = vld [vmem:[%s4 + $0x234] sm:$0xf]
        %v1898 = vld [vmem:[%s4 + $0x238] sm:$0xf]
        %v1899 = vld [vmem:[%s4 + $0x23c] sm:$0xf]
        %v1900 = vld [vmem:[%s5] sm:$0x1]
        %v1902 = vperm.slane %v1900, 0
        %v2048 = vunpack.c.l.b16 %v1756
        %v2049 = vunpack.c.l.b16 %v1757
        %v2050 = vunpack.c.l.b16 %v1758
        %v2051 = vunpack.c.l.b16 %v1759
        %v2052 = vunpack.c.l.b16 %v1760
        %v2053 = vunpack.c.l.b16 %v1761
        %v2054 = vunpack.c.l.b16 %v1762
        %v2055 = vunpack.c.l.b16 %v1763
        %v2056 = vunpack.c.l.b16 %v1764
        %v2057 = vunpack.c.l.b16 %v1765
        %v2058 = vunpack.c.l.b16 %v1766
        %v2059 = vunpack.c.l.b16 %v1767
        %v2060 = vunpack.c.l.b16 %v1768
        %v2061 = vunpack.c.l.b16 %v1769
        %v2062 = vunpack.c.l.b16 %v1770
        %v2063 = vunpack.c.l.b16 %v1771
        %v2064 = vunpack.c.l.b16 %v1772
        %v2065 = vunpack.c.l.b16 %v1773
        %v2066 = vunpack.c.l.b16 %v1774
        %v2067 = vunpack.c.l.b16 %v1775
        %v2068 = vunpack.c.l.b16 %v1776
        %v2069 = vunpack.c.l.b16 %v1777
        %v2070 = vunpack.c.l.b16 %v1778
        %v2071 = vunpack.c.l.b16 %v1779
        %v2072 = vunpack.c.l.b16 %v1780
        %v2073 = vunpack.c.l.b16 %v1781
        %v2074 = vunpack.c.l.b16 %v1782
        %v2075 = vunpack.c.l.b16 %v1783
        %v2076 = vunpack.c.l.b16 %v1784
        %v2077 = vunpack.c.l.b16 %v1785
        %v2078 = vunpack.c.l.b16 %v1786
        %v2079 = vunpack.c.l.b16 %v1787
        %v2080 = vunpack.c.l.b16 %v1788
        %v2081 = vunpack.c.l.b16 %v1789
        %v2082 = vunpack.c.l.b16 %v1790
        %v2083 = vunpack.c.l.b16 %v1791
        %v2084 = vunpack.c.l.b16 %v1792
        %v2085 = vunpack.c.l.b16 %v1793
        %v2086 = vunpack.c.l.b16 %v1794
        %v2087 = vunpack.c.l.b16 %v1795
        %v2088 = vunpack.c.l.b16 %v1796
        %v2089 = vunpack.c.l.b16 %v1797
        %v2090 = vunpack.c.l.b16 %v1798
        %v2091 = vunpack.c.l.b16 %v1799
        %v2092 = vunpack.c.l.b16 %v1800
        %v2093 = vunpack.c.l.b16 %v1801
        %v2094 = vunpack.c.l.b16 %v1802
        %v2095 = vunpack.c.l.b16 %v1803
        %v2096 = vunpack.c.l.b16 %v1804
        %v2097 = vunpack.c.l.b16 %v1805
        %v2098 = vunpack.c.l.b16 %v1806
        %v2099 = vunpack.c.l.b16 %v1807
        %v2100 = vunpack.c.l.b16 %v1808
        %v2101 = vunpack.c.l.b16 %v1809
        %v2102 = vunpack.c.l.b16 %v1810
        %v2103 = vunpack.c.l.b16 %v1811
        %v2104 = vunpack.c.l.b16 %v1812
        %v2105 = vunpack.c.l.b16 %v1813
        %v2106 = vunpack.c.l.b16 %v1814
        %v2107 = vunpack.c.l.b16 %v1815
        %v2108 = vunpack.c.l.b16 %v1816
        %v2109 = vunpack.c.l.b16 %v1817
        %v2110 = vunpack.c.l.b16 %v1818
        %v2111 = vunpack.c.l.b16 %v1819
        %v2112 = vunpack.c.l.b16 %v1820
        %v2113 = vunpack.c.l.b16 %v1821
        %v2114 = vunpack.c.l.b16 %v1822
        %v2115 = vunpack.c.l.b16 %v1823
        %v2116 = vunpack.c.l.b16 %v1824
        %v2117 = vunpack.c.l.b16 %v1825
        %v2118 = vunpack.c.l.b16 %v1826
        %v2119 = vunpack.c.l.b16 %v1827
        %v2120 = vunpack.c.l.b16 %v1828
        %v2121 = vunpack.c.l.b16 %v1829
        %v2122 = vunpack.c.l.b16 %v1830
        %v2123 = vunpack.c.l.b16 %v1831
        %v2124 = vunpack.c.l.b16 %v1832
        %v2125 = vunpack.c.l.b16 %v1833
        %v2126 = vunpack.c.l.b16 %v1834
        %v2127 = vunpack.c.l.b16 %v1835
        %v2128 = vunpack.c.l.b16 %v1836
        %v2129 = vunpack.c.l.b16 %v1837
        %v2130 = vunpack.c.l.b16 %v1838
        %v2131 = vunpack.c.l.b16 %v1839
        %v2132 = vunpack.c.l.b16 %v1840
        %v2133 = vunpack.c.l.b16 %v1841
        %v2134 = vunpack.c.l.b16 %v1842
        %v2135 = vunpack.c.l.b16 %v1843
        %v2136 = vunpack.c.l.b16 %v1844
        %v2137 = vunpack.c.l.b16 %v1845
        %v2138 = vunpack.c.l.b16 %v1846
        %v2139 = vunpack.c.l.b16 %v1847
        %v2140 = vunpack.c.l.b16 %v1848
        %v2141 = vunpack.c.l.b16 %v1849
        %v2142 = vunpack.c.l.b16 %v1850
        %v2143 = vunpack.c.l.b16 %v1851
        %v2144 = vunpack.c.l.b16 %v1852
        %v2145 = vunpack.c.l.b16 %v1853
        %v2146 = vunpack.c.l.b16 %v1854
        %v2147 = vunpack.c.l.b16 %v1855
        %v2148 = vunpack.c.l.b16 %v1856
        %v2149 = vunpack.c.l.b16 %v1857
        %v2150 = vunpack.c.l.b16 %v1858
        %v2151 = vunpack.c.l.b16 %v1859
        %v2152 = vunpack.c.l.b16 %v1860
        %v2153 = vunpack.c.l.b16 %v1861
        %v2154 = vunpack.c.l.b16 %v1862
        %v2155 = vunpack.c.l.b16 %v1863
        %v2156 = vunpack.c.l.b16 %v1864
        %v2157 = vunpack.c.l.b16 %v1865
        %v2158 = vunpack.c.l.b16 %v1866
        %v2159 = vunpack.c.l.b16 %v1867
        %v2160 = vunpack.c.l.b16 %v1868
        %v2161 = vunpack.c.l.b16 %v1869
        %v2162 = vunpack.c.l.b16 %v1870
        %v2163 = vunpack.c.l.b16 %v1871
        %v2164 = vunpack.c.l.b16 %v1872
        %v2165 = vunpack.c.l.b16 %v1873
        %v2166 = vunpack.c.l.b16 %v1874
        %v2167 = vunpack.c.l.b16 %v1875
        %v2168 = vunpack.c.l.b16 %v1876
        %v2169 = vunpack.c.l.b16 %v1877
        %v2170 = vunpack.c.l.b16 %v1878
        %v2171 = vunpack.c.l.b16 %v1879
        %v2172 = vunpack.c.l.b16 %v1880
        %v2173 = vunpack.c.l.b16 %v1881
        %v2174 = vunpack.c.l.b16 %v1882
        %v2175 = vunpack.c.l.b16 %v1883
        %v2176 = vunpack.c.l.b16 %v1884
        %v2177 = vunpack.c.l.b16 %v1885
        %v2178 = vunpack.c.l.b16 %v1886
        %v2179 = vunpack.c.l.b16 %v1887
        %v2180 = vunpack.c.l.b16 %v1888
        %v2181 = vunpack.c.l.b16 %v1889
        %v2182 = vunpack.c.l.b16 %v1890
        %v2183 = vunpack.c.l.b16 %v1891
        %v2184 = vunpack.c.l.b16 %v1892
        %v2185 = vunpack.c.l.b16 %v1893
        %v2186 = vunpack.c.l.b16 %v1894
        %v2187 = vunpack.c.l.b16 %v1895
        %v2188 = vunpack.c.l.b16 %v1896
        %v2189 = vunpack.c.l.b16 %v1897
        %v2190 = vunpack.c.l.b16 %v1898
        %v2191 = vunpack.c.l.b16 %v1899
        %v2192 = vpack.c.b16 %v2049, %v2048
        %v2193 = vpack.c.b16 %v2051, %v2050
        %v2194 = vpack.c.b16 %v2053, %v2052
        %v2195 = vpack.c.b16 %v2055, %v2054
        %v2196 = vpack.c.b16 %v2057, %v2056
        %v2197 = vpack.c.b16 %v2059, %v2058
        %v2198 = vpack.c.b16 %v2061, %v2060
        %v2199 = vpack.c.b16 %v2063, %v2062
        %v2200 = vpack.c.b16 %v2065, %v2064
        %v2201 = vpack.c.b16 %v2067, %v2066
        %v2202 = vpack.c.b16 %v2069, %v2068
        %v2203 = vpack.c.b16 %v2071, %v2070
        %v2204 = vpack.c.b16 %v2073, %v2072
        %v2205 = vpack.c.b16 %v2075, %v2074
        %v2206 = vpack.c.b16 %v2077, %v2076
        %v2207 = vpack.c.b16 %v2079, %v2078
        %v2208 = vpack.c.b16 %v2081, %v2080
        %v2209 = vpack.c.b16 %v2083, %v2082
        %v2210 = vpack.c.b16 %v2085, %v2084
        %v2211 = vpack.c.b16 %v2087, %v2086
        %v2212 = vpack.c.b16 %v2089, %v2088
        %v2213 = vpack.c.b16 %v2091, %v2090
        %v2214 = vpack.c.b16 %v2093, %v2092
        %v2215 = vpack.c.b16 %v2095, %v2094
        %v2216 = vpack.c.b16 %v2097, %v2096
        %v2217 = vpack.c.b16 %v2099, %v2098
        %v2218 = vpack.c.b16 %v2101, %v2100
        %v2219 = vpack.c.b16 %v2103, %v2102
        %v2220 = vpack.c.b16 %v2105, %v2104
        %v2221 = vpack.c.b16 %v2107, %v2106
        %v2222 = vpack.c.b16 %v2109, %v2108
        %v2223 = vpack.c.b16 %v2111, %v2110
        %v2224 = vpack.c.b16 %v2113, %v2112
        %v2225 = vpack.c.b16 %v2115, %v2114
        %v2226 = vpack.c.b16 %v2117, %v2116
        %v2227 = vpack.c.b16 %v2119, %v2118
        %v2228 = vpack.c.b16 %v2121, %v2120
        %v2229 = vpack.c.b16 %v2123, %v2122
        %v2230 = vpack.c.b16 %v2125, %v2124
        %v2231 = vpack.c.b16 %v2127, %v2126
        %v2232 = vpack.c.b16 %v2129, %v2128
        %v2233 = vpack.c.b16 %v2131, %v2130
        %v2234 = vpack.c.b16 %v2133, %v2132
        %v2235 = vpack.c.b16 %v2135, %v2134
        %v2236 = vpack.c.b16 %v2137, %v2136
        %v2237 = vpack.c.b16 %v2139, %v2138
        %v2238 = vpack.c.b16 %v2141, %v2140
        %v2239 = vpack.c.b16 %v2143, %v2142
        %v2240 = vpack.c.b16 %v2145, %v2144
        %v2241 = vpack.c.b16 %v2147, %v2146
        %v2242 = vpack.c.b16 %v2149, %v2148
        %v2243 = vpack.c.b16 %v2151, %v2150
        %v2244 = vpack.c.b16 %v2153, %v2152
        %v2245 = vpack.c.b16 %v2155, %v2154
        %v2246 = vpack.c.b16 %v2157, %v2156
        %v2247 = vpack.c.b16 %v2159, %v2158
        %v2248 = vpack.c.b16 %v2161, %v2160
        %v2249 = vpack.c.b16 %v2163, %v2162
        %v2250 = vpack.c.b16 %v2165, %v2164
        %v2251 = vpack.c.b16 %v2167, %v2166
        %v2252 = vpack.c.b16 %v2169, %v2168
        %v2253 = vpack.c.b16 %v2171, %v2170
        %v2254 = vpack.c.b16 %v2173, %v2172
        %v2255 = vpack.c.b16 %v2175, %v2174
        %v2256 = vpack.c.b16 %v2177, %v2176
        %v2257 = vpack.c.b16 %v2179, %v2178
        %v2258 = vpack.c.b16 %v2181, %v2180
        %v2259 = vpack.c.b16 %v2183, %v2182
        %v2260 = vpack.c.b16 %v2185, %v2184
        %v2261 = vpack.c.b16 %v2187, %v2186
        %v2262 = vpack.c.b16 %v2189, %v2188
        %v2263 = vpack.c.b16 %v2191, %v2190
        %2336 = vmatpush.bf16.msra.mxu0 %v2199
        %2337 = vmatpush.bf16.msra.mxu0 %v2198
        %2338 = vmatpush.bf16.msra.mxu0 %v2197
        %2339 = vmatpush.bf16.msra.mxu0 %v2196
        %2340 = vmatpush.bf16.msra.mxu0 %v2195
        %2341 = vmatpush.bf16.msra.mxu0 %v2194
        %2342 = vmatpush.bf16.msra.mxu0 %v2193
        %2343 = vmatpush.bf16.msra.mxu0 %v2192
        %2344 = vmatmul.bf16.gmra.mxu0 %v1150
        %v2345 = vpop.f32.mrf.mxu0
        %v2346 = vadd.f32 %v1902, %v2345
        %v2347 = vpop.f32.mrf.mxu0
        %v2348 = vadd.f32 %v1902, %v2347
        %2349 = vmatmul.bf16.gmra.mxu0 %v1151
        %v2350 = vpop.f32.mrf.mxu0
        %v2351 = vadd.f32 %v1902, %v2350
        %v2352 = vpop.f32.mrf.mxu0
        %v2353 = vadd.f32 %v1902, %v2352
        %2354 = vmatmul.bf16.gmra.mxu0 %v1152
        %v2355 = vpop.f32.mrf.mxu0
        %v2356 = vadd.f32 %v1902, %v2355
        %v2357 = vpop.f32.mrf.mxu0
        %v2358 = vadd.f32 %v1902, %v2357
        %2359 = vmatmul.bf16.gmra.mxu0 %v1153
        %v2360 = vpop.f32.mrf.mxu0
        %v2361 = vadd.f32 %v1902, %v2360
        %v2362 = vpop.f32.mrf.mxu0
        %v2363 = vadd.f32 %v1902, %v2362
        %2364 = vmatmul.bf16.gmra.mxu0 %v1154
        %v2365 = vpop.f32.mrf.mxu0
        %v2366 = vadd.f32 %v1902, %v2365
        %v2367 = vpop.f32.mrf.mxu0
        %v2368 = vadd.f32 %v1902, %v2367
        %2369 = vmatmul.bf16.gmra.mxu0 %v1155
        %v2370 = vpop.f32.mrf.mxu0
        %v2371 = vadd.f32 %v1902, %v2370
        %v2372 = vpop.f32.mrf.mxu0
        %v2373 = vadd.f32 %v1902, %v2372
        %2374 = vmatmul.bf16.gmra.mxu0 %v1156
        %v2375 = vpop.f32.mrf.mxu0
        %v2376 = vadd.f32 %v1902, %v2375
        %v2377 = vpop.f32.mrf.mxu0
        %v2378 = vadd.f32 %v1902, %v2377
        %2379 = vmatmul.bf16.gmra.mxu0 %v1157
        %v2380 = vpop.f32.mrf.mxu0
        %v2381 = vadd.f32 %v1902, %v2380
        %v2382 = vpop.f32.mrf.mxu0
        %v2383 = vadd.f32 %v1902, %v2382
        %2384 = vmatmul.bf16.gmra.mxu0 %v1158
        %v2385 = vpop.f32.mrf.mxu0
        %v2386 = vadd.f32 %v1902, %v2385
        %v2387 = vpop.f32.mrf.mxu0
        %v2388 = vadd.f32 %v1902, %v2387
        %2389 = vmatmul.bf16.gmra.mxu0 %v1159
        %v2390 = vpop.f32.mrf.mxu0
        %v2391 = vadd.f32 %v1902, %v2390
        %v2392 = vpop.f32.mrf.mxu0
        %v2393 = vadd.f32 %v1902, %v2392
        %2394 = vmatmul.bf16.gmra.mxu0 %v1160
        %v2395 = vpop.f32.mrf.mxu0
        %v2396 = vadd.f32 %v1902, %v2395
        %v2397 = vpop.f32.mrf.mxu0
        %v2398 = vadd.f32 %v1902, %v2397
        %2399 = vmatmul.bf16.gmra.mxu0 %v1161
        %v2400 = vpop.f32.mrf.mxu0
        %v2401 = vadd.f32 %v1902, %v2400
        %v2402 = vpop.f32.mrf.mxu0
        %v2403 = vadd.f32 %v1902, %v2402
        %2404 = vmatmul.bf16.gmra.mxu0 %v1162
        %v2405 = vpop.f32.mrf.mxu0
        %v2406 = vadd.f32 %v1902, %v2405
        %v2407 = vpop.f32.mrf.mxu0
        %v2408 = vadd.f32 %v1902, %v2407
        %2409 = vmatmul.bf16.gmra.mxu0 %v1163
        %v2410 = vpop.f32.mrf.mxu0
        %v2411 = vadd.f32 %v1902, %v2410
        %v2412 = vpop.f32.mrf.mxu0
        %v2413 = vadd.f32 %v1902, %v2412
        %2414 = vmatmul.bf16.gmra.mxu0 %v1164
        %v2415 = vpop.f32.mrf.mxu0
        %v2416 = vadd.f32 %v1902, %v2415
        %v2417 = vpop.f32.mrf.mxu0
        %v2418 = vadd.f32 %v1902, %v2417
        %2419 = vmatmul.bf16.gmra.mxu0 %v1165
        %v2420 = vpop.f32.mrf.mxu0
        %v2421 = vadd.f32 %v1902, %v2420
        %v2422 = vpop.f32.mrf.mxu0
        %v2423 = vadd.f32 %v1902, %v2422
        %2424 = vmatmul.bf16.gmra.mxu0 %v1166
        %v2425 = vpop.f32.mrf.mxu0
        %v2426 = vadd.f32 %v1902, %v2425
        %v2427 = vpop.f32.mrf.mxu0
        %v2428 = vadd.f32 %v1902, %v2427
        %2429 = vmatmul.bf16.gmra.mxu0 %v1167
        %v2430 = vpop.f32.mrf.mxu0
        %v2431 = vadd.f32 %v1902, %v2430
        %v2432 = vpop.f32.mrf.mxu0
        %v2433 = vadd.f32 %v1902, %v2432
        %2434 = vdwg.mxu0
        %2435 = vmatpush.bf16.msra.mxu0 %v2207
        %2436 = vmatpush.bf16.msra.mxu0 %v2206
        %2437 = vmatpush.bf16.msra.mxu0 %v2205
        %2438 = vmatpush.bf16.msra.mxu0 %v2204
        %2439 = vmatpush.bf16.msra.mxu0 %v2203
        %2440 = vmatpush.bf16.msra.mxu0 %v2202
        %2441 = vmatpush.bf16.msra.mxu0 %v2201
        %2442 = vmatpush.bf16.msra.mxu0 %v2200
        %2443 = vmatmul.bf16.gmra.mxu0 %v1201
        %v2444 = vpop.f32.mrf.mxu0
        %v2445 = vadd.f32 %v2346, %v2444
        %v2446 = vpop.f32.mrf.mxu0
        %v2447 = vadd.f32 %v2348, %v2446
        %2448 = vmatmul.bf16.gmra.mxu0 %v1209
        %v2449 = vpop.f32.mrf.mxu0
        %v2450 = vadd.f32 %v2351, %v2449
        %v2451 = vpop.f32.mrf.mxu0
        %v2452 = vadd.f32 %v2353, %v2451
        %2453 = vmatmul.bf16.gmra.mxu0 %v1217
        %v2454 = vpop.f32.mrf.mxu0
        %v2455 = vadd.f32 %v2356, %v2454
        %v2456 = vpop.f32.mrf.mxu0
        %v2457 = vadd.f32 %v2358, %v2456
        %2458 = vmatmul.bf16.gmra.mxu0 %v1225
        %v2459 = vpop.f32.mrf.mxu0
        %v2460 = vadd.f32 %v2361, %v2459
        %v2461 = vpop.f32.mrf.mxu0
        %v2462 = vadd.f32 %v2363, %v2461
        %2463 = vmatmul.bf16.gmra.mxu0 %v1233
        %v2464 = vpop.f32.mrf.mxu0
        %v2465 = vadd.f32 %v2366, %v2464
        %v2466 = vpop.f32.mrf.mxu0
        %v2467 = vadd.f32 %v2368, %v2466
        %2468 = vmatmul.bf16.gmra.mxu0 %v1241
        %v2469 = vpop.f32.mrf.mxu0
        %v2470 = vadd.f32 %v2371, %v2469
        %v2471 = vpop.f32.mrf.mxu0
        %v2472 = vadd.f32 %v2373, %v2471
        %2473 = vmatmul.bf16.gmra.mxu0 %v1249
        %v2474 = vpop.f32.mrf.mxu0
        %v2475 = vadd.f32 %v2376, %v2474
        %v2476 = vpop.f32.mrf.mxu0
        %v2477 = vadd.f32 %v2378, %v2476
        %2478 = vmatmul.bf16.gmra.mxu0 %v1257
        %v2479 = vpop.f32.mrf.mxu0
        %v2480 = vadd.f32 %v2381, %v2479
        %v2481 = vpop.f32.mrf.mxu0
        %v2482 = vadd.f32 %v2383, %v2481
        %2483 = vmatmul.bf16.gmra.mxu0 %v1265
        %v2484 = vpop.f32.mrf.mxu0
        %v2485 = vadd.f32 %v2386, %v2484
        %v2486 = vpop.f32.mrf.mxu0
        %v2487 = vadd.f32 %v2388, %v2486
        %2488 = vmatmul.bf16.gmra.mxu0 %v1273
        %v2489 = vpop.f32.mrf.mxu0
        %v2490 = vadd.f32 %v2391, %v2489
        %v2491 = vpop.f32.mrf.mxu0
        %v2492 = vadd.f32 %v2393, %v2491
        %2493 = vmatmul.bf16.gmra.mxu0 %v1281
        %v2494 = vpop.f32.mrf.mxu0
        %v2495 = vadd.f32 %v2396, %v2494
        %v2496 = vpop.f32.mrf.mxu0
        %v2497 = vadd.f32 %v2398, %v2496
        %2498 = vmatmul.bf16.gmra.mxu0 %v1289
        %v2499 = vpop.f32.mrf.mxu0
        %v2500 = vadd.f32 %v2401, %v2499
        %v2501 = vpop.f32.mrf.mxu0
        %v2502 = vadd.f32 %v2403, %v2501
        %2503 = vmatmul.bf16.gmra.mxu0 %v1297
        %v2504 = vpop.f32.mrf.mxu0
        %v2505 = vadd.f32 %v2406, %v2504
        %v2506 = vpop.f32.mrf.mxu0
        %v2507 = vadd.f32 %v2408, %v2506
        %2508 = vmatmul.bf16.gmra.mxu0 %v1305
        %v2509 = vpop.f32.mrf.mxu0
        %v2510 = vadd.f32 %v2411, %v2509
        %v2511 = vpop.f32.mrf.mxu0
        %v2512 = vadd.f32 %v2413, %v2511
        %2513 = vmatmul.bf16.gmra.mxu0 %v1313
        %v2514 = vpop.f32.mrf.mxu0
        %v2515 = vadd.f32 %v2416, %v2514
        %v2516 = vpop.f32.mrf.mxu0
        %v2517 = vadd.f32 %v2418, %v2516
        %2518 = vmatmul.bf16.gmra.mxu0 %v1321
        %v2519 = vpop.f32.mrf.mxu0
        %v2520 = vadd.f32 %v2421, %v2519
        %v2521 = vpop.f32.mrf.mxu0
        %v2522 = vadd.f32 %v2423, %v2521
        %2523 = vmatmul.bf16.gmra.mxu0 %v1329
        %v2524 = vpop.f32.mrf.mxu0
        %v2525 = vadd.f32 %v2426, %v2524
        %v2526 = vpop.f32.mrf.mxu0
        %v2527 = vadd.f32 %v2428, %v2526
        %2528 = vmatmul.bf16.gmra.mxu0 %v1337
        %v2529 = vpop.f32.mrf.mxu0
        %v2530 = vadd.f32 %v2431, %v2529
        %v2531 = vpop.f32.mrf.mxu0
        %v2532 = vadd.f32 %v2433, %v2531
        %2533 = vdwg.mxu0
        %2534 = vmatpush.bf16.msra.mxu0 %v2215
        %2535 = vmatpush.bf16.msra.mxu0 %v2214
        %2536 = vmatpush.bf16.msra.mxu0 %v2213
        %2537 = vmatpush.bf16.msra.mxu0 %v2212
        %2538 = vmatpush.bf16.msra.mxu0 %v2211
        %2539 = vmatpush.bf16.msra.mxu0 %v2210
        %2540 = vmatpush.bf16.msra.mxu0 %v2209
        %2541 = vmatpush.bf16.msra.mxu0 %v2208
        %2542 = vmatmul.bf16.gmra.mxu0 %v1359
        %v2543 = vpop.f32.mrf.mxu0
        %v2544 = vadd.f32 %v2445, %v2543
        %v2545 = vpop.f32.mrf.mxu0
        %v2546 = vadd.f32 %v2447, %v2545
        %2547 = vmatmul.bf16.gmra.mxu0 %v1361
        %v2548 = vpop.f32.mrf.mxu0
        %v2549 = vadd.f32 %v2450, %v2548
        %v2550 = vpop.f32.mrf.mxu0
        %v2551 = vadd.f32 %v2452, %v2550
        %2552 = vmatmul.bf16.gmra.mxu0 %v1363
        %v2553 = vpop.f32.mrf.mxu0
        %v2554 = vadd.f32 %v2455, %v2553
        %v2555 = vpop.f32.mrf.mxu0
        %v2556 = vadd.f32 %v2457, %v2555
        %2557 = vmatmul.bf16.gmra.mxu0 %v1365
        %v2558 = vpop.f32.mrf.mxu0
        %v2559 = vadd.f32 %v2460, %v2558
        %v2560 = vpop.f32.mrf.mxu0
        %v2561 = vadd.f32 %v2462, %v2560
        %2562 = vmatmul.bf16.gmra.mxu0 %v1367
        %v2563 = vpop.f32.mrf.mxu0
        %v2564 = vadd.f32 %v2465, %v2563
        %v2565 = vpop.f32.mrf.mxu0
        %v2566 = vadd.f32 %v2467, %v2565
        %2567 = vmatmul.bf16.gmra.mxu0 %v1369
        %v2568 = vpop.f32.mrf.mxu0
        %v2569 = vadd.f32 %v2470, %v2568
        %v2570 = vpop.f32.mrf.mxu0
        %v2571 = vadd.f32 %v2472, %v2570
        %2572 = vmatmul.bf16.gmra.mxu0 %v1371
        %v2573 = vpop.f32.mrf.mxu0
        %v2574 = vadd.f32 %v2475, %v2573
        %v2575 = vpop.f32.mrf.mxu0
        %v2576 = vadd.f32 %v2477, %v2575
        %2577 = vmatmul.bf16.gmra.mxu0 %v1373
        %v2578 = vpop.f32.mrf.mxu0
        %v2579 = vadd.f32 %v2480, %v2578
        %v2580 = vpop.f32.mrf.mxu0
        %v2581 = vadd.f32 %v2482, %v2580
        %2582 = vmatmul.bf16.gmra.mxu0 %v1375
        %v2583 = vpop.f32.mrf.mxu0
        %v2584 = vadd.f32 %v2485, %v2583
        %v2585 = vpop.f32.mrf.mxu0
        %v2586 = vadd.f32 %v2487, %v2585
        %2587 = vmatmul.bf16.gmra.mxu0 %v1377
        %v2588 = vpop.f32.mrf.mxu0
        %v2589 = vadd.f32 %v2490, %v2588
        %v2590 = vpop.f32.mrf.mxu0
        %v2591 = vadd.f32 %v2492, %v2590
        %2592 = vmatmul.bf16.gmra.mxu0 %v1379
        %v2593 = vpop.f32.mrf.mxu0
        %v2594 = vadd.f32 %v2495, %v2593
        %v2595 = vpop.f32.mrf.mxu0
        %v2596 = vadd.f32 %v2497, %v2595
        %2597 = vmatmul.bf16.gmra.mxu0 %v1381
        %v2598 = vpop.f32.mrf.mxu0
        %v2599 = vadd.f32 %v2500, %v2598
        %v2600 = vpop.f32.mrf.mxu0
        %v2601 = vadd.f32 %v2502, %v2600
        %2602 = vmatmul.bf16.gmra.mxu0 %v1383
        %v2603 = vpop.f32.mrf.mxu0
        %v2604 = vadd.f32 %v2505, %v2603
        %v2605 = vpop.f32.mrf.mxu0
        %v2606 = vadd.f32 %v2507, %v2605
        %2607 = vmatmul.bf16.gmra.mxu0 %v1385
        %v2608 = vpop.f32.mrf.mxu0
        %v2609 = vadd.f32 %v2510, %v2608
        %v2610 = vpop.f32.mrf.mxu0
        %v2611 = vadd.f32 %v2512, %v2610
        %2612 = vmatmul.bf16.gmra.mxu0 %v1387
        %v2613 = vpop.f32.mrf.mxu0
        %v2614 = vadd.f32 %v2515, %v2613
        %v2615 = vpop.f32.mrf.mxu0
        %v2616 = vadd.f32 %v2517, %v2615
        %2617 = vmatmul.bf16.gmra.mxu0 %v1389
        %v2618 = vpop.f32.mrf.mxu0
        %v2619 = vadd.f32 %v2520, %v2618
        %v2620 = vpop.f32.mrf.mxu0
        %v2621 = vadd.f32 %v2522, %v2620
        %2622 = vmatmul.bf16.gmra.mxu0 %v1391
        %v2623 = vpop.f32.mrf.mxu0
        %v2624 = vadd.f32 %v2525, %v2623
        %v2625 = vpop.f32.mrf.mxu0
        %v2626 = vadd.f32 %v2527, %v2625
        %2627 = vmatmul.bf16.gmra.mxu0 %v1393
        %v2628 = vpop.f32.mrf.mxu0
        %v2629 = vadd.f32 %v2530, %v2628
        %v2630 = vpop.f32.mrf.mxu0
        %v2631 = vadd.f32 %v2532, %v2630
        %2632 = vdwg.mxu0
        %2633 = vmatpush.bf16.msra.mxu0 %v2223
        %2634 = vmatpush.bf16.msra.mxu0 %v2222
        %2635 = vmatpush.bf16.msra.mxu0 %v2221
        %2636 = vmatpush.bf16.msra.mxu0 %v2220
        %2637 = vmatpush.bf16.msra.mxu0 %v2219
        %2638 = vmatpush.bf16.msra.mxu0 %v2218
        %2639 = vmatpush.bf16.msra.mxu0 %v2217
        %2640 = vmatpush.bf16.msra.mxu0 %v2216
        %2641 = vmatmul.bf16.gmra.mxu0 %v1361
        %v2642 = vpop.f32.mrf.mxu0
        %v2643 = vadd.f32 %v2544, %v2642
        %v2644 = vpop.f32.mrf.mxu0
        %v2645 = vadd.f32 %v2546, %v2644
        %2646 = vmatmul.bf16.gmra.mxu0 %v1363
        %v2647 = vpop.f32.mrf.mxu0
        %v2648 = vadd.f32 %v2549, %v2647
        %v2649 = vpop.f32.mrf.mxu0
        %v2650 = vadd.f32 %v2551, %v2649
        %2651 = vmatmul.bf16.gmra.mxu0 %v1365
        %v2652 = vpop.f32.mrf.mxu0
        %v2653 = vadd.f32 %v2554, %v2652
        %v2654 = vpop.f32.mrf.mxu0
        %v2655 = vadd.f32 %v2556, %v2654
        %2656 = vmatmul.bf16.gmra.mxu0 %v1367
        %v2657 = vpop.f32.mrf.mxu0
        %v2658 = vadd.f32 %v2559, %v2657
        %v2659 = vpop.f32.mrf.mxu0
        %v2660 = vadd.f32 %v2561, %v2659
        %2661 = vmatmul.bf16.gmra.mxu0 %v1369
        %v2662 = vpop.f32.mrf.mxu0
        %v2663 = vadd.f32 %v2564, %v2662
        %v2664 = vpop.f32.mrf.mxu0
        %v2665 = vadd.f32 %v2566, %v2664
        %2666 = vmatmul.bf16.gmra.mxu0 %v1371
        %v2667 = vpop.f32.mrf.mxu0
        %v2668 = vadd.f32 %v2569, %v2667
        %v2669 = vpop.f32.mrf.mxu0
        %v2670 = vadd.f32 %v2571, %v2669
        %2671 = vmatmul.bf16.gmra.mxu0 %v1373
        %v2672 = vpop.f32.mrf.mxu0
        %v2673 = vadd.f32 %v2574, %v2672
        %v2674 = vpop.f32.mrf.mxu0
        %v2675 = vadd.f32 %v2576, %v2674
        %2676 = vmatmul.bf16.gmra.mxu0 %v1375
        %v2677 = vpop.f32.mrf.mxu0
        %v2678 = vadd.f32 %v2579, %v2677
        %v2679 = vpop.f32.mrf.mxu0
        %v2680 = vadd.f32 %v2581, %v2679
        %2681 = vmatmul.bf16.gmra.mxu0 %v1377
        %v2682 = vpop.f32.mrf.mxu0
        %v2683 = vadd.f32 %v2584, %v2682
        %v2684 = vpop.f32.mrf.mxu0
        %v2685 = vadd.f32 %v2586, %v2684
        %2686 = vmatmul.bf16.gmra.mxu0 %v1379
        %v2687 = vpop.f32.mrf.mxu0
        %v2688 = vadd.f32 %v2589, %v2687
        %v2689 = vpop.f32.mrf.mxu0
        %v2690 = vadd.f32 %v2591, %v2689
        %2691 = vmatmul.bf16.gmra.mxu0 %v1381
        %v2692 = vpop.f32.mrf.mxu0
        %v2693 = vadd.f32 %v2594, %v2692
        %v2694 = vpop.f32.mrf.mxu0
        %v2695 = vadd.f32 %v2596, %v2694
        %2696 = vmatmul.bf16.gmra.mxu0 %v1383
        %v2697 = vpop.f32.mrf.mxu0
        %v2698 = vadd.f32 %v2599, %v2697
        %v2699 = vpop.f32.mrf.mxu0
        %v2700 = vadd.f32 %v2601, %v2699
        %2701 = vmatmul.bf16.gmra.mxu0 %v1385
        %v2702 = vpop.f32.mrf.mxu0
        %v2703 = vadd.f32 %v2604, %v2702
        %v2704 = vpop.f32.mrf.mxu0
        %v2705 = vadd.f32 %v2606, %v2704
        %2706 = vmatmul.bf16.gmra.mxu0 %v1387
        %v2707 = vpop.f32.mrf.mxu0
        %v2708 = vadd.f32 %v2609, %v2707
        %v2709 = vpop.f32.mrf.mxu0
        %v2710 = vadd.f32 %v2611, %v2709
        %2711 = vmatmul.bf16.gmra.mxu0 %v1389
        %v2712 = vpop.f32.mrf.mxu0
        %v2713 = vadd.f32 %v2614, %v2712
        %v2714 = vpop.f32.mrf.mxu0
        %v2715 = vadd.f32 %v2616, %v2714
        %2716 = vmatmul.bf16.gmra.mxu0 %v1391
        %v2717 = vpop.f32.mrf.mxu0
        %v2718 = vadd.f32 %v2619, %v2717
        %v2719 = vpop.f32.mrf.mxu0
        %v2720 = vadd.f32 %v2621, %v2719
        %2721 = vmatmul.bf16.gmra.mxu0 %v1419
        %v2722 = vpop.f32.mrf.mxu0
        %v2723 = vadd.f32 %v2624, %v2722
        %v2724 = vpop.f32.mrf.mxu0
        %v2725 = vadd.f32 %v2626, %v2724
        %2726 = vmatmul.bf16.gmra.mxu0 %v1421
        %v2727 = vpop.f32.mrf.mxu0
        %v2728 = vadd.f32 %v2629, %v2727
        %v2729 = vpop.f32.mrf.mxu0
        %v2730 = vadd.f32 %v2631, %v2729
        %2731 = vdwg.mxu0
        %2732 = vmatpush.bf16.msra.mxu0 %v2231
        %2733 = vmatpush.bf16.msra.mxu0 %v2230
        %2734 = vmatpush.bf16.msra.mxu0 %v2229
        %2735 = vmatpush.bf16.msra.mxu0 %v2228
        %2736 = vmatpush.bf16.msra.mxu0 %v2227
        %2737 = vmatpush.bf16.msra.mxu0 %v2226
        %2738 = vmatpush.bf16.msra.mxu0 %v2225
        %2739 = vmatpush.bf16.msra.mxu0 %v2224
        %2740 = vmatmul.bf16.gmra.mxu0 %v1431
        %v2741 = vpop.f32.mrf.mxu0
        %v2742 = vadd.f32 %v2643, %v2741
        %v2743 = vpop.f32.mrf.mxu0
        %v2744 = vadd.f32 %v2645, %v2743
        %2745 = vmatmul.bf16.gmra.mxu0 %v1435
        %v2746 = vpop.f32.mrf.mxu0
        %v2747 = vadd.f32 %v2648, %v2746
        %v2748 = vpop.f32.mrf.mxu0
        %v2749 = vadd.f32 %v2650, %v2748
        %2750 = vmatmul.bf16.gmra.mxu0 %v1439
        %v2751 = vpop.f32.mrf.mxu0
        %v2752 = vadd.f32 %v2653, %v2751
        %v2753 = vpop.f32.mrf.mxu0
        %v2754 = vadd.f32 %v2655, %v2753
        %2755 = vmatmul.bf16.gmra.mxu0 %v1443
        %v2756 = vpop.f32.mrf.mxu0
        %v2757 = vadd.f32 %v2658, %v2756
        %v2758 = vpop.f32.mrf.mxu0
        %v2759 = vadd.f32 %v2660, %v2758
        %2760 = vmatmul.bf16.gmra.mxu0 %v1447
        %v2761 = vpop.f32.mrf.mxu0
        %v2762 = vadd.f32 %v2663, %v2761
        %v2763 = vpop.f32.mrf.mxu0
        %v2764 = vadd.f32 %v2665, %v2763
        %2765 = vmatmul.bf16.gmra.mxu0 %v1451
        %v2766 = vpop.f32.mrf.mxu0
        %v2767 = vadd.f32 %v2668, %v2766
        %v2768 = vpop.f32.mrf.mxu0
        %v2769 = vadd.f32 %v2670, %v2768
        %2770 = vmatmul.bf16.gmra.mxu0 %v1455
        %v2771 = vpop.f32.mrf.mxu0
        %v2772 = vadd.f32 %v2673, %v2771
        %v2773 = vpop.f32.mrf.mxu0
        %v2774 = vadd.f32 %v2675, %v2773
        %2775 = vmatmul.bf16.gmra.mxu0 %v1459
        %v2776 = vpop.f32.mrf.mxu0
        %v2777 = vadd.f32 %v2678, %v2776
        %v2778 = vpop.f32.mrf.mxu0
        %v2779 = vadd.f32 %v2680, %v2778
        %2780 = vmatmul.bf16.gmra.mxu0 %v1463
        %v2781 = vpop.f32.mrf.mxu0
        %v2782 = vadd.f32 %v2683, %v2781
        %v2783 = vpop.f32.mrf.mxu0
        %v2784 = vadd.f32 %v2685, %v2783
        %2785 = vmatmul.bf16.gmra.mxu0 %v1467
        %v2786 = vpop.f32.mrf.mxu0
        %v2787 = vadd.f32 %v2688, %v2786
        %v2788 = vpop.f32.mrf.mxu0
        %v2789 = vadd.f32 %v2690, %v2788
        %2790 = vmatmul.bf16.gmra.mxu0 %v1471
        %v2791 = vpop.f32.mrf.mxu0
        %v2792 = vadd.f32 %v2693, %v2791
        %v2793 = vpop.f32.mrf.mxu0
        %v2794 = vadd.f32 %v2695, %v2793
        %2795 = vmatmul.bf16.gmra.mxu0 %v1475
        %v2796 = vpop.f32.mrf.mxu0
        %v2797 = vadd.f32 %v2698, %v2796
        %v2798 = vpop.f32.mrf.mxu0
        %v2799 = vadd.f32 %v2700, %v2798
        %2800 = vmatmul.bf16.gmra.mxu0 %v1479
        %v2801 = vpop.f32.mrf.mxu0
        %v2802 = vadd.f32 %v2703, %v2801
        %v2803 = vpop.f32.mrf.mxu0
        %v2804 = vadd.f32 %v2705, %v2803
        %2805 = vmatmul.bf16.gmra.mxu0 %v1483
        %v2806 = vpop.f32.mrf.mxu0
        %v2807 = vadd.f32 %v2708, %v2806
        %v2808 = vpop.f32.mrf.mxu0
        %v2809 = vadd.f32 %v2710, %v2808
        %2810 = vmatmul.bf16.gmra.mxu0 %v1487
        %v2811 = vpop.f32.mrf.mxu0
        %v2812 = vadd.f32 %v2713, %v2811
        %v2813 = vpop.f32.mrf.mxu0
        %v2814 = vadd.f32 %v2715, %v2813
        %2815 = vmatmul.bf16.gmra.mxu0 %v1491
        %v2816 = vpop.f32.mrf.mxu0
        %v2817 = vadd.f32 %v2718, %v2816
        %v2818 = vpop.f32.mrf.mxu0
        %v2819 = vadd.f32 %v2720, %v2818
        %2820 = vmatmul.bf16.gmra.mxu0 %v1500
        %v2821 = vpop.f32.mrf.mxu0
        %v2822 = vadd.f32 %v2723, %v2821
        %v2823 = vpop.f32.mrf.mxu0
        %v2824 = vadd.f32 %v2725, %v2823
        %2825 = vmatmul.bf16.gmra.mxu0 %v1509
        %v2826 = vpop.f32.mrf.mxu0
        %v2827 = vadd.f32 %v2728, %v2826
        %v2828 = vpop.f32.mrf.mxu0
        %v2829 = vadd.f32 %v2730, %v2828
        %2830 = vdwg.mxu0
        %2831 = vmatpush.bf16.msra.mxu0 %v2239
        %2832 = vmatpush.bf16.msra.mxu0 %v2238
        %2833 = vmatpush.bf16.msra.mxu0 %v2237
        %2834 = vmatpush.bf16.msra.mxu0 %v2236
        %2835 = vmatpush.bf16.msra.mxu0 %v2235
        %2836 = vmatpush.bf16.msra.mxu0 %v2234
        %2837 = vmatpush.bf16.msra.mxu0 %v2233
        %2838 = vmatpush.bf16.msra.mxu0 %v2232
        %2839 = vmatmul.bf16.gmra.mxu0 %v1531
        %v2840 = vpop.f32.mrf.mxu0
        %v2841 = vadd.f32 %v2742, %v2840
        %v2842 = vpop.f32.mrf.mxu0
        %v2843 = vadd.f32 %v2744, %v2842
        %2844 = vmatmul.bf16.gmra.mxu0 %v1533
        %v2845 = vpop.f32.mrf.mxu0
        %v2846 = vadd.f32 %v2747, %v2845
        %v2847 = vpop.f32.mrf.mxu0
        %v2848 = vadd.f32 %v2749, %v2847
        %2849 = vmatmul.bf16.gmra.mxu0 %v1535
        %v2850 = vpop.f32.mrf.mxu0
        %v2851 = vadd.f32 %v2752, %v2850
        %v2852 = vpop.f32.mrf.mxu0
        %v2853 = vadd.f32 %v2754, %v2852
        %2854 = vmatmul.bf16.gmra.mxu0 %v1537
        %v2855 = vpop.f32.mrf.mxu0
        %v2856 = vadd.f32 %v2757, %v2855
        %v2857 = vpop.f32.mrf.mxu0
        %v2858 = vadd.f32 %v2759, %v2857
        %2859 = vmatmul.bf16.gmra.mxu0 %v1539
        %v2860 = vpop.f32.mrf.mxu0
        %v2861 = vadd.f32 %v2762, %v2860
        %v2862 = vpop.f32.mrf.mxu0
        %v2863 = vadd.f32 %v2764, %v2862
        %2864 = vmatmul.bf16.gmra.mxu0 %v1541
        %v2865 = vpop.f32.mrf.mxu0
        %v2866 = vadd.f32 %v2767, %v2865
        %v2867 = vpop.f32.mrf.mxu0
        %v2868 = vadd.f32 %v2769, %v2867
        %2869 = vmatmul.bf16.gmra.mxu0 %v1543
        %v2870 = vpop.f32.mrf.mxu0
        %v2871 = vadd.f32 %v2772, %v2870
        %v2872 = vpop.f32.mrf.mxu0
        %v2873 = vadd.f32 %v2774, %v2872
        %2874 = vmatmul.bf16.gmra.mxu0 %v1545
        %v2875 = vpop.f32.mrf.mxu0
        %v2876 = vadd.f32 %v2777, %v2875
        %v2877 = vpop.f32.mrf.mxu0
        %v2878 = vadd.f32 %v2779, %v2877
        %2879 = vmatmul.bf16.gmra.mxu0 %v1547
        %v2880 = vpop.f32.mrf.mxu0
        %v2881 = vadd.f32 %v2782, %v2880
        %v2882 = vpop.f32.mrf.mxu0
        %v2883 = vadd.f32 %v2784, %v2882
        %2884 = vmatmul.bf16.gmra.mxu0 %v1549
        %v2885 = vpop.f32.mrf.mxu0
        %v2886 = vadd.f32 %v2787, %v2885
        %v2887 = vpop.f32.mrf.mxu0
        %v2888 = vadd.f32 %v2789, %v2887
        %2889 = vmatmul.bf16.gmra.mxu0 %v1551
        %v2890 = vpop.f32.mrf.mxu0
        %v2891 = vadd.f32 %v2792, %v2890
        %v2892 = vpop.f32.mrf.mxu0
        %v2893 = vadd.f32 %v2794, %v2892
        %2894 = vmatmul.bf16.gmra.mxu0 %v1553
        %v2895 = vpop.f32.mrf.mxu0
        %v2896 = vadd.f32 %v2797, %v2895
        %v2897 = vpop.f32.mrf.mxu0
        %v2898 = vadd.f32 %v2799, %v2897
        %2899 = vmatmul.bf16.gmra.mxu0 %v1555
        %v2900 = vpop.f32.mrf.mxu0
        %v2901 = vadd.f32 %v2802, %v2900
        %v2902 = vpop.f32.mrf.mxu0
        %v2903 = vadd.f32 %v2804, %v2902
        %2904 = vmatmul.bf16.gmra.mxu0 %v1557
        %v2905 = vpop.f32.mrf.mxu0
        %v2906 = vadd.f32 %v2807, %v2905
        %v2907 = vpop.f32.mrf.mxu0
        %v2908 = vadd.f32 %v2809, %v2907
        %2909 = vmatmul.bf16.gmra.mxu0 %v1559
        %v2910 = vpop.f32.mrf.mxu0
        %v2911 = vadd.f32 %v2812, %v2910
        %v2912 = vpop.f32.mrf.mxu0
        %v2913 = vadd.f32 %v2814, %v2912
        %2914 = vmatmul.bf16.gmra.mxu0 %v1561
        %v2915 = vpop.f32.mrf.mxu0
        %v2916 = vadd.f32 %v2817, %v2915
        %v2917 = vpop.f32.mrf.mxu0
        %v2918 = vadd.f32 %v2819, %v2917
        %2919 = vmatmul.bf16.gmra.mxu0 %v1563
        %v2920 = vpop.f32.mrf.mxu0
        %v2921 = vadd.f32 %v2822, %v2920
        %v2922 = vpop.f32.mrf.mxu0
        %v2923 = vadd.f32 %v2824, %v2922
        %2924 = vmatmul.bf16.gmra.mxu0 %v1565
        %v2925 = vpop.f32.mrf.mxu0
        %v2926 = vadd.f32 %v2827, %v2925
        %v2927 = vpop.f32.mrf.mxu0
        %v2928 = vadd.f32 %v2829, %v2927
        %2929 = vdwg.mxu0
        %2930 = vmatpush.bf16.msra.mxu0 %v2247
        %2931 = vmatpush.bf16.msra.mxu0 %v2246
        %2932 = vmatpush.bf16.msra.mxu0 %v2245
        %2933 = vmatpush.bf16.msra.mxu0 %v2244
        %2934 = vmatpush.bf16.msra.mxu0 %v2243
        %2935 = vmatpush.bf16.msra.mxu0 %v2242
        %2936 = vmatpush.bf16.msra.mxu0 %v2241
        %2937 = vmatpush.bf16.msra.mxu0 %v2240
        %2938 = vmatmul.bf16.gmra.mxu0 %v1533
        %v2939 = vpop.f32.mrf.mxu0
        %v2940 = vadd.f32 %v2841, %v2939
        %v2941 = vpop.f32.mrf.mxu0
        %v2942 = vadd.f32 %v2843, %v2941
        %2943 = vmatmul.bf16.gmra.mxu0 %v1535
        %v2944 = vpop.f32.mrf.mxu0
        %v2945 = vadd.f32 %v2846, %v2944
        %v2946 = vpop.f32.mrf.mxu0
        %v2947 = vadd.f32 %v2848, %v2946
        %2948 = vmatmul.bf16.gmra.mxu0 %v1537
        %v2949 = vpop.f32.mrf.mxu0
        %v2950 = vadd.f32 %v2851, %v2949
        %v2951 = vpop.f32.mrf.mxu0
        %v2952 = vadd.f32 %v2853, %v2951
        %2953 = vmatmul.bf16.gmra.mxu0 %v1539
        %v2954 = vpop.f32.mrf.mxu0
        %v2955 = vadd.f32 %v2856, %v2954
        %v2956 = vpop.f32.mrf.mxu0
        %v2957 = vadd.f32 %v2858, %v2956
        %2958 = vmatmul.bf16.gmra.mxu0 %v1541
        %v2959 = vpop.f32.mrf.mxu0
        %v2960 = vadd.f32 %v2861, %v2959
        %v2961 = vpop.f32.mrf.mxu0
        %v2962 = vadd.f32 %v2863, %v2961
        %2963 = vmatmul.bf16.gmra.mxu0 %v1543
        %v2964 = vpop.f32.mrf.mxu0
        %v2965 = vadd.f32 %v2866, %v2964
        %v2966 = vpop.f32.mrf.mxu0
        %v2967 = vadd.f32 %v2868, %v2966
        %2968 = vmatmul.bf16.gmra.mxu0 %v1545
        %v2969 = vpop.f32.mrf.mxu0
        %v2970 = vadd.f32 %v2871, %v2969
        %v2971 = vpop.f32.mrf.mxu0
        %v2972 = vadd.f32 %v2873, %v2971
        %2973 = vmatmul.bf16.gmra.mxu0 %v1547
        %v2974 = vpop.f32.mrf.mxu0
        %v2975 = vadd.f32 %v2876, %v2974
        %v2976 = vpop.f32.mrf.mxu0
        %v2977 = vadd.f32 %v2878, %v2976
        %2978 = vmatmul.bf16.gmra.mxu0 %v1549
        %v2979 = vpop.f32.mrf.mxu0
        %v2980 = vadd.f32 %v2881, %v2979
        %v2981 = vpop.f32.mrf.mxu0
        %v2982 = vadd.f32 %v2883, %v2981
        %2983 = vmatmul.bf16.gmra.mxu0 %v1551
        %v2984 = vpop.f32.mrf.mxu0
        %v2985 = vadd.f32 %v2886, %v2984
        %v2986 = vpop.f32.mrf.mxu0
        %v2987 = vadd.f32 %v2888, %v2986
        %2988 = vmatmul.bf16.gmra.mxu0 %v1553
        %v2989 = vpop.f32.mrf.mxu0
        %v2990 = vadd.f32 %v2891, %v2989
        %v2991 = vpop.f32.mrf.mxu0
        %v2992 = vadd.f32 %v2893, %v2991
        %2993 = vmatmul.bf16.gmra.mxu0 %v1555
        %v2994 = vpop.f32.mrf.mxu0
        %v2995 = vadd.f32 %v2896, %v2994
        %v2996 = vpop.f32.mrf.mxu0
        %v2997 = vadd.f32 %v2898, %v2996
        %2998 = vmatmul.bf16.gmra.mxu0 %v1557
        %v2999 = vpop.f32.mrf.mxu0
        %v3000 = vadd.f32 %v2901, %v2999
        %v3001 = vpop.f32.mrf.mxu0
        %v3002 = vadd.f32 %v2903, %v3001
        %3003 = vmatmul.bf16.gmra.mxu0 %v1559
        %v3004 = vpop.f32.mrf.mxu0
        %v3005 = vadd.f32 %v2906, %v3004
        %v3006 = vpop.f32.mrf.mxu0
        %v3007 = vadd.f32 %v2908, %v3006
        %3008 = vmatmul.bf16.gmra.mxu0 %v1561
        %v3009 = vpop.f32.mrf.mxu0
        %v3010 = vadd.f32 %v2911, %v3009
        %v3011 = vpop.f32.mrf.mxu0
        %v3012 = vadd.f32 %v2913, %v3011
        %3013 = vmatmul.bf16.gmra.mxu0 %v1563
        %v3014 = vpop.f32.mrf.mxu0
        %v3015 = vadd.f32 %v2916, %v3014
        %v3016 = vpop.f32.mrf.mxu0
        %v3017 = vadd.f32 %v2918, %v3016
        %3018 = vmatmul.bf16.gmra.mxu0 %v1591
        %v3019 = vpop.f32.mrf.mxu0
        %v3020 = vadd.f32 %v2921, %v3019
        %v3021 = vpop.f32.mrf.mxu0
        %v3022 = vadd.f32 %v2923, %v3021
        %3023 = vmatmul.bf16.gmra.mxu0 %v1593
        %v3024 = vpop.f32.mrf.mxu0
        %v3025 = vadd.f32 %v2926, %v3024
        %v3026 = vpop.f32.mrf.mxu0
        %v3027 = vadd.f32 %v2928, %v3026
        %3028 = vdwg.mxu0
        %3029 = vmatpush.bf16.msra.mxu0 %v2255
        %3030 = vmatpush.bf16.msra.mxu0 %v2254
        %3031 = vmatpush.bf16.msra.mxu0 %v2253
        %3032 = vmatpush.bf16.msra.mxu0 %v2252
        %3033 = vmatpush.bf16.msra.mxu0 %v2251
        %3034 = vmatpush.bf16.msra.mxu0 %v2250
        %3035 = vmatpush.bf16.msra.mxu0 %v2249
        %3036 = vmatpush.bf16.msra.mxu0 %v2248
        %3037 = vmatmul.bf16.gmra.mxu0 %v1603
        %v3038 = vpop.f32.mrf.mxu0
        %v3039 = vadd.f32 %v2940, %v3038
        %v3040 = vpop.f32.mrf.mxu0
        %v3041 = vadd.f32 %v2942, %v3040
        %3042 = vmatmul.bf16.gmra.mxu0 %v1607
        %v3043 = vpop.f32.mrf.mxu0
        %v3044 = vadd.f32 %v2945, %v3043
        %v3045 = vpop.f32.mrf.mxu0
        %v3046 = vadd.f32 %v2947, %v3045
        %3047 = vmatmul.bf16.gmra.mxu0 %v1611
        %v3048 = vpop.f32.mrf.mxu0
        %v3049 = vadd.f32 %v2950, %v3048
        %v3050 = vpop.f32.mrf.mxu0
        %v3051 = vadd.f32 %v2952, %v3050
        %3052 = vmatmul.bf16.gmra.mxu0 %v1615
        %v3053 = vpop.f32.mrf.mxu0
        %v3054 = vadd.f32 %v2955, %v3053
        %v3055 = vpop.f32.mrf.mxu0
        %v3056 = vadd.f32 %v2957, %v3055
        %3057 = vmatmul.bf16.gmra.mxu0 %v1619
        %v3058 = vpop.f32.mrf.mxu0
        %v3059 = vadd.f32 %v2960, %v3058
        %v3060 = vpop.f32.mrf.mxu0
        %v3061 = vadd.f32 %v2962, %v3060
        %3062 = vmatmul.bf16.gmra.mxu0 %v1623
        %v3063 = vpop.f32.mrf.mxu0
        %v3064 = vadd.f32 %v2965, %v3063
        %v3065 = vpop.f32.mrf.mxu0
        %v3066 = vadd.f32 %v2967, %v3065
        %3067 = vmatmul.bf16.gmra.mxu0 %v1627
        %v3068 = vpop.f32.mrf.mxu0
        %v3069 = vadd.f32 %v2970, %v3068
        %v3070 = vpop.f32.mrf.mxu0
        %v3071 = vadd.f32 %v2972, %v3070
        %3072 = vmatmul.bf16.gmra.mxu0 %v1631
        %v3073 = vpop.f32.mrf.mxu0
        %v3074 = vadd.f32 %v2975, %v3073
        %v3075 = vpop.f32.mrf.mxu0
        %v3076 = vadd.f32 %v2977, %v3075
        %3077 = vmatmul.bf16.gmra.mxu0 %v1635
        %v3078 = vpop.f32.mrf.mxu0
        %v3079 = vadd.f32 %v2980, %v3078
        %v3080 = vpop.f32.mrf.mxu0
        %v3081 = vadd.f32 %v2982, %v3080
        %3082 = vmatmul.bf16.gmra.mxu0 %v1639
        %v3083 = vpop.f32.mrf.mxu0
        %v3084 = vadd.f32 %v2985, %v3083
        %v3085 = vpop.f32.mrf.mxu0
        %v3086 = vadd.f32 %v2987, %v3085
        %3087 = vmatmul.bf16.gmra.mxu0 %v1643
        %v3088 = vpop.f32.mrf.mxu0
        %v3089 = vadd.f32 %v2990, %v3088
        %v3090 = vpop.f32.mrf.mxu0
        %v3091 = vadd.f32 %v2992, %v3090
        %3092 = vmatmul.bf16.gmra.mxu0 %v1647
        %v3093 = vpop.f32.mrf.mxu0
        %v3094 = vadd.f32 %v2995, %v3093
        %v3095 = vpop.f32.mrf.mxu0
        %v3096 = vadd.f32 %v2997, %v3095
        %3097 = vmatmul.bf16.gmra.mxu0 %v1651
        %v3098 = vpop.f32.mrf.mxu0
        %v3099 = vadd.f32 %v3000, %v3098
        %v3100 = vpop.f32.mrf.mxu0
        %v3101 = vadd.f32 %v3002, %v3100
        %3102 = vmatmul.bf16.gmra.mxu0 %v1655
        %v3103 = vpop.f32.mrf.mxu0
        %v3104 = vadd.f32 %v3005, %v3103
        %v3105 = vpop.f32.mrf.mxu0
        %v3106 = vadd.f32 %v3007, %v3105
        %3107 = vmatmul.bf16.gmra.mxu0 %v1659
        %v3108 = vpop.f32.mrf.mxu0
        %v3109 = vadd.f32 %v3010, %v3108
        %v3110 = vpop.f32.mrf.mxu0
        %v3111 = vadd.f32 %v3012, %v3110
        %3112 = vmatmul.bf16.gmra.mxu0 %v1663
        %v3113 = vpop.f32.mrf.mxu0
        %v3114 = vadd.f32 %v3015, %v3113
        %v3115 = vpop.f32.mrf.mxu0
        %v3116 = vadd.f32 %v3017, %v3115
        %3117 = vmatmul.bf16.gmra.mxu0 %v1672
        %v3118 = vpop.f32.mrf.mxu0
        %v3119 = vadd.f32 %v3020, %v3118
        %v3120 = vpop.f32.mrf.mxu0
        %v3121 = vadd.f32 %v3022, %v3120
        %3122 = vmatmul.bf16.gmra.mxu0 %v1681
        %v3123 = vpop.f32.mrf.mxu0
        %v3124 = vadd.f32 %v3025, %v3123
        %v3125 = vpop.f32.mrf.mxu0
        %v3126 = vadd.f32 %v3027, %v3125
        %3127 = vdwg.mxu0
        %3128 = vmatpush.bf16.msra.mxu0 %v2263
        %3129 = vmatpush.bf16.msra.mxu0 %v2262
        %3130 = vmatpush.bf16.msra.mxu0 %v2261
        %3131 = vmatpush.bf16.msra.mxu0 %v2260
        %3132 = vmatpush.bf16.msra.mxu0 %v2259
        %3133 = vmatpush.bf16.msra.mxu0 %v2258
        %3134 = vmatpush.bf16.msra.mxu0 %v2257
        %3135 = vmatpush.bf16.msra.mxu0 %v2256
        %3136 = vmatmul.bf16.gmra.mxu0 %v1703
        %v3137 = vpop.f32.mrf.mxu0
        %v3138 = vadd.f32 %v3039, %v3137
        %v3139 = vpop.f32.mrf.mxu0
        %v3140 = vadd.f32 %v3041, %v3139
        %3141 = vmatmul.bf16.gmra.mxu0 %v1705
        %v3142 = vpop.f32.mrf.mxu0
        %v3143 = vadd.f32 %v3044, %v3142
        %v3144 = vpop.f32.mrf.mxu0
        %v3145 = vadd.f32 %v3046, %v3144
        %3146 = vmatmul.bf16.gmra.mxu0 %v1707
        %v3147 = vpop.f32.mrf.mxu0
        %v3148 = vadd.f32 %v3049, %v3147
        %v3149 = vpop.f32.mrf.mxu0
        %v3150 = vadd.f32 %v3051, %v3149
        %3151 = vmatmul.bf16.gmra.mxu0 %v1709
        %v3152 = vpop.f32.mrf.mxu0
        %v3153 = vadd.f32 %v3054, %v3152
        %v3154 = vpop.f32.mrf.mxu0
        %v3155 = vadd.f32 %v3056, %v3154
        %3156 = vmatmul.bf16.gmra.mxu0 %v1711
        %v3157 = vpop.f32.mrf.mxu0
        %v3158 = vadd.f32 %v3059, %v3157
        %v3159 = vpop.f32.mrf.mxu0
        %v3160 = vadd.f32 %v3061, %v3159
        %3161 = vmatmul.bf16.gmra.mxu0 %v1713
        %v3162 = vpop.f32.mrf.mxu0
        %v3163 = vadd.f32 %v3064, %v3162
        %v3164 = vpop.f32.mrf.mxu0
        %v3165 = vadd.f32 %v3066, %v3164
        %3166 = vmatmul.bf16.gmra.mxu0 %v1715
        %v3167 = vpop.f32.mrf.mxu0
        %v3168 = vadd.f32 %v3069, %v3167
        %v3169 = vpop.f32.mrf.mxu0
        %v3170 = vadd.f32 %v3071, %v3169
        %3171 = vmatmul.bf16.gmra.mxu0 %v1717
        %v3172 = vpop.f32.mrf.mxu0
        %v3173 = vadd.f32 %v3074, %v3172
        %v3174 = vpop.f32.mrf.mxu0
        %v3175 = vadd.f32 %v3076, %v3174
        %3176 = vmatmul.bf16.gmra.mxu0 %v1719
        %v3177 = vpop.f32.mrf.mxu0
        %v3178 = vadd.f32 %v3079, %v3177
        %v3179 = vpop.f32.mrf.mxu0
        %v3180 = vadd.f32 %v3081, %v3179
        %3181 = vmatmul.bf16.gmra.mxu0 %v1721
        %v3182 = vpop.f32.mrf.mxu0
        %v3183 = vadd.f32 %v3084, %v3182
        %v3184 = vpop.f32.mrf.mxu0
        %v3185 = vadd.f32 %v3086, %v3184
        %3186 = vmatmul.bf16.gmra.mxu0 %v1723
        %v3187 = vpop.f32.mrf.mxu0
        %v3188 = vadd.f32 %v3089, %v3187
        %v3189 = vpop.f32.mrf.mxu0
        %v3190 = vadd.f32 %v3091, %v3189
        %3191 = vmatmul.bf16.gmra.mxu0 %v1725
        %v3192 = vpop.f32.mrf.mxu0
        %v3193 = vadd.f32 %v3094, %v3192
        %v3194 = vpop.f32.mrf.mxu0
        %v3195 = vadd.f32 %v3096, %v3194
        %3196 = vmatmul.bf16.gmra.mxu0 %v1727
        %v3197 = vpop.f32.mrf.mxu0
        %v3198 = vadd.f32 %v3099, %v3197
        %v3199 = vpop.f32.mrf.mxu0
        %v3200 = vadd.f32 %v3101, %v3199
        %3201 = vmatmul.bf16.gmra.mxu0 %v1729
        %v3202 = vpop.f32.mrf.mxu0
        %v3203 = vadd.f32 %v3104, %v3202
        %v3204 = vpop.f32.mrf.mxu0
        %v3205 = vadd.f32 %v3106, %v3204
        %3206 = vmatmul.bf16.gmra.mxu0 %v1731
        %v3207 = vpop.f32.mrf.mxu0
        %v3208 = vadd.f32 %v3109, %v3207
        %v3209 = vpop.f32.mrf.mxu0
        %v3210 = vadd.f32 %v3111, %v3209
        %3211 = vmatmul.bf16.gmra.mxu0 %v1733
        %v3212 = vpop.f32.mrf.mxu0
        %v3213 = vadd.f32 %v3114, %v3212
        %v3214 = vpop.f32.mrf.mxu0
        %v3215 = vadd.f32 %v3116, %v3214
        %3216 = vmatmul.bf16.gmra.mxu0 %v1735
        %v3217 = vpop.f32.mrf.mxu0
        %v3218 = vadd.f32 %v3119, %v3217
        %v3219 = vpop.f32.mrf.mxu0
        %v3220 = vadd.f32 %v3121, %v3219
        %3221 = vmatmul.bf16.gmra.mxu0 %v1737
        %v3222 = vpop.f32.mrf.mxu0
        %v3223 = vadd.f32 %v3124, %v3222
        %v3224 = vpop.f32.mrf.mxu0
        %v3225 = vadd.f32 %v3126, %v3224
        %3226 = vdwg.mxu0
        %v3227 = vmax.f32 %v3138, 0.0
        %v3228 = vmax.f32 %v3140, 0.0
        %v3229 = vmax.f32 %v3143, 0.0
        %v3230 = vmax.f32 %v3145, 0.0
        %v3231 = vmax.f32 %v3148, 0.0
        %v3232 = vmax.f32 %v3150, 0.0
        %v3233 = vmax.f32 %v3153, 0.0
        %v3234 = vmax.f32 %v3155, 0.0
        %v3235 = vmax.f32 %v3158, 0.0
        %v3236 = vmax.f32 %v3160, 0.0
        %v3237 = vmax.f32 %v3163, 0.0
        %v3238 = vmax.f32 %v3165, 0.0
        %v3239 = vmax.f32 %v3168, 0.0
        %v3240 = vmax.f32 %v3170, 0.0
        %v3241 = vmax.f32 %v3173, 0.0
        %v3242 = vmax.f32 %v3175, 0.0
        %v3243 = vmax.f32 %v3178, 0.0
        %v3244 = vmax.f32 %v3180, 0.0
        %v3245 = vmax.f32 %v3183, 0.0
        %v3246 = vmax.f32 %v3185, 0.0
        %v3247 = vmax.f32 %v3188, 0.0
        %v3248 = vmax.f32 %v3190, 0.0
        %v3249 = vmax.f32 %v3193, 0.0
        %v3250 = vmax.f32 %v3195, 0.0
        %v3251 = vmax.f32 %v3198, 0.0
        %v3252 = vmax.f32 %v3200, 0.0
        %v3253 = vmax.f32 %v3203, 0.0
        %v3254 = vmax.f32 %v3205, 0.0
        %v3255 = vmax.f32 %v3208, 0.0
        %v3256 = vmax.f32 %v3210, 0.0
        %v3257 = vmax.f32 %v3213, 0.0
        %v3258 = vmax.f32 %v3215, 0.0
        %v3259 = vmax.f32 %v3218, 0.0
        %v3260 = vmax.f32 %v3220, 0.0
        %v3261 = vmax.f32 %v3223, 0.0
        %v3262 = vmax.f32 %v3225, 0.0
        %v3263 = vpack.c.bf16 %v3228, %v3227
        %v3264 = vpack.c.bf16 %v3230, %v3229
        %v3265 = vpack.c.bf16 %v3232, %v3231
        %v3266 = vpack.c.bf16 %v3234, %v3233
        %v3267 = vpack.c.bf16 %v3236, %v3235
        %v3268 = vpack.c.bf16 %v3238, %v3237
        %v3269 = vpack.c.bf16 %v3240, %v3239
        %v3270 = vpack.c.bf16 %v3242, %v3241
        %v3271 = vpack.c.bf16 %v3244, %v3243
        %v3272 = vpack.c.bf16 %v3246, %v3245
        %v3273 = vpack.c.bf16 %v3248, %v3247
        %v3274 = vpack.c.bf16 %v3250, %v3249
        %v3275 = vpack.c.bf16 %v3252, %v3251
        %v3276 = vpack.c.bf16 %v3254, %v3253
        %v3277 = vpack.c.bf16 %v3256, %v3255
        %v3278 = vpack.c.bf16 %v3258, %v3257
        %v3279 = vpack.c.bf16 %v3260, %v3259
        %v3280 = vpack.c.bf16 %v3262, %v3261
        %v3281 = vld [vmem:[%s6] sm:$0xf]
        %v3282 = vld [vmem:[%s6 + $0x4] sm:$0xf]
        %v3283 = vld [vmem:[%s6 + $0x8] sm:$0xf]
        %v3284 = vld [vmem:[%s6 + $0xc] sm:$0xf]
        %v3285 = vld [vmem:[%s6 + $0x10] sm:$0xf]
        %v3286 = vld [vmem:[%s6 + $0x14] sm:$0xf]
        %v3287 = vld [vmem:[%s6 + $0x18] sm:$0xf]
        %v3288 = vld [vmem:[%s6 + $0x1c] sm:$0xf]
        %v3289 = vld [vmem:[%s6 + $0x20] sm:$0xf]
        %v3290 = vld [vmem:[%s6 + $0x24] sm:$0xf]
        %v3291 = vld [vmem:[%s6 + $0x28] sm:$0xf]
        %v3292 = vld [vmem:[%s6 + $0x2c] sm:$0xf]
        %v3293 = vld [vmem:[%s6 + $0x30] sm:$0xf]
        %v3294 = vld [vmem:[%s6 + $0x34] sm:$0xf]
        %v3295 = vld [vmem:[%s6 + $0x38] sm:$0xf]
        %v3296 = vld [vmem:[%s6 + $0x3c] sm:$0xf]
        %v3297 = vld [vmem:[%s7] sm:$0x1]
        %v3299 = vperm.slane %v3297, 0
        %v3317 = vunpack.c.l.b16 %v3281
        %v3318 = vunpack.c.l.b16 %v3282
        %v3319 = vunpack.c.l.b16 %v3283
        %v3320 = vunpack.c.l.b16 %v3284
        %v3321 = vunpack.c.l.b16 %v3285
        %v3322 = vunpack.c.l.b16 %v3286
        %v3323 = vunpack.c.l.b16 %v3287
        %v3324 = vunpack.c.l.b16 %v3288
        %v3325 = vunpack.c.l.b16 %v3289
        %v3326 = vunpack.c.l.b16 %v3290
        %v3327 = vunpack.c.l.b16 %v3291
        %v3328 = vunpack.c.l.b16 %v3292
        %v3329 = vunpack.c.l.b16 %v3293
        %v3330 = vunpack.c.l.b16 %v3294
        %v3331 = vunpack.c.l.b16 %v3295
        %v3332 = vunpack.c.l.b16 %v3296
        %v3333 = vpack.c.b16 %v3318, %v3317
        %v3334 = vpack.c.b16 %v3320, %v3319
        %v3335 = vpack.c.b16 %v3322, %v3321
        %v3336 = vpack.c.b16 %v3324, %v3323
        %v3337 = vpack.c.b16 %v3326, %v3325
        %v3338 = vpack.c.b16 %v3328, %v3327
        %v3339 = vpack.c.b16 %v3330, %v3329
        %v3340 = vpack.c.b16 %v3332, %v3331
        %3349 = vmatpush.bf16.msra.mxu0 %v3340
        %3350 = vmatpush.bf16.msra.mxu0 %v3339
        %3351 = vmatpush.bf16.msra.mxu0 %v3338
        %3352 = vmatpush.bf16.msra.mxu0 %v3337
        %3353 = vmatpush.bf16.msra.mxu0 %v3336
        %3354 = vmatpush.bf16.msra.mxu0 %v3335
        %3355 = vmatpush.bf16.msra.mxu0 %v3334
        %3356 = vmatpush.bf16.msra.mxu0 %v3333
        %3357 = vmatmul.bf16.gmra.mxu0 %v3263
        %v3358 = vpop.f32.mrf.mxu0
        %v3359 = vadd.f32 %v3299, %v3358
        %v3360 = vpop.f32.mrf.mxu0
        %v3361 = vadd.f32 %v3299, %v3360
        %3362 = vmatmul.bf16.gmra.mxu0 %v3264
        %v3363 = vpop.f32.mrf.mxu0
        %v3364 = vadd.f32 %v3299, %v3363
        %v3365 = vpop.f32.mrf.mxu0
        %v3366 = vadd.f32 %v3299, %v3365
        %3367 = vmatmul.bf16.gmra.mxu0 %v3265
        %v3368 = vpop.f32.mrf.mxu0
        %v3369 = vadd.f32 %v3299, %v3368
        %v3370 = vpop.f32.mrf.mxu0
        %v3371 = vadd.f32 %v3299, %v3370
        %3372 = vmatmul.bf16.gmra.mxu0 %v3266
        %v3373 = vpop.f32.mrf.mxu0
        %v3374 = vadd.f32 %v3299, %v3373
        %v3375 = vpop.f32.mrf.mxu0
        %v3376 = vadd.f32 %v3299, %v3375
        %3377 = vmatmul.bf16.gmra.mxu0 %v3267
        %v3378 = vpop.f32.mrf.mxu0
        %v3379 = vadd.f32 %v3299, %v3378
        %v3380 = vpop.f32.mrf.mxu0
        %v3381 = vadd.f32 %v3299, %v3380
        %3382 = vmatmul.bf16.gmra.mxu0 %v3268
        %v3383 = vpop.f32.mrf.mxu0
        %v3384 = vadd.f32 %v3299, %v3383
        %v3385 = vpop.f32.mrf.mxu0
        %v3386 = vadd.f32 %v3299, %v3385
        %3387 = vmatmul.bf16.gmra.mxu0 %v3269
        %v3388 = vpop.f32.mrf.mxu0
        %v3389 = vadd.f32 %v3299, %v3388
        %v3390 = vpop.f32.mrf.mxu0
        %v3391 = vadd.f32 %v3299, %v3390
        %3392 = vmatmul.bf16.gmra.mxu0 %v3270
        %v3393 = vpop.f32.mrf.mxu0
        %v3394 = vadd.f32 %v3299, %v3393
        %v3395 = vpop.f32.mrf.mxu0
        %v3396 = vadd.f32 %v3299, %v3395
        %3397 = vmatmul.bf16.gmra.mxu0 %v3271
        %v3398 = vpop.f32.mrf.mxu0
        %v3399 = vadd.f32 %v3299, %v3398
        %v3400 = vpop.f32.mrf.mxu0
        %v3401 = vadd.f32 %v3299, %v3400
        %3402 = vmatmul.bf16.gmra.mxu0 %v3272
        %v3403 = vpop.f32.mrf.mxu0
        %v3404 = vadd.f32 %v3299, %v3403
        %v3405 = vpop.f32.mrf.mxu0
        %v3406 = vadd.f32 %v3299, %v3405
        %3407 = vmatmul.bf16.gmra.mxu0 %v3273
        %v3408 = vpop.f32.mrf.mxu0
        %v3409 = vadd.f32 %v3299, %v3408
        %v3410 = vpop.f32.mrf.mxu0
        %v3411 = vadd.f32 %v3299, %v3410
        %3412 = vmatmul.bf16.gmra.mxu0 %v3274
        %v3413 = vpop.f32.mrf.mxu0
        %v3414 = vadd.f32 %v3299, %v3413
        %v3415 = vpop.f32.mrf.mxu0
        %v3416 = vadd.f32 %v3299, %v3415
        %3417 = vmatmul.bf16.gmra.mxu0 %v3275
        %v3418 = vpop.f32.mrf.mxu0
        %v3419 = vadd.f32 %v3299, %v3418
        %v3420 = vpop.f32.mrf.mxu0
        %v3421 = vadd.f32 %v3299, %v3420
        %3422 = vmatmul.bf16.gmra.mxu0 %v3276
        %v3423 = vpop.f32.mrf.mxu0
        %v3424 = vadd.f32 %v3299, %v3423
        %v3425 = vpop.f32.mrf.mxu0
        %v3426 = vadd.f32 %v3299, %v3425
        %3427 = vmatmul.bf16.gmra.mxu0 %v3277
        %v3428 = vpop.f32.mrf.mxu0
        %v3429 = vadd.f32 %v3299, %v3428
        %v3430 = vpop.f32.mrf.mxu0
        %v3431 = vadd.f32 %v3299, %v3430
        %3432 = vmatmul.bf16.gmra.mxu0 %v3278
        %v3433 = vpop.f32.mrf.mxu0
        %v3434 = vadd.f32 %v3299, %v3433
        %v3435 = vpop.f32.mrf.mxu0
        %v3436 = vadd.f32 %v3299, %v3435
        %3437 = vmatmul.bf16.gmra.mxu0 %v3279
        %v3438 = vpop.f32.mrf.mxu0
        %v3439 = vadd.f32 %v3299, %v3438
        %v3440 = vpop.f32.mrf.mxu0
        %v3441 = vadd.f32 %v3299, %v3440
        %3442 = vmatmul.bf16.gmra.mxu0 %v3280
        %v3443 = vpop.f32.mrf.mxu0
        %v3444 = vadd.f32 %v3299, %v3443
        %v3445 = vpop.f32.mrf.mxu0
        %v3446 = vadd.f32 %v3299, %v3445
        %3447 = vdwg.mxu0
        %v3448 = vunpack.c.l.bf16 %v354
        %v3449 = vunpack.c.l.bf16 %v355
        %v3450 = vunpack.c.l.bf16 %v356
        %v3451 = vunpack.c.l.bf16 %v357
        %v3452 = vunpack.c.l.bf16 %v358
        %v3453 = vunpack.c.l.bf16 %v359
        %v3454 = vunpack.c.l.bf16 %v360
        %v3455 = vunpack.c.l.bf16 %v361
        %v3456 = vunpack.c.l.bf16 %v362
        %v3457 = vunpack.c.l.bf16 %v363
        %v3458 = vunpack.c.l.bf16 %v364
        %v3459 = vunpack.c.l.bf16 %v365
        %v3460 = vunpack.c.l.bf16 %v366
        %v3461 = vunpack.c.l.bf16 %v367
        %v3462 = vunpack.c.l.bf16 %v368
        %v3463 = vunpack.c.l.bf16 %v369
        %v3464 = vunpack.c.l.bf16 %v370
        %v3465 = vunpack.c.l.bf16 %v371
        %v3466 = vunpack.c.l.bf16 %v372
        %v3467 = vunpack.c.l.bf16 %v373
        %v3468 = vunpack.c.l.bf16 %v374
        %v3469 = vunpack.c.l.bf16 %v375
        %v3470 = vunpack.c.l.bf16 %v376
        %v3471 = vunpack.c.l.bf16 %v377
        %v3472 = vunpack.c.l.bf16 %v378
        %v3473 = vunpack.c.l.bf16 %v379
        %v3474 = vunpack.c.l.bf16 %v380
        %v3475 = vunpack.c.l.bf16 %v381
        %v3476 = vunpack.c.l.bf16 %v382
        %v3477 = vunpack.c.l.bf16 %v383
        %v3478 = vunpack.c.l.bf16 %v384
        %v3479 = vunpack.c.l.bf16 %v385
        %v3480 = vunpack.c.l.bf16 %v386
        %v3481 = vunpack.c.l.bf16 %v387
        %v3482 = vunpack.c.l.bf16 %v388
        %v3483 = vunpack.c.l.bf16 %v389
        %v3484 = vunpack.c.l.bf16 %v390
        %vm3522 = vcmask 1044480
        %v3523 = vrot.slane %v3448, 3
        %v3524 = vrot.slane %v3449, 3
        %v3525 = vsel %vm3522, %v3523, %v3524
        %v3526 = vrot.slane %v3450, 3
        %v3527 = vsel %vm3522, %v3524, %v3526
        %v3528 = vrot.slane %v3451, 3
        %v3529 = vsel %vm3522, %v3526, %v3528
        %v3530 = vrot.slane %v3452, 3
        %v3531 = vsel %vm3522, %v3528, %v3530
        %v3532 = vrot.slane %v3453, 3
        %v3533 = vsel %vm3522, %v3530, %v3532
        %v3534 = vrot.slane %v3454, 3
        %v3535 = vsel %vm3522, %v3532, %v3534
        %v3536 = vrot.slane %v3455, 3
        %v3537 = vsel %vm3522, %v3534, %v3536
        %v3538 = vrot.slane %v3456, 3
        %v3539 = vsel %vm3522, %v3536, %v3538
        %v3540 = vrot.slane %v3457, 3
        %v3541 = vsel %vm3522, %v3538, %v3540
        %v3542 = vrot.slane %v3458, 3
        %v3543 = vsel %vm3522, %v3540, %v3542
        %v3544 = vrot.slane %v3459, 3
        %v3545 = vsel %vm3522, %v3542, %v3544
        %v3546 = vrot.slane %v3460, 3
        %v3547 = vsel %vm3522, %v3544, %v3546
        %v3548 = vrot.slane %v3461, 3
        %v3549 = vsel %vm3522, %v3546, %v3548
        %v3550 = vrot.slane %v3462, 3
        %v3551 = vsel %vm3522, %v3548, %v3550
        %v3552 = vrot.slane %v3463, 3
        %v3553 = vsel %vm3522, %v3550, %v3552
        %v3554 = vrot.slane %v3464, 3
        %v3555 = vsel %vm3522, %v3552, %v3554
        %v3556 = vrot.slane %v3465, 3
        %v3557 = vsel %vm3522, %v3554, %v3556
        %v3558 = vrot.slane %v3466, 3
        %v3559 = vsel %vm3522, %v3556, %v3558
        %v3560 = vrot.slane %v3467, 3
        %v3561 = vsel %vm3522, %v3558, %v3560
        %v3562 = vrot.slane %v3468, 3
        %v3563 = vsel %vm3522, %v3560, %v3562
        %v3564 = vrot.slane %v3469, 3
        %v3565 = vsel %vm3522, %v3562, %v3564
        %v3566 = vrot.slane %v3470, 3
        %v3567 = vsel %vm3522, %v3564, %v3566
        %v3568 = vrot.slane %v3471, 3
        %v3569 = vsel %vm3522, %v3566, %v3568
        %v3570 = vrot.slane %v3472, 3
        %v3571 = vsel %vm3522, %v3568, %v3570
        %v3572 = vrot.slane %v3473, 3
        %v3573 = vsel %vm3522, %v3570, %v3572
        %v3574 = vrot.slane %v3474, 3
        %v3575 = vsel %vm3522, %v3572, %v3574
        %v3576 = vrot.slane %v3475, 3
        %v3577 = vsel %vm3522, %v3574, %v3576
        %v3578 = vrot.slane %v3476, 3
        %v3579 = vsel %vm3522, %v3576, %v3578
        %v3580 = vrot.slane %v3477, 3
        %v3581 = vsel %vm3522, %v3578, %v3580
        %v3582 = vrot.slane %v3478, 3
        %v3583 = vsel %vm3522, %v3580, %v3582
        %v3584 = vrot.slane %v3479, 3
        %v3585 = vsel %vm3522, %v3582, %v3584
        %v3586 = vrot.slane %v3480, 3
        %v3587 = vsel %vm3522, %v3584, %v3586
        %v3588 = vrot.slane %v3481, 3
        %v3589 = vsel %vm3522, %v3586, %v3588
        %v3590 = vrot.slane %v3482, 3
        %v3591 = vsel %vm3522, %v3588, %v3590
        %v3592 = vrot.slane %v3483, 3
        %v3593 = vsel %vm3522, %v3590, %v3592
        %v3594 = vrot.slane %v3484, 3
        %v3595 = vsel %vm3522, %v3592, %v3594
        %v3632 = vadd.f32 %v3359, %v3525
        %v3633 = vadd.f32 %v3361, %v3527
        %v3634 = vadd.f32 %v3364, %v3529
        %v3635 = vadd.f32 %v3366, %v3531
        %v3636 = vadd.f32 %v3369, %v3533
        %v3637 = vadd.f32 %v3371, %v3535
        %v3638 = vadd.f32 %v3374, %v3537
        %v3639 = vadd.f32 %v3376, %v3539
        %v3640 = vadd.f32 %v3379, %v3541
        %v3641 = vadd.f32 %v3381, %v3543
        %v3642 = vadd.f32 %v3384, %v3545
        %v3643 = vadd.f32 %v3386, %v3547
        %v3644 = vadd.f32 %v3389, %v3549
        %v3645 = vadd.f32 %v3391, %v3551
        %v3646 = vadd.f32 %v3394, %v3553
        %v3647 = vadd.f32 %v3396, %v3555
        %v3648 = vadd.f32 %v3399, %v3557
        %v3649 = vadd.f32 %v3401, %v3559
        %v3650 = vadd.f32 %v3404, %v3561
        %v3651 = vadd.f32 %v3406, %v3563
        %v3652 = vadd.f32 %v3409, %v3565
        %v3653 = vadd.f32 %v3411, %v3567
        %v3654 = vadd.f32 %v3414, %v3569
        %v3655 = vadd.f32 %v3416, %v3571
        %v3656 = vadd.f32 %v3419, %v3573
        %v3657 = vadd.f32 %v3421, %v3575
        %v3658 = vadd.f32 %v3424, %v3577
        %v3659 = vadd.f32 %v3426, %v3579
        %v3660 = vadd.f32 %v3429, %v3581
        %v3661 = vadd.f32 %v3431, %v3583
        %v3662 = vadd.f32 %v3434, %v3585
        %v3663 = vadd.f32 %v3436, %v3587
        %v3664 = vadd.f32 %v3439, %v3589
        %v3665 = vadd.f32 %v3441, %v3591
        %v3666 = vadd.f32 %v3444, %v3593
        %v3667 = vadd.f32 %v3446, %v3595
        %v3668 = vmax.f32 %v3632, 0.0
        %v3669 = vmax.f32 %v3633, 0.0
        %v3670 = vmax.f32 %v3634, 0.0
        %v3671 = vmax.f32 %v3635, 0.0
        %v3672 = vmax.f32 %v3636, 0.0
        %v3673 = vmax.f32 %v3637, 0.0
        %v3674 = vmax.f32 %v3638, 0.0
        %v3675 = vmax.f32 %v3639, 0.0
        %v3676 = vmax.f32 %v3640, 0.0
        %v3677 = vmax.f32 %v3641, 0.0
        %v3678 = vmax.f32 %v3642, 0.0
        %v3679 = vmax.f32 %v3643, 0.0
        %v3680 = vmax.f32 %v3644, 0.0
        %v3681 = vmax.f32 %v3645, 0.0
        %v3682 = vmax.f32 %v3646, 0.0
        %v3683 = vmax.f32 %v3647, 0.0
        %v3684 = vmax.f32 %v3648, 0.0
        %v3685 = vmax.f32 %v3649, 0.0
        %v3686 = vmax.f32 %v3650, 0.0
        %v3687 = vmax.f32 %v3651, 0.0
        %v3688 = vmax.f32 %v3652, 0.0
        %v3689 = vmax.f32 %v3653, 0.0
        %v3690 = vmax.f32 %v3654, 0.0
        %v3691 = vmax.f32 %v3655, 0.0
        %v3692 = vmax.f32 %v3656, 0.0
        %v3693 = vmax.f32 %v3657, 0.0
        %v3694 = vmax.f32 %v3658, 0.0
        %v3695 = vmax.f32 %v3659, 0.0
        %v3696 = vmax.f32 %v3660, 0.0
        %v3697 = vmax.f32 %v3661, 0.0
        %v3698 = vmax.f32 %v3662, 0.0
        %v3699 = vmax.f32 %v3663, 0.0
        %v3700 = vmax.f32 %v3664, 0.0
        %v3701 = vmax.f32 %v3665, 0.0
        %v3702 = vmax.f32 %v3666, 0.0
        %v3703 = vmax.f32 %v3667, 0.0
        %3704 = vst [vmem:[%s337] sm:$0xff] %v3668
        %3705 = vst [vmem:[%s337 + $0x8] sm:$0xff] %v3669
        %3706 = vst [vmem:[%s337 + $0x10] sm:$0xff] %v3670
        %3707 = vst [vmem:[%s337 + $0x18] sm:$0xff] %v3671
        %3708 = vst [vmem:[%s337 + $0x20] sm:$0xff] %v3672
        %3709 = vst [vmem:[%s337 + $0x28] sm:$0xff] %v3673
        %3710 = vst [vmem:[%s337 + $0x30] sm:$0xff] %v3674
        %3711 = vst [vmem:[%s337 + $0x38] sm:$0xff] %v3675
        %3712 = vst [vmem:[%s337 + $0x40] sm:$0xff] %v3676
        %3713 = vst [vmem:[%s337 + $0x48] sm:$0xff] %v3677
        %3714 = vst [vmem:[%s337 + $0x50] sm:$0xff] %v3678
        %3715 = vst [vmem:[%s337 + $0x58] sm:$0xff] %v3679
        %3716 = vst [vmem:[%s337 + $0x60] sm:$0xff] %v3680
        %3717 = vst [vmem:[%s337 + $0x68] sm:$0xff] %v3681
        %3718 = vst [vmem:[%s337 + $0x70] sm:$0xff] %v3682
        %3719 = vst [vmem:[%s337 + $0x78] sm:$0xff] %v3683
        %3720 = vst [vmem:[%s337 + $0x80] sm:$0xff] %v3684
        %3721 = vst [vmem:[%s337 + $0x88] sm:$0xff] %v3685
        %3722 = vst [vmem:[%s337 + $0x90] sm:$0xff] %v3686
        %3723 = vst [vmem:[%s337 + $0x98] sm:$0xff] %v3687
        %3724 = vst [vmem:[%s337 + $0xa0] sm:$0xff] %v3688
        %3725 = vst [vmem:[%s337 + $0xa8] sm:$0xff] %v3689
        %3726 = vst [vmem:[%s337 + $0xb0] sm:$0xff] %v3690
        %3727 = vst [vmem:[%s337 + $0xb8] sm:$0xff] %v3691
        %3728 = vst [vmem:[%s337 + $0xc0] sm:$0xff] %v3692
        %3729 = vst [vmem:[%s337 + $0xc8] sm:$0xff] %v3693
        %3730 = vst [vmem:[%s337 + $0xd0] sm:$0xff] %v3694
        %3731 = vst [vmem:[%s337 + $0xd8] sm:$0xff] %v3695
        %3732 = vst [vmem:[%s337 + $0xe0] sm:$0xff] %v3696
        %3733 = vst [vmem:[%s337 + $0xe8] sm:$0xff] %v3697
        %3734 = vst [vmem:[%s337 + $0xf0] sm:$0xff] %v3698
        %3735 = vst [vmem:[%s337 + $0xf8] sm:$0xff] %v3699
        %3736 = vst [vmem:[%s337 + $0x100] sm:$0xff] %v3700
        %3737 = vst [vmem:[%s337 + $0x108] sm:$0xff] %v3701
        %3738 = vst [vmem:[%s337 + $0x110] sm:$0xff] %v3702
        %3739 = vst [vmem:[%s337 + $0x118] sm:$0xff] %v3703
        %s3740 = sand.u32 %s224, 1
        %s3741 = scalar_lea.sflag [#allocation3], %s3740
        %s3742 = sand.u32 %s224, 1
        %s3743 = smul.addr %s3742, 288
        %s3744 = scalar_lea.vmem [#allocation2], %s3743
        // Predicated region
        $region53: #{tpu_custom_call.1} parent=51 // pred_check
          %p3745 = pneg %p234
        $region54: #{tpu_custom_call.1} parent=51 // pred_check_branch
          %3747 = sbr.rel (%p3745) target = $region56
        $region55: #{tpu_custom_call.1} parent=51 // pred_region
          %3749 = vsyncadd %s3741, 0
          %s3750 = smul.addr %s27, 36
          %s3751 = smul.addr %s26, 36
          %s3752 = sadd.s32 %s3750, %s3751
          %s3753 = smul.addr %s3752, 8
          %s3754 = scalar_lea.hbm %s8, %s3753
          %s3755 = sshll.u32 %s3744, 4
          %s3756 = int_to_ptr.vmem [resolvable:$true] %s3755
          %s3757 = sshll.u32 %s3754, 4
          %s3758 = int_to_ptr.hbm [resolvable:$true] %s3757
          %3763 = dma.vmem_to_hbm [thread:$0]  %s3756, 4608, %s3758, %s3741, 128, 128, 8
        $region56: #{tpu_custom_call.1} parent=51 // pred_fallthru
          _
      $region52: #{tpu_custom_call.1} parent=5 // pred_fallthru
        _
      %p3764 = scmp.le.s32.totalorder 2, %s17
      // Predicated region
      $region57: #{tpu_custom_call.1} parent=5 // pred_check
        %p3765 = pneg %p3764
      $region58: #{tpu_custom_call.1} parent=5 // pred_check_branch
        %3767 = sbr.rel (%p3765) target = $region60
      $region59: #{tpu_custom_call.1} parent=5 // pred_region
        %s3768 = ssub.s32 %s17, 2
        // Predicated region
        $region61: #{tpu_custom_call.1} parent=59 // pred_check
          %p3769 = pneg %p240
        $region62: #{tpu_custom_call.1} parent=59 // pred_check_branch
          %3771 = sbr.rel (%p3769) target = $region64
        $region63: #{tpu_custom_call.1} parent=59 // pred_region
          %s3772 = sand.u32 %s225, 1
          %s3773 = scalar_lea.sflag [#allocation3], %s3772
          %s3774 = sand.u32 %s225, 1
          %s3775 = smul.addr %s3774, 288
          %s3776 = scalar_lea.vmem [#allocation2], %s3775
          %3778 = dma.done %s3773, 4608
        $region64: #{tpu_custom_call.1} parent=59 // pred_fallthru
          _
      $region60: #{tpu_custom_call.1} parent=5 // pred_fallthru
        _
    $region6: #{tpu_custom_call.1} parent=1 // loop_footer
      %s21 = sadd.s32 1, %s17
    $region7: #{tpu_custom_call.1} parent=1 // loop_footer_branch
      %16 = sbr.rel target = $region3
    $region8: #{tpu_custom_call.1} parent=1 // loop_exit
      _
    %3779 = vsyncpa [#allocation3], 1
    %s3780 = scalar_lea.sflag [#allocation3], 1
    %3781 = vsyncpa %s3780, 1

// kernel: tpu_custom_call.1
$region0: #{tpu_custom_call.1}
  #allocation0 [shape = 'u32[]', space=smem, size = 0x4, offset = 0x4, fixed_abs, tag = 'smem constant byte address 0x4 - core index']
  #allocation1 [shape = 'u32[72,128]{1,0:T(1,128)}', space=vmem, size = 0x9000, scoped, tag = 'internal scratch']
  %s0 = inlined_call_operand.vmem [shape: bf16[2,1,342,128], index: 0, kind: input, shape index: {}]
  %s1 = inlined_call_operand.vmem [shape: f32[1,342,1], index: 1, kind: input, shape index: {}]
  %s2 = inlined_call_operand.vmem [shape: bf16[128,128], index: 2, kind: input, shape index: {}]
  %s3 = inlined_call_operand.vmem [shape: f32[1,128], index: 3, kind: input, shape index: {}]
  %s4 = inlined_call_operand.vmem [shape: bf16[1152,128], index: 4, kind: input, shape index: {}]
  %s5 = inlined_call_operand.vmem [shape: f32[1,128], index: 5, kind: input, shape index: {}]
  %s6 = inlined_call_operand.vmem [shape: bf16[128,128], index: 6, kind: input, shape index: {}]
  %s7 = inlined_call_operand.vmem [shape: f32[1,128], index: 7, kind: input, shape index: {}]
  %s8 = inlined_call_operand.hbm [shape: f32[2,1,288,128], index: 8, kind: output, shape index: {}]
  %s9 = sld [smem:[#allocation0]]
  $region65: #{tpu_custom_call.1} parent=0
    _
  %s11 = ssub.s32 1, %s9
  %s12 = scalar_select 0, %s11, %s9
  $region1: #{tpu_custom_call.1} parent=0
    #allocation2 [shape = 'u8[294912]{0}', space=vmem, size = 0x48000, scoped, tag = 'output window, operand 0']
    #allocation3 [shape = 's32[2]{0}', space=sflag, size = 0x8, scoped, tag = 'scoped memory for tpu_custom_call.1']
    %13 = vsyncpa [#allocation3], 0
    %s14 = scalar_lea.sflag [#allocation3], 1
    %15 = vsyncpa %s14, 0
    loop: start=0, step=1, limit=4
    $region2: #{tpu_custom_call.1} parent=1 // loop_pre_header
      _
    $region3: #{tpu_custom_call.1} parent=1 // loop_header
      %s17 = sphi 0, %s21
      %p18 = scmp.ge.s32.totalorder %s17, 4
      %s24 = sphi 0, %s36
      %s25 = sphi 0, %s32
      %s26 = sphi 0, %s24
      %s27 = sphi 0, %s25
      %s28 = sphi 0, %s26
      %s29 = sphi 0, %s27
      %s41 = sphi 0, %s43
      %s44 = sphi 0, %s41
      %s45 = sphi 0, %s44
      %s61 = sphi 0, %s45
      %s67 = sphi 0, %s69
      %s70 = sphi 0, %s67
      %s71 = sphi 0, %s70
      %s87 = sphi 0, %s71
      %s91 = sphi 0, %s91
      %s93 = sphi 0, %s91
      %s94 = sphi 0, %s93
      %s108 = sphi 0, %s94
      %s112 = sphi 0, %s112
      %s114 = sphi 0, %s112
      %s115 = sphi 0, %s114
      %s129 = sphi 0, %s115
      %s133 = sphi 0, %s133
      %s135 = sphi 0, %s133
      %s136 = sphi 0, %s135
      %s150 = sphi 0, %s136
      %s154 = sphi 0, %s154
      %s156 = sphi 0, %s154
      %s157 = sphi 0, %s156
      %s171 = sphi 0, %s157
      %s175 = sphi 0, %s175
      %s177 = sphi 0, %s175
      %s178 = sphi 0, %s177
      %s192 = sphi 0, %s178
      %s196 = sphi 0, %s196
      %s198 = sphi 0, %s196
      %s199 = sphi 0, %s198
      %s213 = sphi 0, %s199
      %s221 = sphi 0, %s223
      %s224 = sphi 0, %s221
      %s225 = sphi 0, %s224
      %s241 = sphi 0, %s225
    $region4: #{tpu_custom_call.1} parent=1 // loop_header_branch
      %20 = sbr.rel (%p18) target = $region8
    $region5: #{tpu_custom_call.1} parent=1 // loop_body
      %s22 = ssub.s32 %s17, 1
      %s23 = ssub.s32 %s17, 2
      %s30 = sadd.s32 1, %s25
      %p31 = scmp.ge.s32.totalorder %s30, 1
      %s32 = scalar_select %p31, 0, %s30
      %s33 = sadd.s32 1, %s24
      %s34 = scalar_select %p31, %s33, %s24
      %p35 = scmp.ge.s32.totalorder %s34, 2
      %s36 = scalar_select %p35, 0, %s34
      %s37 = ssub.s32 %s24, %s36
      %s38 = ssub.s32 %s25, %s32
      %s39 = sor.u32 %s37, %s38
      %p40 = scmp.eq.s32.totalorder %s39, 0
      %s42 = sadd.s32 %s41, 1
      %s43 = scalar_select %p40, %s41, %s42
      %p46 = pneg %p40
      %p47 = scmp.eq.s32.totalorder %s17, 1
      %p48 = por %p46, %p47
      %p49 = scmp.ne.s32.totalorder %s41, %s44
      %p50 = scmp.eq.s32.totalorder %s17, 0
      %p51 = por %p49, %p50
      %p52 = scmp.ne.s32.totalorder %s41, %s44
      %p53 = scmp.eq.s32.totalorder %s22, 1
      %p54 = por %p52, %p53
      %p55 = scmp.ne.s32.totalorder %s44, %s45
      %p56 = scmp.eq.s32.totalorder %s22, 0
      %p57 = por %p55, %p56
      %p58 = scmp.ne.s32.totalorder %s44, %s45
      %p59 = scmp.eq.s32.totalorder %s23, 1
      %p60 = por %p58, %p59
      %p62 = scmp.ne.s32.totalorder %s45, %s61
      %p63 = scmp.eq.s32.totalorder %s23, 0
      %p64 = por %p62, %p63
      %s65 = ssub.s32 %s25, %s32
      %p66 = scmp.eq.s32.totalorder %s65, 0
      %s68 = sadd.s32 %s67, 1
      %s69 = scalar_select %p66, %s67, %s68
      %p72 = pneg %p66
      %p73 = scmp.eq.s32.totalorder %s17, 1
      %p74 = por %p72, %p73
      %p75 = scmp.ne.s32.totalorder %s67, %s70
      %p76 = scmp.eq.s32.totalorder %s17, 0
      %p77 = por %p75, %p76
      %p78 = scmp.ne.s32.totalorder %s67, %s70
      %p79 = scmp.eq.s32.totalorder %s22, 1
      %p80 = por %p78, %p79
      %p81 = scmp.ne.s32.totalorder %s70, %s71
      %p82 = scmp.eq.s32.totalorder %s22, 0
      %p83 = por %p81, %p82
      %p84 = scmp.ne.s32.totalorder %s70, %s71
      %p85 = scmp.eq.s32.totalorder %s23, 1
      %p86 = por %p84, %p85
      %p88 = scmp.ne.s32.totalorder %s71, %s87
      %p89 = scmp.eq.s32.totalorder %s23, 0
      %p90 = por %p88, %p89
      %s92 = sadd.s32 %s91, 1
      %p95 = scmp.eq.s32.totalorder %s17, 1
      %p96 = scmp.ne.s32.totalorder %s91, %s93
      %p97 = scmp.eq.s32.totalorder %s17, 0
      %p98 = por %p96, %p97
      %p99 = scmp.ne.s32.totalorder %s91, %s93
      %p100 = scmp.eq.s32.totalorder %s22, 1
      %p101 = por %p99, %p100
      %p102 = scmp.ne.s32.totalorder %s93, %s94
      %p103 = scmp.eq.s32.totalorder %s22, 0
      %p104 = por %p102, %p103
      %p105 = scmp.ne.s32.totalorder %s93, %s94
      %p106 = scmp.eq.s32.totalorder %s23, 1
      %p107 = por %p105, %p106
      %p109 = scmp.ne.s32.totalorder %s94, %s108
      %p110 = scmp.eq.s32.totalorder %s23, 0
      %p111 = por %p109, %p110
      %s113 = sadd.s32 %s112, 1
      %p116 = scmp.eq.s32.totalorder %s17, 1
      %p117 = scmp.ne.s32.totalorder %s112, %s114
      %p118 = scmp.eq.s32.totalorder %s17, 0
      %p119 = por %p117, %p118
      %p120 = scmp.ne.s32.totalorder %s112, %s114
      %p121 = scmp.eq.s32.totalorder %s22, 1
      %p122 = por %p120, %p121
      %p123 = scmp.ne.s32.totalorder %s114, %s115
      %p124 = scmp.eq.s32.totalorder %s22, 0
      %p125 = por %p123, %p124
      %p126 = scmp.ne.s32.totalorder %s114, %s115
      %p127 = scmp.eq.s32.totalorder %s23, 1
      %p128 = por %p126, %p127
      %p130 = scmp.ne.s32.totalorder %s115, %s129
      %p131 = scmp.eq.s32.totalorder %s23, 0
      %p132 = por %p130, %p131
      %s134 = sadd.s32 %s133, 1
      %p137 = scmp.eq.s32.totalorder %s17, 1
      %p138 = scmp.ne.s32.totalorder %s133, %s135
      %p139 = scmp.eq.s32.totalorder %s17, 0
      %p140 = por %p138, %p139
      %p141 = scmp.ne.s32.totalorder %s133, %s135
      %p142 = scmp.eq.s32.totalorder %s22, 1
      %p143 = por %p141, %p142
      %p144 = scmp.ne.s32.totalorder %s135, %s136
      %p145 = scmp.eq.s32.totalorder %s22, 0
      %p146 = por %p144, %p145
      %p147 = scmp.ne.s32.totalorder %s135, %s136
      %p148 = scmp.eq.s32.totalorder %s23, 1
      %p149 = por %p147, %p148
      %p151 = scmp.ne.s32.totalorder %s136, %s150
      %p152 = scmp.eq.s32.totalorder %s23, 0
      %p153 = por %p151, %p152
      %s155 = sadd.s32 %s154, 1
      %p158 = scmp.eq.s32.totalorder %s17, 1
      %p159 = scmp.ne.s32.totalorder %s154, %s156
      %p160 = scmp.eq.s32.totalorder %s17, 0
      %p161 = por %p159, %p160
      %p162 = scmp.ne.s32.totalorder %s154, %s156
      %p163 = scmp.eq.s32.totalorder %s22, 1
      %p164 = por %p162, %p163
      %p165 = scmp.ne.s32.totalorder %s156, %s157
      %p166 = scmp.eq.s32.totalorder %s22, 0
      %p167 = por %p165, %p166
      %p168 = scmp.ne.s32.totalorder %s156, %s157
      %p169 = scmp.eq.s32.totalorder %s23, 1
      %p170 = por %p168, %p169
      %p172 = scmp.ne.s32.totalorder %s157, %s171
      %p173 = scmp.eq.s32.totalorder %s23, 0
      %p174 = por %p172, %p173
      %s176 = sadd.s32 %s175, 1
      %p179 = scmp.eq.s32.totalorder %s17, 1
      %p180 = scmp.ne.s32.totalorder %s175, %s177
      %p181 = scmp.eq.s32.totalorder %s17, 0
      %p182 = por %p180, %p181
      %p183 = scmp.ne.s32.totalorder %s175, %s177
      %p184 = scmp.eq.s32.totalorder %s22, 1
      %p185 = por %p183, %p184
      %p186 = scmp.ne.s32.totalorder %s177, %s178
      %p187 = scmp.eq.s32.totalorder %s22, 0
      %p188 = por %p186, %p187
      %p189 = scmp.ne.s32.totalorder %s177, %s178
      %p190 = scmp.eq.s32.totalorder %s23, 1
      %p191 = por %p189, %p190
      %p193 = scmp.ne.s32.totalorder %s178, %s192
      %p194 = scmp.eq.s32.totalorder %s23, 0
      %p195 = por %p193, %p194
      %s197 = sadd.s32 %s196, 1
      %p200 = scmp.eq.s32.totalorder %s17, 1
      %p201 = scmp.ne.s32.totalorder %s196, %s198
      %p202 = scmp.eq.s32.totalorder %s17, 0
      %p203 = por %p201, %p202
      %p204 = scmp.ne.s32.totalorder %s196, %s198
      %p205 = scmp.eq.s32.totalorder %s22, 1
      %p206 = por %p204, %p205
      %p207 = scmp.ne.s32.totalorder %s198, %s199
      %p208 = scmp.eq.s32.totalorder %s22, 0
      %p209 = por %p207, %p208
      %p210 = scmp.ne.s32.totalorder %s198, %s199
      %p211 = scmp.eq.s32.totalorder %s23, 1
      %p212 = por %p210, %p211
      %p214 = scmp.ne.s32.totalorder %s199, %s213
      %p215 = scmp.eq.s32.totalorder %s23, 0
      %p216 = por %p214, %p215
      %s217 = ssub.s32 %s24, %s36
      %s218 = ssub.s32 %s25, %s32
      %s219 = sor.u32 %s217, %s218
      %p220 = scmp.eq.s32.totalorder %s219, 0
      %s222 = sadd.s32 %s221, 1
      %s223 = scalar_select %p220, %s221, %s222
      %p226 = pneg %p220
      %p227 = scmp.eq.s32.totalorder %s17, 1
      %p228 = por %p226, %p227
      %p229 = scmp.ne.s32.totalorder %s221, %s224
      %p230 = scmp.eq.s32.totalorder %s17, 0
      %p231 = por %p229, %p230
      %p232 = scmp.ne.s32.totalorder %s221, %s224
      %p233 = scmp.eq.s32.totalorder %s22, 1
      %p234 = por %p232, %p233
      %p235 = scmp.ne.s32.totalorder %s224, %s225
      %p236 = scmp.eq.s32.totalorder %s22, 0
      %p237 = por %p235, %p236
      %p238 = scmp.ne.s32.totalorder %s224, %s225
      %p239 = scmp.eq.s32.totalorder %s23, 1
      %p240 = por %p238, %p239
      %p242 = scmp.ne.s32.totalorder %s225, %s241
      %p243 = scmp.eq.s32.totalorder %s23, 0
      %p244 = por %p242, %p243
      %p245 = scmp.le.s32.totalorder 1, %s17
      %p246 = scmp.lt.s32.totalorder %s17, 3
      %p247 = pnand %p245, %p246
      %p248 = pneg %p247
      // Predicated region
      $region9: #{tpu_custom_call.1} parent=5 // pred_check
        _
      $region10: #{tpu_custom_call.1} parent=5 // pred_check_branch
        %250 = sbr.rel (%p247) target = $region12
      $region11: #{tpu_custom_call.1} parent=5 // pred_region
        %s251 = ssub.s32 %s17, 1
        // Predicated region
        $region13: #{tpu_custom_call.1} parent=11 // pred_check
          %p252 = pneg %p83
        $region14: #{tpu_custom_call.1} parent=11 // pred_check_branch
          %254 = sbr.rel (%p252) target = $region16
        $region15: #{tpu_custom_call.1} parent=11 // pred_region
          %p255 = scmp.lt.s32.totalorder %s27, 0
          %s256 = scalar_select %p255, %s27, 0
          %s257 = smul.addr %s256, 43
          %s258 = smul.addr %s257, 8
          %s259 = scalar_lea.vmem %s1, %s258
        $region16: #{tpu_custom_call.1} parent=11 // pred_fallthru
          _
        // Predicated region
        $region17: #{tpu_custom_call.1} parent=11 // pred_check
          %p260 = pneg %p104
        $region18: #{tpu_custom_call.1} parent=11 // pred_check_branch
          %262 = sbr.rel (%p260) target = $region20
        $region19: #{tpu_custom_call.1} parent=11 // pred_region
          _
        $region20: #{tpu_custom_call.1} parent=11 // pred_fallthru
          _
        // Predicated region
        $region21: #{tpu_custom_call.1} parent=11 // pred_check
          %p263 = pneg %p125
        $region22: #{tpu_custom_call.1} parent=11 // pred_check_branch
          %265 = sbr.rel (%p263) target = $region24
        $region23: #{tpu_custom_call.1} parent=11 // pred_region
          _
        $region24: #{tpu_custom_call.1} parent=11 // pred_fallthru
          _
        // Predicated region
        $region25: #{tpu_custom_call.1} parent=11 // pred_check
          %p266 = pneg %p146
        $region26: #{tpu_custom_call.1} parent=11 // pred_check_branch
          %268 = sbr.rel (%p266) target = $region28
        $region27: #{tpu_custom_call.1} parent=11 // pred_region
          _
        $region28: #{tpu_custom_call.1} parent=11 // pred_fallthru
          _
        // Predicated region
        $region29: #{tpu_custom_call.1} parent=11 // pred_check
          %p269 = pneg %p167
        $region30: #{tpu_custom_call.1} parent=11 // pred_check_branch
          %271 = sbr.rel (%p269) target = $region32
        $region31: #{tpu_custom_call.1} parent=11 // pred_region
          _
        $region32: #{tpu_custom_call.1} parent=11 // pred_fallthru
          _
        // Predicated region
        $region33: #{tpu_custom_call.1} parent=11 // pred_check
          %p272 = pneg %p188
        $region34: #{tpu_custom_call.1} parent=11 // pred_check_branch
          %274 = sbr.rel (%p272) target = $region36
        $region35: #{tpu_custom_call.1} parent=11 // pred_region
          _
        $region36: #{tpu_custom_call.1} parent=11 // pred_fallthru
          _
        // Predicated region
        $region37: #{tpu_custom_call.1} parent=11 // pred_check
          %p275 = pneg %p209
        $region38: #{tpu_custom_call.1} parent=11 // pred_check_branch
          %277 = sbr.rel (%p275) target = $region40
        $region39: #{tpu_custom_call.1} parent=11 // pred_region
          _
        $region40: #{tpu_custom_call.1} parent=11 // pred_fallthru
          _
      $region12: #{tpu_custom_call.1} parent=5 // pred_fallthru
        _
      %p278 = scmp.lt.s32.totalorder %s17, 2
      // Predicated region
      $region41: #{tpu_custom_call.1} parent=5 // pred_check
        %p279 = pneg %p278
      $region42: #{tpu_custom_call.1} parent=5 // pred_check_branch
        %281 = sbr.rel (%p279) target = $region44
      $region43: #{tpu_custom_call.1} parent=5 // pred_region
        // Predicated region
        $region45: #{tpu_custom_call.1} parent=43 // pred_check
          %p282 = pneg %p51
        $region46: #{tpu_custom_call.1} parent=43 // pred_check_branch
          %284 = sbr.rel (%p282) target = $region48
        $region47: #{tpu_custom_call.1} parent=43 // pred_region
          %p285 = scmp.lt.s32.totalorder %s24, 1
          %s286 = scalar_select %p285, %s24, 1
          %p287 = scmp.lt.s32.totalorder %s25, 0
          %s288 = scalar_select %p287, %s25, 0
          %s289 = smul.addr %s288, 43
          %s290 = smul.addr %s286, 43
          %s291 = sadd.s32 %s289, %s290
          %s292 = smul.addr %s291, 4
          %s293 = scalar_lea.vmem %s0, %s292
        $region48: #{tpu_custom_call.1} parent=43 // pred_fallthru
          _
      $region44: #{tpu_custom_call.1} parent=5 // pred_fallthru
        _
      %p294 = scmp.le.s32.totalorder 1, %s17
      %p295 = scmp.lt.s32.totalorder %s17, 3
      %p296 = pnand %p294, %p295
      %p297 = pneg %p296
      // Predicated region
      $region49: #{tpu_custom_call.1} parent=5 // pred_check
        _
      $region50: #{tpu_custom_call.1} parent=5 // pred_check_branch
        %299 = sbr.rel (%p296) target = $region52
      $region51: #{tpu_custom_call.1} parent=5 // pred_region
        %s300 = ssub.s32 %s17, 1
        %p301 = scmp.lt.s32.totalorder %s26, 1
        %s302 = scalar_select %p301, %s26, 1
        %p303 = scmp.lt.s32.totalorder %s27, 0
        %s304 = scalar_select %p303, %s27, 0
        %s305 = smul.addr %s304, 43
        %s306 = smul.addr %s302, 43
        %s307 = sadd.s32 %s305, %s306
        %s308 = smul.addr %s307, 4
        %s309 = scalar_lea.vmem %s0, %s308
        %p310 = pneg %p57
        %p311 = pneg %p54
        %p312 = scmp.lt.s32.totalorder %s27, 0
        %s313 = scalar_select %p312, %s27, 0
        %s314 = smul.addr %s313, 43
        %s315 = smul.addr %s314, 8
        %s316 = scalar_lea.vmem %s1, %s315
        %p317 = pneg %p83
        %p318 = pneg %p80
        %p319 = pneg %p104
        %p320 = pneg %p101
        %p321 = pneg %p125
        %p322 = pneg %p122
        %p323 = pneg %p146
        %p324 = pneg %p143
        %p325 = pneg %p167
        %p326 = pneg %p164
        %p327 = pneg %p188
        %p328 = pneg %p185
        %p329 = pneg %p209
        %p330 = pneg %p206
        %p331 = pneg %p237
        %p332 = pneg %p234
        %s333 = sand.u32 %s224, 1
        %s334 = scalar_lea.sflag [#allocation3], %s333
        %s335 = sand.u32 %s224, 1
        %s336 = smul.addr %s335, 288
        %s337 = scalar_lea.vmem [#allocation2], %s336
        %p338 = scmp.lt.s32.totalorder %s26, 1
        %s339 = scalar_select %p338, %s26, 1
        %p340 = scmp.lt.s32.totalorder %s27, 0
        %s341 = scalar_select %p340, %s27, 0
        %s342 = smul.addr %s341, 43
        %s343 = smul.addr %s339, 43
        %s344 = sadd.s32 %s342, %s343
        %s345 = smul.addr %s344, 4
        %s346 = scalar_lea.vmem %s0, %s345
        %p347 = scmp.lt.s32.totalorder %s27, 0
        %s348 = scalar_select %p347, %s27, 0
        %s349 = smul.addr %s348, 43
        %s350 = smul.addr %s349, 8
        %s351 = scalar_lea.vmem %s1, %s350
        %v352 = vld [vmem:[%s346] sm:$0xf]
        %v353 = vld [vmem:[%s346 + $0x4] sm:$0xf]
        %v354 = vld [vmem:[%s346 + $0x8] sm:$0xf]
        %v355 = vld [vmem:[%s346 + $0xc] sm:$0xf]
        %v356 = vld [vmem:[%s346 + $0x10] sm:$0xf]
        %v357 = vld [vmem:[%s346 + $0x14] sm:$0xf]
        %v358 = vld [vmem:[%s346 + $0x18] sm:$0xf]
        %v359 = vld [vmem:[%s346 + $0x1c] sm:$0xf]
        %v360 = vld [vmem:[%s346 + $0x20] sm:$0xf]
        %v361 = vld [vmem:[%s346 + $0x24] sm:$0xf]
        %v362 = vld [vmem:[%s346 + $0x28] sm:$0xf]
        %v363 = vld [vmem:[%s346 + $0x2c] sm:$0xf]
        %v364 = vld [vmem:[%s346 + $0x30] sm:$0xf]
        %v365 = vld [vmem:[%s346 + $0x34] sm:$0xf]
        %v366 = vld [vmem:[%s346 + $0x38] sm:$0xf]
        %v367 = vld [vmem:[%s346 + $0x3c] sm:$0xf]
        %v368 = vld [vmem:[%s346 + $0x40] sm:$0xf]
        %v369 = vld [vmem:[%s346 + $0x44] sm:$0xf]
        %v370 = vld [vmem:[%s346 + $0x48] sm:$0xf]
        %v371 = vld [vmem:[%s346 + $0x4c] sm:$0xf]
        %v372 = vld [vmem:[%s346 + $0x50] sm:$0xf]
        %v373 = vld [vmem:[%s346 + $0x54] sm:$0xf]
        %v374 = vld [vmem:[%s346 + $0x58] sm:$0xf]
        %v375 = vld [vmem:[%s346 + $0x5c] sm:$0xf]
        %v376 = vld [vmem:[%s346 + $0x60] sm:$0xf]
        %v377 = vld [vmem:[%s346 + $0x64] sm:$0xf]
        %v378 = vld [vmem:[%s346 + $0x68] sm:$0xf]
        %v379 = vld [vmem:[%s346 + $0x6c] sm:$0xf]
        %v380 = vld [vmem:[%s346 + $0x70] sm:$0xf]
        %v381 = vld [vmem:[%s346 + $0x74] sm:$0xf]
        %v382 = vld [vmem:[%s346 + $0x78] sm:$0xf]
        %v383 = vld [vmem:[%s346 + $0x7c] sm:$0xf]
        %v384 = vld [vmem:[%s346 + $0x80] sm:$0xf]
        %v385 = vld [vmem:[%s346 + $0x84] sm:$0xf]
        %v386 = vld [vmem:[%s346 + $0x88] sm:$0xf]
        %v387 = vld [vmem:[%s346 + $0x8c] sm:$0xf]
        %v388 = vld [vmem:[%s346 + $0x90] sm:$0xf]
        %v389 = vld [vmem:[%s346 + $0x94] sm:$0xf]
        %v390 = vld [vmem:[%s346 + $0x98] sm:$0xf]
        %v391 = vld [vmem:[%s346 + $0x9c] sm:$0xf]
        %v392 = vld [vmem:[%s346 + $0xa0] sm:$0xf]
        %v393 = vld [vmem:[%s346 + $0xa4] sm:$0xf]
        %v394 = vld [vmem:[%s346 + $0xa8] sm:$0x7]
        %v395 = vld [vmem:[%s2] sm:$0xf]
        %v396 = vld [vmem:[%s2 + $0x4] sm:$0xf]
        %v397 = vld [vmem:[%s2 + $0x8] sm:$0xf]
        %v398 = vld [vmem:[%s2 + $0xc] sm:$0xf]
        %v399 = vld [vmem:[%s2 + $0x10] sm:$0xf]
        %v400 = vld [vmem:[%s2 + $0x14] sm:$0xf]
        %v401 = vld [vmem:[%s2 + $0x18] sm:$0xf]
        %v402 = vld [vmem:[%s2 + $0x1c] sm:$0xf]
        %v403 = vld [vmem:[%s2 + $0x20] sm:$0xf]
        %v404 = vld [vmem:[%s2 + $0x24] sm:$0xf]
        %v405 = vld [vmem:[%s2 + $0x28] sm:$0xf]
        %v406 = vld [vmem:[%s2 + $0x2c] sm:$0xf]
        %v407 = vld [vmem:[%s2 + $0x30] sm:$0xf]
        %v408 = vld [vmem:[%s2 + $0x34] sm:$0xf]
        %v409 = vld [vmem:[%s2 + $0x38] sm:$0xf]
        %v410 = vld [vmem:[%s2 + $0x3c] sm:$0xf]
        %v411 = vld [vmem:[%s3] sm:$0x1]
        %v413 = vperm.slane %v411, 0
        %v458 = vunpack.c.l.b16 %v352
        %v459 = vunpack.c.l.b16 %v353
        %v460 = vunpack.c.l.b16 %v354
        %v461 = vunpack.c.l.b16 %v355
        %v462 = vunpack.c.l.b16 %v356
        %v463 = vunpack.c.l.b16 %v357
        %v464 = vunpack.c.l.b16 %v358
        %v465 = vunpack.c.l.b16 %v359
        %v466 = vunpack.c.l.b16 %v360
        %v467 = vunpack.c.l.b16 %v361
        %v468 = vunpack.c.l.b16 %v362
        %v469 = vunpack.c.l.b16 %v363
        %v470 = vunpack.c.l.b16 %v364
        %v471 = vunpack.c.l.b16 %v365
        %v472 = vunpack.c.l.b16 %v366
        %v473 = vunpack.c.l.b16 %v367
        %v474 = vunpack.c.l.b16 %v368
        %v475 = vunpack.c.l.b16 %v369
        %v476 = vunpack.c.l.b16 %v370
        %v477 = vunpack.c.l.b16 %v371
        %v478 = vunpack.c.l.b16 %v372
        %v479 = vunpack.c.l.b16 %v373
        %v480 = vunpack.c.l.b16 %v374
        %v481 = vunpack.c.l.b16 %v375
        %v482 = vunpack.c.l.b16 %v376
        %v483 = vunpack.c.l.b16 %v377
        %v484 = vunpack.c.l.b16 %v378
        %v485 = vunpack.c.l.b16 %v379
        %v486 = vunpack.c.l.b16 %v380
        %v487 = vunpack.c.l.b16 %v381
        %v488 = vunpack.c.l.b16 %v382
        %v489 = vunpack.c.l.b16 %v383
        %v490 = vunpack.c.l.b16 %v384
        %v491 = vunpack.c.l.b16 %v385
        %v492 = vunpack.c.l.b16 %v386
        %v493 = vunpack.c.l.b16 %v387
        %v494 = vunpack.c.l.b16 %v388
        %v495 = vunpack.c.l.b16 %v389
        %v496 = vunpack.c.l.b16 %v390
        %v497 = vunpack.c.l.b16 %v391
        %v498 = vunpack.c.l.b16 %v392
        %v499 = vunpack.c.l.b16 %v393
        %v500 = vunpack.c.l.b16 %v394
        %v501 = vpack.c.b16 %v459, %v458
        %v502 = vpack.c.b16 %v461, %v460
        %v503 = vpack.c.b16 %v463, %v462
        %v504 = vpack.c.b16 %v465, %v464
        %v505 = vpack.c.b16 %v467, %v466
        %v506 = vpack.c.b16 %v469, %v468
        %v507 = vpack.c.b16 %v471, %v470
        %v508 = vpack.c.b16 %v473, %v472
        %v509 = vpack.c.b16 %v475, %v474
        %v510 = vpack.c.b16 %v477, %v476
        %v511 = vpack.c.b16 %v479, %v478
        %v512 = vpack.c.b16 %v481, %v480
        %v513 = vpack.c.b16 %v483, %v482
        %v514 = vpack.c.b16 %v485, %v484
        %v515 = vpack.c.b16 %v487, %v486
        %v516 = vpack.c.b16 %v489, %v488
        %v517 = vpack.c.b16 %v491, %v490
        %v518 = vpack.c.b16 %v493, %v492
        %v519 = vpack.c.b16 %v495, %v494
        %v520 = vpack.c.b16 %v497, %v496
        %v521 = vpack.c.b16 %v499, %v498
        %v522 = vpack.c.b16 %v500, %v500
        %v561 = vunpack.c.l.b16 %v395
        %v562 = vunpack.c.l.b16 %v396
        %v563 = vunpack.c.l.b16 %v397
        %v564 = vunpack.c.l.b16 %v398
        %v565 = vunpack.c.l.b16 %v399
        %v566 = vunpack.c.l.b16 %v400
        %v567 = vunpack.c.l.b16 %v401
        %v568 = vunpack.c.l.b16 %v402
        %v569 = vunpack.c.l.b16 %v403
        %v570 = vunpack.c.l.b16 %v404
        %v571 = vunpack.c.l.b16 %v405
        %v572 = vunpack.c.l.b16 %v406
        %v573 = vunpack.c.l.b16 %v407
        %v574 = vunpack.c.l.b16 %v408
        %v575 = vunpack.c.l.b16 %v409
        %v576 = vunpack.c.l.b16 %v410
        %v577 = vpack.c.b16 %v562, %v561
        %v578 = vpack.c.b16 %v564, %v563
        %v579 = vpack.c.b16 %v566, %v565
        %v580 = vpack.c.b16 %v568, %v567
        %v581 = vpack.c.b16 %v570, %v569
        %v582 = vpack.c.b16 %v572, %v571
        %v583 = vpack.c.b16 %v574, %v573
        %v584 = vpack.c.b16 %v576, %v575
        %593 = vmatpush.bf16.msra.mxu0 %v584
        %594 = vmatpush.bf16.msra.mxu0 %v583
        %595 = vmatpush.bf16.msra.mxu0 %v582
        %596 = vmatpush.bf16.msra.mxu0 %v581
        %597 = vmatpush.bf16.msra.mxu0 %v580
        %598 = vmatpush.bf16.msra.mxu0 %v579
        %599 = vmatpush.bf16.msra.mxu0 %v578
        %600 = vmatpush.bf16.msra.mxu0 %v577
        %601 = vmatmul.bf16.gmra.mxu0 %v501
        %v602 = vpop.f32.mrf.mxu0
        %v603 = vadd.f32 %v413, %v602
        %v604 = vpop.f32.mrf.mxu0
        %v605 = vadd.f32 %v413, %v604
        %606 = vmatmul.bf16.gmra.mxu0 %v502
        %v607 = vpop.f32.mrf.mxu0
        %v608 = vadd.f32 %v413, %v607
        %v609 = vpop.f32.mrf.mxu0
        %v610 = vadd.f32 %v413, %v609
        %611 = vmatmul.bf16.gmra.mxu0 %v503
        %v612 = vpop.f32.mrf.mxu0
        %v613 = vadd.f32 %v413, %v612
        %v614 = vpop.f32.mrf.mxu0
        %v615 = vadd.f32 %v413, %v614
        %616 = vmatmul.bf16.gmra.mxu0 %v504
        %v617 = vpop.f32.mrf.mxu0
        %v618 = vadd.f32 %v413, %v617
        %v619 = vpop.f32.mrf.mxu0
        %v620 = vadd.f32 %v413, %v619
        %621 = vmatmul.bf16.gmra.mxu0 %v505
        %v622 = vpop.f32.mrf.mxu0
        %v623 = vadd.f32 %v413, %v622
        %v624 = vpop.f32.mrf.mxu0
        %v625 = vadd.f32 %v413, %v624
        %626 = vmatmul.bf16.gmra.mxu0 %v506
        %v627 = vpop.f32.mrf.mxu0
        %v628 = vadd.f32 %v413, %v627
        %v629 = vpop.f32.mrf.mxu0
        %v630 = vadd.f32 %v413, %v629
        %631 = vmatmul.bf16.gmra.mxu0 %v507
        %v632 = vpop.f32.mrf.mxu0
        %v633 = vadd.f32 %v413, %v632
        %v634 = vpop.f32.mrf.mxu0
        %v635 = vadd.f32 %v413, %v634
        %636 = vmatmul.bf16.gmra.mxu0 %v508
        %v637 = vpop.f32.mrf.mxu0
        %v638 = vadd.f32 %v413, %v637
        %v639 = vpop.f32.mrf.mxu0
        %v640 = vadd.f32 %v413, %v639
        %641 = vmatmul.bf16.gmra.mxu0 %v509
        %v642 = vpop.f32.mrf.mxu0
        %v643 = vadd.f32 %v413, %v642
        %v644 = vpop.f32.mrf.mxu0
        %v645 = vadd.f32 %v413, %v644
        %646 = vmatmul.bf16.gmra.mxu0 %v510
        %v647 = vpop.f32.mrf.mxu0
        %v648 = vadd.f32 %v413, %v647
        %v649 = vpop.f32.mrf.mxu0
        %v650 = vadd.f32 %v413, %v649
        %651 = vmatmul.bf16.gmra.mxu0 %v511
        %v652 = vpop.f32.mrf.mxu0
        %v653 = vadd.f32 %v413, %v652
        %v654 = vpop.f32.mrf.mxu0
        %v655 = vadd.f32 %v413, %v654
        %656 = vmatmul.bf16.gmra.mxu0 %v512
        %v657 = vpop.f32.mrf.mxu0
        %v658 = vadd.f32 %v413, %v657
        %v659 = vpop.f32.mrf.mxu0
        %v660 = vadd.f32 %v413, %v659
        %661 = vmatmul.bf16.gmra.mxu0 %v513
        %v662 = vpop.f32.mrf.mxu0
        %v663 = vadd.f32 %v413, %v662
        %v664 = vpop.f32.mrf.mxu0
        %v665 = vadd.f32 %v413, %v664
        %666 = vmatmul.bf16.gmra.mxu0 %v514
        %v667 = vpop.f32.mrf.mxu0
        %v668 = vadd.f32 %v413, %v667
        %v669 = vpop.f32.mrf.mxu0
        %v670 = vadd.f32 %v413, %v669
        %671 = vmatmul.bf16.gmra.mxu0 %v515
        %v672 = vpop.f32.mrf.mxu0
        %v673 = vadd.f32 %v413, %v672
        %v674 = vpop.f32.mrf.mxu0
        %v675 = vadd.f32 %v413, %v674
        %676 = vmatmul.bf16.gmra.mxu0 %v516
        %v677 = vpop.f32.mrf.mxu0
        %v678 = vadd.f32 %v413, %v677
        %v679 = vpop.f32.mrf.mxu0
        %v680 = vadd.f32 %v413, %v679
        %681 = vmatmul.bf16.gmra.mxu0 %v517
        %v682 = vpop.f32.mrf.mxu0
        %v683 = vadd.f32 %v413, %v682
        %v684 = vpop.f32.mrf.mxu0
        %v685 = vadd.f32 %v413, %v684
        %686 = vmatmul.bf16.gmra.mxu0 %v518
        %v687 = vpop.f32.mrf.mxu0
        %v688 = vadd.f32 %v413, %v687
        %v689 = vpop.f32.mrf.mxu0
        %v690 = vadd.f32 %v413, %v689
        %691 = vmatmul.bf16.gmra.mxu0 %v519
        %v692 = vpop.f32.mrf.mxu0
        %v693 = vadd.f32 %v413, %v692
        %v694 = vpop.f32.mrf.mxu0
        %v695 = vadd.f32 %v413, %v694
        %696 = vmatmul.bf16.gmra.mxu0 %v520
        %v697 = vpop.f32.mrf.mxu0
        %v698 = vadd.f32 %v413, %v697
        %v699 = vpop.f32.mrf.mxu0
        %v700 = vadd.f32 %v413, %v699
        %701 = vmatmul.bf16.gmra.mxu0 %v521
        %v702 = vpop.f32.mrf.mxu0
        %v703 = vadd.f32 %v413, %v702
        %v704 = vpop.f32.mrf.mxu0
        %705 = vmatmul.bf16.gmra.mxu0 %v522
        %v706 = vpop.f32.mrf.mxu0
        %v707 = vpop.f32.mrf.mxu0
        %708 = vdwg.mxu0
        %v709 = vmax.f32 %v603, 0.0
        %v710 = vmax.f32 %v605, 0.0
        %v711 = vmax.f32 %v608, 0.0
        %v712 = vmax.f32 %v610, 0.0
        %v713 = vmax.f32 %v613, 0.0
        %v714 = vmax.f32 %v615, 0.0
        %v715 = vmax.f32 %v618, 0.0
        %v716 = vmax.f32 %v620, 0.0
        %v717 = vmax.f32 %v623, 0.0
        %v718 = vmax.f32 %v625, 0.0
        %v719 = vmax.f32 %v628, 0.0
        %v720 = vmax.f32 %v630, 0.0
        %v721 = vmax.f32 %v633, 0.0
        %v722 = vmax.f32 %v635, 0.0
        %v723 = vmax.f32 %v638, 0.0
        %v724 = vmax.f32 %v640, 0.0
        %v725 = vmax.f32 %v643, 0.0
        %v726 = vmax.f32 %v645, 0.0
        %v727 = vmax.f32 %v648, 0.0
        %v728 = vmax.f32 %v650, 0.0
        %v729 = vmax.f32 %v653, 0.0
        %v730 = vmax.f32 %v655, 0.0
        %v731 = vmax.f32 %v658, 0.0
        %v732 = vmax.f32 %v660, 0.0
        %v733 = vmax.f32 %v663, 0.0
        %v734 = vmax.f32 %v665, 0.0
        %v735 = vmax.f32 %v668, 0.0
        %v736 = vmax.f32 %v670, 0.0
        %v737 = vmax.f32 %v673, 0.0
        %v738 = vmax.f32 %v675, 0.0
        %v739 = vmax.f32 %v678, 0.0
        %v740 = vmax.f32 %v680, 0.0
        %v741 = vmax.f32 %v683, 0.0
        %v742 = vmax.f32 %v685, 0.0
        %v743 = vmax.f32 %v688, 0.0
        %v744 = vmax.f32 %v690, 0.0
        %v745 = vmax.f32 %v693, 0.0
        %v746 = vmax.f32 %v695, 0.0
        %v747 = vmax.f32 %v698, 0.0
        %v748 = vmax.f32 %v700, 0.0
        %v749 = vmax.f32 %v703, 0.0
        %v750 = vld [vmem:[%s351] sm:$0xff]
        %v751 = vld [vmem:[%s351 + $0x8] sm:$0xff]
        %v752 = vld [vmem:[%s351 + $0x10] sm:$0xff]
        %v753 = vld [vmem:[%s351 + $0x18] sm:$0xff]
        %v754 = vld [vmem:[%s351 + $0x20] sm:$0xff]
        %v755 = vld [vmem:[%s351 + $0x28] sm:$0xff]
        %v756 = vld [vmem:[%s351 + $0x30] sm:$0xff]
        %v757 = vld [vmem:[%s351 + $0x38] sm:$0xff]
        %v758 = vld [vmem:[%s351 + $0x40] sm:$0xff]
        %v759 = vld [vmem:[%s351 + $0x48] sm:$0xff]
        %v760 = vld [vmem:[%s351 + $0x50] sm:$0xff]
        %v761 = vld [vmem:[%s351 + $0x58] sm:$0xff]
        %v762 = vld [vmem:[%s351 + $0x60] sm:$0xff]
        %v763 = vld [vmem:[%s351 + $0x68] sm:$0xff]
        %v764 = vld [vmem:[%s351 + $0x70] sm:$0xff]
        %v765 = vld [vmem:[%s351 + $0x78] sm:$0xff]
        %v766 = vld [vmem:[%s351 + $0x80] sm:$0xff]
        %v767 = vld [vmem:[%s351 + $0x88] sm:$0xff]
        %v768 = vld [vmem:[%s351 + $0x90] sm:$0xff]
        %v769 = vld [vmem:[%s351 + $0x98] sm:$0xff]
        %v770 = vld [vmem:[%s351 + $0xa0] sm:$0xff]
        %v771 = vld [vmem:[%s351 + $0xa8] sm:$0xff]
        %v772 = vld [vmem:[%s351 + $0xb0] sm:$0xff]
        %v773 = vld [vmem:[%s351 + $0xb8] sm:$0xff]
        %v774 = vld [vmem:[%s351 + $0xc0] sm:$0xff]
        %v775 = vld [vmem:[%s351 + $0xc8] sm:$0xff]
        %v776 = vld [vmem:[%s351 + $0xd0] sm:$0xff]
        %v777 = vld [vmem:[%s351 + $0xd8] sm:$0xff]
        %v778 = vld [vmem:[%s351 + $0xe0] sm:$0xff]
        %v779 = vld [vmem:[%s351 + $0xe8] sm:$0xff]
        %v780 = vld [vmem:[%s351 + $0xf0] sm:$0xff]
        %v781 = vld [vmem:[%s351 + $0xf8] sm:$0xff]
        %v782 = vld [vmem:[%s351 + $0x100] sm:$0xff]
        %v783 = vld [vmem:[%s351 + $0x108] sm:$0xff]
        %v784 = vld [vmem:[%s351 + $0x110] sm:$0xff]
        %v785 = vld [vmem:[%s351 + $0x118] sm:$0xff]
        %v786 = vld [vmem:[%s351 + $0x120] sm:$0xff]
        %v787 = vld [vmem:[%s351 + $0x128] sm:$0xff]
        %v788 = vld [vmem:[%s351 + $0x130] sm:$0xff]
        %v789 = vld [vmem:[%s351 + $0x138] sm:$0xff]
        %v790 = vld [vmem:[%s351 + $0x140] sm:$0xff]
        %792 = vset.pattern.permute.xlu0 0
        %793 = vperm.xlu0 %792, %v750
        %v794 = vpop.permute.xlu0 %793
        %797 = vset.pattern.permute.xlu0 0
        %798 = vperm.xlu0 %797, %v751
        %v799 = vpop.permute.xlu0 %798
        %802 = vset.pattern.permute.xlu0 0
        %803 = vperm.xlu0 %802, %v752
        %v804 = vpop.permute.xlu0 %803
        %807 = vset.pattern.permute.xlu0 0
        %808 = vperm.xlu0 %807, %v753
        %v809 = vpop.permute.xlu0 %808
        %812 = vset.pattern.permute.xlu0 0
        %813 = vperm.xlu0 %812, %v754
        %v814 = vpop.permute.xlu0 %813
        %817 = vset.pattern.permute.xlu0 0
        %818 = vperm.xlu0 %817, %v755
        %v819 = vpop.permute.xlu0 %818
        %822 = vset.pattern.permute.xlu0 0
        %823 = vperm.xlu0 %822, %v756
        %v824 = vpop.permute.xlu0 %823
        %827 = vset.pattern.permute.xlu0 0
        %828 = vperm.xlu0 %827, %v757
        %v829 = vpop.permute.xlu0 %828
        %832 = vset.pattern.permute.xlu0 0
        %833 = vperm.xlu0 %832, %v758
        %v834 = vpop.permute.xlu0 %833
        %837 = vset.pattern.permute.xlu0 0
        %838 = vperm.xlu0 %837, %v759
        %v839 = vpop.permute.xlu0 %838
        %842 = vset.pattern.permute.xlu0 0
        %843 = vperm.xlu0 %842, %v760
        %v844 = vpop.permute.xlu0 %843
        %847 = vset.pattern.permute.xlu0 0
        %848 = vperm.xlu0 %847, %v761
        %v849 = vpop.permute.xlu0 %848
        %852 = vset.pattern.permute.xlu0 0
        %853 = vperm.xlu0 %852, %v762
        %v854 = vpop.permute.xlu0 %853
        %857 = vset.pattern.permute.xlu0 0
        %858 = vperm.xlu0 %857, %v763
        %v859 = vpop.permute.xlu0 %858
        %862 = vset.pattern.permute.xlu0 0
        %863 = vperm.xlu0 %862, %v764
        %v864 = vpop.permute.xlu0 %863
        %867 = vset.pattern.permute.xlu0 0
        %868 = vperm.xlu0 %867, %v765
        %v869 = vpop.permute.xlu0 %868
        %872 = vset.pattern.permute.xlu0 0
        %873 = vperm.xlu0 %872, %v766
        %v874 = vpop.permute.xlu0 %873
        %877 = vset.pattern.permute.xlu0 0
        %878 = vperm.xlu0 %877, %v767
        %v879 = vpop.permute.xlu0 %878
        %882 = vset.pattern.permute.xlu0 0
        %883 = vperm.xlu0 %882, %v768
        %v884 = vpop.permute.xlu0 %883
        %887 = vset.pattern.permute.xlu0 0
        %888 = vperm.xlu0 %887, %v769
        %v889 = vpop.permute.xlu0 %888
        %892 = vset.pattern.permute.xlu0 0
        %893 = vperm.xlu0 %892, %v770
        %v894 = vpop.permute.xlu0 %893
        %897 = vset.pattern.permute.xlu0 0
        %898 = vperm.xlu0 %897, %v771
        %v899 = vpop.permute.xlu0 %898
        %902 = vset.pattern.permute.xlu0 0
        %903 = vperm.xlu0 %902, %v772
        %v904 = vpop.permute.xlu0 %903
        %907 = vset.pattern.permute.xlu0 0
        %908 = vperm.xlu0 %907, %v773
        %v909 = vpop.permute.xlu0 %908
        %912 = vset.pattern.permute.xlu0 0
        %913 = vperm.xlu0 %912, %v774
        %v914 = vpop.permute.xlu0 %913
        %917 = vset.pattern.permute.xlu0 0
        %918 = vperm.xlu0 %917, %v775
        %v919 = vpop.permute.xlu0 %918
        %922 = vset.pattern.permute.xlu0 0
        %923 = vperm.xlu0 %922, %v776
        %v924 = vpop.permute.xlu0 %923
        %927 = vset.pattern.permute.xlu0 0
        %928 = vperm.xlu0 %927, %v777
        %v929 = vpop.permute.xlu0 %928
        %932 = vset.pattern.permute.xlu0 0
        %933 = vperm.xlu0 %932, %v778
        %v934 = vpop.permute.xlu0 %933
        %937 = vset.pattern.permute.xlu0 0
        %938 = vperm.xlu0 %937, %v779
        %v939 = vpop.permute.xlu0 %938
        %942 = vset.pattern.permute.xlu0 0
        %943 = vperm.xlu0 %942, %v780
        %v944 = vpop.permute.xlu0 %943
        %947 = vset.pattern.permute.xlu0 0
        %948 = vperm.xlu0 %947, %v781
        %v949 = vpop.permute.xlu0 %948
        %952 = vset.pattern.permute.xlu0 0
        %953 = vperm.xlu0 %952, %v782
        %v954 = vpop.permute.xlu0 %953
        %957 = vset.pattern.permute.xlu0 0
        %958 = vperm.xlu0 %957, %v783
        %v959 = vpop.permute.xlu0 %958
        %962 = vset.pattern.permute.xlu0 0
        %963 = vperm.xlu0 %962, %v784
        %v964 = vpop.permute.xlu0 %963
        %967 = vset.pattern.permute.xlu0 0
        %968 = vperm.xlu0 %967, %v785
        %v969 = vpop.permute.xlu0 %968
        %972 = vset.pattern.permute.xlu0 0
        %973 = vperm.xlu0 %972, %v786
        %v974 = vpop.permute.xlu0 %973
        %977 = vset.pattern.permute.xlu0 0
        %978 = vperm.xlu0 %977, %v787
        %v979 = vpop.permute.xlu0 %978
        %982 = vset.pattern.permute.xlu0 0
        %983 = vperm.xlu0 %982, %v788
        %v984 = vpop.permute.xlu0 %983
        %987 = vset.pattern.permute.xlu0 0
        %988 = vperm.xlu0 %987, %v789
        %v989 = vpop.permute.xlu0 %988
        %992 = vset.pattern.permute.xlu0 0
        %993 = vperm.xlu0 %992, %v790
        %v994 = vpop.permute.xlu0 %993
        %v996 = vmul.f32 %v709, %v794
        %v997 = vmul.f32 %v710, %v799
        %v998 = vmul.f32 %v711, %v804
        %v999 = vmul.f32 %v712, %v809
        %v1000 = vmul.f32 %v713, %v814
        %v1001 = vmul.f32 %v714, %v819
        %v1002 = vmul.f32 %v715, %v824
        %v1003 = vmul.f32 %v716, %v829
        %v1004 = vmul.f32 %v717, %v834
        %v1005 = vmul.f32 %v718, %v839
        %v1006 = vmul.f32 %v719, %v844
        %v1007 = vmul.f32 %v720, %v849
        %v1008 = vmul.f32 %v721, %v854
        %v1009 = vmul.f32 %v722, %v859
        %v1010 = vmul.f32 %v723, %v864
        %v1011 = vmul.f32 %v724, %v869
        %v1012 = vmul.f32 %v725, %v874
        %v1013 = vmul.f32 %v726, %v879
        %v1014 = vmul.f32 %v727, %v884
        %v1015 = vmul.f32 %v728, %v889
        %v1016 = vmul.f32 %v729, %v894
        %v1017 = vmul.f32 %v730, %v899
        %v1018 = vmul.f32 %v731, %v904
        %v1019 = vmul.f32 %v732, %v909
        %v1020 = vmul.f32 %v733, %v914
        %v1021 = vmul.f32 %v734, %v919
        %v1022 = vmul.f32 %v735, %v924
        %v1023 = vmul.f32 %v736, %v929
        %v1024 = vmul.f32 %v737, %v934
        %v1025 = vmul.f32 %v738, %v939
        %v1026 = vmul.f32 %v739, %v944
        %v1027 = vmul.f32 %v740, %v949
        %v1028 = vmul.f32 %v741, %v954
        %v1029 = vmul.f32 %v742, %v959
        %v1030 = vmul.f32 %v743, %v964
        %v1031 = vmul.f32 %v744, %v969
        %v1032 = vmul.f32 %v745, %v974
        %v1033 = vmul.f32 %v746, %v979
        %v1034 = vmul.f32 %v747, %v984
        %v1035 = vmul.f32 %v748, %v989
        %v1036 = vmul.f32 %v749, %v994
        %v1037 = vpack.c.bf16 %v996, %v996
        %v1038 = vpack.c.bf16 %v997, %v997
        %v1039 = vpack.c.bf16 %v998, %v998
        %v1040 = vpack.c.bf16 %v999, %v999
        %v1041 = vpack.c.bf16 %v1000, %v1000
        %v1042 = vpack.c.bf16 %v1001, %v1001
        %v1043 = vpack.c.bf16 %v1002, %v1002
        %v1044 = vpack.c.bf16 %v1003, %v1003
        %v1045 = vpack.c.bf16 %v1004, %v1004
        %v1046 = vpack.c.bf16 %v1005, %v1005
        %v1047 = vpack.c.bf16 %v1006, %v1006
        %v1048 = vpack.c.bf16 %v1007, %v1007
        %v1049 = vpack.c.bf16 %v1008, %v1008
        %v1050 = vpack.c.bf16 %v1009, %v1009
        %v1051 = vpack.c.bf16 %v1010, %v1010
        %v1052 = vpack.c.bf16 %v1011, %v1011
        %v1053 = vpack.c.bf16 %v1012, %v1012
        %v1054 = vpack.c.bf16 %v1013, %v1013
        %v1055 = vpack.c.bf16 %v1014, %v1014
        %v1056 = vpack.c.bf16 %v1015, %v1015
        %v1057 = vpack.c.bf16 %v1016, %v1016
        %v1058 = vpack.c.bf16 %v1017, %v1017
        %v1059 = vpack.c.bf16 %v1018, %v1018
        %v1060 = vpack.c.bf16 %v1019, %v1019
        %v1061 = vpack.c.bf16 %v1020, %v1020
        %v1062 = vpack.c.bf16 %v1021, %v1021
        %v1063 = vpack.c.bf16 %v1022, %v1022
        %v1064 = vpack.c.bf16 %v1023, %v1023
        %v1065 = vpack.c.bf16 %v1024, %v1024
        %v1066 = vpack.c.bf16 %v1025, %v1025
        %v1067 = vpack.c.bf16 %v1026, %v1026
        %v1068 = vpack.c.bf16 %v1027, %v1027
        %v1069 = vpack.c.bf16 %v1028, %v1028
        %v1070 = vpack.c.bf16 %v1029, %v1029
        %v1071 = vpack.c.bf16 %v1030, %v1030
        %v1072 = vpack.c.bf16 %v1031, %v1031
        %v1073 = vpack.c.bf16 %v1032, %v1032
        %v1074 = vpack.c.bf16 %v1033, %v1033
        %v1075 = vpack.c.bf16 %v1034, %v1034
        %v1076 = vpack.c.bf16 %v1035, %v1035
        %v1077 = vpack.c.bf16 %v1036, %v1036
        %v1114 = vunpack.c.l.b16 %v1037
        %v1115 = vunpack.c.l.b16 %v1038
        %v1116 = vunpack.c.l.b16 %v1039
        %v1117 = vunpack.c.l.b16 %v1040
        %v1118 = vunpack.c.l.b16 %v1041
        %v1119 = vunpack.c.l.b16 %v1042
        %v1120 = vunpack.c.l.b16 %v1043
        %v1121 = vunpack.c.l.b16 %v1044
        %v1122 = vunpack.c.l.b16 %v1045
        %v1123 = vunpack.c.l.b16 %v1046
        %v1124 = vunpack.c.l.b16 %v1047
        %v1125 = vunpack.c.l.b16 %v1048
        %v1126 = vunpack.c.l.b16 %v1049
        %v1127 = vunpack.c.l.b16 %v1050
        %v1128 = vunpack.c.l.b16 %v1051
        %v1129 = vunpack.c.l.b16 %v1052
        %v1130 = vunpack.c.l.b16 %v1053
        %v1131 = vunpack.c.l.b16 %v1054
        %v1132 = vunpack.c.l.b16 %v1055
        %v1133 = vunpack.c.l.b16 %v1056
        %v1134 = vunpack.c.l.b16 %v1057
        %v1135 = vunpack.c.l.b16 %v1058
        %v1136 = vunpack.c.l.b16 %v1059
        %v1137 = vunpack.c.l.b16 %v1060
        %v1138 = vunpack.c.l.b16 %v1061
        %v1139 = vunpack.c.l.b16 %v1062
        %v1140 = vunpack.c.l.b16 %v1063
        %v1141 = vunpack.c.l.b16 %v1064
        %v1142 = vunpack.c.l.b16 %v1065
        %v1143 = vunpack.c.l.b16 %v1066
        %v1144 = vunpack.c.l.b16 %v1067
        %v1145 = vunpack.c.l.b16 %v1068
        %v1146 = vunpack.c.l.b16 %v1069
        %v1147 = vunpack.c.l.b16 %v1070
        %v1148 = vunpack.c.l.b16 %v1071
        %v1149 = vunpack.c.l.b16 %v1072
        %v1150 = vpack.c.b16 %v1115, %v1114
        %v1151 = vpack.c.b16 %v1117, %v1116
        %v1152 = vpack.c.b16 %v1119, %v1118
        %v1153 = vpack.c.b16 %v1121, %v1120
        %v1154 = vpack.c.b16 %v1123, %v1122
        %v1155 = vpack.c.b16 %v1125, %v1124
        %v1156 = vpack.c.b16 %v1127, %v1126
        %v1157 = vpack.c.b16 %v1129, %v1128
        %v1158 = vpack.c.b16 %v1131, %v1130
        %v1159 = vpack.c.b16 %v1133, %v1132
        %v1160 = vpack.c.b16 %v1135, %v1134
        %v1161 = vpack.c.b16 %v1137, %v1136
        %v1162 = vpack.c.b16 %v1139, %v1138
        %v1163 = vpack.c.b16 %v1141, %v1140
        %v1164 = vpack.c.b16 %v1143, %v1142
        %v1165 = vpack.c.b16 %v1145, %v1144
        %v1166 = vpack.c.b16 %v1147, %v1146
        %v1167 = vpack.c.b16 %v1149, %v1148
        %v1187 = vunpack.c.l.b16 %v1073
        %v1188 = vpack.c.b16 %v1187, %v1187
        %vm1189 = vsmask.f32 7424
        %v1191 = vshrl.u32 %v1150, 16
        %v1193 = vshll.u32 %v1150, 16
        %v1195 = vrot.slane %v1193, 1
        %v1196 = vor.u32 %v1191, %v1195
        %v1198 = vshll.u32 %v1151, 16
        %v1200 = vrot.slane %v1198, 1
        %v1201 = vsel %vm1189, %v1196, %v1200
        %v1202 = vshrl.u32 %v1151, 16
        %v1204 = vor.u32 %v1202, %v1200
        %v1206 = vshll.u32 %v1152, 16
        %v1208 = vrot.slane %v1206, 1
        %v1209 = vsel %vm1189, %v1204, %v1208
        %v1210 = vshrl.u32 %v1152, 16
        %v1212 = vor.u32 %v1210, %v1208
        %v1214 = vshll.u32 %v1153, 16
        %v1216 = vrot.slane %v1214, 1
        %v1217 = vsel %vm1189, %v1212, %v1216
        %v1218 = vshrl.u32 %v1153, 16
        %v1220 = vor.u32 %v1218, %v1216
        %v1222 = vshll.u32 %v1154, 16
        %v1224 = vrot.slane %v1222, 1
        %v1225 = vsel %vm1189, %v1220, %v1224
        %v1226 = vshrl.u32 %v1154, 16
        %v1228 = vor.u32 %v1226, %v1224
        %v1230 = vshll.u32 %v1155, 16
        %v1232 = vrot.slane %v1230, 1
        %v1233 = vsel %vm1189, %v1228, %v1232
        %v1234 = vshrl.u32 %v1155, 16
        %v1236 = vor.u32 %v1234, %v1232
        %v1238 = vshll.u32 %v1156, 16
        %v1240 = vrot.slane %v1238, 1
        %v1241 = vsel %vm1189, %v1236, %v1240
        %v1242 = vshrl.u32 %v1156, 16
        %v1244 = vor.u32 %v1242, %v1240
        %v1246 = vshll.u32 %v1157, 16
        %v1248 = vrot.slane %v1246, 1
        %v1249 = vsel %vm1189, %v1244, %v1248
        %v1250 = vshrl.u32 %v1157, 16
        %v1252 = vor.u32 %v1250, %v1248
        %v1254 = vshll.u32 %v1158, 16
        %v1256 = vrot.slane %v1254, 1
        %v1257 = vsel %vm1189, %v1252, %v1256
        %v1258 = vshrl.u32 %v1158, 16
        %v1260 = vor.u32 %v1258, %v1256
        %v1262 = vshll.u32 %v1159, 16
        %v1264 = vrot.slane %v1262, 1
        %v1265 = vsel %vm1189, %v1260, %v1264
        %v1266 = vshrl.u32 %v1159, 16
        %v1268 = vor.u32 %v1266, %v1264
        %v1270 = vshll.u32 %v1160, 16
        %v1272 = vrot.slane %v1270, 1
        %v1273 = vsel %vm1189, %v1268, %v1272
        %v1274 = vshrl.u32 %v1160, 16
        %v1276 = vor.u32 %v1274, %v1272
        %v1278 = vshll.u32 %v1161, 16
        %v1280 = vrot.slane %v1278, 1
        %v1281 = vsel %vm1189, %v1276, %v1280
        %v1282 = vshrl.u32 %v1161, 16
        %v1284 = vor.u32 %v1282, %v1280
        %v1286 = vshll.u32 %v1162, 16
        %v1288 = vrot.slane %v1286, 1
        %v1289 = vsel %vm1189, %v1284, %v1288
        %v1290 = vshrl.u32 %v1162, 16
        %v1292 = vor.u32 %v1290, %v1288
        %v1294 = vshll.u32 %v1163, 16
        %v1296 = vrot.slane %v1294, 1
        %v1297 = vsel %vm1189, %v1292, %v1296
        %v1298 = vshrl.u32 %v1163, 16
        %v1300 = vor.u32 %v1298, %v1296
        %v1302 = vshll.u32 %v1164, 16
        %v1304 = vrot.slane %v1302, 1
        %v1305 = vsel %vm1189, %v1300, %v1304
        %v1306 = vshrl.u32 %v1164, 16
        %v1308 = vor.u32 %v1306, %v1304
        %v1310 = vshll.u32 %v1165, 16
        %v1312 = vrot.slane %v1310, 1
        %v1313 = vsel %vm1189, %v1308, %v1312
        %v1314 = vshrl.u32 %v1165, 16
        %v1316 = vor.u32 %v1314, %v1312
        %v1318 = vshll.u32 %v1166, 16
        %v1320 = vrot.slane %v1318, 1
        %v1321 = vsel %vm1189, %v1316, %v1320
        %v1322 = vshrl.u32 %v1166, 16
        %v1324 = vor.u32 %v1322, %v1320
        %v1326 = vshll.u32 %v1167, 16
        %v1328 = vrot.slane %v1326, 1
        %v1329 = vsel %vm1189, %v1324, %v1328
        %v1330 = vshrl.u32 %v1167, 16
        %v1332 = vor.u32 %v1330, %v1328
        %v1334 = vshll.u32 %v1188, 16
        %v1336 = vrot.slane %v1334, 1
        %v1337 = vsel %vm1189, %v1332, %v1336
        %vm1356 = vcmask 1046528
        %v1357 = vrot.slane %v1150, 1
        %v1358 = vrot.slane %v1151, 1
        %v1359 = vsel %vm1356, %v1357, %v1358
        %v1360 = vrot.slane %v1152, 1
        %v1361 = vsel %vm1356, %v1358, %v1360
        %v1362 = vrot.slane %v1153, 1
        %v1363 = vsel %vm1356, %v1360, %v1362
        %v1364 = vrot.slane %v1154, 1
        %v1365 = vsel %vm1356, %v1362, %v1364
        %v1366 = vrot.slane %v1155, 1
        %v1367 = vsel %vm1356, %v1364, %v1366
        %v1368 = vrot.slane %v1156, 1
        %v1369 = vsel %vm1356, %v1366, %v1368
        %v1370 = vrot.slane %v1157, 1
        %v1371 = vsel %vm1356, %v1368, %v1370
        %v1372 = vrot.slane %v1158, 1
        %v1373 = vsel %vm1356, %v1370, %v1372
        %v1374 = vrot.slane %v1159, 1
        %v1375 = vsel %vm1356, %v1372, %v1374
        %v1376 = vrot.slane %v1160, 1
        %v1377 = vsel %vm1356, %v1374, %v1376
        %v1378 = vrot.slane %v1161, 1
        %v1379 = vsel %vm1356, %v1376, %v1378
        %v1380 = vrot.slane %v1162, 1
        %v1381 = vsel %vm1356, %v1378, %v1380
        %v1382 = vrot.slane %v1163, 1
        %v1383 = vsel %vm1356, %v1380, %v1382
        %v1384 = vrot.slane %v1164, 1
        %v1385 = vsel %vm1356, %v1382, %v1384
        %v1386 = vrot.slane %v1165, 1
        %v1387 = vsel %vm1356, %v1384, %v1386
        %v1388 = vrot.slane %v1166, 1
        %v1389 = vsel %vm1356, %v1386, %v1388
        %v1390 = vrot.slane %v1167, 1
        %v1391 = vsel %vm1356, %v1388, %v1390
        %v1392 = vrot.slane %v1188, 1
        %v1393 = vsel %vm1356, %v1390, %v1392
        %v1414 = vunpack.c.l.b16 %v1074
        %v1415 = vunpack.c.l.b16 %v1075
        %v1416 = vpack.c.b16 %v1414, %v1187
        %v1417 = vpack.c.b16 %v1415, %v1415
        %v1418 = vrot.slane %v1416, 1
        %v1419 = vsel %vm1356, %v1390, %v1418
        %v1420 = vrot.slane %v1417, 1
        %v1421 = vsel %vm1356, %v1418, %v1420
        %vm1424 = vsmask.f32 6400
        %v1425 = vrot.slane %v1202, 1
        %v1426 = vrot.slane %v1198, 2
        %v1427 = vor.u32 %v1425, %v1426
        %v1428 = vrot.slane %v1210, 1
        %v1429 = vrot.slane %v1206, 2
        %v1430 = vor.u32 %v1428, %v1429
        %v1431 = vsel %vm1424, %v1427, %v1430
        %v1432 = vrot.slane %v1218, 1
        %v1433 = vrot.slane %v1214, 2
        %v1434 = vor.u32 %v1432, %v1433
        %v1435 = vsel %vm1424, %v1430, %v1434
        %v1436 = vrot.slane %v1226, 1
        %v1437 = vrot.slane %v1222, 2
        %v1438 = vor.u32 %v1436, %v1437
        %v1439 = vsel %vm1424, %v1434, %v1438
        %v1440 = vrot.slane %v1234, 1
        %v1441 = vrot.slane %v1230, 2
        %v1442 = vor.u32 %v1440, %v1441
        %v1443 = vsel %vm1424, %v1438, %v1442
        %v1444 = vrot.slane %v1242, 1
        %v1445 = vrot.slane %v1238, 2
        %v1446 = vor.u32 %v1444, %v1445
        %v1447 = vsel %vm1424, %v1442, %v1446
        %v1448 = vrot.slane %v1250, 1
        %v1449 = vrot.slane %v1246, 2
        %v1450 = vor.u32 %v1448, %v1449
        %v1451 = vsel %vm1424, %v1446, %v1450
        %v1452 = vrot.slane %v1258, 1
        %v1453 = vrot.slane %v1254, 2
        %v1454 = vor.u32 %v1452, %v1453
        %v1455 = vsel %vm1424, %v1450, %v1454
        %v1456 = vrot.slane %v1266, 1
        %v1457 = vrot.slane %v1262, 2
        %v1458 = vor.u32 %v1456, %v1457
        %v1459 = vsel %vm1424, %v1454, %v1458
        %v1460 = vrot.slane %v1274, 1
        %v1461 = vrot.slane %v1270, 2
        %v1462 = vor.u32 %v1460, %v1461
        %v1463 = vsel %vm1424, %v1458, %v1462
        %v1464 = vrot.slane %v1282, 1
        %v1465 = vrot.slane %v1278, 2
        %v1466 = vor.u32 %v1464, %v1465
        %v1467 = vsel %vm1424, %v1462, %v1466
        %v1468 = vrot.slane %v1290, 1
        %v1469 = vrot.slane %v1286, 2
        %v1470 = vor.u32 %v1468, %v1469
        %v1471 = vsel %vm1424, %v1466, %v1470
        %v1472 = vrot.slane %v1298, 1
        %v1473 = vrot.slane %v1294, 2
        %v1474 = vor.u32 %v1472, %v1473
        %v1475 = vsel %vm1424, %v1470, %v1474
        %v1476 = vrot.slane %v1306, 1
        %v1477 = vrot.slane %v1302, 2
        %v1478 = vor.u32 %v1476, %v1477
        %v1479 = vsel %vm1424, %v1474, %v1478
        %v1480 = vrot.slane %v1314, 1
        %v1481 = vrot.slane %v1310, 2
        %v1482 = vor.u32 %v1480, %v1481
        %v1483 = vsel %vm1424, %v1478, %v1482
        %v1484 = vrot.slane %v1322, 1
        %v1485 = vrot.slane %v1318, 2
        %v1486 = vor.u32 %v1484, %v1485
        %v1487 = vsel %vm1424, %v1482, %v1486
        %v1488 = vrot.slane %v1330, 1
        %v1489 = vrot.slane %v1326, 2
        %v1490 = vor.u32 %v1488, %v1489
        %v1491 = vsel %vm1424, %v1486, %v1490
        %v1493 = vshrl.u32 %v1416, 16
        %v1495 = vrot.slane %v1493, 1
        %v1496 = vshll.u32 %v1416, 16
        %v1498 = vrot.slane %v1496, 2
        %v1499 = vor.u32 %v1495, %v1498
        %v1500 = vsel %vm1424, %v1490, %v1499
        %v1502 = vshrl.u32 %v1417, 16
        %v1504 = vrot.slane %v1502, 1
        %v1505 = vshll.u32 %v1417, 16
        %v1507 = vrot.slane %v1505, 2
        %v1508 = vor.u32 %v1504, %v1507
        %v1509 = vsel %vm1424, %v1499, %v1508
        %vm1528 = vcmask 1045504
        %v1529 = vrot.slane %v1151, 2
        %v1530 = vrot.slane %v1152, 2
        %v1531 = vsel %vm1528, %v1529, %v1530
        %v1532 = vrot.slane %v1153, 2
        %v1533 = vsel %vm1528, %v1530, %v1532
        %v1534 = vrot.slane %v1154, 2
        %v1535 = vsel %vm1528, %v1532, %v1534
        %v1536 = vrot.slane %v1155, 2
        %v1537 = vsel %vm1528, %v1534, %v1536
        %v1538 = vrot.slane %v1156, 2
        %v1539 = vsel %vm1528, %v1536, %v1538
        %v1540 = vrot.slane %v1157, 2
        %v1541 = vsel %vm1528, %v1538, %v1540
        %v1542 = vrot.slane %v1158, 2
        %v1543 = vsel %vm1528, %v1540, %v1542
        %v1544 = vrot.slane %v1159, 2
        %v1545 = vsel %vm1528, %v1542, %v1544
        %v1546 = vrot.slane %v1160, 2
        %v1547 = vsel %vm1528, %v1544, %v1546
        %v1548 = vrot.slane %v1161, 2
        %v1549 = vsel %vm1528, %v1546, %v1548
        %v1550 = vrot.slane %v1162, 2
        %v1551 = vsel %vm1528, %v1548, %v1550
        %v1552 = vrot.slane %v1163, 2
        %v1553 = vsel %vm1528, %v1550, %v1552
        %v1554 = vrot.slane %v1164, 2
        %v1555 = vsel %vm1528, %v1552, %v1554
        %v1556 = vrot.slane %v1165, 2
        %v1557 = vsel %vm1528, %v1554, %v1556
        %v1558 = vrot.slane %v1166, 2
        %v1559 = vsel %vm1528, %v1556, %v1558
        %v1560 = vrot.slane %v1167, 2
        %v1561 = vsel %vm1528, %v1558, %v1560
        %v1562 = vrot.slane %v1416, 2
        %v1563 = vsel %vm1528, %v1560, %v1562
        %v1564 = vrot.slane %v1417, 2
        %v1565 = vsel %vm1528, %v1562, %v1564
        %v1586 = vunpack.c.l.b16 %v1076
        %v1587 = vunpack.c.l.b16 %v1077
        %v1588 = vpack.c.b16 %v1586, %v1415
        %v1589 = vpack.c.b16 %v1587, %v1587
        %v1590 = vrot.slane %v1588, 2
        %v1591 = vsel %vm1528, %v1562, %v1590
        %v1592 = vrot.slane %v1589, 2
        %v1593 = vsel %vm1528, %v1590, %v1592
        %vm1596 = vsmask.f32 5376
        %v1597 = vrot.slane %v1210, 2
        %v1598 = vrot.slane %v1206, 3
        %v1599 = vor.u32 %v1597, %v1598
        %v1600 = vrot.slane %v1218, 2
        %v1601 = vrot.slane %v1214, 3
        %v1602 = vor.u32 %v1600, %v1601
        %v1603 = vsel %vm1596, %v1599, %v1602
        %v1604 = vrot.slane %v1226, 2
        %v1605 = vrot.slane %v1222, 3
        %v1606 = vor.u32 %v1604, %v1605
        %v1607 = vsel %vm1596, %v1602, %v1606
        %v1608 = vrot.slane %v1234, 2
        %v1609 = vrot.slane %v1230, 3
        %v1610 = vor.u32 %v1608, %v1609
        %v1611 = vsel %vm1596, %v1606, %v1610
        %v1612 = vrot.slane %v1242, 2
        %v1613 = vrot.slane %v1238, 3
        %v1614 = vor.u32 %v1612, %v1613
        %v1615 = vsel %vm1596, %v1610, %v1614
        %v1616 = vrot.slane %v1250, 2
        %v1617 = vrot.slane %v1246, 3
        %v1618 = vor.u32 %v1616, %v1617
        %v1619 = vsel %vm1596, %v1614, %v1618
        %v1620 = vrot.slane %v1258, 2
        %v1621 = vrot.slane %v1254, 3
        %v1622 = vor.u32 %v1620, %v1621
        %v1623 = vsel %vm1596, %v1618, %v1622
        %v1624 = vrot.slane %v1266, 2
        %v1625 = vrot.slane %v1262, 3
        %v1626 = vor.u32 %v1624, %v1625
        %v1627 = vsel %vm1596, %v1622, %v1626
        %v1628 = vrot.slane %v1274, 2
        %v1629 = vrot.slane %v1270, 3
        %v1630 = vor.u32 %v1628, %v1629
        %v1631 = vsel %vm1596, %v1626, %v1630
        %v1632 = vrot.slane %v1282, 2
        %v1633 = vrot.slane %v1278, 3
        %v1634 = vor.u32 %v1632, %v1633
        %v1635 = vsel %vm1596, %v1630, %v1634
        %v1636 = vrot.slane %v1290, 2
        %v1637 = vrot.slane %v1286, 3
        %v1638 = vor.u32 %v1636, %v1637
        %v1639 = vsel %vm1596, %v1634, %v1638
        %v1640 = vrot.slane %v1298, 2
        %v1641 = vrot.slane %v1294, 3
        %v1642 = vor.u32 %v1640, %v1641
        %v1643 = vsel %vm1596, %v1638, %v1642
        %v1644 = vrot.slane %v1306, 2
        %v1645 = vrot.slane %v1302, 3
        %v1646 = vor.u32 %v1644, %v1645
        %v1647 = vsel %vm1596, %v1642, %v1646
        %v1648 = vrot.slane %v1314, 2
        %v1649 = vrot.slane %v1310, 3
        %v1650 = vor.u32 %v1648, %v1649
        %v1651 = vsel %vm1596, %v1646, %v1650
        %v1652 = vrot.slane %v1322, 2
        %v1653 = vrot.slane %v1318, 3
        %v1654 = vor.u32 %v1652, %v1653
        %v1655 = vsel %vm1596, %v1650, %v1654
        %v1656 = vrot.slane %v1330, 2
        %v1657 = vrot.slane %v1326, 3
        %v1658 = vor.u32 %v1656, %v1657
        %v1659 = vsel %vm1596, %v1654, %v1658
        %v1660 = vrot.slane %v1493, 2
        %v1661 = vrot.slane %v1496, 3
        %v1662 = vor.u32 %v1660, %v1661
        %v1663 = vsel %vm1596, %v1658, %v1662
        %v1665 = vshrl.u32 %v1588, 16
        %v1667 = vrot.slane %v1665, 2
        %v1668 = vshll.u32 %v1588, 16
        %v1670 = vrot.slane %v1668, 3
        %v1671 = vor.u32 %v1667, %v1670
        %v1672 = vsel %vm1596, %v1662, %v1671
        %v1674 = vshrl.u32 %v1589, 16
        %v1676 = vrot.slane %v1674, 2
        %v1677 = vshll.u32 %v1589, 16
        %v1679 = vrot.slane %v1677, 3
        %v1680 = vor.u32 %v1676, %v1679
        %v1681 = vsel %vm1596, %v1671, %v1680
        %vm1700 = vcmask 1044480
        %v1701 = vrot.slane %v1152, 3
        %v1702 = vrot.slane %v1153, 3
        %v1703 = vsel %vm1700, %v1701, %v1702
        %v1704 = vrot.slane %v1154, 3
        %v1705 = vsel %vm1700, %v1702, %v1704
        %v1706 = vrot.slane %v1155, 3
        %v1707 = vsel %vm1700, %v1704, %v1706
        %v1708 = vrot.slane %v1156, 3
        %v1709 = vsel %vm1700, %v1706, %v1708
        %v1710 = vrot.slane %v1157, 3
        %v1711 = vsel %vm1700, %v1708, %v1710
        %v1712 = vrot.slane %v1158, 3
        %v1713 = vsel %vm1700, %v1710, %v1712
        %v1714 = vrot.slane %v1159, 3
        %v1715 = vsel %vm1700, %v1712, %v1714
        %v1716 = vrot.slane %v1160, 3
        %v1717 = vsel %vm1700, %v1714, %v1716
        %v1718 = vrot.slane %v1161, 3
        %v1719 = vsel %vm1700, %v1716, %v1718
        %v1720 = vrot.slane %v1162, 3
        %v1721 = vsel %vm1700, %v1718, %v1720
        %v1722 = vrot.slane %v1163, 3
        %v1723 = vsel %vm1700, %v1720, %v1722
        %v1724 = vrot.slane %v1164, 3
        %v1725 = vsel %vm1700, %v1722, %v1724
        %v1726 = vrot.slane %v1165, 3
        %v1727 = vsel %vm1700, %v1724, %v1726
        %v1728 = vrot.slane %v1166, 3
        %v1729 = vsel %vm1700, %v1726, %v1728
        %v1730 = vrot.slane %v1167, 3
        %v1731 = vsel %vm1700, %v1728, %v1730
        %v1732 = vrot.slane %v1416, 3
        %v1733 = vsel %vm1700, %v1730, %v1732
        %v1734 = vrot.slane %v1588, 3
        %v1735 = vsel %vm1700, %v1732, %v1734
        %v1736 = vrot.slane %v1589, 3
        %v1737 = vsel %vm1700, %v1734, %v1736
        %v1756 = vld [vmem:[%s4] sm:$0xf]
        %v1757 = vld [vmem:[%s4 + $0x4] sm:$0xf]
        %v1758 = vld [vmem:[%s4 + $0x8] sm:$0xf]
        %v1759 = vld [vmem:[%s4 + $0xc] sm:$0xf]
        %v1760 = vld [vmem:[%s4 + $0x10] sm:$0xf]
        %v1761 = vld [vmem:[%s4 + $0x14] sm:$0xf]
        %v1762 = vld [vmem:[%s4 + $0x18] sm:$0xf]
        %v1763 = vld [vmem:[%s4 + $0x1c] sm:$0xf]
        %v1764 = vld [vmem:[%s4 + $0x20] sm:$0xf]
        %v1765 = vld [vmem:[%s4 + $0x24] sm:$0xf]
        %v1766 = vld [vmem:[%s4 + $0x28] sm:$0xf]
        %v1767 = vld [vmem:[%s4 + $0x2c] sm:$0xf]
        %v1768 = vld [vmem:[%s4 + $0x30] sm:$0xf]
        %v1769 = vld [vmem:[%s4 + $0x34] sm:$0xf]
        %v1770 = vld [vmem:[%s4 + $0x38] sm:$0xf]
        %v1771 = vld [vmem:[%s4 + $0x3c] sm:$0xf]
        %v1772 = vld [vmem:[%s4 + $0x40] sm:$0xf]
        %v1773 = vld [vmem:[%s4 + $0x44] sm:$0xf]
        %v1774 = vld [vmem:[%s4 + $0x48] sm:$0xf]
        %v1775 = vld [vmem:[%s4 + $0x4c] sm:$0xf]
        %v1776 = vld [vmem:[%s4 + $0x50] sm:$0xf]
        %v1777 = vld [vmem:[%s4 + $0x54] sm:$0xf]
        %v1778 = vld [vmem:[%s4 + $0x58] sm:$0xf]
        %v1779 = vld [vmem:[%s4 + $0x5c] sm:$0xf]
        %v1780 = vld [vmem:[%s4 + $0x60] sm:$0xf]
        %v1781 = vld [vmem:[%s4 + $0x64] sm:$0xf]
        %v1782 = vld [vmem:[%s4 + $0x68] sm:$0xf]
        %v1783 = vld [vmem:[%s4 + $0x6c] sm:$0xf]
        %v1784 = vld [vmem:[%s4 + $0x70] sm:$0xf]
        %v1785 = vld [vmem:[%s4 + $0x74] sm:$0xf]
        %v1786 = vld [vmem:[%s4 + $0x78] sm:$0xf]
        %v1787 = vld [vmem:[%s4 + $0x7c] sm:$0xf]
        %v1788 = vld [vmem:[%s4 + $0x80] sm:$0xf]
        %v1789 = vld [vmem:[%s4 + $0x84] sm:$0xf]
        %v1790 = vld [vmem:[%s4 + $0x88] sm:$0xf]
        %v1791 = vld [vmem:[%s4 + $0x8c] sm:$0xf]
        %v1792 = vld [vmem:[%s4 + $0x90] sm:$0xf]
        %v1793 = vld [vmem:[%s4 + $0x94] sm:$0xf]
        %v1794 = vld [vmem:[%s4 + $0x98] sm:$0xf]
        %v1795 = vld [vmem:[%s4 + $0x9c] sm:$0xf]
        %v1796 = vld [vmem:[%s4 + $0xa0] sm:$0xf]
        %v1797 = vld [vmem:[%s4 + $0xa4] sm:$0xf]
        %v1798 = vld [vmem:[%s4 + $0xa8] sm:$0xf]
        %v1799 = vld [vmem:[%s4 + $0xac] sm:$0xf]
        %v1800 = vld [vmem:[%s4 + $0xb0] sm:$0xf]
        %v1801 = vld [vmem:[%s4 + $0xb4] sm:$0xf]
        %v1802 = vld [vmem:[%s4 + $0xb8] sm:$0xf]
        %v1803 = vld [vmem:[%s4 + $0xbc] sm:$0xf]
        %v1804 = vld [vmem:[%s4 + $0xc0] sm:$0xf]
        %v1805 = vld [vmem:[%s4 + $0xc4] sm:$0xf]
        %v1806 = vld [vmem:[%s4 + $0xc8] sm:$0xf]
        %v1807 = vld [vmem:[%s4 + $0xcc] sm:$0xf]
        %v1808 = vld [vmem:[%s4 + $0xd0] sm:$0xf]
        %v1809 = vld [vmem:[%s4 + $0xd4] sm:$0xf]
        %v1810 = vld [vmem:[%s4 + $0xd8] sm:$0xf]
        %v1811 = vld [vmem:[%s4 + $0xdc] sm:$0xf]
        %v1812 = vld [vmem:[%s4 + $0xe0] sm:$0xf]
        %v1813 = vld [vmem:[%s4 + $0xe4] sm:$0xf]
        %v1814 = vld [vmem:[%s4 + $0xe8] sm:$0xf]
        %v1815 = vld [vmem:[%s4 + $0xec] sm:$0xf]
        %v1816 = vld [vmem:[%s4 + $0xf0] sm:$0xf]
        %v1817 = vld [vmem:[%s4 + $0xf4] sm:$0xf]
        %v1818 = vld [vmem:[%s4 + $0xf8] sm:$0xf]
        %v1819 = vld [vmem:[%s4 + $0xfc] sm:$0xf]
        %v1820 = vld [vmem:[%s4 + $0x100] sm:$0xf]
        %v1821 = vld [vmem:[%s4 + $0x104] sm:$0xf]
        %v1822 = vld [vmem:[%s4 + $0x108] sm:$0xf]
        %v1823 = vld [vmem:[%s4 + $0x10c] sm:$0xf]
        %v1824 = vld [vmem:[%s4 + $0x110] sm:$0xf]
        %v1825 = vld [vmem:[%s4 + $0x114] sm:$0xf]
        %v1826 = vld [vmem:[%s4 + $0x118] sm:$0xf]
        %v1827 = vld [vmem:[%s4 + $0x11c] sm:$0xf]
        %v1828 = vld [vmem:[%s4 + $0x120] sm:$0xf]
        %v1829 = vld [vmem:[%s4 + $0x124] sm:$0xf]
        %v1830 = vld [vmem:[%s4 + $0x128] sm:$0xf]
        %v1831 = vld [vmem:[%s4 + $0x12c] sm:$0xf]
        %v1832 = vld [vmem:[%s4 + $0x130] sm:$0xf]
        %v1833 = vld [vmem:[%s4 + $0x134] sm:$0xf]
        %v1834 = vld [vmem:[%s4 + $0x138] sm:$0xf]
        %v1835 = vld [vmem:[%s4 + $0x13c] sm:$0xf]
        %v1836 = vld [vmem:[%s4 + $0x140] sm:$0xf]
        %v1837 = vld [vmem:[%s4 + $0x144] sm:$0xf]
        %v1838 = vld [vmem:[%s4 + $0x148] sm:$0xf]
        %v1839 = vld [vmem:[%s4 + $0x14c] sm:$0xf]
        %v1840 = vld [vmem:[%s4 + $0x150] sm:$0xf]
        %v1841 = vld [vmem:[%s4 + $0x154] sm:$0xf]
        %v1842 = vld [vmem:[%s4 + $0x158] sm:$0xf]
        %v1843 = vld [vmem:[%s4 + $0x15c] sm:$0xf]
        %v1844 = vld [vmem:[%s4 + $0x160] sm:$0xf]
        %v1845 = vld [vmem:[%s4 + $0x164] sm:$0xf]
        %v1846 = vld [vmem:[%s4 + $0x168] sm:$0xf]
        %v1847 = vld [vmem:[%s4 + $0x16c] sm:$0xf]
        %v1848 = vld [vmem:[%s4 + $0x170] sm:$0xf]
        %v1849 = vld [vmem:[%s4 + $0x174] sm:$0xf]
        %v1850 = vld [vmem:[%s4 + $0x178] sm:$0xf]
        %v1851 = vld [vmem:[%s4 + $0x17c] sm:$0xf]
        %v1852 = vld [vmem:[%s4 + $0x180] sm:$0xf]
        %v1853 = vld [vmem:[%s4 + $0x184] sm:$0xf]
        %v1854 = vld [vmem:[%s4 + $0x188] sm:$0xf]
        %v1855 = vld [vmem:[%s4 + $0x18c] sm:$0xf]
        %v1856 = vld [vmem:[%s4 + $0x190] sm:$0xf]
        %v1857 = vld [vmem:[%s4 + $0x194] sm:$0xf]
        %v1858 = vld [vmem:[%s4 + $0x198] sm:$0xf]
        %v1859 = vld [vmem:[%s4 + $0x19c] sm:$0xf]
        %v1860 = vld [vmem:[%s4 + $0x1a0] sm:$0xf]
        %v1861 = vld [vmem:[%s4 + $0x1a4] sm:$0xf]
        %v1862 = vld [vmem:[%s4 + $0x1a8] sm:$0xf]
        %v1863 = vld [vmem:[%s4 + $0x1ac] sm:$0xf]
        %v1864 = vld [vmem:[%s4 + $0x1b0] sm:$0xf]
        %v1865 = vld [vmem:[%s4 + $0x1b4] sm:$0xf]
        %v1866 = vld [vmem:[%s4 + $0x1b8] sm:$0xf]
        %v1867 = vld [vmem:[%s4 + $0x1bc] sm:$0xf]
        %v1868 = vld [vmem:[%s4 + $0x1c0] sm:$0xf]
        %v1869 = vld [vmem:[%s4 + $0x1c4] sm:$0xf]
        %v1870 = vld [vmem:[%s4 + $0x1c8] sm:$0xf]
        %v1871 = vld [vmem:[%s4 + $0x1cc] sm:$0xf]
        %v1872 = vld [vmem:[%s4 + $0x1d0] sm:$0xf]
        %v1873 = vld [vmem:[%s4 + $0x1d4] sm:$0xf]
        %v1874 = vld [vmem:[%s4 + $0x1d8] sm:$0xf]
        %v1875 = vld [vmem:[%s4 + $0x1dc] sm:$0xf]
        %v1876 = vld [vmem:[%s4 + $0x1e0] sm:$0xf]
        %v1877 = vld [vmem:[%s4 + $0x1e4] sm:$0xf]
        %v1878 = vld [vmem:[%s4 + $0x1e8] sm:$0xf]
        %v1879 = vld [vmem:[%s4 + $0x1ec] sm:$0xf]
        %v1880 = vld [vmem:[%s4 + $0x1f0] sm:$0xf]
        %v1881 = vld [vmem:[%s4 + $0x1f4] sm:$0xf]
        %v1882 = vld [vmem:[%s4 + $0x1f8] sm:$0xf]
        %v1883 = vld [vmem:[%s4 + $0x1fc] sm:$0xf]
        %v1884 = vld [vmem:[%s4 + $0x200] sm:$0xf]
        %v1885 = vld [vmem:[%s4 + $0x204] sm:$0xf]
        %v1886 = vld [vmem:[%s4 + $0x208] sm:$0xf]
        %v1887 = vld [vmem:[%s4 + $0x20c] sm:$0xf]
        %v1888 = vld [vmem:[%s4 + $0x210] sm:$0xf]
        %v1889 = vld [vmem:[%s4 + $0x214] sm:$0xf]
        %v1890 = vld [vmem:[%s4 + $0x218] sm:$0xf]
        %v1891 = vld [vmem:[%s4 + $0x21c] sm:$0xf]
        %v1892 = vld [vmem:[%s4 + $0x220] sm:$0xf]
        %v1893 = vld [vmem:[%s4 + $0x224] sm:$0xf]
        %v1894 = vld [vmem:[%s4 + $0x228] sm:$0xf]
        %v1895 = vld [vmem:[%s4 + $0x22c] sm:$0xf]
        %v1896 = vld [vmem:[%s4 + $0x230] sm:$0xf]
        %v1897 = vld [vmem:[%s4 + $0x234] sm:$0xf]
        %v1898 = vld [vmem:[%s4 + $0x238] sm:$0xf]
        %v1899 = vld [vmem:[%s4 + $0x23c] sm:$0xf]
        %v1900 = vld [vmem:[%s5] sm:$0x1]
        %v1902 = vperm.slane %v1900, 0
        %v2048 = vunpack.c.l.b16 %v1756
        %v2049 = vunpack.c.l.b16 %v1757
        %v2050 = vunpack.c.l.b16 %v1758
        %v2051 = vunpack.c.l.b16 %v1759
        %v2052 = vunpack.c.l.b16 %v1760
        %v2053 = vunpack.c.l.b16 %v1761
        %v2054 = vunpack.c.l.b16 %v1762
        %v2055 = vunpack.c.l.b16 %v1763
        %v2056 = vunpack.c.l.b16 %v1764
        %v2057 = vunpack.c.l.b16 %v1765
        %v2058 = vunpack.c.l.b16 %v1766
        %v2059 = vunpack.c.l.b16 %v1767
        %v2060 = vunpack.c.l.b16 %v1768
        %v2061 = vunpack.c.l.b16 %v1769
        %v2062 = vunpack.c.l.b16 %v1770
        %v2063 = vunpack.c.l.b16 %v1771
        %v2064 = vunpack.c.l.b16 %v1772
        %v2065 = vunpack.c.l.b16 %v1773
        %v2066 = vunpack.c.l.b16 %v1774
        %v2067 = vunpack.c.l.b16 %v1775
        %v2068 = vunpack.c.l.b16 %v1776
        %v2069 = vunpack.c.l.b16 %v1777
        %v2070 = vunpack.c.l.b16 %v1778
        %v2071 = vunpack.c.l.b16 %v1779
        %v2072 = vunpack.c.l.b16 %v1780
        %v2073 = vunpack.c.l.b16 %v1781
        %v2074 = vunpack.c.l.b16 %v1782
        %v2075 = vunpack.c.l.b16 %v1783
        %v2076 = vunpack.c.l.b16 %v1784
        %v2077 = vunpack.c.l.b16 %v1785
        %v2078 = vunpack.c.l.b16 %v1786
        %v2079 = vunpack.c.l.b16 %v1787
        %v2080 = vunpack.c.l.b16 %v1788
        %v2081 = vunpack.c.l.b16 %v1789
        %v2082 = vunpack.c.l.b16 %v1790
        %v2083 = vunpack.c.l.b16 %v1791
        %v2084 = vunpack.c.l.b16 %v1792
        %v2085 = vunpack.c.l.b16 %v1793
        %v2086 = vunpack.c.l.b16 %v1794
        %v2087 = vunpack.c.l.b16 %v1795
        %v2088 = vunpack.c.l.b16 %v1796
        %v2089 = vunpack.c.l.b16 %v1797
        %v2090 = vunpack.c.l.b16 %v1798
        %v2091 = vunpack.c.l.b16 %v1799
        %v2092 = vunpack.c.l.b16 %v1800
        %v2093 = vunpack.c.l.b16 %v1801
        %v2094 = vunpack.c.l.b16 %v1802
        %v2095 = vunpack.c.l.b16 %v1803
        %v2096 = vunpack.c.l.b16 %v1804
        %v2097 = vunpack.c.l.b16 %v1805
        %v2098 = vunpack.c.l.b16 %v1806
        %v2099 = vunpack.c.l.b16 %v1807
        %v2100 = vunpack.c.l.b16 %v1808
        %v2101 = vunpack.c.l.b16 %v1809
        %v2102 = vunpack.c.l.b16 %v1810
        %v2103 = vunpack.c.l.b16 %v1811
        %v2104 = vunpack.c.l.b16 %v1812
        %v2105 = vunpack.c.l.b16 %v1813
        %v2106 = vunpack.c.l.b16 %v1814
        %v2107 = vunpack.c.l.b16 %v1815
        %v2108 = vunpack.c.l.b16 %v1816
        %v2109 = vunpack.c.l.b16 %v1817
        %v2110 = vunpack.c.l.b16 %v1818
        %v2111 = vunpack.c.l.b16 %v1819
        %v2112 = vunpack.c.l.b16 %v1820
        %v2113 = vunpack.c.l.b16 %v1821
        %v2114 = vunpack.c.l.b16 %v1822
        %v2115 = vunpack.c.l.b16 %v1823
        %v2116 = vunpack.c.l.b16 %v1824
        %v2117 = vunpack.c.l.b16 %v1825
        %v2118 = vunpack.c.l.b16 %v1826
        %v2119 = vunpack.c.l.b16 %v1827
        %v2120 = vunpack.c.l.b16 %v1828
        %v2121 = vunpack.c.l.b16 %v1829
        %v2122 = vunpack.c.l.b16 %v1830
        %v2123 = vunpack.c.l.b16 %v1831
        %v2124 = vunpack.c.l.b16 %v1832
        %v2125 = vunpack.c.l.b16 %v1833
        %v2126 = vunpack.c.l.b16 %v1834
        %v2127 = vunpack.c.l.b16 %v1835
        %v2128 = vunpack.c.l.b16 %v1836
        %v2129 = vunpack.c.l.b16 %v1837
        %v2130 = vunpack.c.l.b16 %v1838
        %v2131 = vunpack.c.l.b16 %v1839
        %v2132 = vunpack.c.l.b16 %v1840
        %v2133 = vunpack.c.l.b16 %v1841
        %v2134 = vunpack.c.l.b16 %v1842
        %v2135 = vunpack.c.l.b16 %v1843
        %v2136 = vunpack.c.l.b16 %v1844
        %v2137 = vunpack.c.l.b16 %v1845
        %v2138 = vunpack.c.l.b16 %v1846
        %v2139 = vunpack.c.l.b16 %v1847
        %v2140 = vunpack.c.l.b16 %v1848
        %v2141 = vunpack.c.l.b16 %v1849
        %v2142 = vunpack.c.l.b16 %v1850
        %v2143 = vunpack.c.l.b16 %v1851
        %v2144 = vunpack.c.l.b16 %v1852
        %v2145 = vunpack.c.l.b16 %v1853
        %v2146 = vunpack.c.l.b16 %v1854
        %v2147 = vunpack.c.l.b16 %v1855
        %v2148 = vunpack.c.l.b16 %v1856
        %v2149 = vunpack.c.l.b16 %v1857
        %v2150 = vunpack.c.l.b16 %v1858
        %v2151 = vunpack.c.l.b16 %v1859
        %v2152 = vunpack.c.l.b16 %v1860
        %v2153 = vunpack.c.l.b16 %v1861
        %v2154 = vunpack.c.l.b16 %v1862
        %v2155 = vunpack.c.l.b16 %v1863
        %v2156 = vunpack.c.l.b16 %v1864
        %v2157 = vunpack.c.l.b16 %v1865
        %v2158 = vunpack.c.l.b16 %v1866
        %v2159 = vunpack.c.l.b16 %v1867
        %v2160 = vunpack.c.l.b16 %v1868
        %v2161 = vunpack.c.l.b16 %v1869
        %v2162 = vunpack.c.l.b16 %v1870
        %v2163 = vunpack.c.l.b16 %v1871
        %v2164 = vunpack.c.l.b16 %v1872
        %v2165 = vunpack.c.l.b16 %v1873
        %v2166 = vunpack.c.l.b16 %v1874
        %v2167 = vunpack.c.l.b16 %v1875
        %v2168 = vunpack.c.l.b16 %v1876
        %v2169 = vunpack.c.l.b16 %v1877
        %v2170 = vunpack.c.l.b16 %v1878
        %v2171 = vunpack.c.l.b16 %v1879
        %v2172 = vunpack.c.l.b16 %v1880
        %v2173 = vunpack.c.l.b16 %v1881
        %v2174 = vunpack.c.l.b16 %v1882
        %v2175 = vunpack.c.l.b16 %v1883
        %v2176 = vunpack.c.l.b16 %v1884
        %v2177 = vunpack.c.l.b16 %v1885
        %v2178 = vunpack.c.l.b16 %v1886
        %v2179 = vunpack.c.l.b16 %v1887
        %v2180 = vunpack.c.l.b16 %v1888
        %v2181 = vunpack.c.l.b16 %v1889
        %v2182 = vunpack.c.l.b16 %v1890
        %v2183 = vunpack.c.l.b16 %v1891
        %v2184 = vunpack.c.l.b16 %v1892
        %v2185 = vunpack.c.l.b16 %v1893
        %v2186 = vunpack.c.l.b16 %v1894
        %v2187 = vunpack.c.l.b16 %v1895
        %v2188 = vunpack.c.l.b16 %v1896
        %v2189 = vunpack.c.l.b16 %v1897
        %v2190 = vunpack.c.l.b16 %v1898
        %v2191 = vunpack.c.l.b16 %v1899
        %v2192 = vpack.c.b16 %v2049, %v2048
        %v2193 = vpack.c.b16 %v2051, %v2050
        %v2194 = vpack.c.b16 %v2053, %v2052
        %v2195 = vpack.c.b16 %v2055, %v2054
        %v2196 = vpack.c.b16 %v2057, %v2056
        %v2197 = vpack.c.b16 %v2059, %v2058
        %v2198 = vpack.c.b16 %v2061, %v2060
        %v2199 = vpack.c.b16 %v2063, %v2062
        %v2200 = vpack.c.b16 %v2065, %v2064
        %v2201 = vpack.c.b16 %v2067, %v2066
        %v2202 = vpack.c.b16 %v2069, %v2068
        %v2203 = vpack.c.b16 %v2071, %v2070
        %v2204 = vpack.c.b16 %v2073, %v2072
        %v2205 = vpack.c.b16 %v2075, %v2074
        %v2206 = vpack.c.b16 %v2077, %v2076
        %v2207 = vpack.c.b16 %v2079, %v2078
        %v2208 = vpack.c.b16 %v2081, %v2080
        %v2209 = vpack.c.b16 %v2083, %v2082
        %v2210 = vpack.c.b16 %v2085, %v2084
        %v2211 = vpack.c.b16 %v2087, %v2086
        %v2212 = vpack.c.b16 %v2089, %v2088
        %v2213 = vpack.c.b16 %v2091, %v2090
        %v2214 = vpack.c.b16 %v2093, %v2092
        %v2215 = vpack.c.b16 %v2095, %v2094
        %v2216 = vpack.c.b16 %v2097, %v2096
        %v2217 = vpack.c.b16 %v2099, %v2098
        %v2218 = vpack.c.b16 %v2101, %v2100
        %v2219 = vpack.c.b16 %v2103, %v2102
        %v2220 = vpack.c.b16 %v2105, %v2104
        %v2221 = vpack.c.b16 %v2107, %v2106
        %v2222 = vpack.c.b16 %v2109, %v2108
        %v2223 = vpack.c.b16 %v2111, %v2110
        %v2224 = vpack.c.b16 %v2113, %v2112
        %v2225 = vpack.c.b16 %v2115, %v2114
        %v2226 = vpack.c.b16 %v2117, %v2116
        %v2227 = vpack.c.b16 %v2119, %v2118
        %v2228 = vpack.c.b16 %v2121, %v2120
        %v2229 = vpack.c.b16 %v2123, %v2122
        %v2230 = vpack.c.b16 %v2125, %v2124
        %v2231 = vpack.c.b16 %v2127, %v2126
        %v2232 = vpack.c.b16 %v2129, %v2128
        %v2233 = vpack.c.b16 %v2131, %v2130
        %v2234 = vpack.c.b16 %v2133, %v2132
        %v2235 = vpack.c.b16 %v2135, %v2134
        %v2236 = vpack.c.b16 %v2137, %v2136
        %v2237 = vpack.c.b16 %v2139, %v2138
        %v2238 = vpack.c.b16 %v2141, %v2140
        %v2239 = vpack.c.b16 %v2143, %v2142
        %v2240 = vpack.c.b16 %v2145, %v2144
        %v2241 = vpack.c.b16 %v2147, %v2146
        %v2242 = vpack.c.b16 %v2149, %v2148
        %v2243 = vpack.c.b16 %v2151, %v2150
        %v2244 = vpack.c.b16 %v2153, %v2152
        %v2245 = vpack.c.b16 %v2155, %v2154
        %v2246 = vpack.c.b16 %v2157, %v2156
        %v2247 = vpack.c.b16 %v2159, %v2158
        %v2248 = vpack.c.b16 %v2161, %v2160
        %v2249 = vpack.c.b16 %v2163, %v2162
        %v2250 = vpack.c.b16 %v2165, %v2164
        %v2251 = vpack.c.b16 %v2167, %v2166
        %v2252 = vpack.c.b16 %v2169, %v2168
        %v2253 = vpack.c.b16 %v2171, %v2170
        %v2254 = vpack.c.b16 %v2173, %v2172
        %v2255 = vpack.c.b16 %v2175, %v2174
        %v2256 = vpack.c.b16 %v2177, %v2176
        %v2257 = vpack.c.b16 %v2179, %v2178
        %v2258 = vpack.c.b16 %v2181, %v2180
        %v2259 = vpack.c.b16 %v2183, %v2182
        %v2260 = vpack.c.b16 %v2185, %v2184
        %v2261 = vpack.c.b16 %v2187, %v2186
        %v2262 = vpack.c.b16 %v2189, %v2188
        %v2263 = vpack.c.b16 %v2191, %v2190
        %2336 = vmatpush.bf16.msra.mxu0 %v2199
        %2337 = vmatpush.bf16.msra.mxu0 %v2198
        %2338 = vmatpush.bf16.msra.mxu0 %v2197
        %2339 = vmatpush.bf16.msra.mxu0 %v2196
        %2340 = vmatpush.bf16.msra.mxu0 %v2195
        %2341 = vmatpush.bf16.msra.mxu0 %v2194
        %2342 = vmatpush.bf16.msra.mxu0 %v2193
        %2343 = vmatpush.bf16.msra.mxu0 %v2192
        %2344 = vmatmul.bf16.gmra.mxu0 %v1150
        %v2345 = vpop.f32.mrf.mxu0
        %v2346 = vadd.f32 %v1902, %v2345
        %v2347 = vpop.f32.mrf.mxu0
        %v2348 = vadd.f32 %v1902, %v2347
        %2349 = vmatmul.bf16.gmra.mxu0 %v1151
        %v2350 = vpop.f32.mrf.mxu0
        %v2351 = vadd.f32 %v1902, %v2350
        %v2352 = vpop.f32.mrf.mxu0
        %v2353 = vadd.f32 %v1902, %v2352
        %2354 = vmatmul.bf16.gmra.mxu0 %v1152
        %v2355 = vpop.f32.mrf.mxu0
        %v2356 = vadd.f32 %v1902, %v2355
        %v2357 = vpop.f32.mrf.mxu0
        %v2358 = vadd.f32 %v1902, %v2357
        %2359 = vmatmul.bf16.gmra.mxu0 %v1153
        %v2360 = vpop.f32.mrf.mxu0
        %v2361 = vadd.f32 %v1902, %v2360
        %v2362 = vpop.f32.mrf.mxu0
        %v2363 = vadd.f32 %v1902, %v2362
        %2364 = vmatmul.bf16.gmra.mxu0 %v1154
        %v2365 = vpop.f32.mrf.mxu0
        %v2366 = vadd.f32 %v1902, %v2365
        %v2367 = vpop.f32.mrf.mxu0
        %v2368 = vadd.f32 %v1902, %v2367
        %2369 = vmatmul.bf16.gmra.mxu0 %v1155
        %v2370 = vpop.f32.mrf.mxu0
        %v2371 = vadd.f32 %v1902, %v2370
        %v2372 = vpop.f32.mrf.mxu0
        %v2373 = vadd.f32 %v1902, %v2372
        %2374 = vmatmul.bf16.gmra.mxu0 %v1156
        %v2375 = vpop.f32.mrf.mxu0
        %v2376 = vadd.f32 %v1902, %v2375
        %v2377 = vpop.f32.mrf.mxu0
        %v2378 = vadd.f32 %v1902, %v2377
        %2379 = vmatmul.bf16.gmra.mxu0 %v1157
        %v2380 = vpop.f32.mrf.mxu0
        %v2381 = vadd.f32 %v1902, %v2380
        %v2382 = vpop.f32.mrf.mxu0
        %v2383 = vadd.f32 %v1902, %v2382
        %2384 = vmatmul.bf16.gmra.mxu0 %v1158
        %v2385 = vpop.f32.mrf.mxu0
        %v2386 = vadd.f32 %v1902, %v2385
        %v2387 = vpop.f32.mrf.mxu0
        %v2388 = vadd.f32 %v1902, %v2387
        %2389 = vmatmul.bf16.gmra.mxu0 %v1159
        %v2390 = vpop.f32.mrf.mxu0
        %v2391 = vadd.f32 %v1902, %v2390
        %v2392 = vpop.f32.mrf.mxu0
        %v2393 = vadd.f32 %v1902, %v2392
        %2394 = vmatmul.bf16.gmra.mxu0 %v1160
        %v2395 = vpop.f32.mrf.mxu0
        %v2396 = vadd.f32 %v1902, %v2395
        %v2397 = vpop.f32.mrf.mxu0
        %v2398 = vadd.f32 %v1902, %v2397
        %2399 = vmatmul.bf16.gmra.mxu0 %v1161
        %v2400 = vpop.f32.mrf.mxu0
        %v2401 = vadd.f32 %v1902, %v2400
        %v2402 = vpop.f32.mrf.mxu0
        %v2403 = vadd.f32 %v1902, %v2402
        %2404 = vmatmul.bf16.gmra.mxu0 %v1162
        %v2405 = vpop.f32.mrf.mxu0
        %v2406 = vadd.f32 %v1902, %v2405
        %v2407 = vpop.f32.mrf.mxu0
        %v2408 = vadd.f32 %v1902, %v2407
        %2409 = vmatmul.bf16.gmra.mxu0 %v1163
        %v2410 = vpop.f32.mrf.mxu0
        %v2411 = vadd.f32 %v1902, %v2410
        %v2412 = vpop.f32.mrf.mxu0
        %v2413 = vadd.f32 %v1902, %v2412
        %2414 = vmatmul.bf16.gmra.mxu0 %v1164
        %v2415 = vpop.f32.mrf.mxu0
        %v2416 = vadd.f32 %v1902, %v2415
        %v2417 = vpop.f32.mrf.mxu0
        %v2418 = vadd.f32 %v1902, %v2417
        %2419 = vmatmul.bf16.gmra.mxu0 %v1165
        %v2420 = vpop.f32.mrf.mxu0
        %v2421 = vadd.f32 %v1902, %v2420
        %v2422 = vpop.f32.mrf.mxu0
        %v2423 = vadd.f32 %v1902, %v2422
        %2424 = vmatmul.bf16.gmra.mxu0 %v1166
        %v2425 = vpop.f32.mrf.mxu0
        %v2426 = vadd.f32 %v1902, %v2425
        %v2427 = vpop.f32.mrf.mxu0
        %v2428 = vadd.f32 %v1902, %v2427
        %2429 = vmatmul.bf16.gmra.mxu0 %v1167
        %v2430 = vpop.f32.mrf.mxu0
        %v2431 = vadd.f32 %v1902, %v2430
        %v2432 = vpop.f32.mrf.mxu0
        %v2433 = vadd.f32 %v1902, %v2432
        %2434 = vdwg.mxu0
        %2435 = vmatpush.bf16.msra.mxu0 %v2207
        %2436 = vmatpush.bf16.msra.mxu0 %v2206
        %2437 = vmatpush.bf16.msra.mxu0 %v2205
        %2438 = vmatpush.bf16.msra.mxu0 %v2204
        %2439 = vmatpush.bf16.msra.mxu0 %v2203
        %2440 = vmatpush.bf16.msra.mxu0 %v2202
        %2441 = vmatpush.bf16.msra.mxu0 %v2201
        %2442 = vmatpush.bf16.msra.mxu0 %v2200
        %2443 = vmatmul.bf16.gmra.mxu0 %v1201
        %v2444 = vpop.f32.mrf.mxu0
        %v2445 = vadd.f32 %v2346, %v2444
        %v2446 = vpop.f32.mrf.mxu0
        %v2447 = vadd.f32 %v2348, %v2446
        %2448 = vmatmul.bf16.gmra.mxu0 %v1209
        %v2449 = vpop.f32.mrf.mxu0
        %v2450 = vadd.f32 %v2351, %v2449
        %v2451 = vpop.f32.mrf.mxu0
        %v2452 = vadd.f32 %v2353, %v2451
        %2453 = vmatmul.bf16.gmra.mxu0 %v1217
        %v2454 = vpop.f32.mrf.mxu0
        %v2455 = vadd.f32 %v2356, %v2454
        %v2456 = vpop.f32.mrf.mxu0
        %v2457 = vadd.f32 %v2358, %v2456
        %2458 = vmatmul.bf16.gmra.mxu0 %v1225
        %v2459 = vpop.f32.mrf.mxu0
        %v2460 = vadd.f32 %v2361, %v2459
        %v2461 = vpop.f32.mrf.mxu0
        %v2462 = vadd.f32 %v2363, %v2461
        %2463 = vmatmul.bf16.gmra.mxu0 %v1233
        %v2464 = vpop.f32.mrf.mxu0
        %v2465 = vadd.f32 %v2366, %v2464
        %v2466 = vpop.f32.mrf.mxu0
        %v2467 = vadd.f32 %v2368, %v2466
        %2468 = vmatmul.bf16.gmra.mxu0 %v1241
        %v2469 = vpop.f32.mrf.mxu0
        %v2470 = vadd.f32 %v2371, %v2469
        %v2471 = vpop.f32.mrf.mxu0
        %v2472 = vadd.f32 %v2373, %v2471
        %2473 = vmatmul.bf16.gmra.mxu0 %v1249
        %v2474 = vpop.f32.mrf.mxu0
        %v2475 = vadd.f32 %v2376, %v2474
        %v2476 = vpop.f32.mrf.mxu0
        %v2477 = vadd.f32 %v2378, %v2476
        %2478 = vmatmul.bf16.gmra.mxu0 %v1257
        %v2479 = vpop.f32.mrf.mxu0
        %v2480 = vadd.f32 %v2381, %v2479
        %v2481 = vpop.f32.mrf.mxu0
        %v2482 = vadd.f32 %v2383, %v2481
        %2483 = vmatmul.bf16.gmra.mxu0 %v1265
        %v2484 = vpop.f32.mrf.mxu0
        %v2485 = vadd.f32 %v2386, %v2484
        %v2486 = vpop.f32.mrf.mxu0
        %v2487 = vadd.f32 %v2388, %v2486
        %2488 = vmatmul.bf16.gmra.mxu0 %v1273
        %v2489 = vpop.f32.mrf.mxu0
        %v2490 = vadd.f32 %v2391, %v2489
        %v2491 = vpop.f32.mrf.mxu0
        %v2492 = vadd.f32 %v2393, %v2491
        %2493 = vmatmul.bf16.gmra.mxu0 %v1281
        %v2494 = vpop.f32.mrf.mxu0
        %v2495 = vadd.f32 %v2396, %v2494
        %v2496 = vpop.f32.mrf.mxu0
        %v2497 = vadd.f32 %v2398, %v2496
        %2498 = vmatmul.bf16.gmra.mxu0 %v1289
        %v2499 = vpop.f32.mrf.mxu0
        %v2500 = vadd.f32 %v2401, %v2499
        %v2501 = vpop.f32.mrf.mxu0
        %v2502 = vadd.f32 %v2403, %v2501
        %2503 = vmatmul.bf16.gmra.mxu0 %v1297
        %v2504 = vpop.f32.mrf.mxu0
        %v2505 = vadd.f32 %v2406, %v2504
        %v2506 = vpop.f32.mrf.mxu0
        %v2507 = vadd.f32 %v2408, %v2506
        %2508 = vmatmul.bf16.gmra.mxu0 %v1305
        %v2509 = vpop.f32.mrf.mxu0
        %v2510 = vadd.f32 %v2411, %v2509
        %v2511 = vpop.f32.mrf.mxu0
        %v2512 = vadd.f32 %v2413, %v2511
        %2513 = vmatmul.bf16.gmra.mxu0 %v1313
        %v2514 = vpop.f32.mrf.mxu0
        %v2515 = vadd.f32 %v2416, %v2514
        %v2516 = vpop.f32.mrf.mxu0
        %v2517 = vadd.f32 %v2418, %v2516
        %2518 = vmatmul.bf16.gmra.mxu0 %v1321
        %v2519 = vpop.f32.mrf.mxu0
        %v2520 = vadd.f32 %v2421, %v2519
        %v2521 = vpop.f32.mrf.mxu0
        %v2522 = vadd.f32 %v2423, %v2521
        %2523 = vmatmul.bf16.gmra.mxu0 %v1329
        %v2524 = vpop.f32.mrf.mxu0
        %v2525 = vadd.f32 %v2426, %v2524
        %v2526 = vpop.f32.mrf.mxu0
        %v2527 = vadd.f32 %v2428, %v2526
        %2528 = vmatmul.bf16.gmra.mxu0 %v1337
        %v2529 = vpop.f32.mrf.mxu0
        %v2530 = vadd.f32 %v2431, %v2529
        %v2531 = vpop.f32.mrf.mxu0
        %v2532 = vadd.f32 %v2433, %v2531
        %2533 = vdwg.mxu0
        %2534 = vmatpush.bf16.msra.mxu0 %v2215
        %2535 = vmatpush.bf16.msra.mxu0 %v2214
        %2536 = vmatpush.bf16.msra.mxu0 %v2213
        %2537 = vmatpush.bf16.msra.mxu0 %v2212
        %2538 = vmatpush.bf16.msra.mxu0 %v2211
        %2539 = vmatpush.bf16.msra.mxu0 %v2210
        %2540 = vmatpush.bf16.msra.mxu0 %v2209
        %2541 = vmatpush.bf16.msra.mxu0 %v2208
        %2542 = vmatmul.bf16.gmra.mxu0 %v1359
        %v2543 = vpop.f32.mrf.mxu0
        %v2544 = vadd.f32 %v2445, %v2543
        %v2545 = vpop.f32.mrf.mxu0
        %v2546 = vadd.f32 %v2447, %v2545
        %2547 = vmatmul.bf16.gmra.mxu0 %v1361
        %v2548 = vpop.f32.mrf.mxu0
        %v2549 = vadd.f32 %v2450, %v2548
        %v2550 = vpop.f32.mrf.mxu0
        %v2551 = vadd.f32 %v2452, %v2550
        %2552 = vmatmul.bf16.gmra.mxu0 %v1363
        %v2553 = vpop.f32.mrf.mxu0
        %v2554 = vadd.f32 %v2455, %v2553
        %v2555 = vpop.f32.mrf.mxu0
        %v2556 = vadd.f32 %v2457, %v2555
        %2557 = vmatmul.bf16.gmra.mxu0 %v1365
        %v2558 = vpop.f32.mrf.mxu0
        %v2559 = vadd.f32 %v2460, %v2558
        %v2560 = vpop.f32.mrf.mxu0
        %v2561 = vadd.f32 %v2462, %v2560
        %2562 = vmatmul.bf16.gmra.mxu0 %v1367
        %v2563 = vpop.f32.mrf.mxu0
        %v2564 = vadd.f32 %v2465, %v2563
        %v2565 = vpop.f32.mrf.mxu0
        %v2566 = vadd.f32 %v2467, %v2565
        %2567 = vmatmul.bf16.gmra.mxu0 %v1369
        %v2568 = vpop.f32.mrf.mxu0
        %v2569 = vadd.f32 %v2470, %v2568
        %v2570 = vpop.f32.mrf.mxu0
        %v2571 = vadd.f32 %v2472, %v2570
        %2572 = vmatmul.bf16.gmra.mxu0 %v1371
        %v2573 = vpop.f32.mrf.mxu0
        %v2574 = vadd.f32 %v2475, %v2573
        %v2575 = vpop.f32.mrf.mxu0
        %v2576 = vadd.f32 %v2477, %v2575
        %2577 = vmatmul.bf16.gmra.mxu0 %v1373
        %v2578 = vpop.f32.mrf.mxu0
        %v2579 = vadd.f32 %v2480, %v2578
        %v2580 = vpop.f32.mrf.mxu0
        %v2581 = vadd.f32 %v2482, %v2580
        %2582 = vmatmul.bf16.gmra.mxu0 %v1375
        %v2583 = vpop.f32.mrf.mxu0
        %v2584 = vadd.f32 %v2485, %v2583
        %v2585 = vpop.f32.mrf.mxu0
        %v2586 = vadd.f32 %v2487, %v2585
        %2587 = vmatmul.bf16.gmra.mxu0 %v1377
        %v2588 = vpop.f32.mrf.mxu0
        %v2589 = vadd.f32 %v2490, %v2588
        %v2590 = vpop.f32.mrf.mxu0
        %v2591 = vadd.f32 %v2492, %v2590
        %2592 = vmatmul.bf16.gmra.mxu0 %v1379
        %v2593 = vpop.f32.mrf.mxu0
        %v2594 = vadd.f32 %v2495, %v2593
        %v2595 = vpop.f32.mrf.mxu0
        %v2596 = vadd.f32 %v2497, %v2595
        %2597 = vmatmul.bf16.gmra.mxu0 %v1381
        %v2598 = vpop.f32.mrf.mxu0
        %v2599 = vadd.f32 %v2500, %v2598
        %v2600 = vpop.f32.mrf.mxu0
        %v2601 = vadd.f32 %v2502, %v2600
        %2602 = vmatmul.bf16.gmra.mxu0 %v1383
        %v2603 = vpop.f32.mrf.mxu0
        %v2604 = vadd.f32 %v2505, %v2603
        %v2605 = vpop.f32.mrf.mxu0
        %v2606 = vadd.f32 %v2507, %v2605
        %2607 = vmatmul.bf16.gmra.mxu0 %v1385
        %v2608 = vpop.f32.mrf.mxu0
        %v2609 = vadd.f32 %v2510, %v2608
        %v2610 = vpop.f32.mrf.mxu0
        %v2611 = vadd.f32 %v2512, %v2610
        %2612 = vmatmul.bf16.gmra.mxu0 %v1387
        %v2613 = vpop.f32.mrf.mxu0
        %v2614 = vadd.f32 %v2515, %v2613
        %v2615 = vpop.f32.mrf.mxu0
        %v2616 = vadd.f32 %v2517, %v2615
        %2617 = vmatmul.bf16.gmra.mxu0 %v1389
        %v2618 = vpop.f32.mrf.mxu0
        %v2619 = vadd.f32 %v2520, %v2618
        %v2620 = vpop.f32.mrf.mxu0
        %v2621 = vadd.f32 %v2522, %v2620
        %2622 = vmatmul.bf16.gmra.mxu0 %v1391
        %v2623 = vpop.f32.mrf.mxu0
        %v2624 = vadd.f32 %v2525, %v2623
        %v2625 = vpop.f32.mrf.mxu0
        %v2626 = vadd.f32 %v2527, %v2625
        %2627 = vmatmul.bf16.gmra.mxu0 %v1393
        %v2628 = vpop.f32.mrf.mxu0
        %v2629 = vadd.f32 %v2530, %v2628
        %v2630 = vpop.f32.mrf.mxu0
        %v2631 = vadd.f32 %v2532, %v2630
        %2632 = vdwg.mxu0
        %2633 = vmatpush.bf16.msra.mxu0 %v2223
        %2634 = vmatpush.bf16.msra.mxu0 %v2222
        %2635 = vmatpush.bf16.msra.mxu0 %v2221
        %2636 = vmatpush.bf16.msra.mxu0 %v2220
        %2637 = vmatpush.bf16.msra.mxu0 %v2219
        %2638 = vmatpush.bf16.msra.mxu0 %v2218
        %2639 = vmatpush.bf16.msra.mxu0 %v2217
        %2640 = vmatpush.bf16.msra.mxu0 %v2216
        %2641 = vmatmul.bf16.gmra.mxu0 %v1361
        %v2642 = vpop.f32.mrf.mxu0
        %v2643 = vadd.f32 %v2544, %v2642
        %v2644 = vpop.f32.mrf.mxu0
        %v2645 = vadd.f32 %v2546, %v2644
        %2646 = vmatmul.bf16.gmra.mxu0 %v1363
        %v2647 = vpop.f32.mrf.mxu0
        %v2648 = vadd.f32 %v2549, %v2647
        %v2649 = vpop.f32.mrf.mxu0
        %v2650 = vadd.f32 %v2551, %v2649
        %2651 = vmatmul.bf16.gmra.mxu0 %v1365
        %v2652 = vpop.f32.mrf.mxu0
        %v2653 = vadd.f32 %v2554, %v2652
        %v2654 = vpop.f32.mrf.mxu0
        %v2655 = vadd.f32 %v2556, %v2654
        %2656 = vmatmul.bf16.gmra.mxu0 %v1367
        %v2657 = vpop.f32.mrf.mxu0
        %v2658 = vadd.f32 %v2559, %v2657
        %v2659 = vpop.f32.mrf.mxu0
        %v2660 = vadd.f32 %v2561, %v2659
        %2661 = vmatmul.bf16.gmra.mxu0 %v1369
        %v2662 = vpop.f32.mrf.mxu0
        %v2663 = vadd.f32 %v2564, %v2662
        %v2664 = vpop.f32.mrf.mxu0
        %v2665 = vadd.f32 %v2566, %v2664
        %2666 = vmatmul.bf16.gmra.mxu0 %v1371
        %v2667 = vpop.f32.mrf.mxu0
        %v2668 = vadd.f32 %v2569, %v2667
        %v2669 = vpop.f32.mrf.mxu0
        %v2670 = vadd.f32 %v2571, %v2669
        %2671 = vmatmul.bf16.gmra.mxu0 %v1373
        %v2672 = vpop.f32.mrf.mxu0
        %v2673 = vadd.f32 %v2574, %v2672
        %v2674 = vpop.f32.mrf.mxu0
        %v2675 = vadd.f32 %v2576, %v2674
        %2676 = vmatmul.bf16.gmra.mxu0 %v1375
        %v2677 = vpop.f32.mrf.mxu0
        %v2678 = vadd.f32 %v2579, %v2677
        %v2679 = vpop.f32.mrf.mxu0
        %v2680 = vadd.f32 %v2581, %v2679
        %2681 = vmatmul.bf16.gmra.mxu0 %v1377
        %v2682 = vpop.f32.mrf.mxu0
        %v2683 = vadd.f32 %v2584, %v2682
        %v2684 = vpop.f32.mrf.mxu0
        %v2685 = vadd.f32 %v2586, %v2684
        %2686 = vmatmul.bf16.gmra.mxu0 %v1379
        %v2687 = vpop.f32.mrf.mxu0
        %v2688 = vadd.f32 %v2589, %v2687
        %v2689 = vpop.f32.mrf.mxu0
        %v2690 = vadd.f32 %v2591, %v2689
        %2691 = vmatmul.bf16.gmra.mxu0 %v1381
        %v2692 = vpop.f32.mrf.mxu0
        %v2693 = vadd.f32 %v2594, %v2692
        %v2694 = vpop.f32.mrf.mxu0
        %v2695 = vadd.f32 %v2596, %v2694
        %2696 = vmatmul.bf16.gmra.mxu0 %v1383
        %v2697 = vpop.f32.mrf.mxu0
        %v2698 = vadd.f32 %v2599, %v2697
        %v2699 = vpop.f32.mrf.mxu0
        %v2700 = vadd.f32 %v2601, %v2699
        %2701 = vmatmul.bf16.gmra.mxu0 %v1385
        %v2702 = vpop.f32.mrf.mxu0
        %v2703 = vadd.f32 %v2604, %v2702
        %v2704 = vpop.f32.mrf.mxu0
        %v2705 = vadd.f32 %v2606, %v2704
        %2706 = vmatmul.bf16.gmra.mxu0 %v1387
        %v2707 = vpop.f32.mrf.mxu0
        %v2708 = vadd.f32 %v2609, %v2707
        %v2709 = vpop.f32.mrf.mxu0
        %v2710 = vadd.f32 %v2611, %v2709
        %2711 = vmatmul.bf16.gmra.mxu0 %v1389
        %v2712 = vpop.f32.mrf.mxu0
        %v2713 = vadd.f32 %v2614, %v2712
        %v2714 = vpop.f32.mrf.mxu0
        %v2715 = vadd.f32 %v2616, %v2714
        %2716 = vmatmul.bf16.gmra.mxu0 %v1391
        %v2717 = vpop.f32.mrf.mxu0
        %v2718 = vadd.f32 %v2619, %v2717
        %v2719 = vpop.f32.mrf.mxu0
        %v2720 = vadd.f32 %v2621, %v2719
        %2721 = vmatmul.bf16.gmra.mxu0 %v1419
        %v2722 = vpop.f32.mrf.mxu0
        %v2723 = vadd.f32 %v2624, %v2722
        %v2724 = vpop.f32.mrf.mxu0
        %v2725 = vadd.f32 %v2626, %v2724
        %2726 = vmatmul.bf16.gmra.mxu0 %v1421
        %v2727 = vpop.f32.mrf.mxu0
        %v2728 = vadd.f32 %v2629, %v2727
        %v2729 = vpop.f32.mrf.mxu0
        %v2730 = vadd.f32 %v2631, %v2729
        %2731 = vdwg.mxu0
        %2732 = vmatpush.bf16.msra.mxu0 %v2231
        %2733 = vmatpush.bf16.msra.mxu0 %v2230
        %2734 = vmatpush.bf16.msra.mxu0 %v2229
        %2735 = vmatpush.bf16.msra.mxu0 %v2228
        %2736 = vmatpush.bf16.msra.mxu0 %v2227
        %2737 = vmatpush.bf16.msra.mxu0 %v2226
        %2738 = vmatpush.bf16.msra.mxu0 %v2225
        %2739 = vmatpush.bf16.msra.mxu0 %v2224
        %2740 = vmatmul.bf16.gmra.mxu0 %v1431
        %v2741 = vpop.f32.mrf.mxu0
        %v2742 = vadd.f32 %v2643, %v2741
        %v2743 = vpop.f32.mrf.mxu0
        %v2744 = vadd.f32 %v2645, %v2743
        %2745 = vmatmul.bf16.gmra.mxu0 %v1435
        %v2746 = vpop.f32.mrf.mxu0
        %v2747 = vadd.f32 %v2648, %v2746
        %v2748 = vpop.f32.mrf.mxu0
        %v2749 = vadd.f32 %v2650, %v2748
        %2750 = vmatmul.bf16.gmra.mxu0 %v1439
        %v2751 = vpop.f32.mrf.mxu0
        %v2752 = vadd.f32 %v2653, %v2751
        %v2753 = vpop.f32.mrf.mxu0
        %v2754 = vadd.f32 %v2655, %v2753
        %2755 = vmatmul.bf16.gmra.mxu0 %v1443
        %v2756 = vpop.f32.mrf.mxu0
        %v2757 = vadd.f32 %v2658, %v2756
        %v2758 = vpop.f32.mrf.mxu0
        %v2759 = vadd.f32 %v2660, %v2758
        %2760 = vmatmul.bf16.gmra.mxu0 %v1447
        %v2761 = vpop.f32.mrf.mxu0
        %v2762 = vadd.f32 %v2663, %v2761
        %v2763 = vpop.f32.mrf.mxu0
        %v2764 = vadd.f32 %v2665, %v2763
        %2765 = vmatmul.bf16.gmra.mxu0 %v1451
        %v2766 = vpop.f32.mrf.mxu0
        %v2767 = vadd.f32 %v2668, %v2766
        %v2768 = vpop.f32.mrf.mxu0
        %v2769 = vadd.f32 %v2670, %v2768
        %2770 = vmatmul.bf16.gmra.mxu0 %v1455
        %v2771 = vpop.f32.mrf.mxu0
        %v2772 = vadd.f32 %v2673, %v2771
        %v2773 = vpop.f32.mrf.mxu0
        %v2774 = vadd.f32 %v2675, %v2773
        %2775 = vmatmul.bf16.gmra.mxu0 %v1459
        %v2776 = vpop.f32.mrf.mxu0
        %v2777 = vadd.f32 %v2678, %v2776
        %v2778 = vpop.f32.mrf.mxu0
        %v2779 = vadd.f32 %v2680, %v2778
        %2780 = vmatmul.bf16.gmra.mxu0 %v1463
        %v2781 = vpop.f32.mrf.mxu0
        %v2782 = vadd.f32 %v2683, %v2781
        %v2783 = vpop.f32.mrf.mxu0
        %v2784 = vadd.f32 %v2685, %v2783
        %2785 = vmatmul.bf16.gmra.mxu0 %v1467
        %v2786 = vpop.f32.mrf.mxu0
        %v2787 = vadd.f32 %v2688, %v2786
        %v2788 = vpop.f32.mrf.mxu0
        %v2789 = vadd.f32 %v2690, %v2788
        %2790 = vmatmul.bf16.gmra.mxu0 %v1471
        %v2791 = vpop.f32.mrf.mxu0
        %v2792 = vadd.f32 %v2693, %v2791
        %v2793 = vpop.f32.mrf.mxu0
        %v2794 = vadd.f32 %v2695, %v2793
        %2795 = vmatmul.bf16.gmra.mxu0 %v1475
        %v2796 = vpop.f32.mrf.mxu0
        %v2797 = vadd.f32 %v2698, %v2796
        %v2798 = vpop.f32.mrf.mxu0
        %v2799 = vadd.f32 %v2700, %v2798
        %2800 = vmatmul.bf16.gmra.mxu0 %v1479
        %v2801 = vpop.f32.mrf.mxu0
        %v2802 = vadd.f32 %v2703, %v2801
        %v2803 = vpop.f32.mrf.mxu0
        %v2804 = vadd.f32 %v2705, %v2803
        %2805 = vmatmul.bf16.gmra.mxu0 %v1483
        %v2806 = vpop.f32.mrf.mxu0
        %v2807 = vadd.f32 %v2708, %v2806
        %v2808 = vpop.f32.mrf.mxu0
        %v2809 = vadd.f32 %v2710, %v2808
        %2810 = vmatmul.bf16.gmra.mxu0 %v1487
        %v2811 = vpop.f32.mrf.mxu0
        %v2812 = vadd.f32 %v2713, %v2811
        %v2813 = vpop.f32.mrf.mxu0
        %v2814 = vadd.f32 %v2715, %v2813
        %2815 = vmatmul.bf16.gmra.mxu0 %v1491
        %v2816 = vpop.f32.mrf.mxu0
        %v2817 = vadd.f32 %v2718, %v2816
        %v2818 = vpop.f32.mrf.mxu0
        %v2819 = vadd.f32 %v2720, %v2818
        %2820 = vmatmul.bf16.gmra.mxu0 %v1500
        %v2821 = vpop.f32.mrf.mxu0
        %v2822 = vadd.f32 %v2723, %v2821
        %v2823 = vpop.f32.mrf.mxu0
        %v2824 = vadd.f32 %v2725, %v2823
        %2825 = vmatmul.bf16.gmra.mxu0 %v1509
        %v2826 = vpop.f32.mrf.mxu0
        %v2827 = vadd.f32 %v2728, %v2826
        %v2828 = vpop.f32.mrf.mxu0
        %v2829 = vadd.f32 %v2730, %v2828
        %2830 = vdwg.mxu0
        %2831 = vmatpush.bf16.msra.mxu0 %v2239
        %2832 = vmatpush.bf16.msra.mxu0 %v2238
        %2833 = vmatpush.bf16.msra.mxu0 %v2237
        %2834 = vmatpush.bf16.msra.mxu0 %v2236
        %2835 = vmatpush.bf16.msra.mxu0 %v2235
        %2836 = vmatpush.bf16.msra.mxu0 %v2234
        %2837 = vmatpush.bf16.msra.mxu0 %v2233
        %2838 = vmatpush.bf16.msra.mxu0 %v2232
        %2839 = vmatmul.bf16.gmra.mxu0 %v1531
        %v2840 = vpop.f32.mrf.mxu0
        %v2841 = vadd.f32 %v2742, %v2840
        %v2842 = vpop.f32.mrf.mxu0
        %v2843 = vadd.f32 %v2744, %v2842
        %2844 = vmatmul.bf16.gmra.mxu0 %v1533
        %v2845 = vpop.f32.mrf.mxu0
        %v2846 = vadd.f32 %v2747, %v2845
        %v2847 = vpop.f32.mrf.mxu0
        %v2848 = vadd.f32 %v2749, %v2847
        %2849 = vmatmul.bf16.gmra.mxu0 %v1535
        %v2850 = vpop.f32.mrf.mxu0
        %v2851 = vadd.f32 %v2752, %v2850
        %v2852 = vpop.f32.mrf.mxu0
        %v2853 = vadd.f32 %v2754, %v2852
        %2854 = vmatmul.bf16.gmra.mxu0 %v1537
        %v2855 = vpop.f32.mrf.mxu0
        %v2856 = vadd.f32 %v2757, %v2855
        %v2857 = vpop.f32.mrf.mxu0
        %v2858 = vadd.f32 %v2759, %v2857
        %2859 = vmatmul.bf16.gmra.mxu0 %v1539
        %v2860 = vpop.f32.mrf.mxu0
        %v2861 = vadd.f32 %v2762, %v2860
        %v2862 = vpop.f32.mrf.mxu0
        %v2863 = vadd.f32 %v2764, %v2862
        %2864 = vmatmul.bf16.gmra.mxu0 %v1541
        %v2865 = vpop.f32.mrf.mxu0
        %v2866 = vadd.f32 %v2767, %v2865
        %v2867 = vpop.f32.mrf.mxu0
        %v2868 = vadd.f32 %v2769, %v2867
        %2869 = vmatmul.bf16.gmra.mxu0 %v1543
        %v2870 = vpop.f32.mrf.mxu0
        %v2871 = vadd.f32 %v2772, %v2870
        %v2872 = vpop.f32.mrf.mxu0
        %v2873 = vadd.f32 %v2774, %v2872
        %2874 = vmatmul.bf16.gmra.mxu0 %v1545
        %v2875 = vpop.f32.mrf.mxu0
        %v2876 = vadd.f32 %v2777, %v2875
        %v2877 = vpop.f32.mrf.mxu0
        %v2878 = vadd.f32 %v2779, %v2877
        %2879 = vmatmul.bf16.gmra.mxu0 %v1547
        %v2880 = vpop.f32.mrf.mxu0
        %v2881 = vadd.f32 %v2782, %v2880
        %v2882 = vpop.f32.mrf.mxu0
        %v2883 = vadd.f32 %v2784, %v2882
        %2884 = vmatmul.bf16.gmra.mxu0 %v1549
        %v2885 = vpop.f32.mrf.mxu0
        %v2886 = vadd.f32 %v2787, %v2885
        %v2887 = vpop.f32.mrf.mxu0
        %v2888 = vadd.f32 %v2789, %v2887
        %2889 = vmatmul.bf16.gmra.mxu0 %v1551
        %v2890 = vpop.f32.mrf.mxu0
        %v2891 = vadd.f32 %v2792, %v2890
        %v2892 = vpop.f32.mrf.mxu0
        %v2893 = vadd.f32 %v2794, %v2892
        %2894 = vmatmul.bf16.gmra.mxu0 %v1553
        %v2895 = vpop.f32.mrf.mxu0
        %v2896 = vadd.f32 %v2797, %v2895
        %v2897 = vpop.f32.mrf.mxu0
        %v2898 = vadd.f32 %v2799, %v2897
        %2899 = vmatmul.bf16.gmra.mxu0 %v1555
        %v2900 = vpop.f32.mrf.mxu0
        %v2901 = vadd.f32 %v2802, %v2900
        %v2902 = vpop.f32.mrf.mxu0
        %v2903 = vadd.f32 %v2804, %v2902
        %2904 = vmatmul.bf16.gmra.mxu0 %v1557
        %v2905 = vpop.f32.mrf.mxu0
        %v2906 = vadd.f32 %v2807, %v2905
        %v2907 = vpop.f32.mrf.mxu0
        %v2908 = vadd.f32 %v2809, %v2907
        %2909 = vmatmul.bf16.gmra.mxu0 %v1559
        %v2910 = vpop.f32.mrf.mxu0
        %v2911 = vadd.f32 %v2812, %v2910
        %v2912 = vpop.f32.mrf.mxu0
        %v2913 = vadd.f32 %v2814, %v2912
        %2914 = vmatmul.bf16.gmra.mxu0 %v1561
        %v2915 = vpop.f32.mrf.mxu0
        %v2916 = vadd.f32 %v2817, %v2915
        %v2917 = vpop.f32.mrf.mxu0
        %v2918 = vadd.f32 %v2819, %v2917
        %2919 = vmatmul.bf16.gmra.mxu0 %v1563
        %v2920 = vpop.f32.mrf.mxu0
        %v2921 = vadd.f32 %v2822, %v2920
        %v2922 = vpop.f32.mrf.mxu0
        %v2923 = vadd.f32 %v2824, %v2922
        %2924 = vmatmul.bf16.gmra.mxu0 %v1565
        %v2925 = vpop.f32.mrf.mxu0
        %v2926 = vadd.f32 %v2827, %v2925
        %v2927 = vpop.f32.mrf.mxu0
        %v2928 = vadd.f32 %v2829, %v2927
        %2929 = vdwg.mxu0
        %2930 = vmatpush.bf16.msra.mxu0 %v2247
        %2931 = vmatpush.bf16.msra.mxu0 %v2246
        %2932 = vmatpush.bf16.msra.mxu0 %v2245
        %2933 = vmatpush.bf16.msra.mxu0 %v2244
        %2934 = vmatpush.bf16.msra.mxu0 %v2243
        %2935 = vmatpush.bf16.msra.mxu0 %v2242
        %2936 = vmatpush.bf16.msra.mxu0 %v2241
        %2937 = vmatpush.bf16.msra.mxu0 %v2240
        %2938 = vmatmul.bf16.gmra.mxu0 %v1533
        %v2939 = vpop.f32.mrf.mxu0
        %v2940 = vadd.f32 %v2841, %v2939
        %v2941 = vpop.f32.mrf.mxu0
        %v2942 = vadd.f32 %v2843, %v2941
        %2943 = vmatmul.bf16.gmra.mxu0 %v1535
        %v2944 = vpop.f32.mrf.mxu0
        %v2945 = vadd.f32 %v2846, %v2944
        %v2946 = vpop.f32.mrf.mxu0
        %v2947 = vadd.f32 %v2848, %v2946
        %2948 = vmatmul.bf16.gmra.mxu0 %v1537
        %v2949 = vpop.f32.mrf.mxu0
        %v2950 = vadd.f32 %v2851, %v2949
        %v2951 = vpop.f32.mrf.mxu0
        %v2952 = vadd.f32 %v2853, %v2951
        %2953 = vmatmul.bf16.gmra.mxu0 %v1539
        %v2954 = vpop.f32.mrf.mxu0
        %v2955 = vadd.f32 %v2856, %v2954
        %v2956 = vpop.f32.mrf.mxu0
        %v2957 = vadd.f32 %v2858, %v2956
        %2958 = vmatmul.bf16.gmra.mxu0 %v1541
        %v2959 = vpop.f32.mrf.mxu0
        %v2960 = vadd.f32 %v2861, %v2959
        %v2961 = vpop.f32.mrf.mxu0
        %v2962 = vadd.f32 %v2863, %v2961
        %2963 = vmatmul.bf16.gmra.mxu0 %v1543
        %v2964 = vpop.f32.mrf.mxu0
        %v2965 = vadd.f32 %v2866, %v2964
        %v2966 = vpop.f32.mrf.mxu0
        %v2967 = vadd.f32 %v2868, %v2966
        %2968 = vmatmul.bf16.gmra.mxu0 %v1545
        %v2969 = vpop.f32.mrf.mxu0
        %v2970 = vadd.f32 %v2871, %v2969
        %v2971 = vpop.f32.mrf.mxu0
        %v2972 = vadd.f32 %v2873, %v2971
        %2973 = vmatmul.bf16.gmra.mxu0 %v1547
        %v2974 = vpop.f32.mrf.mxu0
        %v2975 = vadd.f32 %v2876, %v2974
        %v2976 = vpop.f32.mrf.mxu0
        %v2977 = vadd.f32 %v2878, %v2976
        %2978 = vmatmul.bf16.gmra.mxu0 %v1549
        %v2979 = vpop.f32.mrf.mxu0
        %v2980 = vadd.f32 %v2881, %v2979
        %v2981 = vpop.f32.mrf.mxu0
        %v2982 = vadd.f32 %v2883, %v2981
        %2983 = vmatmul.bf16.gmra.mxu0 %v1551
        %v2984 = vpop.f32.mrf.mxu0
        %v2985 = vadd.f32 %v2886, %v2984
        %v2986 = vpop.f32.mrf.mxu0
        %v2987 = vadd.f32 %v2888, %v2986
        %2988 = vmatmul.bf16.gmra.mxu0 %v1553
        %v2989 = vpop.f32.mrf.mxu0
        %v2990 = vadd.f32 %v2891, %v2989
        %v2991 = vpop.f32.mrf.mxu0
        %v2992 = vadd.f32 %v2893, %v2991
        %2993 = vmatmul.bf16.gmra.mxu0 %v1555
        %v2994 = vpop.f32.mrf.mxu0
        %v2995 = vadd.f32 %v2896, %v2994
        %v2996 = vpop.f32.mrf.mxu0
        %v2997 = vadd.f32 %v2898, %v2996
        %2998 = vmatmul.bf16.gmra.mxu0 %v1557
        %v2999 = vpop.f32.mrf.mxu0
        %v3000 = vadd.f32 %v2901, %v2999
        %v3001 = vpop.f32.mrf.mxu0
        %v3002 = vadd.f32 %v2903, %v3001
        %3003 = vmatmul.bf16.gmra.mxu0 %v1559
        %v3004 = vpop.f32.mrf.mxu0
        %v3005 = vadd.f32 %v2906, %v3004
        %v3006 = vpop.f32.mrf.mxu0
        %v3007 = vadd.f32 %v2908, %v3006
        %3008 = vmatmul.bf16.gmra.mxu0 %v1561
        %v3009 = vpop.f32.mrf.mxu0
        %v3010 = vadd.f32 %v2911, %v3009
        %v3011 = vpop.f32.mrf.mxu0
        %v3012 = vadd.f32 %v2913, %v3011
        %3013 = vmatmul.bf16.gmra.mxu0 %v1563
        %v3014 = vpop.f32.mrf.mxu0
        %v3015 = vadd.f32 %v2916, %v3014
        %v3016 = vpop.f32.mrf.mxu0
        %v3017 = vadd.f32 %v2918, %v3016
        %3018 = vmatmul.bf16.gmra.mxu0 %v1591
        %v3019 = vpop.f32.mrf.mxu0
        %v3020 = vadd.f32 %v2921, %v3019
        %v3021 = vpop.f32.mrf.mxu0
        %v3022 = vadd.f32 %v2923, %v3021
        %3023 = vmatmul.bf16.gmra.mxu0 %v1593
        %v3024 = vpop.f32.mrf.mxu0
        %v3025 = vadd.f32 %v2926, %v3024
        %v3026 = vpop.f32.mrf.mxu0
        %v3027 = vadd.f32 %v2928, %v3026
        %3028 = vdwg.mxu0
        %3029 = vmatpush.bf16.msra.mxu0 %v2255
        %3030 = vmatpush.bf16.msra.mxu0 %v2254
        %3031 = vmatpush.bf16.msra.mxu0 %v2253
        %3032 = vmatpush.bf16.msra.mxu0 %v2252
        %3033 = vmatpush.bf16.msra.mxu0 %v2251
        %3034 = vmatpush.bf16.msra.mxu0 %v2250
        %3035 = vmatpush.bf16.msra.mxu0 %v2249
        %3036 = vmatpush.bf16.msra.mxu0 %v2248
        %3037 = vmatmul.bf16.gmra.mxu0 %v1603
        %v3038 = vpop.f32.mrf.mxu0
        %v3039 = vadd.f32 %v2940, %v3038
        %v3040 = vpop.f32.mrf.mxu0
        %v3041 = vadd.f32 %v2942, %v3040
        %3042 = vmatmul.bf16.gmra.mxu0 %v1607
        %v3043 = vpop.f32.mrf.mxu0
        %v3044 = vadd.f32 %v2945, %v3043
        %v3045 = vpop.f32.mrf.mxu0
        %v3046 = vadd.f32 %v2947, %v3045
        %3047 = vmatmul.bf16.gmra.mxu0 %v1611
        %v3048 = vpop.f32.mrf.mxu0
        %v3049 = vadd.f32 %v2950, %v3048
        %v3050 = vpop.f32.mrf.mxu0
        %v3051 = vadd.f32 %v2952, %v3050
        %3052 = vmatmul.bf16.gmra.mxu0 %v1615
        %v3053 = vpop.f32.mrf.mxu0
        %v3054 = vadd.f32 %v2955, %v3053
        %v3055 = vpop.f32.mrf.mxu0
        %v3056 = vadd.f32 %v2957, %v3055
        %3057 = vmatmul.bf16.gmra.mxu0 %v1619
        %v3058 = vpop.f32.mrf.mxu0
        %v3059 = vadd.f32 %v2960, %v3058
        %v3060 = vpop.f32.mrf.mxu0
        %v3061 = vadd.f32 %v2962, %v3060
        %3062 = vmatmul.bf16.gmra.mxu0 %v1623
        %v3063 = vpop.f32.mrf.mxu0
        %v3064 = vadd.f32 %v2965, %v3063
        %v3065 = vpop.f32.mrf.mxu0
        %v3066 = vadd.f32 %v2967, %v3065
        %3067 = vmatmul.bf16.gmra.mxu0 %v1627
        %v3068 = vpop.f32.mrf.mxu0
        %v3069 = vadd.f32 %v2970, %v3068
        %v3070 = vpop.f32.mrf.mxu0
        %v3071 = vadd.f32 %v2972, %v3070
        %3072 = vmatmul.bf16.gmra.mxu0 %v1631
        %v3073 = vpop.f32.mrf.mxu0
        %v3074 = vadd.f32 %v2975, %v3073
        %v3075 = vpop.f32.mrf.mxu0
        %v3076 = vadd.f32 %v2977, %v3075
        %3077 = vmatmul.bf16.gmra.mxu0 %v1635
        %v3078 = vpop.f32.mrf.mxu0
        %v3079 = vadd.f32 %v2980, %v3078
        %v3080 = vpop.f32.mrf.mxu0
        %v3081 = vadd.f32 %v2982, %v3080
        %3082 = vmatmul.bf16.gmra.mxu0 %v1639
        %v3083 = vpop.f32.mrf.mxu0
        %v3084 = vadd.f32 %v2985, %v3083
        %v3085 = vpop.f32.mrf.mxu0
        %v3086 = vadd.f32 %v2987, %v3085
        %3087 = vmatmul.bf16.gmra.mxu0 %v1643
        %v3088 = vpop.f32.mrf.mxu0
        %v3089 = vadd.f32 %v2990, %v3088
        %v3090 = vpop.f32.mrf.mxu0
        %v3091 = vadd.f32 %v2992, %v3090
        %3092 = vmatmul.bf16.gmra.mxu0 %v1647
        %v3093 = vpop.f32.mrf.mxu0
        %v3094 = vadd.f32 %v2995, %v3093
        %v3095 = vpop.f32.mrf.mxu0
        %v3096 = vadd.f32 %v2997, %v3095
        %3097 = vmatmul.bf16.gmra.mxu0 %v1651
        %v3098 = vpop.f32.mrf.mxu0
        %v3099 = vadd.f32 %v3000, %v3098
        %v3100 = vpop.f32.mrf.mxu0
        %v3101 = vadd.f32 %v3002, %v3100
        %3102 = vmatmul.bf16.gmra.mxu0 %v1655
        %v3103 = vpop.f32.mrf.mxu0
        %v3104 = vadd.f32 %v3005, %v3103
        %v3105 = vpop.f32.mrf.mxu0
        %v3106 = vadd.f32 %v3007, %v3105
        %3107 = vmatmul.bf16.gmra.mxu0 %v1659
        %v3108 = vpop.f32.mrf.mxu0
        %v3109 = vadd.f32 %v3010, %v3108
        %v3110 = vpop.f32.mrf.mxu0
        %v3111 = vadd.f32 %v3012, %v3110
        %3112 = vmatmul.bf16.gmra.mxu0 %v1663
        %v3113 = vpop.f32.mrf.mxu0
        %v3114 = vadd.f32 %v3015, %v3113
        %v3115 = vpop.f32.mrf.mxu0
        %v3116 = vadd.f32 %v3017, %v3115
        %3117 = vmatmul.bf16.gmra.mxu0 %v1672
        %v3118 = vpop.f32.mrf.mxu0
        %v3119 = vadd.f32 %v3020, %v3118
        %v3120 = vpop.f32.mrf.mxu0
        %v3121 = vadd.f32 %v3022, %v3120
        %3122 = vmatmul.bf16.gmra.mxu0 %v1681
        %v3123 = vpop.f32.mrf.mxu0
        %v3124 = vadd.f32 %v3025, %v3123
        %v3125 = vpop.f32.mrf.mxu0
        %v3126 = vadd.f32 %v3027, %v3125
        %3127 = vdwg.mxu0
        %3128 = vmatpush.bf16.msra.mxu0 %v2263
        %3129 = vmatpush.bf16.msra.mxu0 %v2262
        %3130 = vmatpush.bf16.msra.mxu0 %v2261
        %3131 = vmatpush.bf16.msra.mxu0 %v2260
        %3132 = vmatpush.bf16.msra.mxu0 %v2259
        %3133 = vmatpush.bf16.msra.mxu0 %v2258
        %3134 = vmatpush.bf16.msra.mxu0 %v2257
        %3135 = vmatpush.bf16.msra.mxu0 %v2256
        %3136 = vmatmul.bf16.gmra.mxu0 %v1703
        %v3137 = vpop.f32.mrf.mxu0
        %v3138 = vadd.f32 %v3039, %v3137
        %v3139 = vpop.f32.mrf.mxu0
        %v3140 = vadd.f32 %v3041, %v3139
        %3141 = vmatmul.bf16.gmra.mxu0 %v1705
        %v3142 = vpop.f32.mrf.mxu0
        %v3143 = vadd.f32 %v3044, %v3142
        %v3144 = vpop.f32.mrf.mxu0
        %v3145 = vadd.f32 %v3046, %v3144
        %3146 = vmatmul.bf16.gmra.mxu0 %v1707
        %v3147 = vpop.f32.mrf.mxu0
        %v3148 = vadd.f32 %v3049, %v3147
        %v3149 = vpop.f32.mrf.mxu0
        %v3150 = vadd.f32 %v3051, %v3149
        %3151 = vmatmul.bf16.gmra.mxu0 %v1709
        %v3152 = vpop.f32.mrf.mxu0
        %v3153 = vadd.f32 %v3054, %v3152
        %v3154 = vpop.f32.mrf.mxu0
        %v3155 = vadd.f32 %v3056, %v3154
        %3156 = vmatmul.bf16.gmra.mxu0 %v1711
        %v3157 = vpop.f32.mrf.mxu0
        %v3158 = vadd.f32 %v3059, %v3157
        %v3159 = vpop.f32.mrf.mxu0
        %v3160 = vadd.f32 %v3061, %v3159
        %3161 = vmatmul.bf16.gmra.mxu0 %v1713
        %v3162 = vpop.f32.mrf.mxu0
        %v3163 = vadd.f32 %v3064, %v3162
        %v3164 = vpop.f32.mrf.mxu0
        %v3165 = vadd.f32 %v3066, %v3164
        %3166 = vmatmul.bf16.gmra.mxu0 %v1715
        %v3167 = vpop.f32.mrf.mxu0
        %v3168 = vadd.f32 %v3069, %v3167
        %v3169 = vpop.f32.mrf.mxu0
        %v3170 = vadd.f32 %v3071, %v3169
        %3171 = vmatmul.bf16.gmra.mxu0 %v1717
        %v3172 = vpop.f32.mrf.mxu0
        %v3173 = vadd.f32 %v3074, %v3172
        %v3174 = vpop.f32.mrf.mxu0
        %v3175 = vadd.f32 %v3076, %v3174
        %3176 = vmatmul.bf16.gmra.mxu0 %v1719
        %v3177 = vpop.f32.mrf.mxu0
        %v3178 = vadd.f32 %v3079, %v3177
        %v3179 = vpop.f32.mrf.mxu0
        %v3180 = vadd.f32 %v3081, %v3179
        %3181 = vmatmul.bf16.gmra.mxu0 %v1721
        %v3182 = vpop.f32.mrf.mxu0
        %v3183 = vadd.f32 %v3084, %v3182
        %v3184 = vpop.f32.mrf.mxu0
        %v3185 = vadd.f32 %v3086, %v3184
        %3186 = vmatmul.bf16.gmra.mxu0 %v1723
        %v3187 = vpop.f32.mrf.mxu0
        %v3188 = vadd.f32 %v3089, %v3187
        %v3189 = vpop.f32.mrf.mxu0
        %v3190 = vadd.f32 %v3091, %v3189
        %3191 = vmatmul.bf16.gmra.mxu0 %v1725
        %v3192 = vpop.f32.mrf.mxu0
        %v3193 = vadd.f32 %v3094, %v3192
        %v3194 = vpop.f32.mrf.mxu0
        %v3195 = vadd.f32 %v3096, %v3194
        %3196 = vmatmul.bf16.gmra.mxu0 %v1727
        %v3197 = vpop.f32.mrf.mxu0
        %v3198 = vadd.f32 %v3099, %v3197
        %v3199 = vpop.f32.mrf.mxu0
        %v3200 = vadd.f32 %v3101, %v3199
        %3201 = vmatmul.bf16.gmra.mxu0 %v1729
        %v3202 = vpop.f32.mrf.mxu0
        %v3203 = vadd.f32 %v3104, %v3202
        %v3204 = vpop.f32.mrf.mxu0
        %v3205 = vadd.f32 %v3106, %v3204
        %3206 = vmatmul.bf16.gmra.mxu0 %v1731
        %v3207 = vpop.f32.mrf.mxu0
        %v3208 = vadd.f32 %v3109, %v3207
        %v3209 = vpop.f32.mrf.mxu0
        %v3210 = vadd.f32 %v3111, %v3209
        %3211 = vmatmul.bf16.gmra.mxu0 %v1733
        %v3212 = vpop.f32.mrf.mxu0
        %v3213 = vadd.f32 %v3114, %v3212
        %v3214 = vpop.f32.mrf.mxu0
        %v3215 = vadd.f32 %v3116, %v3214
        %3216 = vmatmul.bf16.gmra.mxu0 %v1735
        %v3217 = vpop.f32.mrf.mxu0
        %v3218 = vadd.f32 %v3119, %v3217
        %v3219 = vpop.f32.mrf.mxu0
        %v3220 = vadd.f32 %v3121, %v3219
        %3221 = vmatmul.bf16.gmra.mxu0 %v1737
        %v3222 = vpop.f32.mrf.mxu0
        %v3223 = vadd.f32 %v3124, %v3222
        %v3224 = vpop.f32.mrf.mxu0
        %v3225 = vadd.f32 %v3126, %v3224
        %3226 = vdwg.mxu0
        %v3227 = vmax.f32 %v3138, 0.0
        %v3228 = vmax.f32 %v3140, 0.0
        %v3229 = vmax.f32 %v3143, 0.0
        %v3230 = vmax.f32 %v3145, 0.0
        %v3231 = vmax.f32 %v3148, 0.0
        %v3232 = vmax.f32 %v3150, 0.0
        %v3233 = vmax.f32 %v3153, 0.0
        %v3234 = vmax.f32 %v3155, 0.0
        %v3235 = vmax.f32 %v3158, 0.0
        %v3236 = vmax.f32 %v3160, 0.0
        %v3237 = vmax.f32 %v3163, 0.0
        %v3238 = vmax.f32 %v3165, 0.0
        %v3239 = vmax.f32 %v3168, 0.0
        %v3240 = vmax.f32 %v3170, 0.0
        %v3241 = vmax.f32 %v3173, 0.0
        %v3242 = vmax.f32 %v3175, 0.0
        %v3243 = vmax.f32 %v3178, 0.0
        %v3244 = vmax.f32 %v3180, 0.0
        %v3245 = vmax.f32 %v3183, 0.0
        %v3246 = vmax.f32 %v3185, 0.0
        %v3247 = vmax.f32 %v3188, 0.0
        %v3248 = vmax.f32 %v3190, 0.0
        %v3249 = vmax.f32 %v3193, 0.0
        %v3250 = vmax.f32 %v3195, 0.0
        %v3251 = vmax.f32 %v3198, 0.0
        %v3252 = vmax.f32 %v3200, 0.0
        %v3253 = vmax.f32 %v3203, 0.0
        %v3254 = vmax.f32 %v3205, 0.0
        %v3255 = vmax.f32 %v3208, 0.0
        %v3256 = vmax.f32 %v3210, 0.0
        %v3257 = vmax.f32 %v3213, 0.0
        %v3258 = vmax.f32 %v3215, 0.0
        %v3259 = vmax.f32 %v3218, 0.0
        %v3260 = vmax.f32 %v3220, 0.0
        %v3261 = vmax.f32 %v3223, 0.0
        %v3262 = vmax.f32 %v3225, 0.0
        %v3263 = vpack.c.bf16 %v3228, %v3227
        %v3264 = vpack.c.bf16 %v3230, %v3229
        %v3265 = vpack.c.bf16 %v3232, %v3231
        %v3266 = vpack.c.bf16 %v3234, %v3233
        %v3267 = vpack.c.bf16 %v3236, %v3235
        %v3268 = vpack.c.bf16 %v3238, %v3237
        %v3269 = vpack.c.bf16 %v3240, %v3239
        %v3270 = vpack.c.bf16 %v3242, %v3241
        %v3271 = vpack.c.bf16 %v3244, %v3243
        %v3272 = vpack.c.bf16 %v3246, %v3245
        %v3273 = vpack.c.bf16 %v3248, %v3247
        %v3274 = vpack.c.bf16 %v3250, %v3249
        %v3275 = vpack.c.bf16 %v3252, %v3251
        %v3276 = vpack.c.bf16 %v3254, %v3253
        %v3277 = vpack.c.bf16 %v3256, %v3255
        %v3278 = vpack.c.bf16 %v3258, %v3257
        %v3279 = vpack.c.bf16 %v3260, %v3259
        %v3280 = vpack.c.bf16 %v3262, %v3261
        %v3281 = vld [vmem:[%s6] sm:$0xf]
        %v3282 = vld [vmem:[%s6 + $0x4] sm:$0xf]
        %v3283 = vld [vmem:[%s6 + $0x8] sm:$0xf]
        %v3284 = vld [vmem:[%s6 + $0xc] sm:$0xf]
        %v3285 = vld [vmem:[%s6 + $0x10] sm:$0xf]
        %v3286 = vld [vmem:[%s6 + $0x14] sm:$0xf]
        %v3287 = vld [vmem:[%s6 + $0x18] sm:$0xf]
        %v3288 = vld [vmem:[%s6 + $0x1c] sm:$0xf]
        %v3289 = vld [vmem:[%s6 + $0x20] sm:$0xf]
        %v3290 = vld [vmem:[%s6 + $0x24] sm:$0xf]
        %v3291 = vld [vmem:[%s6 + $0x28] sm:$0xf]
        %v3292 = vld [vmem:[%s6 + $0x2c] sm:$0xf]
        %v3293 = vld [vmem:[%s6 + $0x30] sm:$0xf]
        %v3294 = vld [vmem:[%s6 + $0x34] sm:$0xf]
        %v3295 = vld [vmem:[%s6 + $0x38] sm:$0xf]
        %v3296 = vld [vmem:[%s6 + $0x3c] sm:$0xf]
        %v3297 = vld [vmem:[%s7] sm:$0x1]
        %v3299 = vperm.slane %v3297, 0
        %v3317 = vunpack.c.l.b16 %v3281
        %v3318 = vunpack.c.l.b16 %v3282
        %v3319 = vunpack.c.l.b16 %v3283
        %v3320 = vunpack.c.l.b16 %v3284
        %v3321 = vunpack.c.l.b16 %v3285
        %v3322 = vunpack.c.l.b16 %v3286
        %v3323 = vunpack.c.l.b16 %v3287
        %v3324 = vunpack.c.l.b16 %v3288
        %v3325 = vunpack.c.l.b16 %v3289
        %v3326 = vunpack.c.l.b16 %v3290
        %v3327 = vunpack.c.l.b16 %v3291
        %v3328 = vunpack.c.l.b16 %v3292
        %v3329 = vunpack.c.l.b16 %v3293
        %v3330 = vunpack.c.l.b16 %v3294
        %v3331 = vunpack.c.l.b16 %v3295
        %v3332 = vunpack.c.l.b16 %v3296
        %v3333 = vpack.c.b16 %v3318, %v3317
        %v3334 = vpack.c.b16 %v3320, %v3319
        %v3335 = vpack.c.b16 %v3322, %v3321
        %v3336 = vpack.c.b16 %v3324, %v3323
        %v3337 = vpack.c.b16 %v3326, %v3325
        %v3338 = vpack.c.b16 %v3328, %v3327
        %v3339 = vpack.c.b16 %v3330, %v3329
        %v3340 = vpack.c.b16 %v3332, %v3331
        %3349 = vmatpush.bf16.msra.mxu0 %v3340
        %3350 = vmatpush.bf16.msra.mxu0 %v3339
        %3351 = vmatpush.bf16.msra.mxu0 %v3338
        %3352 = vmatpush.bf16.msra.mxu0 %v3337
        %3353 = vmatpush.bf16.msra.mxu0 %v3336
        %3354 = vmatpush.bf16.msra.mxu0 %v3335
        %3355 = vmatpush.bf16.msra.mxu0 %v3334
        %3356 = vmatpush.bf16.msra.mxu0 %v3333
        %3357 = vmatmul.bf16.gmra.mxu0 %v3263
        %v3358 = vpop.f32.mrf.mxu0
        %v3359 = vadd.f32 %v3299, %v3358
        %v3360 = vpop.f32.mrf.mxu0
        %v3361 = vadd.f32 %v3299, %v3360
        %3362 = vmatmul.bf16.gmra.mxu0 %v3264
        %v3363 = vpop.f32.mrf.mxu0
        %v3364 = vadd.f32 %v3299, %v3363
        %v3365 = vpop.f32.mrf.mxu0
        %v3366 = vadd.f32 %v3299, %v3365
        %3367 = vmatmul.bf16.gmra.mxu0 %v3265
        %v3368 = vpop.f32.mrf.mxu0
        %v3369 = vadd.f32 %v3299, %v3368
        %v3370 = vpop.f32.mrf.mxu0
        %v3371 = vadd.f32 %v3299, %v3370
        %3372 = vmatmul.bf16.gmra.mxu0 %v3266
        %v3373 = vpop.f32.mrf.mxu0
        %v3374 = vadd.f32 %v3299, %v3373
        %v3375 = vpop.f32.mrf.mxu0
        %v3376 = vadd.f32 %v3299, %v3375
        %3377 = vmatmul.bf16.gmra.mxu0 %v3267
        %v3378 = vpop.f32.mrf.mxu0
        %v3379 = vadd.f32 %v3299, %v3378
        %v3380 = vpop.f32.mrf.mxu0
        %v3381 = vadd.f32 %v3299, %v3380
        %3382 = vmatmul.bf16.gmra.mxu0 %v3268
        %v3383 = vpop.f32.mrf.mxu0
        %v3384 = vadd.f32 %v3299, %v3383
        %v3385 = vpop.f32.mrf.mxu0
        %v3386 = vadd.f32 %v3299, %v3385
        %3387 = vmatmul.bf16.gmra.mxu0 %v3269
        %v3388 = vpop.f32.mrf.mxu0
        %v3389 = vadd.f32 %v3299, %v3388
        %v3390 = vpop.f32.mrf.mxu0
        %v3391 = vadd.f32 %v3299, %v3390
        %3392 = vmatmul.bf16.gmra.mxu0 %v3270
        %v3393 = vpop.f32.mrf.mxu0
        %v3394 = vadd.f32 %v3299, %v3393
        %v3395 = vpop.f32.mrf.mxu0
        %v3396 = vadd.f32 %v3299, %v3395
        %3397 = vmatmul.bf16.gmra.mxu0 %v3271
        %v3398 = vpop.f32.mrf.mxu0
        %v3399 = vadd.f32 %v3299, %v3398
        %v3400 = vpop.f32.mrf.mxu0
        %v3401 = vadd.f32 %v3299, %v3400
        %3402 = vmatmul.bf16.gmra.mxu0 %v3272
        %v3403 = vpop.f32.mrf.mxu0
        %v3404 = vadd.f32 %v3299, %v3403
        %v3405 = vpop.f32.mrf.mxu0
        %v3406 = vadd.f32 %v3299, %v3405
        %3407 = vmatmul.bf16.gmra.mxu0 %v3273
        %v3408 = vpop.f32.mrf.mxu0
        %v3409 = vadd.f32 %v3299, %v3408
        %v3410 = vpop.f32.mrf.mxu0
        %v3411 = vadd.f32 %v3299, %v3410
        %3412 = vmatmul.bf16.gmra.mxu0 %v3274
        %v3413 = vpop.f32.mrf.mxu0
        %v3414 = vadd.f32 %v3299, %v3413
        %v3415 = vpop.f32.mrf.mxu0
        %v3416 = vadd.f32 %v3299, %v3415
        %3417 = vmatmul.bf16.gmra.mxu0 %v3275
        %v3418 = vpop.f32.mrf.mxu0
        %v3419 = vadd.f32 %v3299, %v3418
        %v3420 = vpop.f32.mrf.mxu0
        %v3421 = vadd.f32 %v3299, %v3420
        %3422 = vmatmul.bf16.gmra.mxu0 %v3276
        %v3423 = vpop.f32.mrf.mxu0
        %v3424 = vadd.f32 %v3299, %v3423
        %v3425 = vpop.f32.mrf.mxu0
        %v3426 = vadd.f32 %v3299, %v3425
        %3427 = vmatmul.bf16.gmra.mxu0 %v3277
        %v3428 = vpop.f32.mrf.mxu0
        %v3429 = vadd.f32 %v3299, %v3428
        %v3430 = vpop.f32.mrf.mxu0
        %v3431 = vadd.f32 %v3299, %v3430
        %3432 = vmatmul.bf16.gmra.mxu0 %v3278
        %v3433 = vpop.f32.mrf.mxu0
        %v3434 = vadd.f32 %v3299, %v3433
        %v3435 = vpop.f32.mrf.mxu0
        %v3436 = vadd.f32 %v3299, %v3435
        %3437 = vmatmul.bf16.gmra.mxu0 %v3279
        %v3438 = vpop.f32.mrf.mxu0
        %v3439 = vadd.f32 %v3299, %v3438
        %v3440 = vpop.f32.mrf.mxu0
        %v3441 = vadd.f32 %v3299, %v3440
        %3442 = vmatmul.bf16.gmra.mxu0 %v3280
        %v3443 = vpop.f32.mrf.mxu0
        %v3444 = vadd.f32 %v3299, %v3443
        %v3445 = vpop.f32.mrf.mxu0
        %v3446 = vadd.f32 %v3299, %v3445
        %3447 = vdwg.mxu0
        %v3448 = vunpack.c.l.bf16 %v354
        %v3449 = vunpack.c.l.bf16 %v355
        %v3450 = vunpack.c.l.bf16 %v356
        %v3451 = vunpack.c.l.bf16 %v357
        %v3452 = vunpack.c.l.bf16 %v358
        %v3453 = vunpack.c.l.bf16 %v359
        %v3454 = vunpack.c.l.bf16 %v360
        %v3455 = vunpack.c.l.bf16 %v361
        %v3456 = vunpack.c.l.bf16 %v362
        %v3457 = vunpack.c.l.bf16 %v363
        %v3458 = vunpack.c.l.bf16 %v364
        %v3459 = vunpack.c.l.bf16 %v365
        %v3460 = vunpack.c.l.bf16 %v366
        %v3461 = vunpack.c.l.bf16 %v367
        %v3462 = vunpack.c.l.bf16 %v368
        %v3463 = vunpack.c.l.bf16 %v369
        %v3464 = vunpack.c.l.bf16 %v370
        %v3465 = vunpack.c.l.bf16 %v371
        %v3466 = vunpack.c.l.bf16 %v372
        %v3467 = vunpack.c.l.bf16 %v373
        %v3468 = vunpack.c.l.bf16 %v374
        %v3469 = vunpack.c.l.bf16 %v375
        %v3470 = vunpack.c.l.bf16 %v376
        %v3471 = vunpack.c.l.bf16 %v377
        %v3472 = vunpack.c.l.bf16 %v378
        %v3473 = vunpack.c.l.bf16 %v379
        %v3474 = vunpack.c.l.bf16 %v380
        %v3475 = vunpack.c.l.bf16 %v381
        %v3476 = vunpack.c.l.bf16 %v382
        %v3477 = vunpack.c.l.bf16 %v383
        %v3478 = vunpack.c.l.bf16 %v384
        %v3479 = vunpack.c.l.bf16 %v385
        %v3480 = vunpack.c.l.bf16 %v386
        %v3481 = vunpack.c.l.bf16 %v387
        %v3482 = vunpack.c.l.bf16 %v388
        %v3483 = vunpack.c.l.bf16 %v389
        %v3484 = vunpack.c.l.bf16 %v390
        %vm3522 = vcmask 1044480
        %v3523 = vrot.slane %v3448, 3
        %v3524 = vrot.slane %v3449, 3
        %v3525 = vsel %vm3522, %v3523, %v3524
        %v3526 = vrot.slane %v3450, 3
        %v3527 = vsel %vm3522, %v3524, %v3526
        %v3528 = vrot.slane %v3451, 3
        %v3529 = vsel %vm3522, %v3526, %v3528
        %v3530 = vrot.slane %v3452, 3
        %v3531 = vsel %vm3522, %v3528, %v3530
        %v3532 = vrot.slane %v3453, 3
        %v3533 = vsel %vm3522, %v3530, %v3532
        %v3534 = vrot.slane %v3454, 3
        %v3535 = vsel %vm3522, %v3532, %v3534
        %v3536 = vrot.slane %v3455, 3
        %v3537 = vsel %vm3522, %v3534, %v3536
        %v3538 = vrot.slane %v3456, 3
        %v3539 = vsel %vm3522, %v3536, %v3538
        %v3540 = vrot.slane %v3457, 3
        %v3541 = vsel %vm3522, %v3538, %v3540
        %v3542 = vrot.slane %v3458, 3
        %v3543 = vsel %vm3522, %v3540, %v3542
        %v3544 = vrot.slane %v3459, 3
        %v3545 = vsel %vm3522, %v3542, %v3544
        %v3546 = vrot.slane %v3460, 3
        %v3547 = vsel %vm3522, %v3544, %v3546
        %v3548 = vrot.slane %v3461, 3
        %v3549 = vsel %vm3522, %v3546, %v3548
        %v3550 = vrot.slane %v3462, 3
        %v3551 = vsel %vm3522, %v3548, %v3550
        %v3552 = vrot.slane %v3463, 3
        %v3553 = vsel %vm3522, %v3550, %v3552
        %v3554 = vrot.slane %v3464, 3
        %v3555 = vsel %vm3522, %v3552, %v3554
        %v3556 = vrot.slane %v3465, 3
        %v3557 = vsel %vm3522, %v3554, %v3556
        %v3558 = vrot.slane %v3466, 3
        %v3559 = vsel %vm3522, %v3556, %v3558
        %v3560 = vrot.slane %v3467, 3
        %v3561 = vsel %vm3522, %v3558, %v3560
        %v3562 = vrot.slane %v3468, 3
        %v3563 = vsel %vm3522, %v3560, %v3562
        %v3564 = vrot.slane %v3469, 3
        %v3565 = vsel %vm3522, %v3562, %v3564
        %v3566 = vrot.slane %v3470, 3
        %v3567 = vsel %vm3522, %v3564, %v3566
        %v3568 = vrot.slane %v3471, 3
        %v3569 = vsel %vm3522, %v3566, %v3568
        %v3570 = vrot.slane %v3472, 3
        %v3571 = vsel %vm3522, %v3568, %v3570
        %v3572 = vrot.slane %v3473, 3
        %v3573 = vsel %vm3522, %v3570, %v3572
        %v3574 = vrot.slane %v3474, 3
        %v3575 = vsel %vm3522, %v3572, %v3574
        %v3576 = vrot.slane %v3475, 3
        %v3577 = vsel %vm3522, %v3574, %v3576
        %v3578 = vrot.slane %v3476, 3
        %v3579 = vsel %vm3522, %v3576, %v3578
        %v3580 = vrot.slane %v3477, 3
        %v3581 = vsel %vm3522, %v3578, %v3580
        %v3582 = vrot.slane %v3478, 3
        %v3583 = vsel %vm3522, %v3580, %v3582
        %v3584 = vrot.slane %v3479, 3
        %v3585 = vsel %vm3522, %v3582, %v3584
        %v3586 = vrot.slane %v3480, 3
        %v3587 = vsel %vm3522, %v3584, %v3586
        %v3588 = vrot.slane %v3481, 3
        %v3589 = vsel %vm3522, %v3586, %v3588
        %v3590 = vrot.slane %v3482, 3
        %v3591 = vsel %vm3522, %v3588, %v3590
        %v3592 = vrot.slane %v3483, 3
        %v3593 = vsel %vm3522, %v3590, %v3592
        %v3594 = vrot.slane %v3484, 3
        %v3595 = vsel %vm3522, %v3592, %v3594
        %v3632 = vadd.f32 %v3359, %v3525
        %v3633 = vadd.f32 %v3361, %v3527
        %v3634 = vadd.f32 %v3364, %v3529
        %v3635 = vadd.f32 %v3366, %v3531
        %v3636 = vadd.f32 %v3369, %v3533
        %v3637 = vadd.f32 %v3371, %v3535
        %v3638 = vadd.f32 %v3374, %v3537
        %v3639 = vadd.f32 %v3376, %v3539
        %v3640 = vadd.f32 %v3379, %v3541
        %v3641 = vadd.f32 %v3381, %v3543
        %v3642 = vadd.f32 %v3384, %v3545
        %v3643 = vadd.f32 %v3386, %v3547
        %v3644 = vadd.f32 %v3389, %v3549
        %v3645 = vadd.f32 %v3391, %v3551
        %v3646 = vadd.f32 %v3394, %v3553
        %v3647 = vadd.f32 %v3396, %v3555
        %v3648 = vadd.f32 %v3399, %v3557
        %v3649 = vadd.f32 %v3401, %v3559
        %v3650 = vadd.f32 %v3404, %v3561
        %v3651 = vadd.f32 %v3406, %v3563
        %v3652 = vadd.f32 %v3409, %v3565
        %v3653 = vadd.f32 %v3411, %v3567
        %v3654 = vadd.f32 %v3414, %v3569
        %v3655 = vadd.f32 %v3416, %v3571
        %v3656 = vadd.f32 %v3419, %v3573
        %v3657 = vadd.f32 %v3421, %v3575
        %v3658 = vadd.f32 %v3424, %v3577
        %v3659 = vadd.f32 %v3426, %v3579
        %v3660 = vadd.f32 %v3429, %v3581
        %v3661 = vadd.f32 %v3431, %v3583
        %v3662 = vadd.f32 %v3434, %v3585
        %v3663 = vadd.f32 %v3436, %v3587
        %v3664 = vadd.f32 %v3439, %v3589
        %v3665 = vadd.f32 %v3441, %v3591
        %v3666 = vadd.f32 %v3444, %v3593
        %v3667 = vadd.f32 %v3446, %v3595
        %v3668 = vmax.f32 %v3632, 0.0
        %v3669 = vmax.f32 %v3633, 0.0
        %v3670 = vmax.f32 %v3634, 0.0
        %v3671 = vmax.f32 %v3635, 0.0
        %v3672 = vmax.f32 %v3636, 0.0
        %v3673 = vmax.f32 %v3637, 0.0
        %v3674 = vmax.f32 %v3638, 0.0
        %v3675 = vmax.f32 %v3639, 0.0
        %v3676 = vmax.f32 %v3640, 0.0
        %v3677 = vmax.f32 %v3641, 0.0
        %v3678 = vmax.f32 %v3642, 0.0
        %v3679 = vmax.f32 %v3643, 0.0
        %v3680 = vmax.f32 %v3644, 0.0
        %v3681 = vmax.f32 %v3645, 0.0
        %v3682 = vmax.f32 %v3646, 0.0
        %v3683 = vmax.f32 %v3647, 0.0
        %v3684 = vmax.f32 %v3648, 0.0
        %v3685 = vmax.f32 %v3649, 0.0
        %v3686 = vmax.f32 %v3650, 0.0
        %v3687 = vmax.f32 %v3651, 0.0
        %v3688 = vmax.f32 %v3652, 0.0
        %v3689 = vmax.f32 %v3653, 0.0
        %v3690 = vmax.f32 %v3654, 0.0
        %v3691 = vmax.f32 %v3655, 0.0
        %v3692 = vmax.f32 %v3656, 0.0
        %v3693 = vmax.f32 %v3657, 0.0
        %v3694 = vmax.f32 %v3658, 0.0
        %v3695 = vmax.f32 %v3659, 0.0
        %v3696 = vmax.f32 %v3660, 0.0
        %v3697 = vmax.f32 %v3661, 0.0
        %v3698 = vmax.f32 %v3662, 0.0
        %v3699 = vmax.f32 %v3663, 0.0
        %v3700 = vmax.f32 %v3664, 0.0
        %v3701 = vmax.f32 %v3665, 0.0
        %v3702 = vmax.f32 %v3666, 0.0
        %v3703 = vmax.f32 %v3667, 0.0
        %3704 = vst [vmem:[%s337] sm:$0xff] %v3668
        %3705 = vst [vmem:[%s337 + $0x8] sm:$0xff] %v3669
        %3706 = vst [vmem:[%s337 + $0x10] sm:$0xff] %v3670
        %3707 = vst [vmem:[%s337 + $0x18] sm:$0xff] %v3671
        %3708 = vst [vmem:[%s337 + $0x20] sm:$0xff] %v3672
        %3709 = vst [vmem:[%s337 + $0x28] sm:$0xff] %v3673
        %3710 = vst [vmem:[%s337 + $0x30] sm:$0xff] %v3674
        %3711 = vst [vmem:[%s337 + $0x38] sm:$0xff] %v3675
        %3712 = vst [vmem:[%s337 + $0x40] sm:$0xff] %v3676
        %3713 = vst [vmem:[%s337 + $0x48] sm:$0xff] %v3677
        %3714 = vst [vmem:[%s337 + $0x50] sm:$0xff] %v3678
        %3715 = vst [vmem:[%s337 + $0x58] sm:$0xff] %v3679
        %3716 = vst [vmem:[%s337 + $0x60] sm:$0xff] %v3680
        %3717 = vst [vmem:[%s337 + $0x68] sm:$0xff] %v3681
        %3718 = vst [vmem:[%s337 + $0x70] sm:$0xff] %v3682
        %3719 = vst [vmem:[%s337 + $0x78] sm:$0xff] %v3683
        %3720 = vst [vmem:[%s337 + $0x80] sm:$0xff] %v3684
        %3721 = vst [vmem:[%s337 + $0x88] sm:$0xff] %v3685
        %3722 = vst [vmem:[%s337 + $0x90] sm:$0xff] %v3686
        %3723 = vst [vmem:[%s337 + $0x98] sm:$0xff] %v3687
        %3724 = vst [vmem:[%s337 + $0xa0] sm:$0xff] %v3688
        %3725 = vst [vmem:[%s337 + $0xa8] sm:$0xff] %v3689
        %3726 = vst [vmem:[%s337 + $0xb0] sm:$0xff] %v3690
        %3727 = vst [vmem:[%s337 + $0xb8] sm:$0xff] %v3691
        %3728 = vst [vmem:[%s337 + $0xc0] sm:$0xff] %v3692
        %3729 = vst [vmem:[%s337 + $0xc8] sm:$0xff] %v3693
        %3730 = vst [vmem:[%s337 + $0xd0] sm:$0xff] %v3694
        %3731 = vst [vmem:[%s337 + $0xd8] sm:$0xff] %v3695
        %3732 = vst [vmem:[%s337 + $0xe0] sm:$0xff] %v3696
        %3733 = vst [vmem:[%s337 + $0xe8] sm:$0xff] %v3697
        %3734 = vst [vmem:[%s337 + $0xf0] sm:$0xff] %v3698
        %3735 = vst [vmem:[%s337 + $0xf8] sm:$0xff] %v3699
        %3736 = vst [vmem:[%s337 + $0x100] sm:$0xff] %v3700
        %3737 = vst [vmem:[%s337 + $0x108] sm:$0xff] %v3701
        %3738 = vst [vmem:[%s337 + $0x110] sm:$0xff] %v3702
        %3739 = vst [vmem:[%s337 + $0x118] sm:$0xff] %v3703
        %s3740 = sand.u32 %s224, 1
        %s3741 = scalar_lea.sflag [#allocation3], %s3740
        %s3742 = sand.u32 %s224, 1
        %s3743 = smul.addr %s3742, 288
        %s3744 = scalar_lea.vmem [#allocation2], %s3743
        // Predicated region
        $region53: #{tpu_custom_call.1} parent=51 // pred_check
          %p3745 = pneg %p234
        $region54: #{tpu_custom_call.1} parent=51 // pred_check_branch
          %3747 = sbr.rel (%p3745) target = $region56
        $region55: #{tpu_custom_call.1} parent=51 // pred_region
          %3749 = vsyncadd %s3741, 0
          %s3750 = smul.addr %s27, 36
          %s3751 = smul.addr %s26, 36
          %s3752 = sadd.s32 %s3750, %s3751
          %s3753 = smul.addr %s3752, 8
          %s3754 = scalar_lea.hbm %s8, %s3753
          %s3755 = sshll.u32 %s3744, 4
          %s3756 = int_to_ptr.vmem [resolvable:$true] %s3755
          %s3757 = sshll.u32 %s3754, 4
          %s3758 = int_to_ptr.hbm [resolvable:$true] %s3757
          %3763 = dma.vmem_to_hbm [thread:$0]  %s3756, 4608, %s3758, %s3741, 128, 128, 8
        $region56: #{tpu_custom_call.1} parent=51 // pred_fallthru
          _
      $region52: #{tpu_custom_call.1} parent=5 // pred_fallthru
        _
      %p3764 = scmp.le.s32.totalorder 2, %s17
      // Predicated region
      $region57: #{tpu_custom_call.1} parent=5 // pred_check
        %p3765 = pneg %p3764
      $region58: #{tpu_custom_call.1} parent=5 // pred_check_branch
        %3767 = sbr.rel (%p3765) target = $region60
      $region59: #{tpu_custom_call.1} parent=5 // pred_region
        %s3768 = ssub.s32 %s17, 2
        // Predicated region
        $region61: #{tpu_custom_call.1} parent=59 // pred_check
          %p3769 = pneg %p240
        $region62: #{tpu_custom_call.1} parent=59 // pred_check_branch
          %3771 = sbr.rel (%p3769) target = $region64
        $region63: #{tpu_custom_call.1} parent=59 // pred_region
          %s3772 = sand.u32 %s225, 1
          %s3773 = scalar_lea.sflag [#allocation3], %s3772
          %s3774 = sand.u32 %s225, 1
          %s3775 = smul.addr %s3774, 288
          %s3776 = scalar_lea.vmem [#allocation2], %s3775
          %3778 = dma.done %s3773, 4608
        $region64: #{tpu_custom_call.1} parent=59 // pred_fallthru
          _
      $region60: #{tpu_custom_call.1} parent=5 // pred_fallthru
        _
    $region6: #{tpu_custom_call.1} parent=1 // loop_footer
      %s21 = sadd.s32 1, %s17
    $region7: #{tpu_custom_call.1} parent=1 // loop_footer_branch
      %16 = sbr.rel target = $region3
    $region8: #{tpu_custom_call.1} parent=1 // loop_exit
      _
    %3779 = vsyncpa [#allocation3], 1
    %s3780 = scalar_lea.sflag [#allocation3], 1
    %3781 = vsyncpa %s3780, 1

</llo_original>
